<compile_context>
chip_gen: v5e
topology: v5e:2x2
jax: 0.10.0
libtpu: 0.0.40
codegen_flags: <defaults>
</compile_context>

<pallas_src>
import math

import jax
import jax.numpy as jnp
from jax.experimental import pallas as pl
from jax.experimental.pallas import tpu as pltpu


# ----------------------------- configuration -------------------------------
LOCATION_SIZE = 2
NUM_CLASSES = 10
LOCATION_STD = 0.2
GLIMPSE_SIZE = 8
NUM_GLIMPSES = 4
NUM_SCALES = 2
FEATURE_SIZE = 32
GLIMPSE_FEATURE_SIZE = 32
HIDDEN_SIZE = 32
INPUT_SIZE = GLIMPSE_SIZE * GLIMPSE_SIZE * NUM_SCALES       # 128
HEAD_SIZE = LOCATION_SIZE + 1 + NUM_CLASSES                 # [mu | value | logits] = 13
STEP_SIZE = LOCATION_SIZE + 2                               # [loc_x, loc_y, logp, value]

_LOG_STD = math.log(LOCATION_STD)
_HALF_LOG_2PI = 0.5 * math.log(2.0 * math.pi)


# ------------------------------ fused kernel --------------------------------
def _fused_ram_kernel(img_ref, loc0_ref, noise_ref,
                      wg_ref, bg_ref, wl_ref, bl_ref,
                      wgg_ref, wlg_ref, bgl_ref,
                      wih_ref, whh_ref, blstm_ref,
                      whead_ref, bhead_ref,
                      act_ref, step_ref,
                      loc_scr, patch_scr):
    f32 = jnp.float32
    B, H, W = img_ref.shape
    G = GLIMPSE_SIZE
    HID = HIDDEN_SIZE
    F = FEATURE_SIZE

    img = img_ref[...]                       # (B, H, W)  — resident all steps
    wg = wg_ref[...]                         # (INPUT_SIZE, F) shared weights
    bg = bg_ref[...]                         # (1, F)
    wl = wl_ref[...]                         # (2, F)
    bl = bl_ref[...]
    wgg = wgg_ref[...]                       # (F, GF)
    wlg = wlg_ref[...]                       # (F, GF)
    bgl = bgl_ref[...]
    wih = wih_ref[...]                       # (GF, 4*HID)
    whh = whh_ref[...]                       # (HID, 4*HID)
    blstm = blstm_ref[...]                   # (1, 4*HID)
    whead = whead_ref[...]                   # (HID, HEAD_SIZE)
    bhead = bhead_ref[...]                   # (1, HEAD_SIZE)

    # initial state: ht = ct = 0, location = initial uniform sample
    loc_scr[...] = loc0_ref[...]             # (B, 1, 2)
    ht = jnp.zeros((B, HID), f32)
    ct = jnp.zeros((B, HID), f32)

    # Retina constants (output-grid normalized coords and source-pixel indices)
    base = (jax.lax.broadcasted_iota(jnp.int32, (1, G, 1), 1).astype(f32)
            * (2.0 / (G - 1)) - 1.0)                                  # (1, G, 1)
    yy = jax.lax.broadcasted_iota(jnp.int32, (1, G, H), 2).astype(f32)
    xx = jax.lax.broadcasted_iota(jnp.int32, (1, G, W), 2).astype(f32)
    scale0 = float(G) / float(H - 1)         # PyTorch: glimpse_size / (data.size(2)-1)

    logits = None
    for t in range(NUM_GLIMPSES):
        loc2 = loc_scr[:, 0, :]              # (B, 2)  current location
        loc_x3 = loc_scr[:, :, 0:1]          # (B, 1, 1)
        loc_y3 = loc_scr[:, :, 1:2]          # (B, 1, 1)

        # ---- Retina: separable bilinear sampling (grid_sample, zeros padding,
        #      align_corners=True) -> one (B, G, G) patch per scale.
        for s in range(NUM_SCALES):
            sc = scale0 * (2.0 ** s)
            py = (sc * base + loc_y3 + 1.0) * (0.5 * (H - 1))     # (B, G, 1)
            px = (sc * base + loc_x3 + 1.0) * (0.5 * (W - 1))     # (B, G, 1)
            ry = jnp.maximum(1.0 - jnp.abs(py - yy), 0.0)         # (B, G, H)
            rx = jnp.maximum(1.0 - jnp.abs(px - xx), 0.0)         # (B, G, W)
            rows = jnp.einsum('bgh,bhw->bgw', ry, img,
                              preferred_element_type=f32)          # (B, G, W)
            patch = jnp.einsum('bgw,bpw->bgp', rows, rx,
                               preferred_element_type=f32)         # (B, G, G)
            patch_scr[:, s * G:(s + 1) * G, :] = patch             # single store

        # ---- GlimpseNetwork: hg = relu(flat_glimpse @ Wg + bg), with the flat
        #      contraction folded into per-row-block 2-D dots (shared weights).
        hg_acc = jnp.zeros((B, F), f32)
        for k in range(NUM_SCALES * G):
            hg_acc = hg_acc + jnp.dot(patch_scr[:, k, :],
                                      wg[k * G:(k + 1) * G, :],
                                      preferred_element_type=f32)
        hg = jnp.maximum(hg_acc + bg, 0.0)                         # (B, F)
        # hl = relu(loc @ Wl + bl)  (K=2 contraction done on the VPU)
        hl = jnp.maximum(loc2[:, 0:1] * wl[0:1, :]
                         + loc2[:, 1:2] * wl[1:2, :] + bl, 0.0)    # (B, F)
        # gt = relu([hg | hl] @ [Wgg; Wlg] + b)  as summed matmuls
        gt = jnp.maximum(jnp.dot(hg, wgg, preferred_element_type=f32)
                         + jnp.dot(hl, wlg, preferred_element_type=f32)
                         + bgl, 0.0)                               # (B, GF)

        # ---- CoreNetwork: LSTM cell (PyTorch gate order i, f, g, o)
        gates = (jnp.dot(gt, wih, preferred_element_type=f32)
                 + jnp.dot(ht, whh, preferred_element_type=f32) + blstm)
        i_g = jax.nn.sigmoid(gates[:, 0 * HID:1 * HID])
        f_g = jax.nn.sigmoid(gates[:, 1 * HID:2 * HID])
        g_g = jnp.tanh(gates[:, 2 * HID:3 * HID])
        o_g = jax.nn.sigmoid(gates[:, 3 * HID:4 * HID])
        ct = f_g * ct + i_g * g_g
        ht = o_g * jnp.tanh(ct)

        # ---- fused heads: [location mu | critic value | actor logits]
        head = jnp.dot(ht, whead, preferred_element_type=f32) + bhead
        mu = jnp.tanh(head[:, 0:LOCATION_SIZE])                    # (B, 2)
        val = head[:, LOCATION_SIZE:LOCATION_SIZE + 1]             # (B, 1)
        logits = head[:, LOCATION_SIZE + 1:]                       # (B, C)

        # LocationNetwork: sample + Normal log-prob (summed over location dims)
        noise_t = noise_ref[t]                                     # (B, 2)
        new_loc = mu + LOCATION_STD * noise_t
        logp = jnp.sum(-0.5 * ((new_loc - mu) / LOCATION_STD) ** 2
                       - _LOG_STD - _HALF_LOG_2PI,
                       axis=1, keepdims=True)                      # (B, 1)

        loc_scr[:, 0, :] = new_loc                                 # carry state
        # coalesced per-step output: [loc_x, loc_y, log_prob, value]
        step_ref[t] = jnp.concatenate([new_loc, logp, val], axis=1)

    # ActorNetwork: log_softmax(Linear(ht)) on the final hidden state
    m = jnp.max(logits, axis=-1, keepdims=True)
    lse = m + jnp.log(jnp.sum(jnp.exp(logits - m), axis=-1, keepdims=True))
    act_ref[...] = logits - lse


# ------------------------------ pallas_call ----------------------------------
def _build_fused_call(batch, height, width):
    del height, width  # shapes flow through the input arrays
    return pl.pallas_call(
        _fused_ram_kernel,
        out_shape=(
            jax.ShapeDtypeStruct((batch, NUM_CLASSES), jnp.float32),
            jax.ShapeDtypeStruct((NUM_GLIMPSES, batch, STEP_SIZE), jnp.float32),
        ),
        scratch_shapes=[
            pltpu.VMEM((batch, 1, LOCATION_SIZE), jnp.float32),                  # loc
            pltpu.VMEM((batch, NUM_SCALES * GLIMPSE_SIZE, GLIMPSE_SIZE),
                       jnp.float32),                                             # patches
        ],
    )


# ------------------------------ parameters ----------------------------------
def init_params(key):
    def dense(k, fan_in, fan_out):
        kw, kb = jax.random.split(k)
        lim = 1.0 / float(fan_in) ** 0.5
        w = jax.random.uniform(kw, (fan_in, fan_out), minval=-lim, maxval=lim,
                               dtype=jnp.float32)
        b = jax.random.uniform(kb, (1, fan_out), minval=-lim, maxval=lim,
                               dtype=jnp.float32)
        return w, b

    keys = jax.random.split(key, 9)
    wg, bg = dense(keys[0], INPUT_SIZE, FEATURE_SIZE)
    wl, bl = dense(keys[1], LOCATION_SIZE, FEATURE_SIZE)
    wgg, _ = dense(keys[2], FEATURE_SIZE, GLIMPSE_FEATURE_SIZE)
    wlg, bgt = dense(keys[3], FEATURE_SIZE, GLIMPSE_FEATURE_SIZE)
    wih, bih = dense(keys[4], GLIMPSE_FEATURE_SIZE, 4 * HIDDEN_SIZE)
    whh, bhh = dense(keys[5], HIDDEN_SIZE, 4 * HIDDEN_SIZE)
    wloc, bloc = dense(keys[6], HIDDEN_SIZE, LOCATION_SIZE)
    wc, bc = dense(keys[7], HIDDEN_SIZE, 1)
    wa, ba = dense(keys[8], HIDDEN_SIZE, NUM_CLASSES)
    return dict(wg=wg, bg=bg, wl=wl, bl=bl, wgg=wgg, wlg=wlg, bgt=bgt,
                wih=wih, bih=bih, whh=whh, bhh=bhh,
                wloc=wloc, bloc=bloc, wc=wc, bc=bc, wa=wa, ba=ba)


def _prepare_params(params):
    """Shared 2-D weights; fuse the LSTM biases and the three head matmuls."""
    blstm = params["bih"] + params["bhh"]
    whead = jnp.concatenate([params["wloc"], params["wc"], params["wa"]], axis=1)
    bhead = jnp.concatenate([params["bloc"], params["bc"], params["ba"]], axis=1)
    return (params["wg"], params["bg"], params["wl"], params["bl"],
            params["wgg"], params["wlg"], params["bgt"],
            params["wih"], params["whh"], blstm,
            whead, bhead)


# ------------------------------- forward ------------------------------------
def ram_forward(data, params, key):
    B, _, H, W = data.shape
    B_pad = ((B + 7) // 8) * 8                       # batch -> sublane multiple
    pad = B_pad - B

    img = jnp.pad(data[:, 0].astype(jnp.float32), ((0, pad), (0, 0), (0, 0)))

    k_loc, k_noise = jax.random.split(key)
    loc0 = jax.random.uniform(k_loc, (B, 1, LOCATION_SIZE), minval=-1.0,
                              maxval=1.0, dtype=jnp.float32)
    loc0 = jnp.pad(loc0, ((0, pad), (0, 0), (0, 0)))
    noise = jax.random.normal(k_noise, (NUM_GLIMPSES, B, LOCATION_SIZE),
                              dtype=jnp.float32)
    noise = jnp.pad(noise, ((0, 0), (0, pad), (0, 0)))

    fused = _build_fused_call(B_pad, H, W)
    act, step = fused(img, loc0, noise, *_prepare_params(params))

    act_log_probs = act[:B]                                                  # (B, C)
    locations = jnp.transpose(step[:, :B, 0:LOCATION_SIZE], (1, 0, 2))       # (B, T, 2)
    location_log_probs = jnp.transpose(step[:, :B, LOCATION_SIZE], (1, 0))   # (B, T)
    critic_values = jnp.transpose(step[:, :B, LOCATION_SIZE + 1], (1, 0))    # (B, T)
    return act_log_probs, locations, location_log_probs, critic_values


# --------------------------------- main --------------------------------------
if __name__ == "__main__":
    key = jax.random.PRNGKey(0)
    kp, kd, kf = jax.random.split(key, 3)
    params = init_params(kp)
    x = jax.random.normal(kd, (2, 1, 16, 16), dtype=jnp.float32)  # NCHW

    fwd = jax.jit(ram_forward)
    outs = jax.block_until_ready(fwd(x, params, kf))

    act_log_probs, locations, location_log_probs, critic_values = outs
    assert act_log_probs.shape == (2, NUM_CLASSES)
    assert locations.shape == (2, NUM_GLIMPSES, LOCATION_SIZE)
    assert location_log_probs.shape == (2, NUM_GLIMPSES)
    assert critic_values.shape == (2, NUM_GLIMPSES)
    assert bool(jnp.all(jnp.isfinite(act_log_probs)))
    assert bool(jnp.all(jnp.isfinite(locations)))
    assert bool(jnp.all(jnp.isfinite(location_log_probs)))
    assert bool(jnp.all(jnp.isfinite(critic_values)))
    # log_softmax rows must normalize to 1 in probability space.
    assert bool(jnp.all(
        jnp.abs(jnp.sum(jnp.exp(act_log_probs), axis=-1) - 1.0) < 1e-2))
    print("KERNEL_OK")
</pallas_src>

<mosaic_0001>
module attributes {stable_mosaic.version = 11 : i64} {
  func.func @_fused_ram_kernel(%arg0: memref<8x16x16xf32, #tpu.memory_space<vmem>>, %arg1: memref<8x1x2xf32, #tpu.memory_space<vmem>>, %arg2: memref<4x8x2xf32, #tpu.memory_space<vmem>>, %arg3: memref<128x32xf32, #tpu.memory_space<vmem>>, %arg4: memref<1x32xf32, #tpu.memory_space<vmem>>, %arg5: memref<2x32xf32, #tpu.memory_space<vmem>>, %arg6: memref<1x32xf32, #tpu.memory_space<vmem>>, %arg7: memref<32x32xf32, #tpu.memory_space<vmem>>, %arg8: memref<32x32xf32, #tpu.memory_space<vmem>>, %arg9: memref<1x32xf32, #tpu.memory_space<vmem>>, %arg10: memref<32x128xf32, #tpu.memory_space<vmem>>, %arg11: memref<32x128xf32, #tpu.memory_space<vmem>>, %arg12: memref<1x128xf32, #tpu.memory_space<vmem>>, %arg13: memref<32x13xf32, #tpu.memory_space<vmem>>, %arg14: memref<1x13xf32, #tpu.memory_space<vmem>>, %arg15: memref<8x10xf32, #tpu.memory_space<vmem>>, %arg16: memref<4x8x4xf32, #tpu.memory_space<vmem>>, %arg17: memref<8x1x2xf32, #tpu.memory_space<vmem>>, %arg18: memref<8x16x8xf32, #tpu.memory_space<vmem>>) attributes {dimension_semantics = [], scalar_prefetch = 0 : i64, scratch_operands = 2 : i64, tpu.core_type = #tpu.core_type<tc>} {
    %c0 = arith.constant 0 : index
    %c0_0 = arith.constant 0 : index
    %c0_1 = arith.constant 0 : index
    %0 = vector.load %arg0[%c0, %c0_0, %c0_1] : memref<8x16x16xf32, #tpu.memory_space<vmem>>, vector<8x16x16xf32>
    %c0_2 = arith.constant 0 : index
    %c0_3 = arith.constant 0 : index
    %1 = vector.load %arg3[%c0_2, %c0_3] : memref<128x32xf32, #tpu.memory_space<vmem>>, vector<128x32xf32>
    %c0_4 = arith.constant 0 : index
    %c0_5 = arith.constant 0 : index
    %2 = vector.load %arg4[%c0_4, %c0_5] : memref<1x32xf32, #tpu.memory_space<vmem>>, vector<1x32xf32>
    %c0_6 = arith.constant 0 : index
    %c0_7 = arith.constant 0 : index
    %3 = vector.load %arg5[%c0_6, %c0_7] : memref<2x32xf32, #tpu.memory_space<vmem>>, vector<2x32xf32>
    %c0_8 = arith.constant 0 : index
    %c0_9 = arith.constant 0 : index
    %4 = vector.load %arg6[%c0_8, %c0_9] : memref<1x32xf32, #tpu.memory_space<vmem>>, vector<1x32xf32>
    %c0_10 = arith.constant 0 : index
    %c0_11 = arith.constant 0 : index
    %5 = vector.load %arg7[%c0_10, %c0_11] : memref<32x32xf32, #tpu.memory_space<vmem>>, vector<32x32xf32>
    %c0_12 = arith.constant 0 : index
    %c0_13 = arith.constant 0 : index
    %6 = vector.load %arg8[%c0_12, %c0_13] : memref<32x32xf32, #tpu.memory_space<vmem>>, vector<32x32xf32>
    %c0_14 = arith.constant 0 : index
    %c0_15 = arith.constant 0 : index
    %7 = vector.load %arg9[%c0_14, %c0_15] : memref<1x32xf32, #tpu.memory_space<vmem>>, vector<1x32xf32>
    %c0_16 = arith.constant 0 : index
    %c0_17 = arith.constant 0 : index
    %8 = vector.load %arg10[%c0_16, %c0_17] : memref<32x128xf32, #tpu.memory_space<vmem>>, vector<32x128xf32>
    %c0_18 = arith.constant 0 : index
    %c0_19 = arith.constant 0 : index
    %9 = vector.load %arg11[%c0_18, %c0_19] : memref<32x128xf32, #tpu.memory_space<vmem>>, vector<32x128xf32>
    %c0_20 = arith.constant 0 : index
    %c0_21 = arith.constant 0 : index
    %10 = vector.load %arg12[%c0_20, %c0_21] : memref<1x128xf32, #tpu.memory_space<vmem>>, vector<1x128xf32>
    %c0_22 = arith.constant 0 : index
    %c0_23 = arith.constant 0 : index
    %11 = vector.load %arg13[%c0_22, %c0_23] : memref<32x13xf32, #tpu.memory_space<vmem>>, vector<32x13xf32>
    %c0_24 = arith.constant 0 : index
    %c0_25 = arith.constant 0 : index
    %12 = vector.load %arg14[%c0_24, %c0_25] : memref<1x13xf32, #tpu.memory_space<vmem>>, vector<1x13xf32>
    %c0_26 = arith.constant 0 : index
    %c0_27 = arith.constant 0 : index
    %c0_28 = arith.constant 0 : index
    %13 = vector.load %arg1[%c0_26, %c0_27, %c0_28] : memref<8x1x2xf32, #tpu.memory_space<vmem>>, vector<8x1x2xf32>
    %c0_29 = arith.constant 0 : index
    %c0_30 = arith.constant 0 : index
    %c0_31 = arith.constant 0 : index
    %14 = vector.load %arg17[%c0_29, %c0_30, %c0_31] : memref<8x1x2xf32, #tpu.memory_space<vmem>>, vector<8x1x2xf32>
    tpu.vector_store %arg17[%c0_29, %c0_30, %c0_31], %13 {strides = array<i32>} : memref<8x1x2xf32, #tpu.memory_space<vmem>>, vector<8x1x2xf32>,
    %cst = arith.constant 0.000000e+00 : f32
    %15 = vector.broadcast %cst : f32 to vector<8x32xf32>
    %cst_32 = arith.constant 0.000000e+00 : f32
    %16 = vector.broadcast %cst_32 : f32 to vector<8x32xf32>
    %17 = tpu.iota {dimensions = array<i32: 1>} : vector<1x8x1xi32>
    %18 = arith.sitofp %17 : vector<1x8x1xi32> to vector<1x8x1xf32>
    %cst_33 = arith.constant 0.285714298 : f32
    %19 = vector.broadcast %cst_33 : f32 to vector<1x8x1xf32>
    %20 = arith.mulf %18, %19 : vector<1x8x1xf32>
    %cst_34 = arith.constant 1.000000e+00 : f32
    %21 = vector.broadcast %cst_34 : f32 to vector<1x8x1xf32>
    %22 = arith.subf %20, %21 : vector<1x8x1xf32>
    %23 = tpu.iota {dimensions = array<i32: 2>} : vector<1x8x16xi32>
    %24 = arith.sitofp %23 : vector<1x8x16xi32> to vector<1x8x16xf32>
    %25 = tpu.iota {dimensions = array<i32: 2>} : vector<1x8x16xi32>
    %26 = arith.sitofp %25 : vector<1x8x16xi32> to vector<1x8x16xf32>
    %c0_35 = arith.constant 0 : index
    %c0_36 = arith.constant 0 : index
    %c0_37 = arith.constant 0 : index
    %27 = vector.load %arg17[%c0_35, %c0_36, %c0_37] : memref<8x1x2xf32, #tpu.memory_space<vmem>>, vector<8x1x2xf32>
    %28 = vector.shape_cast %27 : vector<8x1x2xf32> to vector<8x2xf32>
    %c0_38 = arith.constant 0 : index
    %c0_39 = arith.constant 0 : index
    %c0_40 = arith.constant 0 : index
    %29 = vector.load %arg17[%c0_38, %c0_39, %c0_40] : memref<8x1x2xf32, #tpu.memory_space<vmem>>, vector<8x1x1xf32>
    %c0_41 = arith.constant 0 : index
    %c0_42 = arith.constant 0 : index
    %c1 = arith.constant 1 : index
    %30 = vector.load %arg17[%c0_41, %c0_42, %c1] : memref<8x1x2xf32, #tpu.memory_space<vmem>>, vector<8x1x1xf32>
    %cst_43 = arith.constant 0.533333361 : f32
    %31 = vector.broadcast %cst_43 : f32 to vector<1x8x1xf32>
    %32 = arith.mulf %31, %22 : vector<1x8x1xf32>
    %33 = vector.broadcast %32 : vector<1x8x1xf32> to vector<8x8x1xf32>
    %34 = vector.broadcast %30 : vector<8x1x1xf32> to vector<8x8x1xf32>
    %35 = arith.addf %33, %34 : vector<8x8x1xf32>
    %cst_44 = arith.constant 1.000000e+00 : f32
    %36 = vector.broadcast %cst_44 : f32 to vector<8x8x1xf32>
    %37 = arith.addf %35, %36 : vector<8x8x1xf32>
    %cst_45 = arith.constant 7.500000e+00 : f32
    %38 = vector.broadcast %cst_45 : f32 to vector<8x8x1xf32>
    %39 = arith.mulf %37, %38 : vector<8x8x1xf32>
    %cst_46 = arith.constant 0.533333361 : f32
    %40 = vector.broadcast %cst_46 : f32 to vector<1x8x1xf32>
    %41 = arith.mulf %40, %22 : vector<1x8x1xf32>
    %42 = vector.broadcast %41 : vector<1x8x1xf32> to vector<8x8x1xf32>
    %43 = vector.broadcast %29 : vector<8x1x1xf32> to vector<8x8x1xf32>
    %44 = arith.addf %42, %43 : vector<8x8x1xf32>
    %cst_47 = arith.constant 1.000000e+00 : f32
    %45 = vector.broadcast %cst_47 : f32 to vector<8x8x1xf32>
    %46 = arith.addf %44, %45 : vector<8x8x1xf32>
    %cst_48 = arith.constant 7.500000e+00 : f32
    %47 = vector.broadcast %cst_48 : f32 to vector<8x8x1xf32>
    %48 = arith.mulf %46, %47 : vector<8x8x1xf32>
    %49 = vector.broadcast %39 : vector<8x8x1xf32> to vector<8x8x16xf32>
    %50 = vector.broadcast %24 : vector<1x8x16xf32> to vector<8x8x16xf32>
    %51 = arith.subf %49, %50 : vector<8x8x16xf32>
    %52 = math.absf %51 : vector<8x8x16xf32>
    %cst_49 = arith.constant 1.000000e+00 : f32
    %53 = vector.broadcast %cst_49 : f32 to vector<8x8x16xf32>
    %54 = arith.subf %53, %52 : vector<8x8x16xf32>
    %cst_50 = arith.constant 0.000000e+00 : f32
    %55 = vector.broadcast %cst_50 : f32 to vector<8x8x16xf32>
    %56 = arith.maximumf %54, %55 : vector<8x8x16xf32>
    %57 = vector.broadcast %48 : vector<8x8x1xf32> to vector<8x8x16xf32>
    %58 = vector.broadcast %26 : vector<1x8x16xf32> to vector<8x8x16xf32>
    %59 = arith.subf %57, %58 : vector<8x8x16xf32>
    %60 = math.absf %59 : vector<8x8x16xf32>
    %cst_51 = arith.constant 1.000000e+00 : f32
    %61 = vector.broadcast %cst_51 : f32 to vector<8x8x16xf32>
    %62 = arith.subf %61, %60 : vector<8x8x16xf32>
    %cst_52 = arith.constant 0.000000e+00 : f32
    %63 = vector.broadcast %cst_52 : f32 to vector<8x8x16xf32>
    %64 = arith.maximumf %62, %63 : vector<8x8x16xf32>
    "tpu.trace_start"() <{level = 10 : i32, message = "bgh,bhw->bgw"}> : () -> ()
    %cst_53 = arith.constant dense<0.000000e+00> : vector<8x8x16xf32>
    %65 = tpu.matmul %56, %0, %cst_53 {dimension_numbers = #tpu.dot_dimension_numbers<[2], [1], [1], [2], [0, 0, 0, 1, 1, 2], [0], [0]>} : vector<8x8x16xf32>, vector<8x16x16xf32>, vector<8x8x16xf32> -> vector<8x8x16xf32>
    "tpu.trace_stop"() : () -> ()
    "tpu.trace_start"() <{level = 10 : i32, message = "bgw,bpw->bgp"}> : () -> ()
    %cst_54 = arith.constant dense<0.000000e+00> : vector<8x8x8xf32>
    %66 = tpu.matmul %65, %64, %cst_54 {dimension_numbers = #tpu.dot_dimension_numbers<[2], [2], [1], [1], [0, 0, 0, 1, 1, 1], [0], [0]>} : vector<8x8x16xf32>, vector<8x8x16xf32>, vector<8x8x8xf32> -> vector<8x8x8xf32>
    "tpu.trace_stop"() : () -> ()
    %c0_55 = arith.constant 0 : index
    %c0_56 = arith.constant 0 : index
    %c0_57 = arith.constant 0 : index
    %67 = vector.load %arg18[%c0_55, %c0_56, %c0_57] : memref<8x16x8xf32, #tpu.memory_space<vmem>>, vector<8x8x8xf32>
    tpu.vector_store %arg18[%c0_55, %c0_56, %c0_57], %66 {strides = array<i32>} : memref<8x16x8xf32, #tpu.memory_space<vmem>>, vector<8x8x8xf32>,
    %cst_58 = arith.constant 1.06666672 : f32
    %68 = vector.broadcast %cst_58 : f32 to vector<1x8x1xf32>
    %69 = arith.mulf %68, %22 : vector<1x8x1xf32>
    %70 = vector.broadcast %69 : vector<1x8x1xf32> to vector<8x8x1xf32>
    %71 = vector.broadcast %30 : vector<8x1x1xf32> to vector<8x8x1xf32>
    %72 = arith.addf %70, %71 : vector<8x8x1xf32>
    %cst_59 = arith.constant 1.000000e+00 : f32
    %73 = vector.broadcast %cst_59 : f32 to vector<8x8x1xf32>
    %74 = arith.addf %72, %73 : vector<8x8x1xf32>
    %cst_60 = arith.constant 7.500000e+00 : f32
    %75 = vector.broadcast %cst_60 : f32 to vector<8x8x1xf32>
    %76 = arith.mulf %74, %75 : vector<8x8x1xf32>
    %cst_61 = arith.constant 1.06666672 : f32
    %77 = vector.broadcast %cst_61 : f32 to vector<1x8x1xf32>
    %78 = arith.mulf %77, %22 : vector<1x8x1xf32>
    %79 = vector.broadcast %78 : vector<1x8x1xf32> to vector<8x8x1xf32>
    %80 = vector.broadcast %29 : vector<8x1x1xf32> to vector<8x8x1xf32>
    %81 = arith.addf %79, %80 : vector<8x8x1xf32>
    %cst_62 = arith.constant 1.000000e+00 : f32
    %82 = vector.broadcast %cst_62 : f32 to vector<8x8x1xf32>
    %83 = arith.addf %81, %82 : vector<8x8x1xf32>
    %cst_63 = arith.constant 7.500000e+00 : f32
    %84 = vector.broadcast %cst_63 : f32 to vector<8x8x1xf32>
    %85 = arith.mulf %83, %84 : vector<8x8x1xf32>
    %86 = vector.broadcast %76 : vector<8x8x1xf32> to vector<8x8x16xf32>
    %87 = vector.broadcast %24 : vector<1x8x16xf32> to vector<8x8x16xf32>
    %88 = arith.subf %86, %87 : vector<8x8x16xf32>
    %89 = math.absf %88 : vector<8x8x16xf32>
    %cst_64 = arith.constant 1.000000e+00 : f32
    %90 = vector.broadcast %cst_64 : f32 to vector<8x8x16xf32>
    %91 = arith.subf %90, %89 : vector<8x8x16xf32>
    %cst_65 = arith.constant 0.000000e+00 : f32
    %92 = vector.broadcast %cst_65 : f32 to vector<8x8x16xf32>
    %93 = arith.maximumf %91, %92 : vector<8x8x16xf32>
    %94 = vector.broadcast %85 : vector<8x8x1xf32> to vector<8x8x16xf32>
    %95 = vector.broadcast %26 : vector<1x8x16xf32> to vector<8x8x16xf32>
    %96 = arith.subf %94, %95 : vector<8x8x16xf32>
    %97 = math.absf %96 : vector<8x8x16xf32>
    %cst_66 = arith.constant 1.000000e+00 : f32
    %98 = vector.broadcast %cst_66 : f32 to vector<8x8x16xf32>
    %99 = arith.subf %98, %97 : vector<8x8x16xf32>
    %cst_67 = arith.constant 0.000000e+00 : f32
    %100 = vector.broadcast %cst_67 : f32 to vector<8x8x16xf32>
    %101 = arith.maximumf %99, %100 : vector<8x8x16xf32>
    "tpu.trace_start"() <{level = 10 : i32, message = "bgh,bhw->bgw"}> : () -> ()
    %cst_68 = arith.constant dense<0.000000e+00> : vector<8x8x16xf32>
    %102 = tpu.matmul %93, %0, %cst_68 {dimension_numbers = #tpu.dot_dimension_numbers<[2], [1], [1], [2], [0, 0, 0, 1, 1, 2], [0], [0]>} : vector<8x8x16xf32>, vector<8x16x16xf32>, vector<8x8x16xf32> -> vector<8x8x16xf32>
    "tpu.trace_stop"() : () -> ()
    "tpu.trace_start"() <{level = 10 : i32, message = "bgw,bpw->bgp"}> : () -> ()
    %cst_69 = arith.constant dense<0.000000e+00> : vector<8x8x8xf32>
    %103 = tpu.matmul %102, %101, %cst_69 {dimension_numbers = #tpu.dot_dimension_numbers<[2], [2], [1], [1], [0, 0, 0, 1, 1, 1], [0], [0]>} : vector<8x8x16xf32>, vector<8x8x16xf32>, vector<8x8x8xf32> -> vector<8x8x8xf32>
    "tpu.trace_stop"() : () -> ()
    %c0_70 = arith.constant 0 : index
    %c8 = arith.constant 8 : index
    %c0_71 = arith.constant 0 : index
    %104 = vector.load %arg18[%c0_70, %c8, %c0_71] : memref<8x16x8xf32, #tpu.memory_space<vmem>>, vector<8x8x8xf32>
    tpu.vector_store %arg18[%c0_70, %c8, %c0_71], %103 {strides = array<i32>} : memref<8x16x8xf32, #tpu.memory_space<vmem>>, vector<8x8x8xf32>,
    %cst_72 = arith.constant 0.000000e+00 : f32
    %105 = vector.broadcast %cst_72 : f32 to vector<8x32xf32>
    %c0_73 = arith.constant 0 : index
    %c0_74 = arith.constant 0 : index
    %c0_75 = arith.constant 0 : index
    %106 = vector.load %arg18[%c0_73, %c0_74, %c0_75] : memref<8x16x8xf32, #tpu.memory_space<vmem>>, vector<8x1x8xf32>
    %107 = vector.shape_cast %106 : vector<8x1x8xf32> to vector<8x8xf32>
    %108 = vector.extract_strided_slice %1 {offsets = [0, 0], sizes = [8, 32], strides = [1, 1]} : vector<128x32xf32> to vector<8x32xf32>
    %cst_76 = arith.constant dense<0.000000e+00> : vector<8x32xf32>
    %109 = tpu.matmul %107, %108, %cst_76 {dimension_numbers = #tpu.dot_dimension_numbers<[1], [0], [0], [1], [0, 0, 1, 1], [], []>} : vector<8x8xf32>, vector<8x32xf32>, vector<8x32xf32> -> vector<8x32xf32>
    %110 = arith.addf %105, %109 : vector<8x32xf32>
    %c0_77 = arith.constant 0 : index
    %c1_78 = arith.constant 1 : index
    %c0_79 = arith.constant 0 : index
    %111 = vector.load %arg18[%c0_77, %c1_78, %c0_79] : memref<8x16x8xf32, #tpu.memory_space<vmem>>, vector<8x1x8xf32>
    %112 = vector.shape_cast %111 : vector<8x1x8xf32> to vector<8x8xf32>
    %113 = vector.extract_strided_slice %1 {offsets = [8, 0], sizes = [8, 32], strides = [1, 1]} : vector<128x32xf32> to vector<8x32xf32>
    %cst_80 = arith.constant dense<0.000000e+00> : vector<8x32xf32>
    %114 = tpu.matmul %112, %113, %cst_80 {dimension_numbers = #tpu.dot_dimension_numbers<[1], [0], [0], [1], [0, 0, 1, 1], [], []>} : vector<8x8xf32>, vector<8x32xf32>, vector<8x32xf32> -> vector<8x32xf32>
    %115 = arith.addf %110, %114 : vector<8x32xf32>
    %c0_81 = arith.constant 0 : index
    %c2 = arith.constant 2 : index
    %c0_82 = arith.constant 0 : index
    %116 = vector.load %arg18[%c0_81, %c2, %c0_82] : memref<8x16x8xf32, #tpu.memory_space<vmem>>, vector<8x1x8xf32>
    %117 = vector.shape_cast %116 : vector<8x1x8xf32> to vector<8x8xf32>
    %118 = vector.extract_strided_slice %1 {offsets = [16, 0], sizes = [8, 32], strides = [1, 1]} : vector<128x32xf32> to vector<8x32xf32>
    %cst_83 = arith.constant dense<0.000000e+00> : vector<8x32xf32>
    %119 = tpu.matmul %117, %118, %cst_83 {dimension_numbers = #tpu.dot_dimension_numbers<[1], [0], [0], [1], [0, 0, 1, 1], [], []>} : vector<8x8xf32>, vector<8x32xf32>, vector<8x32xf32> -> vector<8x32xf32>
    %120 = arith.addf %115, %119 : vector<8x32xf32>
    %c0_84 = arith.constant 0 : index
    %c3 = arith.constant 3 : index
    %c0_85 = arith.constant 0 : index
    %121 = vector.load %arg18[%c0_84, %c3, %c0_85] : memref<8x16x8xf32, #tpu.memory_space<vmem>>, vector<8x1x8xf32>
    %122 = vector.shape_cast %121 : vector<8x1x8xf32> to vector<8x8xf32>
    %123 = vector.extract_strided_slice %1 {offsets = [24, 0], sizes = [8, 32], strides = [1, 1]} : vector<128x32xf32> to vector<8x32xf32>
    %cst_86 = arith.constant dense<0.000000e+00> : vector<8x32xf32>
    %124 = tpu.matmul %122, %123, %cst_86 {dimension_numbers = #tpu.dot_dimension_numbers<[1], [0], [0], [1], [0, 0, 1, 1], [], []>} : vector<8x8xf32>, vector<8x32xf32>, vector<8x32xf32> -> vector<8x32xf32>
    %125 = arith.addf %120, %124 : vector<8x32xf32>
    %c0_87 = arith.constant 0 : index
    %c4 = arith.constant 4 : index
    %c0_88 = arith.constant 0 : index
    %126 = vector.load %arg18[%c0_87, %c4, %c0_88] : memref<8x16x8xf32, #tpu.memory_space<vmem>>, vector<8x1x8xf32>
    %127 = vector.shape_cast %126 : vector<8x1x8xf32> to vector<8x8xf32>
    %128 = vector.extract_strided_slice %1 {offsets = [32, 0], sizes = [8, 32], strides = [1, 1]} : vector<128x32xf32> to vector<8x32xf32>
    %cst_89 = arith.constant dense<0.000000e+00> : vector<8x32xf32>
    %129 = tpu.matmul %127, %128, %cst_89 {dimension_numbers = #tpu.dot_dimension_numbers<[1], [0], [0], [1], [0, 0, 1, 1], [], []>} : vector<8x8xf32>, vector<8x32xf32>, vector<8x32xf32> -> vector<8x32xf32>
    %130 = arith.addf %125, %129 : vector<8x32xf32>
    %c0_90 = arith.constant 0 : index
    %c5 = arith.constant 5 : index
    %c0_91 = arith.constant 0 : index
    %131 = vector.load %arg18[%c0_90, %c5, %c0_91] : memref<8x16x8xf32, #tpu.memory_space<vmem>>, vector<8x1x8xf32>
    %132 = vector.shape_cast %131 : vector<8x1x8xf32> to vector<8x8xf32>
    %133 = vector.extract_strided_slice %1 {offsets = [40, 0], sizes = [8, 32], strides = [1, 1]} : vector<128x32xf32> to vector<8x32xf32>
    %cst_92 = arith.constant dense<0.000000e+00> : vector<8x32xf32>
    %134 = tpu.matmul %132, %133, %cst_92 {dimension_numbers = #tpu.dot_dimension_numbers<[1], [0], [0], [1], [0, 0, 1, 1], [], []>} : vector<8x8xf32>, vector<8x32xf32>, vector<8x32xf32> -> vector<8x32xf32>
    %135 = arith.addf %130, %134 : vector<8x32xf32>
    %c0_93 = arith.constant 0 : index
    %c6 = arith.constant 6 : index
    %c0_94 = arith.constant 0 : index
    %136 = vector.load %arg18[%c0_93, %c6, %c0_94] : memref<8x16x8xf32, #tpu.memory_space<vmem>>, vector<8x1x8xf32>
    %137 = vector.shape_cast %136 : vector<8x1x8xf32> to vector<8x8xf32>
    %138 = vector.extract_strided_slice %1 {offsets = [48, 0], sizes = [8, 32], strides = [1, 1]} : vector<128x32xf32> to vector<8x32xf32>
    %cst_95 = arith.constant dense<0.000000e+00> : vector<8x32xf32>
    %139 = tpu.matmul %137, %138, %cst_95 {dimension_numbers = #tpu.dot_dimension_numbers<[1], [0], [0], [1], [0, 0, 1, 1], [], []>} : vector<8x8xf32>, vector<8x32xf32>, vector<8x32xf32> -> vector<8x32xf32>
    %140 = arith.addf %135, %139 : vector<8x32xf32>
    %c0_96 = arith.constant 0 : index
    %c7 = arith.constant 7 : index
    %c0_97 = arith.constant 0 : index
    %141 = vector.load %arg18[%c0_96, %c7, %c0_97] : memref<8x16x8xf32, #tpu.memory_space<vmem>>, vector<8x1x8xf32>
    %142 = vector.shape_cast %141 : vector<8x1x8xf32> to vector<8x8xf32>
    %143 = vector.extract_strided_slice %1 {offsets = [56, 0], sizes = [8, 32], strides = [1, 1]} : vector<128x32xf32> to vector<8x32xf32>
    %cst_98 = arith.constant dense<0.000000e+00> : vector<8x32xf32>
    %144 = tpu.matmul %142, %143, %cst_98 {dimension_numbers = #tpu.dot_dimension_numbers<[1], [0], [0], [1], [0, 0, 1, 1], [], []>} : vector<8x8xf32>, vector<8x32xf32>, vector<8x32xf32> -> vector<8x32xf32>
    %145 = arith.addf %140, %144 : vector<8x32xf32>
    %c0_99 = arith.constant 0 : index
    %c8_100 = arith.constant 8 : index
    %c0_101 = arith.constant 0 : index
    %146 = vector.load %arg18[%c0_99, %c8_100, %c0_101] : memref<8x16x8xf32, #tpu.memory_space<vmem>>, vector<8x1x8xf32>
    %147 = vector.shape_cast %146 : vector<8x1x8xf32> to vector<8x8xf32>
    %148 = vector.extract_strided_slice %1 {offsets = [64, 0], sizes = [8, 32], strides = [1, 1]} : vector<128x32xf32> to vector<8x32xf32>
    %cst_102 = arith.constant dense<0.000000e+00> : vector<8x32xf32>
    %149 = tpu.matmul %147, %148, %cst_102 {dimension_numbers = #tpu.dot_dimension_numbers<[1], [0], [0], [1], [0, 0, 1, 1], [], []>} : vector<8x8xf32>, vector<8x32xf32>, vector<8x32xf32> -> vector<8x32xf32>
    %150 = arith.addf %145, %149 : vector<8x32xf32>
    %c0_103 = arith.constant 0 : index
    %c9 = arith.constant 9 : index
    %c0_104 = arith.constant 0 : index
    %151 = vector.load %arg18[%c0_103, %c9, %c0_104] : memref<8x16x8xf32, #tpu.memory_space<vmem>>, vector<8x1x8xf32>
    %152 = vector.shape_cast %151 : vector<8x1x8xf32> to vector<8x8xf32>
    %153 = vector.extract_strided_slice %1 {offsets = [72, 0], sizes = [8, 32], strides = [1, 1]} : vector<128x32xf32> to vector<8x32xf32>
    %cst_105 = arith.constant dense<0.000000e+00> : vector<8x32xf32>
    %154 = tpu.matmul %152, %153, %cst_105 {dimension_numbers = #tpu.dot_dimension_numbers<[1], [0], [0], [1], [0, 0, 1, 1], [], []>} : vector<8x8xf32>, vector<8x32xf32>, vector<8x32xf32> -> vector<8x32xf32>
    %155 = arith.addf %150, %154 : vector<8x32xf32>
    %c0_106 = arith.constant 0 : index
    %c10 = arith.constant 10 : index
    %c0_107 = arith.constant 0 : index
    %156 = vector.load %arg18[%c0_106, %c10, %c0_107] : memref<8x16x8xf32, #tpu.memory_space<vmem>>, vector<8x1x8xf32>
    %157 = vector.shape_cast %156 : vector<8x1x8xf32> to vector<8x8xf32>
    %158 = vector.extract_strided_slice %1 {offsets = [80, 0], sizes = [8, 32], strides = [1, 1]} : vector<128x32xf32> to vector<8x32xf32>
    %cst_108 = arith.constant dense<0.000000e+00> : vector<8x32xf32>
    %159 = tpu.matmul %157, %158, %cst_108 {dimension_numbers = #tpu.dot_dimension_numbers<[1], [0], [0], [1], [0, 0, 1, 1], [], []>} : vector<8x8xf32>, vector<8x32xf32>, vector<8x32xf32> -> vector<8x32xf32>
    %160 = arith.addf %155, %159 : vector<8x32xf32>
    %c0_109 = arith.constant 0 : index
    %c11 = arith.constant 11 : index
    %c0_110 = arith.constant 0 : index
    %161 = vector.load %arg18[%c0_109, %c11, %c0_110] : memref<8x16x8xf32, #tpu.memory_space<vmem>>, vector<8x1x8xf32>
    %162 = vector.shape_cast %161 : vector<8x1x8xf32> to vector<8x8xf32>
    %163 = vector.extract_strided_slice %1 {offsets = [88, 0], sizes = [8, 32], strides = [1, 1]} : vector<128x32xf32> to vector<8x32xf32>
    %cst_111 = arith.constant dense<0.000000e+00> : vector<8x32xf32>
    %164 = tpu.matmul %162, %163, %cst_111 {dimension_numbers = #tpu.dot_dimension_numbers<[1], [0], [0], [1], [0, 0, 1, 1], [], []>} : vector<8x8xf32>, vector<8x32xf32>, vector<8x32xf32> -> vector<8x32xf32>
    %165 = arith.addf %160, %164 : vector<8x32xf32>
    %c0_112 = arith.constant 0 : index
    %c12 = arith.constant 12 : index
    %c0_113 = arith.constant 0 : index
    %166 = vector.load %arg18[%c0_112, %c12, %c0_113] : memref<8x16x8xf32, #tpu.memory_space<vmem>>, vector<8x1x8xf32>
    %167 = vector.shape_cast %166 : vector<8x1x8xf32> to vector<8x8xf32>
    %168 = vector.extract_strided_slice %1 {offsets = [96, 0], sizes = [8, 32], strides = [1, 1]} : vector<128x32xf32> to vector<8x32xf32>
    %cst_114 = arith.constant dense<0.000000e+00> : vector<8x32xf32>
    %169 = tpu.matmul %167, %168, %cst_114 {dimension_numbers = #tpu.dot_dimension_numbers<[1], [0], [0], [1], [0, 0, 1, 1], [], []>} : vector<8x8xf32>, vector<8x32xf32>, vector<8x32xf32> -> vector<8x32xf32>
    %170 = arith.addf %165, %169 : vector<8x32xf32>
    %c0_115 = arith.constant 0 : index
    %c13 = arith.constant 13 : index
    %c0_116 = arith.constant 0 : index
    %171 = vector.load %arg18[%c0_115, %c13, %c0_116] : memref<8x16x8xf32, #tpu.memory_space<vmem>>, vector<8x1x8xf32>
    %172 = vector.shape_cast %171 : vector<8x1x8xf32> to vector<8x8xf32>
    %173 = vector.extract_strided_slice %1 {offsets = [104, 0], sizes = [8, 32], strides = [1, 1]} : vector<128x32xf32> to vector<8x32xf32>
    %cst_117 = arith.constant dense<0.000000e+00> : vector<8x32xf32>
    %174 = tpu.matmul %172, %173, %cst_117 {dimension_numbers = #tpu.dot_dimension_numbers<[1], [0], [0], [1], [0, 0, 1, 1], [], []>} : vector<8x8xf32>, vector<8x32xf32>, vector<8x32xf32> -> vector<8x32xf32>
    %175 = arith.addf %170, %174 : vector<8x32xf32>
    %c0_118 = arith.constant 0 : index
    %c14 = arith.constant 14 : index
    %c0_119 = arith.constant 0 : index
    %176 = vector.load %arg18[%c0_118, %c14, %c0_119] : memref<8x16x8xf32, #tpu.memory_space<vmem>>, vector<8x1x8xf32>
    %177 = vector.shape_cast %176 : vector<8x1x8xf32> to vector<8x8xf32>
    %178 = vector.extract_strided_slice %1 {offsets = [112, 0], sizes = [8, 32], strides = [1, 1]} : vector<128x32xf32> to vector<8x32xf32>
    %cst_120 = arith.constant dense<0.000000e+00> : vector<8x32xf32>
    %179 = tpu.matmul %177, %178, %cst_120 {dimension_numbers = #tpu.dot_dimension_numbers<[1], [0], [0], [1], [0, 0, 1, 1], [], []>} : vector<8x8xf32>, vector<8x32xf32>, vector<8x32xf32> -> vector<8x32xf32>
    %180 = arith.addf %175, %179 : vector<8x32xf32>
    %c0_121 = arith.constant 0 : index
    %c15 = arith.constant 15 : index
    %c0_122 = arith.constant 0 : index
    %181 = vector.load %arg18[%c0_121, %c15, %c0_122] : memref<8x16x8xf32, #tpu.memory_space<vmem>>, vector<8x1x8xf32>
    %182 = vector.shape_cast %181 : vector<8x1x8xf32> to vector<8x8xf32>
    %183 = vector.extract_strided_slice %1 {offsets = [120, 0], sizes = [8, 32], strides = [1, 1]} : vector<128x32xf32> to vector<8x32xf32>
    %cst_123 = arith.constant dense<0.000000e+00> : vector<8x32xf32>
    %184 = tpu.matmul %182, %183, %cst_123 {dimension_numbers = #tpu.dot_dimension_numbers<[1], [0], [0], [1], [0, 0, 1, 1], [], []>} : vector<8x8xf32>, vector<8x32xf32>, vector<8x32xf32> -> vector<8x32xf32>
    %185 = arith.addf %180, %184 : vector<8x32xf32>
    %186 = vector.broadcast %2 : vector<1x32xf32> to vector<8x32xf32>
    %187 = arith.addf %185, %186 : vector<8x32xf32>
    %cst_124 = arith.constant 0.000000e+00 : f32
    %188 = vector.broadcast %cst_124 : f32 to vector<8x32xf32>
    %189 = arith.maximumf %187, %188 : vector<8x32xf32>
    %190 = vector.extract_strided_slice %28 {offsets = [0, 0], sizes = [8, 1], strides = [1, 1]} : vector<8x2xf32> to vector<8x1xf32>
    %191 = vector.extract_strided_slice %3 {offsets = [0, 0], sizes = [1, 32], strides = [1, 1]} : vector<2x32xf32> to vector<1x32xf32>
    %192 = vector.broadcast %190 : vector<8x1xf32> to vector<8x32xf32>
    %193 = vector.broadcast %191 : vector<1x32xf32> to vector<8x32xf32>
    %194 = arith.mulf %192, %193 : vector<8x32xf32>
    %195 = vector.extract_strided_slice %28 {offsets = [0, 1], sizes = [8, 1], strides = [1, 1]} : vector<8x2xf32> to vector<8x1xf32>
    %196 = vector.extract_strided_slice %3 {offsets = [1, 0], sizes = [1, 32], strides = [1, 1]} : vector<2x32xf32> to vector<1x32xf32>
    %197 = vector.broadcast %195 : vector<8x1xf32> to vector<8x32xf32>
    %198 = vector.broadcast %196 : vector<1x32xf32> to vector<8x32xf32>
    %199 = arith.mulf %197, %198 : vector<8x32xf32>
    %200 = arith.addf %194, %199 : vector<8x32xf32>
    %201 = vector.broadcast %4 : vector<1x32xf32> to vector<8x32xf32>
    %202 = arith.addf %200, %201 : vector<8x32xf32>
    %cst_125 = arith.constant 0.000000e+00 : f32
    %203 = vector.broadcast %cst_125 : f32 to vector<8x32xf32>
    %204 = arith.maximumf %202, %203 : vector<8x32xf32>
    %cst_126 = arith.constant dense<0.000000e+00> : vector<8x32xf32>
    %205 = tpu.matmul %189, %5, %cst_126 {dimension_numbers = #tpu.dot_dimension_numbers<[1], [0], [0], [1], [0, 0, 1, 1], [], []>} : vector<8x32xf32>, vector<32x32xf32>, vector<8x32xf32> -> vector<8x32xf32>
    %cst_127 = arith.constant dense<0.000000e+00> : vector<8x32xf32>
    %206 = tpu.matmul %204, %6, %cst_127 {dimension_numbers = #tpu.dot_dimension_numbers<[1], [0], [0], [1], [0, 0, 1, 1], [], []>} : vector<8x32xf32>, vector<32x32xf32>, vector<8x32xf32> -> vector<8x32xf32>
    %207 = arith.addf %205, %206 : vector<8x32xf32>
    %208 = vector.broadcast %7 : vector<1x32xf32> to vector<8x32xf32>
    %209 = arith.addf %207, %208 : vector<8x32xf32>
    %cst_128 = arith.constant 0.000000e+00 : f32
    %210 = vector.broadcast %cst_128 : f32 to vector<8x32xf32>
    %211 = arith.maximumf %209, %210 : vector<8x32xf32>
    %cst_129 = arith.constant dense<0.000000e+00> : vector<8x128xf32>
    %212 = tpu.matmul %211, %8, %cst_129 {dimension_numbers = #tpu.dot_dimension_numbers<[1], [0], [0], [1], [0, 0, 1, 1], [], []>} : vector<8x32xf32>, vector<32x128xf32>, vector<8x128xf32> -> vector<8x128xf32>
    %cst_130 = arith.constant dense<0.000000e+00> : vector<8x128xf32>
    %213 = tpu.matmul %15, %9, %cst_130 {dimension_numbers = #tpu.dot_dimension_numbers<[1], [0], [0], [1], [0, 0, 1, 1], [], []>} : vector<8x32xf32>, vector<32x128xf32>, vector<8x128xf32> -> vector<8x128xf32>
    %214 = arith.addf %212, %213 : vector<8x128xf32>
    %215 = vector.broadcast %10 : vector<1x128xf32> to vector<8x128xf32>
    %216 = arith.addf %214, %215 : vector<8x128xf32>
    %217 = vector.extract_strided_slice %216 {offsets = [0, 0], sizes = [8, 32], strides = [1, 1]} : vector<8x128xf32> to vector<8x32xf32>
    %218 = arith.negf %217 : vector<8x32xf32>
    %219 = math.exp %218 : vector<8x32xf32>
    %cst_131 = arith.constant 1.000000e+00 : f32
    %220 = vector.broadcast %cst_131 : f32 to vector<8x32xf32>
    %221 = arith.addf %220, %219 : vector<8x32xf32>
    %222 = arith.divf %220, %221 : vector<8x32xf32>
    %223 = vector.extract_strided_slice %216 {offsets = [0, 32], sizes = [8, 32], strides = [1, 1]} : vector<8x128xf32> to vector<8x32xf32>
    %224 = arith.negf %223 : vector<8x32xf32>
    %225 = math.exp %224 : vector<8x32xf32>
    %cst_132 = arith.constant 1.000000e+00 : f32
    %226 = vector.broadcast %cst_132 : f32 to vector<8x32xf32>
    %227 = arith.addf %226, %225 : vector<8x32xf32>
    %228 = arith.divf %226, %227 : vector<8x32xf32>
    %229 = vector.extract_strided_slice %216 {offsets = [0, 64], sizes = [8, 32], strides = [1, 1]} : vector<8x128xf32> to vector<8x32xf32>
    %230 = math.tanh %229 : vector<8x32xf32>
    %231 = vector.extract_strided_slice %216 {offsets = [0, 96], sizes = [8, 32], strides = [1, 1]} : vector<8x128xf32> to vector<8x32xf32>
    %232 = arith.negf %231 : vector<8x32xf32>
    %233 = math.exp %232 : vector<8x32xf32>
    %cst_133 = arith.constant 1.000000e+00 : f32
    %234 = vector.broadcast %cst_133 : f32 to vector<8x32xf32>
    %235 = arith.addf %234, %233 : vector<8x32xf32>
    %236 = arith.divf %234, %235 : vector<8x32xf32>
    %237 = arith.mulf %228, %16 : vector<8x32xf32>
    %238 = arith.mulf %222, %230 : vector<8x32xf32>
    %239 = arith.addf %237, %238 : vector<8x32xf32>
    %240 = math.tanh %239 : vector<8x32xf32>
    %241 = arith.mulf %236, %240 : vector<8x32xf32>
    %cst_134 = arith.constant dense<0.000000e+00> : vector<8x13xf32>
    %242 = tpu.matmul %241, %11, %cst_134 {dimension_numbers = #tpu.dot_dimension_numbers<[1], [0], [0], [1], [0, 0, 1, 1], [], []>} : vector<8x32xf32>, vector<32x13xf32>, vector<8x13xf32> -> vector<8x13xf32>
    %243 = vector.broadcast %12 : vector<1x13xf32> to vector<8x13xf32>
    %244 = arith.addf %242, %243 : vector<8x13xf32>
    %245 = vector.extract_strided_slice %244 {offsets = [0, 0], sizes = [8, 2], strides = [1, 1]} : vector<8x13xf32> to vector<8x2xf32>
    %246 = math.tanh %245 : vector<8x2xf32>
    %247 = vector.extract_strided_slice %244 {offsets = [0, 2], sizes = [8, 1], strides = [1, 1]} : vector<8x13xf32> to vector<8x1xf32>
    %c0_135 = arith.constant 0 : index
    %c0_136 = arith.constant 0 : index
    %c0_137 = arith.constant 0 : index
    %248 = vector.load %arg2[%c0_135, %c0_136, %c0_137] : memref<4x8x2xf32, #tpu.memory_space<vmem>>, vector<1x8x2xf32>
    %249 = vector.shape_cast %248 : vector<1x8x2xf32> to vector<8x2xf32>
    %cst_138 = arith.constant 2.000000e-01 : f32
    %250 = vector.broadcast %cst_138 : f32 to vector<8x2xf32>
    %251 = arith.mulf %250, %249 : vector<8x2xf32>
    %252 = arith.addf %246, %251 : vector<8x2xf32>
    %253 = arith.subf %252, %246 : vector<8x2xf32>
    %cst_139 = arith.constant 2.000000e-01 : f32
    %254 = vector.broadcast %cst_139 : f32 to vector<8x2xf32>
    %255 = arith.divf %253, %254 : vector<8x2xf32>
    %256 = arith.mulf %255, %255 : vector<8x2xf32>
    %cst_140 = arith.constant -5.000000e-01 : f32
    %257 = vector.broadcast %cst_140 : f32 to vector<8x2xf32>
    %258 = arith.mulf %257, %256 : vector<8x2xf32>
    %cst_141 = arith.constant -1.60943794 : f32
    %259 = vector.broadcast %cst_141 : f32 to vector<8x2xf32>
    %260 = arith.subf %258, %259 : vector<8x2xf32>
    %cst_142 = arith.constant 0.918938517 : f32
    %261 = vector.broadcast %cst_142 : f32 to vector<8x2xf32>
    %262 = arith.subf %260, %261 : vector<8x2xf32>
    %cst_143 = arith.constant dense<0.000000e+00> : vector<8xf32>
    %263 = vector.multi_reduction <add>, %262, %cst_143 [1] : vector<8x2xf32> to vector<8xf32>
    %264 = vector.shape_cast %263 : vector<8xf32> to vector<8x1xf32>
    %c0_144 = arith.constant 0 : index
    %c0_145 = arith.constant 0 : index
    %c0_146 = arith.constant 0 : index
    %265 = vector.load %arg17[%c0_144, %c0_145, %c0_146] : memref<8x1x2xf32, #tpu.memory_space<vmem>>, vector<8x1x2xf32>
    %266 = vector.shape_cast %265 : vector<8x1x2xf32> to vector<8x2xf32>
    %267 = vector.shape_cast %252 : vector<8x2xf32> to vector<8x1x2xf32>
    tpu.vector_store %arg17[%c0_144, %c0_145, %c0_146], %267 {strides = array<i32>} : memref<8x1x2xf32, #tpu.memory_space<vmem>>, vector<8x1x2xf32>,
    %268 = tpu.concatenate %252, %264, %247 in 1 : vector<8x2xf32>, vector<8x1xf32>, vector<8x1xf32> -> vector<8x4xf32>
    %c0_147 = arith.constant 0 : index
    %c0_148 = arith.constant 0 : index
    %c0_149 = arith.constant 0 : index
    %269 = vector.load %arg16[%c0_147, %c0_148, %c0_149] : memref<4x8x4xf32, #tpu.memory_space<vmem>>, vector<1x8x4xf32>
    %270 = vector.shape_cast %269 : vector<1x8x4xf32> to vector<8x4xf32>
    %271 = vector.shape_cast %268 : vector<8x4xf32> to vector<1x8x4xf32>
    tpu.vector_store %arg16[%c0_147, %c0_148, %c0_149], %271 {strides = array<i32>} : memref<4x8x4xf32, #tpu.memory_space<vmem>>, vector<1x8x4xf32>,
    %c0_150 = arith.constant 0 : index
    %c0_151 = arith.constant 0 : index
    %c0_152 = arith.constant 0 : index
    %272 = vector.load %arg17[%c0_150, %c0_151, %c0_152] : memref<8x1x2xf32, #tpu.memory_space<vmem>>, vector<8x1x2xf32>
    %273 = vector.shape_cast %272 : vector<8x1x2xf32> to vector<8x2xf32>
    %c0_153 = arith.constant 0 : index
    %c0_154 = arith.constant 0 : index
    %c0_155 = arith.constant 0 : index
    %274 = vector.load %arg17[%c0_153, %c0_154, %c0_155] : memref<8x1x2xf32, #tpu.memory_space<vmem>>, vector<8x1x1xf32>
    %c0_156 = arith.constant 0 : index
    %c0_157 = arith.constant 0 : index
    %c1_158 = arith.constant 1 : index
    %275 = vector.load %arg17[%c0_156, %c0_157, %c1_158] : memref<8x1x2xf32, #tpu.memory_space<vmem>>, vector<8x1x1xf32>
    %cst_159 = arith.constant 0.533333361 : f32
    %276 = vector.broadcast %cst_159 : f32 to vector<1x8x1xf32>
    %277 = arith.mulf %276, %22 : vector<1x8x1xf32>
    %278 = vector.broadcast %277 : vector<1x8x1xf32> to vector<8x8x1xf32>
    %279 = vector.broadcast %275 : vector<8x1x1xf32> to vector<8x8x1xf32>
    %280 = arith.addf %278, %279 : vector<8x8x1xf32>
    %cst_160 = arith.constant 1.000000e+00 : f32
    %281 = vector.broadcast %cst_160 : f32 to vector<8x8x1xf32>
    %282 = arith.addf %280, %281 : vector<8x8x1xf32>
    %cst_161 = arith.constant 7.500000e+00 : f32
    %283 = vector.broadcast %cst_161 : f32 to vector<8x8x1xf32>
    %284 = arith.mulf %282, %283 : vector<8x8x1xf32>
    %cst_162 = arith.constant 0.533333361 : f32
    %285 = vector.broadcast %cst_162 : f32 to vector<1x8x1xf32>
    %286 = arith.mulf %285, %22 : vector<1x8x1xf32>
    %287 = vector.broadcast %286 : vector<1x8x1xf32> to vector<8x8x1xf32>
    %288 = vector.broadcast %274 : vector<8x1x1xf32> to vector<8x8x1xf32>
    %289 = arith.addf %287, %288 : vector<8x8x1xf32>
    %cst_163 = arith.constant 1.000000e+00 : f32
    %290 = vector.broadcast %cst_163 : f32 to vector<8x8x1xf32>
    %291 = arith.addf %289, %290 : vector<8x8x1xf32>
    %cst_164 = arith.constant 7.500000e+00 : f32
    %292 = vector.broadcast %cst_164 : f32 to vector<8x8x1xf32>
    %293 = arith.mulf %291, %292 : vector<8x8x1xf32>
    %294 = vector.broadcast %284 : vector<8x8x1xf32> to vector<8x8x16xf32>
    %295 = vector.broadcast %24 : vector<1x8x16xf32> to vector<8x8x16xf32>
    %296 = arith.subf %294, %295 : vector<8x8x16xf32>
    %297 = math.absf %296 : vector<8x8x16xf32>
    %cst_165 = arith.constant 1.000000e+00 : f32
    %298 = vector.broadcast %cst_165 : f32 to vector<8x8x16xf32>
    %299 = arith.subf %298, %297 : vector<8x8x16xf32>
    %cst_166 = arith.constant 0.000000e+00 : f32
    %300 = vector.broadcast %cst_166 : f32 to vector<8x8x16xf32>
    %301 = arith.maximumf %299, %300 : vector<8x8x16xf32>
    %302 = vector.broadcast %293 : vector<8x8x1xf32> to vector<8x8x16xf32>
    %303 = vector.broadcast %26 : vector<1x8x16xf32> to vector<8x8x16xf32>
    %304 = arith.subf %302, %303 : vector<8x8x16xf32>
    %305 = math.absf %304 : vector<8x8x16xf32>
    %cst_167 = arith.constant 1.000000e+00 : f32
    %306 = vector.broadcast %cst_167 : f32 to vector<8x8x16xf32>
    %307 = arith.subf %306, %305 : vector<8x8x16xf32>
    %cst_168 = arith.constant 0.000000e+00 : f32
    %308 = vector.broadcast %cst_168 : f32 to vector<8x8x16xf32>
    %309 = arith.maximumf %307, %308 : vector<8x8x16xf32>
    "tpu.trace_start"() <{level = 10 : i32, message = "bgh,bhw->bgw"}> : () -> ()
    %cst_169 = arith.constant dense<0.000000e+00> : vector<8x8x16xf32>
    %310 = tpu.matmul %301, %0, %cst_169 {dimension_numbers = #tpu.dot_dimension_numbers<[2], [1], [1], [2], [0, 0, 0, 1, 1, 2], [0], [0]>} : vector<8x8x16xf32>, vector<8x16x16xf32>, vector<8x8x16xf32> -> vector<8x8x16xf32>
    "tpu.trace_stop"() : () -> ()
    "tpu.trace_start"() <{level = 10 : i32, message = "bgw,bpw->bgp"}> : () -> ()
    %cst_170 = arith.constant dense<0.000000e+00> : vector<8x8x8xf32>
    %311 = tpu.matmul %310, %309, %cst_170 {dimension_numbers = #tpu.dot_dimension_numbers<[2], [2], [1], [1], [0, 0, 0, 1, 1, 1], [0], [0]>} : vector<8x8x16xf32>, vector<8x8x16xf32>, vector<8x8x8xf32> -> vector<8x8x8xf32>
    "tpu.trace_stop"() : () -> ()
    %c0_171 = arith.constant 0 : index
    %c0_172 = arith.constant 0 : index
    %c0_173 = arith.constant 0 : index
    %312 = vector.load %arg18[%c0_171, %c0_172, %c0_173] : memref<8x16x8xf32, #tpu.memory_space<vmem>>, vector<8x8x8xf32>
    tpu.vector_store %arg18[%c0_171, %c0_172, %c0_173], %311 {strides = array<i32>} : memref<8x16x8xf32, #tpu.memory_space<vmem>>, vector<8x8x8xf32>,
    %cst_174 = arith.constant 1.06666672 : f32
    %313 = vector.broadcast %cst_174 : f32 to vector<1x8x1xf32>
    %314 = arith.mulf %313, %22 : vector<1x8x1xf32>
    %315 = vector.broadcast %314 : vector<1x8x1xf32> to vector<8x8x1xf32>
    %316 = vector.broadcast %275 : vector<8x1x1xf32> to vector<8x8x1xf32>
    %317 = arith.addf %315, %316 : vector<8x8x1xf32>
    %cst_175 = arith.constant 1.000000e+00 : f32
    %318 = vector.broadcast %cst_175 : f32 to vector<8x8x1xf32>
    %319 = arith.addf %317, %318 : vector<8x8x1xf32>
    %cst_176 = arith.constant 7.500000e+00 : f32
    %320 = vector.broadcast %cst_176 : f32 to vector<8x8x1xf32>
    %321 = arith.mulf %319, %320 : vector<8x8x1xf32>
    %cst_177 = arith.constant 1.06666672 : f32
    %322 = vector.broadcast %cst_177 : f32 to vector<1x8x1xf32>
    %323 = arith.mulf %322, %22 : vector<1x8x1xf32>
    %324 = vector.broadcast %323 : vector<1x8x1xf32> to vector<8x8x1xf32>
    %325 = vector.broadcast %274 : vector<8x1x1xf32> to vector<8x8x1xf32>
    %326 = arith.addf %324, %325 : vector<8x8x1xf32>
    %cst_178 = arith.constant 1.000000e+00 : f32
    %327 = vector.broadcast %cst_178 : f32 to vector<8x8x1xf32>
    %328 = arith.addf %326, %327 : vector<8x8x1xf32>
    %cst_179 = arith.constant 7.500000e+00 : f32
    %329 = vector.broadcast %cst_179 : f32 to vector<8x8x1xf32>
    %330 = arith.mulf %328, %329 : vector<8x8x1xf32>
    %331 = vector.broadcast %321 : vector<8x8x1xf32> to vector<8x8x16xf32>
    %332 = vector.broadcast %24 : vector<1x8x16xf32> to vector<8x8x16xf32>
    %333 = arith.subf %331, %332 : vector<8x8x16xf32>
    %334 = math.absf %333 : vector<8x8x16xf32>
    %cst_180 = arith.constant 1.000000e+00 : f32
    %335 = vector.broadcast %cst_180 : f32 to vector<8x8x16xf32>
    %336 = arith.subf %335, %334 : vector<8x8x16xf32>
    %cst_181 = arith.constant 0.000000e+00 : f32
    %337 = vector.broadcast %cst_181 : f32 to vector<8x8x16xf32>
    %338 = arith.maximumf %336, %337 : vector<8x8x16xf32>
    %339 = vector.broadcast %330 : vector<8x8x1xf32> to vector<8x8x16xf32>
    %340 = vector.broadcast %26 : vector<1x8x16xf32> to vector<8x8x16xf32>
    %341 = arith.subf %339, %340 : vector<8x8x16xf32>
    %342 = math.absf %341 : vector<8x8x16xf32>
    %cst_182 = arith.constant 1.000000e+00 : f32
    %343 = vector.broadcast %cst_182 : f32 to vector<8x8x16xf32>
    %344 = arith.subf %343, %342 : vector<8x8x16xf32>
    %cst_183 = arith.constant 0.000000e+00 : f32
    %345 = vector.broadcast %cst_183 : f32 to vector<8x8x16xf32>
    %346 = arith.maximumf %344, %345 : vector<8x8x16xf32>
    "tpu.trace_start"() <{level = 10 : i32, message = "bgh,bhw->bgw"}> : () -> ()
    %cst_184 = arith.constant dense<0.000000e+00> : vector<8x8x16xf32>
    %347 = tpu.matmul %338, %0, %cst_184 {dimension_numbers = #tpu.dot_dimension_numbers<[2], [1], [1], [2], [0, 0, 0, 1, 1, 2], [0], [0]>} : vector<8x8x16xf32>, vector<8x16x16xf32>, vector<8x8x16xf32> -> vector<8x8x16xf32>
    "tpu.trace_stop"() : () -> ()
    "tpu.trace_start"() <{level = 10 : i32, message = "bgw,bpw->bgp"}> : () -> ()
    %cst_185 = arith.constant dense<0.000000e+00> : vector<8x8x8xf32>
    %348 = tpu.matmul %347, %346, %cst_185 {dimension_numbers = #tpu.dot_dimension_numbers<[2], [2], [1], [1], [0, 0, 0, 1, 1, 1], [0], [0]>} : vector<8x8x16xf32>, vector<8x8x16xf32>, vector<8x8x8xf32> -> vector<8x8x8xf32>
    "tpu.trace_stop"() : () -> ()
    %c0_186 = arith.constant 0 : index
    %c8_187 = arith.constant 8 : index
    %c0_188 = arith.constant 0 : index
    %349 = vector.load %arg18[%c0_186, %c8_187, %c0_188] : memref<8x16x8xf32, #tpu.memory_space<vmem>>, vector<8x8x8xf32>
    tpu.vector_store %arg18[%c0_186, %c8_187, %c0_188], %348 {strides = array<i32>} : memref<8x16x8xf32, #tpu.memory_space<vmem>>, vector<8x8x8xf32>,
    %cst_189 = arith.constant 0.000000e+00 : f32
    %350 = vector.broadcast %cst_189 : f32 to vector<8x32xf32>
    %c0_190 = arith.constant 0 : index
    %c0_191 = arith.constant 0 : index
    %c0_192 = arith.constant 0 : index
    %351 = vector.load %arg18[%c0_190, %c0_191, %c0_192] : memref<8x16x8xf32, #tpu.memory_space<vmem>>, vector<8x1x8xf32>
    %352 = vector.shape_cast %351 : vector<8x1x8xf32> to vector<8x8xf32>
    %353 = vector.extract_strided_slice %1 {offsets = [0, 0], sizes = [8, 32], strides = [1, 1]} : vector<128x32xf32> to vector<8x32xf32>
    %cst_193 = arith.constant dense<0.000000e+00> : vector<8x32xf32>
    %354 = tpu.matmul %352, %353, %cst_193 {dimension_numbers = #tpu.dot_dimension_numbers<[1], [0], [0], [1], [0, 0, 1, 1], [], []>} : vector<8x8xf32>, vector<8x32xf32>, vector<8x32xf32> -> vector<8x32xf32>
    %355 = arith.addf %350, %354 : vector<8x32xf32>
    %c0_194 = arith.constant 0 : index
    %c1_195 = arith.constant 1 : index
    %c0_196 = arith.constant 0 : index
    %356 = vector.load %arg18[%c0_194, %c1_195, %c0_196] : memref<8x16x8xf32, #tpu.memory_space<vmem>>, vector<8x1x8xf32>
    %357 = vector.shape_cast %356 : vector<8x1x8xf32> to vector<8x8xf32>
    %358 = vector.extract_strided_slice %1 {offsets = [8, 0], sizes = [8, 32], strides = [1, 1]} : vector<128x32xf32> to vector<8x32xf32>
    %cst_197 = arith.constant dense<0.000000e+00> : vector<8x32xf32>
    %359 = tpu.matmul %357, %358, %cst_197 {dimension_numbers = #tpu.dot_dimension_numbers<[1], [0], [0], [1], [0, 0, 1, 1], [], []>} : vector<8x8xf32>, vector<8x32xf32>, vector<8x32xf32> -> vector<8x32xf32>
    %360 = arith.addf %355, %359 : vector<8x32xf32>
    %c0_198 = arith.constant 0 : index
    %c2_199 = arith.constant 2 : index
    %c0_200 = arith.constant 0 : index
    %361 = vector.load %arg18[%c0_198, %c2_199, %c0_200] : memref<8x16x8xf32, #tpu.memory_space<vmem>>, vector<8x1x8xf32>
    %362 = vector.shape_cast %361 : vector<8x1x8xf32> to vector<8x8xf32>
    %363 = vector.extract_strided_slice %1 {offsets = [16, 0], sizes = [8, 32], strides = [1, 1]} : vector<128x32xf32> to vector<8x32xf32>
    %cst_201 = arith.constant dense<0.000000e+00> : vector<8x32xf32>
    %364 = tpu.matmul %362, %363, %cst_201 {dimension_numbers = #tpu.dot_dimension_numbers<[1], [0], [0], [1], [0, 0, 1, 1], [], []>} : vector<8x8xf32>, vector<8x32xf32>, vector<8x32xf32> -> vector<8x32xf32>
    %365 = arith.addf %360, %364 : vector<8x32xf32>
    %c0_202 = arith.constant 0 : index
    %c3_203 = arith.constant 3 : index
    %c0_204 = arith.constant 0 : index
    %366 = vector.load %arg18[%c0_202, %c3_203, %c0_204] : memref<8x16x8xf32, #tpu.memory_space<vmem>>, vector<8x1x8xf32>
    %367 = vector.shape_cast %366 : vector<8x1x8xf32> to vector<8x8xf32>
    %368 = vector.extract_strided_slice %1 {offsets = [24, 0], sizes = [8, 32], strides = [1, 1]} : vector<128x32xf32> to vector<8x32xf32>
    %cst_205 = arith.constant dense<0.000000e+00> : vector<8x32xf32>
    %369 = tpu.matmul %367, %368, %cst_205 {dimension_numbers = #tpu.dot_dimension_numbers<[1], [0], [0], [1], [0, 0, 1, 1], [], []>} : vector<8x8xf32>, vector<8x32xf32>, vector<8x32xf32> -> vector<8x32xf32>
    %370 = arith.addf %365, %369 : vector<8x32xf32>
    %c0_206 = arith.constant 0 : index
    %c4_207 = arith.constant 4 : index
    %c0_208 = arith.constant 0 : index
    %371 = vector.load %arg18[%c0_206, %c4_207, %c0_208] : memref<8x16x8xf32, #tpu.memory_space<vmem>>, vector<8x1x8xf32>
    %372 = vector.shape_cast %371 : vector<8x1x8xf32> to vector<8x8xf32>
    %373 = vector.extract_strided_slice %1 {offsets = [32, 0], sizes = [8, 32], strides = [1, 1]} : vector<128x32xf32> to vector<8x32xf32>
    %cst_209 = arith.constant dense<0.000000e+00> : vector<8x32xf32>
    %374 = tpu.matmul %372, %373, %cst_209 {dimension_numbers = #tpu.dot_dimension_numbers<[1], [0], [0], [1], [0, 0, 1, 1], [], []>} : vector<8x8xf32>, vector<8x32xf32>, vector<8x32xf32> -> vector<8x32xf32>
    %375 = arith.addf %370, %374 : vector<8x32xf32>
    %c0_210 = arith.constant 0 : index
    %c5_211 = arith.constant 5 : index
    %c0_212 = arith.constant 0 : index
    %376 = vector.load %arg18[%c0_210, %c5_211, %c0_212] : memref<8x16x8xf32, #tpu.memory_space<vmem>>, vector<8x1x8xf32>
    %377 = vector.shape_cast %376 : vector<8x1x8xf32> to vector<8x8xf32>
    %378 = vector.extract_strided_slice %1 {offsets = [40, 0], sizes = [8, 32], strides = [1, 1]} : vector<128x32xf32> to vector<8x32xf32>
    %cst_213 = arith.constant dense<0.000000e+00> : vector<8x32xf32>
    %379 = tpu.matmul %377, %378, %cst_213 {dimension_numbers = #tpu.dot_dimension_numbers<[1], [0], [0], [1], [0, 0, 1, 1], [], []>} : vector<8x8xf32>, vector<8x32xf32>, vector<8x32xf32> -> vector<8x32xf32>
    %380 = arith.addf %375, %379 : vector<8x32xf32>
    %c0_214 = arith.constant 0 : index
    %c6_215 = arith.constant 6 : index
    %c0_216 = arith.constant 0 : index
    %381 = vector.load %arg18[%c0_214, %c6_215, %c0_216] : memref<8x16x8xf32, #tpu.memory_space<vmem>>, vector<8x1x8xf32>
    %382 = vector.shape_cast %381 : vector<8x1x8xf32> to vector<8x8xf32>
    %383 = vector.extract_strided_slice %1 {offsets = [48, 0], sizes = [8, 32], strides = [1, 1]} : vector<128x32xf32> to vector<8x32xf32>
    %cst_217 = arith.constant dense<0.000000e+00> : vector<8x32xf32>
    %384 = tpu.matmul %382, %383, %cst_217 {dimension_numbers = #tpu.dot_dimension_numbers<[1], [0], [0], [1], [0, 0, 1, 1], [], []>} : vector<8x8xf32>, vector<8x32xf32>, vector<8x32xf32> -> vector<8x32xf32>
    %385 = arith.addf %380, %384 : vector<8x32xf32>
    %c0_218 = arith.constant 0 : index
    %c7_219 = arith.constant 7 : index
    %c0_220 = arith.constant 0 : index
    %386 = vector.load %arg18[%c0_218, %c7_219, %c0_220] : memref<8x16x8xf32, #tpu.memory_space<vmem>>, vector<8x1x8xf32>
    %387 = vector.shape_cast %386 : vector<8x1x8xf32> to vector<8x8xf32>
    %388 = vector.extract_strided_slice %1 {offsets = [56, 0], sizes = [8, 32], strides = [1, 1]} : vector<128x32xf32> to vector<8x32xf32>
    %cst_221 = arith.constant dense<0.000000e+00> : vector<8x32xf32>
    %389 = tpu.matmul %387, %388, %cst_221 {dimension_numbers = #tpu.dot_dimension_numbers<[1], [0], [0], [1], [0, 0, 1, 1], [], []>} : vector<8x8xf32>, vector<8x32xf32>, vector<8x32xf32> -> vector<8x32xf32>
    %390 = arith.addf %385, %389 : vector<8x32xf32>
    %c0_222 = arith.constant 0 : index
    %c8_223 = arith.constant 8 : index
    %c0_224 = arith.constant 0 : index
    %391 = vector.load %arg18[%c0_222, %c8_223, %c0_224] : memref<8x16x8xf32, #tpu.memory_space<vmem>>, vector<8x1x8xf32>
    %392 = vector.shape_cast %391 : vector<8x1x8xf32> to vector<8x8xf32>
    %393 = vector.extract_strided_slice %1 {offsets = [64, 0], sizes = [8, 32], strides = [1, 1]} : vector<128x32xf32> to vector<8x32xf32>
    %cst_225 = arith.constant dense<0.000000e+00> : vector<8x32xf32>
    %394 = tpu.matmul %392, %393, %cst_225 {dimension_numbers = #tpu.dot_dimension_numbers<[1], [0], [0], [1], [0, 0, 1, 1], [], []>} : vector<8x8xf32>, vector<8x32xf32>, vector<8x32xf32> -> vector<8x32xf32>
    %395 = arith.addf %390, %394 : vector<8x32xf32>
    %c0_226 = arith.constant 0 : index
    %c9_227 = arith.constant 9 : index
    %c0_228 = arith.constant 0 : index
    %396 = vector.load %arg18[%c0_226, %c9_227, %c0_228] : memref<8x16x8xf32, #tpu.memory_space<vmem>>, vector<8x1x8xf32>
    %397 = vector.shape_cast %396 : vector<8x1x8xf32> to vector<8x8xf32>
    %398 = vector.extract_strided_slice %1 {offsets = [72, 0], sizes = [8, 32], strides = [1, 1]} : vector<128x32xf32> to vector<8x32xf32>
    %cst_229 = arith.constant dense<0.000000e+00> : vector<8x32xf32>
    %399 = tpu.matmul %397, %398, %cst_229 {dimension_numbers = #tpu.dot_dimension_numbers<[1], [0], [0], [1], [0, 0, 1, 1], [], []>} : vector<8x8xf32>, vector<8x32xf32>, vector<8x32xf32> -> vector<8x32xf32>
    %400 = arith.addf %395, %399 : vector<8x32xf32>
    %c0_230 = arith.constant 0 : index
    %c10_231 = arith.constant 10 : index
    %c0_232 = arith.constant 0 : index
    %401 = vector.load %arg18[%c0_230, %c10_231, %c0_232] : memref<8x16x8xf32, #tpu.memory_space<vmem>>, vector<8x1x8xf32>
    %402 = vector.shape_cast %401 : vector<8x1x8xf32> to vector<8x8xf32>
    %403 = vector.extract_strided_slice %1 {offsets = [80, 0], sizes = [8, 32], strides = [1, 1]} : vector<128x32xf32> to vector<8x32xf32>
    %cst_233 = arith.constant dense<0.000000e+00> : vector<8x32xf32>
    %404 = tpu.matmul %402, %403, %cst_233 {dimension_numbers = #tpu.dot_dimension_numbers<[1], [0], [0], [1], [0, 0, 1, 1], [], []>} : vector<8x8xf32>, vector<8x32xf32>, vector<8x32xf32> -> vector<8x32xf32>
    %405 = arith.addf %400, %404 : vector<8x32xf32>
    %c0_234 = arith.constant 0 : index
    %c11_235 = arith.constant 11 : index
    %c0_236 = arith.constant 0 : index
    %406 = vector.load %arg18[%c0_234, %c11_235, %c0_236] : memref<8x16x8xf32, #tpu.memory_space<vmem>>, vector<8x1x8xf32>
    %407 = vector.shape_cast %406 : vector<8x1x8xf32> to vector<8x8xf32>
    %408 = vector.extract_strided_slice %1 {offsets = [88, 0], sizes = [8, 32], strides = [1, 1]} : vector<128x32xf32> to vector<8x32xf32>
    %cst_237 = arith.constant dense<0.000000e+00> : vector<8x32xf32>
    %409 = tpu.matmul %407, %408, %cst_237 {dimension_numbers = #tpu.dot_dimension_numbers<[1], [0], [0], [1], [0, 0, 1, 1], [], []>} : vector<8x8xf32>, vector<8x32xf32>, vector<8x32xf32> -> vector<8x32xf32>
    %410 = arith.addf %405, %409 : vector<8x32xf32>
    %c0_238 = arith.constant 0 : index
    %c12_239 = arith.constant 12 : index
    %c0_240 = arith.constant 0 : index
    %411 = vector.load %arg18[%c0_238, %c12_239, %c0_240] : memref<8x16x8xf32, #tpu.memory_space<vmem>>, vector<8x1x8xf32>
    %412 = vector.shape_cast %411 : vector<8x1x8xf32> to vector<8x8xf32>
    %413 = vector.extract_strided_slice %1 {offsets = [96, 0], sizes = [8, 32], strides = [1, 1]} : vector<128x32xf32> to vector<8x32xf32>
    %cst_241 = arith.constant dense<0.000000e+00> : vector<8x32xf32>
    %414 = tpu.matmul %412, %413, %cst_241 {dimension_numbers = #tpu.dot_dimension_numbers<[1], [0], [0], [1], [0, 0, 1, 1], [], []>} : vector<8x8xf32>, vector<8x32xf32>, vector<8x32xf32> -> vector<8x32xf32>
    %415 = arith.addf %410, %414 : vector<8x32xf32>
    %c0_242 = arith.constant 0 : index
    %c13_243 = arith.constant 13 : index
    %c0_244 = arith.constant 0 : index
    %416 = vector.load %arg18[%c0_242, %c13_243, %c0_244] : memref<8x16x8xf32, #tpu.memory_space<vmem>>, vector<8x1x8xf32>
    %417 = vector.shape_cast %416 : vector<8x1x8xf32> to vector<8x8xf32>
    %418 = vector.extract_strided_slice %1 {offsets = [104, 0], sizes = [8, 32], strides = [1, 1]} : vector<128x32xf32> to vector<8x32xf32>
    %cst_245 = arith.constant dense<0.000000e+00> : vector<8x32xf32>
    %419 = tpu.matmul %417, %418, %cst_245 {dimension_numbers = #tpu.dot_dimension_numbers<[1], [0], [0], [1], [0, 0, 1, 1], [], []>} : vector<8x8xf32>, vector<8x32xf32>, vector<8x32xf32> -> vector<8x32xf32>
    %420 = arith.addf %415, %419 : vector<8x32xf32>
    %c0_246 = arith.constant 0 : index
    %c14_247 = arith.constant 14 : index
    %c0_248 = arith.constant 0 : index
    %421 = vector.load %arg18[%c0_246, %c14_247, %c0_248] : memref<8x16x8xf32, #tpu.memory_space<vmem>>, vector<8x1x8xf32>
    %422 = vector.shape_cast %421 : vector<8x1x8xf32> to vector<8x8xf32>
    %423 = vector.extract_strided_slice %1 {offsets = [112, 0], sizes = [8, 32], strides = [1, 1]} : vector<128x32xf32> to vector<8x32xf32>
    %cst_249 = arith.constant dense<0.000000e+00> : vector<8x32xf32>
    %424 = tpu.matmul %422, %423, %cst_249 {dimension_numbers = #tpu.dot_dimension_numbers<[1], [0], [0], [1], [0, 0, 1, 1], [], []>} : vector<8x8xf32>, vector<8x32xf32>, vector<8x32xf32> -> vector<8x32xf32>
    %425 = arith.addf %420, %424 : vector<8x32xf32>
    %c0_250 = arith.constant 0 : index
    %c15_251 = arith.constant 15 : index
    %c0_252 = arith.constant 0 : index
    %426 = vector.load %arg18[%c0_250, %c15_251, %c0_252] : memref<8x16x8xf32, #tpu.memory_space<vmem>>, vector<8x1x8xf32>
    %427 = vector.shape_cast %426 : vector<8x1x8xf32> to vector<8x8xf32>
    %428 = vector.extract_strided_slice %1 {offsets = [120, 0], sizes = [8, 32], strides = [1, 1]} : vector<128x32xf32> to vector<8x32xf32>
    %cst_253 = arith.constant dense<0.000000e+00> : vector<8x32xf32>
    %429 = tpu.matmul %427, %428, %cst_253 {dimension_numbers = #tpu.dot_dimension_numbers<[1], [0], [0], [1], [0, 0, 1, 1], [], []>} : vector<8x8xf32>, vector<8x32xf32>, vector<8x32xf32> -> vector<8x32xf32>
    %430 = arith.addf %425, %429 : vector<8x32xf32>
    %431 = vector.broadcast %2 : vector<1x32xf32> to vector<8x32xf32>
    %432 = arith.addf %430, %431 : vector<8x32xf32>
    %cst_254 = arith.constant 0.000000e+00 : f32
    %433 = vector.broadcast %cst_254 : f32 to vector<8x32xf32>
    %434 = arith.maximumf %432, %433 : vector<8x32xf32>
    %435 = vector.extract_strided_slice %273 {offsets = [0, 0], sizes = [8, 1], strides = [1, 1]} : vector<8x2xf32> to vector<8x1xf32>
    %436 = vector.extract_strided_slice %3 {offsets = [0, 0], sizes = [1, 32], strides = [1, 1]} : vector<2x32xf32> to vector<1x32xf32>
    %437 = vector.broadcast %435 : vector<8x1xf32> to vector<8x32xf32>
    %438 = vector.broadcast %436 : vector<1x32xf32> to vector<8x32xf32>
    %439 = arith.mulf %437, %438 : vector<8x32xf32>
    %440 = vector.extract_strided_slice %273 {offsets = [0, 1], sizes = [8, 1], strides = [1, 1]} : vector<8x2xf32> to vector<8x1xf32>
    %441 = vector.extract_strided_slice %3 {offsets = [1, 0], sizes = [1, 32], strides = [1, 1]} : vector<2x32xf32> to vector<1x32xf32>
    %442 = vector.broadcast %440 : vector<8x1xf32> to vector<8x32xf32>
    %443 = vector.broadcast %441 : vector<1x32xf32> to vector<8x32xf32>
    %444 = arith.mulf %442, %443 : vector<8x32xf32>
    %445 = arith.addf %439, %444 : vector<8x32xf32>
    %446 = vector.broadcast %4 : vector<1x32xf32> to vector<8x32xf32>
    %447 = arith.addf %445, %446 : vector<8x32xf32>
    %cst_255 = arith.constant 0.000000e+00 : f32
    %448 = vector.broadcast %cst_255 : f32 to vector<8x32xf32>
    %449 = arith.maximumf %447, %448 : vector<8x32xf32>
    %cst_256 = arith.constant dense<0.000000e+00> : vector<8x32xf32>
    %450 = tpu.matmul %434, %5, %cst_256 {dimension_numbers = #tpu.dot_dimension_numbers<[1], [0], [0], [1], [0, 0, 1, 1], [], []>} : vector<8x32xf32>, vector<32x32xf32>, vector<8x32xf32> -> vector<8x32xf32>
    %cst_257 = arith.constant dense<0.000000e+00> : vector<8x32xf32>
    %451 = tpu.matmul %449, %6, %cst_257 {dimension_numbers = #tpu.dot_dimension_numbers<[1], [0], [0], [1], [0, 0, 1, 1], [], []>} : vector<8x32xf32>, vector<32x32xf32>, vector<8x32xf32> -> vector<8x32xf32>
    %452 = arith.addf %450, %451 : vector<8x32xf32>
    %453 = vector.broadcast %7 : vector<1x32xf32> to vector<8x32xf32>
    %454 = arith.addf %452, %453 : vector<8x32xf32>
    %cst_258 = arith.constant 0.000000e+00 : f32
    %455 = vector.broadcast %cst_258 : f32 to vector<8x32xf32>
    %456 = arith.maximumf %454, %455 : vector<8x32xf32>
    %cst_259 = arith.constant dense<0.000000e+00> : vector<8x128xf32>
    %457 = tpu.matmul %456, %8, %cst_259 {dimension_numbers = #tpu.dot_dimension_numbers<[1], [0], [0], [1], [0, 0, 1, 1], [], []>} : vector<8x32xf32>, vector<32x128xf32>, vector<8x128xf32> -> vector<8x128xf32>
    %cst_260 = arith.constant dense<0.000000e+00> : vector<8x128xf32>
    %458 = tpu.matmul %241, %9, %cst_260 {dimension_numbers = #tpu.dot_dimension_numbers<[1], [0], [0], [1], [0, 0, 1, 1], [], []>} : vector<8x32xf32>, vector<32x128xf32>, vector<8x128xf32> -> vector<8x128xf32>
    %459 = arith.addf %457, %458 : vector<8x128xf32>
    %460 = vector.broadcast %10 : vector<1x128xf32> to vector<8x128xf32>
    %461 = arith.addf %459, %460 : vector<8x128xf32>
    %462 = vector.extract_strided_slice %461 {offsets = [0, 0], sizes = [8, 32], strides = [1, 1]} : vector<8x128xf32> to vector<8x32xf32>
    %463 = arith.negf %462 : vector<8x32xf32>
    %464 = math.exp %463 : vector<8x32xf32>
    %cst_261 = arith.constant 1.000000e+00 : f32
    %465 = vector.broadcast %cst_261 : f32 to vector<8x32xf32>
    %466 = arith.addf %465, %464 : vector<8x32xf32>
    %467 = arith.divf %465, %466 : vector<8x32xf32>
    %468 = vector.extract_strided_slice %461 {offsets = [0, 32], sizes = [8, 32], strides = [1, 1]} : vector<8x128xf32> to vector<8x32xf32>
    %469 = arith.negf %468 : vector<8x32xf32>
    %470 = math.exp %469 : vector<8x32xf32>
    %cst_262 = arith.constant 1.000000e+00 : f32
    %471 = vector.broadcast %cst_262 : f32 to vector<8x32xf32>
    %472 = arith.addf %471, %470 : vector<8x32xf32>
    %473 = arith.divf %471, %472 : vector<8x32xf32>
    %474 = vector.extract_strided_slice %461 {offsets = [0, 64], sizes = [8, 32], strides = [1, 1]} : vector<8x128xf32> to vector<8x32xf32>
    %475 = math.tanh %474 : vector<8x32xf32>
    %476 = vector.extract_strided_slice %461 {offsets = [0, 96], sizes = [8, 32], strides = [1, 1]} : vector<8x128xf32> to vector<8x32xf32>
    %477 = arith.negf %476 : vector<8x32xf32>
    %478 = math.exp %477 : vector<8x32xf32>
    %cst_263 = arith.constant 1.000000e+00 : f32
    %479 = vector.broadcast %cst_263 : f32 to vector<8x32xf32>
    %480 = arith.addf %479, %478 : vector<8x32xf32>
    %481 = arith.divf %479, %480 : vector<8x32xf32>
    %482 = arith.mulf %473, %239 : vector<8x32xf32>
    %483 = arith.mulf %467, %475 : vector<8x32xf32>
    %484 = arith.addf %482, %483 : vector<8x32xf32>
    %485 = math.tanh %484 : vector<8x32xf32>
    %486 = arith.mulf %481, %485 : vector<8x32xf32>
    %cst_264 = arith.constant dense<0.000000e+00> : vector<8x13xf32>
    %487 = tpu.matmul %486, %11, %cst_264 {dimension_numbers = #tpu.dot_dimension_numbers<[1], [0], [0], [1], [0, 0, 1, 1], [], []>} : vector<8x32xf32>, vector<32x13xf32>, vector<8x13xf32> -> vector<8x13xf32>
    %488 = vector.broadcast %12 : vector<1x13xf32> to vector<8x13xf32>
    %489 = arith.addf %487, %488 : vector<8x13xf32>
    %490 = vector.extract_strided_slice %489 {offsets = [0, 0], sizes = [8, 2], strides = [1, 1]} : vector<8x13xf32> to vector<8x2xf32>
    %491 = math.tanh %490 : vector<8x2xf32>
    %492 = vector.extract_strided_slice %489 {offsets = [0, 2], sizes = [8, 1], strides = [1, 1]} : vector<8x13xf32> to vector<8x1xf32>
    %c1_265 = arith.constant 1 : index
    %c0_266 = arith.constant 0 : index
    %c0_267 = arith.constant 0 : index
    %493 = vector.load %arg2[%c1_265, %c0_266, %c0_267] : memref<4x8x2xf32, #tpu.memory_space<vmem>>, vector<1x8x2xf32>
    %494 = vector.shape_cast %493 : vector<1x8x2xf32> to vector<8x2xf32>
    %cst_268 = arith.constant 2.000000e-01 : f32
    %495 = vector.broadcast %cst_268 : f32 to vector<8x2xf32>
    %496 = arith.mulf %495, %494 : vector<8x2xf32>
    %497 = arith.addf %491, %496 : vector<8x2xf32>
    %498 = arith.subf %497, %491 : vector<8x2xf32>
    %cst_269 = arith.constant 2.000000e-01 : f32
    %499 = vector.broadcast %cst_269 : f32 to vector<8x2xf32>
    %500 = arith.divf %498, %499 : vector<8x2xf32>
    %501 = arith.mulf %500, %500 : vector<8x2xf32>
    %cst_270 = arith.constant -5.000000e-01 : f32
    %502 = vector.broadcast %cst_270 : f32 to vector<8x2xf32>
    %503 = arith.mulf %502, %501 : vector<8x2xf32>
    %cst_271 = arith.constant -1.60943794 : f32
    %504 = vector.broadcast %cst_271 : f32 to vector<8x2xf32>
    %505 = arith.subf %503, %504 : vector<8x2xf32>
    %cst_272 = arith.constant 0.918938517 : f32
    %506 = vector.broadcast %cst_272 : f32 to vector<8x2xf32>
    %507 = arith.subf %505, %506 : vector<8x2xf32>
    %cst_273 = arith.constant dense<0.000000e+00> : vector<8xf32>
    %508 = vector.multi_reduction <add>, %507, %cst_273 [1] : vector<8x2xf32> to vector<8xf32>
    %509 = vector.shape_cast %508 : vector<8xf32> to vector<8x1xf32>
    %c0_274 = arith.constant 0 : index
    %c0_275 = arith.constant 0 : index
    %c0_276 = arith.constant 0 : index
    %510 = vector.load %arg17[%c0_274, %c0_275, %c0_276] : memref<8x1x2xf32, #tpu.memory_space<vmem>>, vector<8x1x2xf32>
    %511 = vector.shape_cast %510 : vector<8x1x2xf32> to vector<8x2xf32>
    %512 = vector.shape_cast %497 : vector<8x2xf32> to vector<8x1x2xf32>
    tpu.vector_store %arg17[%c0_274, %c0_275, %c0_276], %512 {strides = array<i32>} : memref<8x1x2xf32, #tpu.memory_space<vmem>>, vector<8x1x2xf32>,
    %513 = tpu.concatenate %497, %509, %492 in 1 : vector<8x2xf32>, vector<8x1xf32>, vector<8x1xf32> -> vector<8x4xf32>
    %c1_277 = arith.constant 1 : index
    %c0_278 = arith.constant 0 : index
    %c0_279 = arith.constant 0 : index
    %514 = vector.load %arg16[%c1_277, %c0_278, %c0_279] : memref<4x8x4xf32, #tpu.memory_space<vmem>>, vector<1x8x4xf32>
    %515 = vector.shape_cast %514 : vector<1x8x4xf32> to vector<8x4xf32>
    %516 = vector.shape_cast %513 : vector<8x4xf32> to vector<1x8x4xf32>
    tpu.vector_store %arg16[%c1_277, %c0_278, %c0_279], %516 {strides = array<i32>} : memref<4x8x4xf32, #tpu.memory_space<vmem>>, vector<1x8x4xf32>,
    %c0_280 = arith.constant 0 : index
    %c0_281 = arith.constant 0 : index
    %c0_282 = arith.constant 0 : index
    %517 = vector.load %arg17[%c0_280, %c0_281, %c0_282] : memref<8x1x2xf32, #tpu.memory_space<vmem>>, vector<8x1x2xf32>
    %518 = vector.shape_cast %517 : vector<8x1x2xf32> to vector<8x2xf32>
    %c0_283 = arith.constant 0 : index
    %c0_284 = arith.constant 0 : index
    %c0_285 = arith.constant 0 : index
    %519 = vector.load %arg17[%c0_283, %c0_284, %c0_285] : memref<8x1x2xf32, #tpu.memory_space<vmem>>, vector<8x1x1xf32>
    %c0_286 = arith.constant 0 : index
    %c0_287 = arith.constant 0 : index
    %c1_288 = arith.constant 1 : index
    %520 = vector.load %arg17[%c0_286, %c0_287, %c1_288] : memref<8x1x2xf32, #tpu.memory_space<vmem>>, vector<8x1x1xf32>
    %cst_289 = arith.constant 0.533333361 : f32
    %521 = vector.broadcast %cst_289 : f32 to vector<1x8x1xf32>
    %522 = arith.mulf %521, %22 : vector<1x8x1xf32>
    %523 = vector.broadcast %522 : vector<1x8x1xf32> to vector<8x8x1xf32>
    %524 = vector.broadcast %520 : vector<8x1x1xf32> to vector<8x8x1xf32>
    %525 = arith.addf %523, %524 : vector<8x8x1xf32>
    %cst_290 = arith.constant 1.000000e+00 : f32
    %526 = vector.broadcast %cst_290 : f32 to vector<8x8x1xf32>
    %527 = arith.addf %525, %526 : vector<8x8x1xf32>
    %cst_291 = arith.constant 7.500000e+00 : f32
    %528 = vector.broadcast %cst_291 : f32 to vector<8x8x1xf32>
    %529 = arith.mulf %527, %528 : vector<8x8x1xf32>
    %cst_292 = arith.constant 0.533333361 : f32
    %530 = vector.broadcast %cst_292 : f32 to vector<1x8x1xf32>
    %531 = arith.mulf %530, %22 : vector<1x8x1xf32>
    %532 = vector.broadcast %531 : vector<1x8x1xf32> to vector<8x8x1xf32>
    %533 = vector.broadcast %519 : vector<8x1x1xf32> to vector<8x8x1xf32>
    %534 = arith.addf %532, %533 : vector<8x8x1xf32>
    %cst_293 = arith.constant 1.000000e+00 : f32
    %535 = vector.broadcast %cst_293 : f32 to vector<8x8x1xf32>
    %536 = arith.addf %534, %535 : vector<8x8x1xf32>
    %cst_294 = arith.constant 7.500000e+00 : f32
    %537 = vector.broadcast %cst_294 : f32 to vector<8x8x1xf32>
    %538 = arith.mulf %536, %537 : vector<8x8x1xf32>
    %539 = vector.broadcast %529 : vector<8x8x1xf32> to vector<8x8x16xf32>
    %540 = vector.broadcast %24 : vector<1x8x16xf32> to vector<8x8x16xf32>
    %541 = arith.subf %539, %540 : vector<8x8x16xf32>
    %542 = math.absf %541 : vector<8x8x16xf32>
    %cst_295 = arith.constant 1.000000e+00 : f32
    %543 = vector.broadcast %cst_295 : f32 to vector<8x8x16xf32>
    %544 = arith.subf %543, %542 : vector<8x8x16xf32>
    %cst_296 = arith.constant 0.000000e+00 : f32
    %545 = vector.broadcast %cst_296 : f32 to vector<8x8x16xf32>
    %546 = arith.maximumf %544, %545 : vector<8x8x16xf32>
    %547 = vector.broadcast %538 : vector<8x8x1xf32> to vector<8x8x16xf32>
    %548 = vector.broadcast %26 : vector<1x8x16xf32> to vector<8x8x16xf32>
    %549 = arith.subf %547, %548 : vector<8x8x16xf32>
    %550 = math.absf %549 : vector<8x8x16xf32>
    %cst_297 = arith.constant 1.000000e+00 : f32
    %551 = vector.broadcast %cst_297 : f32 to vector<8x8x16xf32>
    %552 = arith.subf %551, %550 : vector<8x8x16xf32>
    %cst_298 = arith.constant 0.000000e+00 : f32
    %553 = vector.broadcast %cst_298 : f32 to vector<8x8x16xf32>
    %554 = arith.maximumf %552, %553 : vector<8x8x16xf32>
    "tpu.trace_start"() <{level = 10 : i32, message = "bgh,bhw->bgw"}> : () -> ()
    %cst_299 = arith.constant dense<0.000000e+00> : vector<8x8x16xf32>
    %555 = tpu.matmul %546, %0, %cst_299 {dimension_numbers = #tpu.dot_dimension_numbers<[2], [1], [1], [2], [0, 0, 0, 1, 1, 2], [0], [0]>} : vector<8x8x16xf32>, vector<8x16x16xf32>, vector<8x8x16xf32> -> vector<8x8x16xf32>
    "tpu.trace_stop"() : () -> ()
    "tpu.trace_start"() <{level = 10 : i32, message = "bgw,bpw->bgp"}> : () -> ()
    %cst_300 = arith.constant dense<0.000000e+00> : vector<8x8x8xf32>
    %556 = tpu.matmul %555, %554, %cst_300 {dimension_numbers = #tpu.dot_dimension_numbers<[2], [2], [1], [1], [0, 0, 0, 1, 1, 1], [0], [0]>} : vector<8x8x16xf32>, vector<8x8x16xf32>, vector<8x8x8xf32> -> vector<8x8x8xf32>
    "tpu.trace_stop"() : () -> ()
    %c0_301 = arith.constant 0 : index
    %c0_302 = arith.constant 0 : index
    %c0_303 = arith.constant 0 : index
    %557 = vector.load %arg18[%c0_301, %c0_302, %c0_303] : memref<8x16x8xf32, #tpu.memory_space<vmem>>, vector<8x8x8xf32>
    tpu.vector_store %arg18[%c0_301, %c0_302, %c0_303], %556 {strides = array<i32>} : memref<8x16x8xf32, #tpu.memory_space<vmem>>, vector<8x8x8xf32>,
    %cst_304 = arith.constant 1.06666672 : f32
    %558 = vector.broadcast %cst_304 : f32 to vector<1x8x1xf32>
    %559 = arith.mulf %558, %22 : vector<1x8x1xf32>
    %560 = vector.broadcast %559 : vector<1x8x1xf32> to vector<8x8x1xf32>
    %561 = vector.broadcast %520 : vector<8x1x1xf32> to vector<8x8x1xf32>
    %562 = arith.addf %560, %561 : vector<8x8x1xf32>
    %cst_305 = arith.constant 1.000000e+00 : f32
    %563 = vector.broadcast %cst_305 : f32 to vector<8x8x1xf32>
    %564 = arith.addf %562, %563 : vector<8x8x1xf32>
    %cst_306 = arith.constant 7.500000e+00 : f32
    %565 = vector.broadcast %cst_306 : f32 to vector<8x8x1xf32>
    %566 = arith.mulf %564, %565 : vector<8x8x1xf32>
    %cst_307 = arith.constant 1.06666672 : f32
    %567 = vector.broadcast %cst_307 : f32 to vector<1x8x1xf32>
    %568 = arith.mulf %567, %22 : vector<1x8x1xf32>
    %569 = vector.broadcast %568 : vector<1x8x1xf32> to vector<8x8x1xf32>
    %570 = vector.broadcast %519 : vector<8x1x1xf32> to vector<8x8x1xf32>
    %571 = arith.addf %569, %570 : vector<8x8x1xf32>
    %cst_308 = arith.constant 1.000000e+00 : f32
    %572 = vector.broadcast %cst_308 : f32 to vector<8x8x1xf32>
    %573 = arith.addf %571, %572 : vector<8x8x1xf32>
    %cst_309 = arith.constant 7.500000e+00 : f32
    %574 = vector.broadcast %cst_309 : f32 to vector<8x8x1xf32>
    %575 = arith.mulf %573, %574 : vector<8x8x1xf32>
    %576 = vector.broadcast %566 : vector<8x8x1xf32> to vector<8x8x16xf32>
    %577 = vector.broadcast %24 : vector<1x8x16xf32> to vector<8x8x16xf32>
    %578 = arith.subf %576, %577 : vector<8x8x16xf32>
    %579 = math.absf %578 : vector<8x8x16xf32>
    %cst_310 = arith.constant 1.000000e+00 : f32
    %580 = vector.broadcast %cst_310 : f32 to vector<8x8x16xf32>
    %581 = arith.subf %580, %579 : vector<8x8x16xf32>
    %cst_311 = arith.constant 0.000000e+00 : f32
    %582 = vector.broadcast %cst_311 : f32 to vector<8x8x16xf32>
    %583 = arith.maximumf %581, %582 : vector<8x8x16xf32>
    %584 = vector.broadcast %575 : vector<8x8x1xf32> to vector<8x8x16xf32>
    %585 = vector.broadcast %26 : vector<1x8x16xf32> to vector<8x8x16xf32>
    %586 = arith.subf %584, %585 : vector<8x8x16xf32>
    %587 = math.absf %586 : vector<8x8x16xf32>
    %cst_312 = arith.constant 1.000000e+00 : f32
    %588 = vector.broadcast %cst_312 : f32 to vector<8x8x16xf32>
    %589 = arith.subf %588, %587 : vector<8x8x16xf32>
    %cst_313 = arith.constant 0.000000e+00 : f32
    %590 = vector.broadcast %cst_313 : f32 to vector<8x8x16xf32>
    %591 = arith.maximumf %589, %590 : vector<8x8x16xf32>
    "tpu.trace_start"() <{level = 10 : i32, message = "bgh,bhw->bgw"}> : () -> ()
    %cst_314 = arith.constant dense<0.000000e+00> : vector<8x8x16xf32>
    %592 = tpu.matmul %583, %0, %cst_314 {dimension_numbers = #tpu.dot_dimension_numbers<[2], [1], [1], [2], [0, 0, 0, 1, 1, 2], [0], [0]>} : vector<8x8x16xf32>, vector<8x16x16xf32>, vector<8x8x16xf32> -> vector<8x8x16xf32>
    "tpu.trace_stop"() : () -> ()
    "tpu.trace_start"() <{level = 10 : i32, message = "bgw,bpw->bgp"}> : () -> ()
    %cst_315 = arith.constant dense<0.000000e+00> : vector<8x8x8xf32>
    %593 = tpu.matmul %592, %591, %cst_315 {dimension_numbers = #tpu.dot_dimension_numbers<[2], [2], [1], [1], [0, 0, 0, 1, 1, 1], [0], [0]>} : vector<8x8x16xf32>, vector<8x8x16xf32>, vector<8x8x8xf32> -> vector<8x8x8xf32>
    "tpu.trace_stop"() : () -> ()
    %c0_316 = arith.constant 0 : index
    %c8_317 = arith.constant 8 : index
    %c0_318 = arith.constant 0 : index
    %594 = vector.load %arg18[%c0_316, %c8_317, %c0_318] : memref<8x16x8xf32, #tpu.memory_space<vmem>>, vector<8x8x8xf32>
    tpu.vector_store %arg18[%c0_316, %c8_317, %c0_318], %593 {strides = array<i32>} : memref<8x16x8xf32, #tpu.memory_space<vmem>>, vector<8x8x8xf32>,
    %cst_319 = arith.constant 0.000000e+00 : f32
    %595 = vector.broadcast %cst_319 : f32 to vector<8x32xf32>
    %c0_320 = arith.constant 0 : index
    %c0_321 = arith.constant 0 : index
    %c0_322 = arith.constant 0 : index
    %596 = vector.load %arg18[%c0_320, %c0_321, %c0_322] : memref<8x16x8xf32, #tpu.memory_space<vmem>>, vector<8x1x8xf32>
    %597 = vector.shape_cast %596 : vector<8x1x8xf32> to vector<8x8xf32>
    %598 = vector.extract_strided_slice %1 {offsets = [0, 0], sizes = [8, 32], strides = [1, 1]} : vector<128x32xf32> to vector<8x32xf32>
    %cst_323 = arith.constant dense<0.000000e+00> : vector<8x32xf32>
    %599 = tpu.matmul %597, %598, %cst_323 {dimension_numbers = #tpu.dot_dimension_numbers<[1], [0], [0], [1], [0, 0, 1, 1], [], []>} : vector<8x8xf32>, vector<8x32xf32>, vector<8x32xf32> -> vector<8x32xf32>
    %600 = arith.addf %595, %599 : vector<8x32xf32>
    %c0_324 = arith.constant 0 : index
    %c1_325 = arith.constant 1 : index
    %c0_326 = arith.constant 0 : index
    %601 = vector.load %arg18[%c0_324, %c1_325, %c0_326] : memref<8x16x8xf32, #tpu.memory_space<vmem>>, vector<8x1x8xf32>
    %602 = vector.shape_cast %601 : vector<8x1x8xf32> to vector<8x8xf32>
    %603 = vector.extract_strided_slice %1 {offsets = [8, 0], sizes = [8, 32], strides = [1, 1]} : vector<128x32xf32> to vector<8x32xf32>
    %cst_327 = arith.constant dense<0.000000e+00> : vector<8x32xf32>
    %604 = tpu.matmul %602, %603, %cst_327 {dimension_numbers = #tpu.dot_dimension_numbers<[1], [0], [0], [1], [0, 0, 1, 1], [], []>} : vector<8x8xf32>, vector<8x32xf32>, vector<8x32xf32> -> vector<8x32xf32>
    %605 = arith.addf %600, %604 : vector<8x32xf32>
    %c0_328 = arith.constant 0 : index
    %c2_329 = arith.constant 2 : index
    %c0_330 = arith.constant 0 : index
    %606 = vector.load %arg18[%c0_328, %c2_329, %c0_330] : memref<8x16x8xf32, #tpu.memory_space<vmem>>, vector<8x1x8xf32>
    %607 = vector.shape_cast %606 : vector<8x1x8xf32> to vector<8x8xf32>
    %608 = vector.extract_strided_slice %1 {offsets = [16, 0], sizes = [8, 32], strides = [1, 1]} : vector<128x32xf32> to vector<8x32xf32>
    %cst_331 = arith.constant dense<0.000000e+00> : vector<8x32xf32>
    %609 = tpu.matmul %607, %608, %cst_331 {dimension_numbers = #tpu.dot_dimension_numbers<[1], [0], [0], [1], [0, 0, 1, 1], [], []>} : vector<8x8xf32>, vector<8x32xf32>, vector<8x32xf32> -> vector<8x32xf32>
    %610 = arith.addf %605, %609 : vector<8x32xf32>
    %c0_332 = arith.constant 0 : index
    %c3_333 = arith.constant 3 : index
    %c0_334 = arith.constant 0 : index
    %611 = vector.load %arg18[%c0_332, %c3_333, %c0_334] : memref<8x16x8xf32, #tpu.memory_space<vmem>>, vector<8x1x8xf32>
    %612 = vector.shape_cast %611 : vector<8x1x8xf32> to vector<8x8xf32>
    %613 = vector.extract_strided_slice %1 {offsets = [24, 0], sizes = [8, 32], strides = [1, 1]} : vector<128x32xf32> to vector<8x32xf32>
    %cst_335 = arith.constant dense<0.000000e+00> : vector<8x32xf32>
    %614 = tpu.matmul %612, %613, %cst_335 {dimension_numbers = #tpu.dot_dimension_numbers<[1], [0], [0], [1], [0, 0, 1, 1], [], []>} : vector<8x8xf32>, vector<8x32xf32>, vector<8x32xf32> -> vector<8x32xf32>
    %615 = arith.addf %610, %614 : vector<8x32xf32>
    %c0_336 = arith.constant 0 : index
    %c4_337 = arith.constant 4 : index
    %c0_338 = arith.constant 0 : index
    %616 = vector.load %arg18[%c0_336, %c4_337, %c0_338] : memref<8x16x8xf32, #tpu.memory_space<vmem>>, vector<8x1x8xf32>
    %617 = vector.shape_cast %616 : vector<8x1x8xf32> to vector<8x8xf32>
    %618 = vector.extract_strided_slice %1 {offsets = [32, 0], sizes = [8, 32], strides = [1, 1]} : vector<128x32xf32> to vector<8x32xf32>
    %cst_339 = arith.constant dense<0.000000e+00> : vector<8x32xf32>
    %619 = tpu.matmul %617, %618, %cst_339 {dimension_numbers = #tpu.dot_dimension_numbers<[1], [0], [0], [1], [0, 0, 1, 1], [], []>} : vector<8x8xf32>, vector<8x32xf32>, vector<8x32xf32> -> vector<8x32xf32>
    %620 = arith.addf %615, %619 : vector<8x32xf32>
    %c0_340 = arith.constant 0 : index
    %c5_341 = arith.constant 5 : index
    %c0_342 = arith.constant 0 : index
    %621 = vector.load %arg18[%c0_340, %c5_341, %c0_342] : memref<8x16x8xf32, #tpu.memory_space<vmem>>, vector<8x1x8xf32>
    %622 = vector.shape_cast %621 : vector<8x1x8xf32> to vector<8x8xf32>
    %623 = vector.extract_strided_slice %1 {offsets = [40, 0], sizes = [8, 32], strides = [1, 1]} : vector<128x32xf32> to vector<8x32xf32>
    %cst_343 = arith.constant dense<0.000000e+00> : vector<8x32xf32>
    %624 = tpu.matmul %622, %623, %cst_343 {dimension_numbers = #tpu.dot_dimension_numbers<[1], [0], [0], [1], [0, 0, 1, 1], [], []>} : vector<8x8xf32>, vector<8x32xf32>, vector<8x32xf32> -> vector<8x32xf32>
    %625 = arith.addf %620, %624 : vector<8x32xf32>
    %c0_344 = arith.constant 0 : index
    %c6_345 = arith.constant 6 : index
    %c0_346 = arith.constant 0 : index
    %626 = vector.load %arg18[%c0_344, %c6_345, %c0_346] : memref<8x16x8xf32, #tpu.memory_space<vmem>>, vector<8x1x8xf32>
    %627 = vector.shape_cast %626 : vector<8x1x8xf32> to vector<8x8xf32>
    %628 = vector.extract_strided_slice %1 {offsets = [48, 0], sizes = [8, 32], strides = [1, 1]} : vector<128x32xf32> to vector<8x32xf32>
    %cst_347 = arith.constant dense<0.000000e+00> : vector<8x32xf32>
    %629 = tpu.matmul %627, %628, %cst_347 {dimension_numbers = #tpu.dot_dimension_numbers<[1], [0], [0], [1], [0, 0, 1, 1], [], []>} : vector<8x8xf32>, vector<8x32xf32>, vector<8x32xf32> -> vector<8x32xf32>
    %630 = arith.addf %625, %629 : vector<8x32xf32>
    %c0_348 = arith.constant 0 : index
    %c7_349 = arith.constant 7 : index
    %c0_350 = arith.constant 0 : index
    %631 = vector.load %arg18[%c0_348, %c7_349, %c0_350] : memref<8x16x8xf32, #tpu.memory_space<vmem>>, vector<8x1x8xf32>
    %632 = vector.shape_cast %631 : vector<8x1x8xf32> to vector<8x8xf32>
    %633 = vector.extract_strided_slice %1 {offsets = [56, 0], sizes = [8, 32], strides = [1, 1]} : vector<128x32xf32> to vector<8x32xf32>
    %cst_351 = arith.constant dense<0.000000e+00> : vector<8x32xf32>
    %634 = tpu.matmul %632, %633, %cst_351 {dimension_numbers = #tpu.dot_dimension_numbers<[1], [0], [0], [1], [0, 0, 1, 1], [], []>} : vector<8x8xf32>, vector<8x32xf32>, vector<8x32xf32> -> vector<8x32xf32>
    %635 = arith.addf %630, %634 : vector<8x32xf32>
    %c0_352 = arith.constant 0 : index
    %c8_353 = arith.constant 8 : index
    %c0_354 = arith.constant 0 : index
    %636 = vector.load %arg18[%c0_352, %c8_353, %c0_354] : memref<8x16x8xf32, #tpu.memory_space<vmem>>, vector<8x1x8xf32>
    %637 = vector.shape_cast %636 : vector<8x1x8xf32> to vector<8x8xf32>
    %638 = vector.extract_strided_slice %1 {offsets = [64, 0], sizes = [8, 32], strides = [1, 1]} : vector<128x32xf32> to vector<8x32xf32>
    %cst_355 = arith.constant dense<0.000000e+00> : vector<8x32xf32>
    %639 = tpu.matmul %637, %638, %cst_355 {dimension_numbers = #tpu.dot_dimension_numbers<[1], [0], [0], [1], [0, 0, 1, 1], [], []>} : vector<8x8xf32>, vector<8x32xf32>, vector<8x32xf32> -> vector<8x32xf32>
    %640 = arith.addf %635, %639 : vector<8x32xf32>
    %c0_356 = arith.constant 0 : index
    %c9_357 = arith.constant 9 : index
    %c0_358 = arith.constant 0 : index
    %641 = vector.load %arg18[%c0_356, %c9_357, %c0_358] : memref<8x16x8xf32, #tpu.memory_space<vmem>>, vector<8x1x8xf32>
    %642 = vector.shape_cast %641 : vector<8x1x8xf32> to vector<8x8xf32>
    %643 = vector.extract_strided_slice %1 {offsets = [72, 0], sizes = [8, 32], strides = [1, 1]} : vector<128x32xf32> to vector<8x32xf32>
    %cst_359 = arith.constant dense<0.000000e+00> : vector<8x32xf32>
    %644 = tpu.matmul %642, %643, %cst_359 {dimension_numbers = #tpu.dot_dimension_numbers<[1], [0], [0], [1], [0, 0, 1, 1], [], []>} : vector<8x8xf32>, vector<8x32xf32>, vector<8x32xf32> -> vector<8x32xf32>
    %645 = arith.addf %640, %644 : vector<8x32xf32>
    %c0_360 = arith.constant 0 : index
    %c10_361 = arith.constant 10 : index
    %c0_362 = arith.constant 0 : index
    %646 = vector.load %arg18[%c0_360, %c10_361, %c0_362] : memref<8x16x8xf32, #tpu.memory_space<vmem>>, vector<8x1x8xf32>
    %647 = vector.shape_cast %646 : vector<8x1x8xf32> to vector<8x8xf32>
    %648 = vector.extract_strided_slice %1 {offsets = [80, 0], sizes = [8, 32], strides = [1, 1]} : vector<128x32xf32> to vector<8x32xf32>
    %cst_363 = arith.constant dense<0.000000e+00> : vector<8x32xf32>
    %649 = tpu.matmul %647, %648, %cst_363 {dimension_numbers = #tpu.dot_dimension_numbers<[1], [0], [0], [1], [0, 0, 1, 1], [], []>} : vector<8x8xf32>, vector<8x32xf32>, vector<8x32xf32> -> vector<8x32xf32>
    %650 = arith.addf %645, %649 : vector<8x32xf32>
    %c0_364 = arith.constant 0 : index
    %c11_365 = arith.constant 11 : index
    %c0_366 = arith.constant 0 : index
    %651 = vector.load %arg18[%c0_364, %c11_365, %c0_366] : memref<8x16x8xf32, #tpu.memory_space<vmem>>, vector<8x1x8xf32>
    %652 = vector.shape_cast %651 : vector<8x1x8xf32> to vector<8x8xf32>
    %653 = vector.extract_strided_slice %1 {offsets = [88, 0], sizes = [8, 32], strides = [1, 1]} : vector<128x32xf32> to vector<8x32xf32>
    %cst_367 = arith.constant dense<0.000000e+00> : vector<8x32xf32>
    %654 = tpu.matmul %652, %653, %cst_367 {dimension_numbers = #tpu.dot_dimension_numbers<[1], [0], [0], [1], [0, 0, 1, 1], [], []>} : vector<8x8xf32>, vector<8x32xf32>, vector<8x32xf32> -> vector<8x32xf32>
    %655 = arith.addf %650, %654 : vector<8x32xf32>
    %c0_368 = arith.constant 0 : index
    %c12_369 = arith.constant 12 : index
    %c0_370 = arith.constant 0 : index
    %656 = vector.load %arg18[%c0_368, %c12_369, %c0_370] : memref<8x16x8xf32, #tpu.memory_space<vmem>>, vector<8x1x8xf32>
    %657 = vector.shape_cast %656 : vector<8x1x8xf32> to vector<8x8xf32>
    %658 = vector.extract_strided_slice %1 {offsets = [96, 0], sizes = [8, 32], strides = [1, 1]} : vector<128x32xf32> to vector<8x32xf32>
    %cst_371 = arith.constant dense<0.000000e+00> : vector<8x32xf32>
    %659 = tpu.matmul %657, %658, %cst_371 {dimension_numbers = #tpu.dot_dimension_numbers<[1], [0], [0], [1], [0, 0, 1, 1], [], []>} : vector<8x8xf32>, vector<8x32xf32>, vector<8x32xf32> -> vector<8x32xf32>
    %660 = arith.addf %655, %659 : vector<8x32xf32>
    %c0_372 = arith.constant 0 : index
    %c13_373 = arith.constant 13 : index
    %c0_374 = arith.constant 0 : index
    %661 = vector.load %arg18[%c0_372, %c13_373, %c0_374] : memref<8x16x8xf32, #tpu.memory_space<vmem>>, vector<8x1x8xf32>
    %662 = vector.shape_cast %661 : vector<8x1x8xf32> to vector<8x8xf32>
    %663 = vector.extract_strided_slice %1 {offsets = [104, 0], sizes = [8, 32], strides = [1, 1]} : vector<128x32xf32> to vector<8x32xf32>
    %cst_375 = arith.constant dense<0.000000e+00> : vector<8x32xf32>
    %664 = tpu.matmul %662, %663, %cst_375 {dimension_numbers = #tpu.dot_dimension_numbers<[1], [0], [0], [1], [0, 0, 1, 1], [], []>} : vector<8x8xf32>, vector<8x32xf32>, vector<8x32xf32> -> vector<8x32xf32>
    %665 = arith.addf %660, %664 : vector<8x32xf32>
    %c0_376 = arith.constant 0 : index
    %c14_377 = arith.constant 14 : index
    %c0_378 = arith.constant 0 : index
    %666 = vector.load %arg18[%c0_376, %c14_377, %c0_378] : memref<8x16x8xf32, #tpu.memory_space<vmem>>, vector<8x1x8xf32>
    %667 = vector.shape_cast %666 : vector<8x1x8xf32> to vector<8x8xf32>
    %668 = vector.extract_strided_slice %1 {offsets = [112, 0], sizes = [8, 32], strides = [1, 1]} : vector<128x32xf32> to vector<8x32xf32>
    %cst_379 = arith.constant dense<0.000000e+00> : vector<8x32xf32>
    %669 = tpu.matmul %667, %668, %cst_379 {dimension_numbers = #tpu.dot_dimension_numbers<[1], [0], [0], [1], [0, 0, 1, 1], [], []>} : vector<8x8xf32>, vector<8x32xf32>, vector<8x32xf32> -> vector<8x32xf32>
    %670 = arith.addf %665, %669 : vector<8x32xf32>
    %c0_380 = arith.constant 0 : index
    %c15_381 = arith.constant 15 : index
    %c0_382 = arith.constant 0 : index
    %671 = vector.load %arg18[%c0_380, %c15_381, %c0_382] : memref<8x16x8xf32, #tpu.memory_space<vmem>>, vector<8x1x8xf32>
    %672 = vector.shape_cast %671 : vector<8x1x8xf32> to vector<8x8xf32>
    %673 = vector.extract_strided_slice %1 {offsets = [120, 0], sizes = [8, 32], strides = [1, 1]} : vector<128x32xf32> to vector<8x32xf32>
    %cst_383 = arith.constant dense<0.000000e+00> : vector<8x32xf32>
    %674 = tpu.matmul %672, %673, %cst_383 {dimension_numbers = #tpu.dot_dimension_numbers<[1], [0], [0], [1], [0, 0, 1, 1], [], []>} : vector<8x8xf32>, vector<8x32xf32>, vector<8x32xf32> -> vector<8x32xf32>
    %675 = arith.addf %670, %674 : vector<8x32xf32>
    %676 = vector.broadcast %2 : vector<1x32xf32> to vector<8x32xf32>
    %677 = arith.addf %675, %676 : vector<8x32xf32>
    %cst_384 = arith.constant 0.000000e+00 : f32
    %678 = vector.broadcast %cst_384 : f32 to vector<8x32xf32>
    %679 = arith.maximumf %677, %678 : vector<8x32xf32>
    %680 = vector.extract_strided_slice %518 {offsets = [0, 0], sizes = [8, 1], strides = [1, 1]} : vector<8x2xf32> to vector<8x1xf32>
    %681 = vector.extract_strided_slice %3 {offsets = [0, 0], sizes = [1, 32], strides = [1, 1]} : vector<2x32xf32> to vector<1x32xf32>
    %682 = vector.broadcast %680 : vector<8x1xf32> to vector<8x32xf32>
    %683 = vector.broadcast %681 : vector<1x32xf32> to vector<8x32xf32>
    %684 = arith.mulf %682, %683 : vector<8x32xf32>
    %685 = vector.extract_strided_slice %518 {offsets = [0, 1], sizes = [8, 1], strides = [1, 1]} : vector<8x2xf32> to vector<8x1xf32>
    %686 = vector.extract_strided_slice %3 {offsets = [1, 0], sizes = [1, 32], strides = [1, 1]} : vector<2x32xf32> to vector<1x32xf32>
    %687 = vector.broadcast %685 : vector<8x1xf32> to vector<8x32xf32>
    %688 = vector.broadcast %686 : vector<1x32xf32> to vector<8x32xf32>
    %689 = arith.mulf %687, %688 : vector<8x32xf32>
    %690 = arith.addf %684, %689 : vector<8x32xf32>
    %691 = vector.broadcast %4 : vector<1x32xf32> to vector<8x32xf32>
    %692 = arith.addf %690, %691 : vector<8x32xf32>
    %cst_385 = arith.constant 0.000000e+00 : f32
    %693 = vector.broadcast %cst_385 : f32 to vector<8x32xf32>
    %694 = arith.maximumf %692, %693 : vector<8x32xf32>
    %cst_386 = arith.constant dense<0.000000e+00> : vector<8x32xf32>
    %695 = tpu.matmul %679, %5, %cst_386 {dimension_numbers = #tpu.dot_dimension_numbers<[1], [0], [0], [1], [0, 0, 1, 1], [], []>} : vector<8x32xf32>, vector<32x32xf32>, vector<8x32xf32> -> vector<8x32xf32>
    %cst_387 = arith.constant dense<0.000000e+00> : vector<8x32xf32>
    %696 = tpu.matmul %694, %6, %cst_387 {dimension_numbers = #tpu.dot_dimension_numbers<[1], [0], [0], [1], [0, 0, 1, 1], [], []>} : vector<8x32xf32>, vector<32x32xf32>, vector<8x32xf32> -> vector<8x32xf32>
    %697 = arith.addf %695, %696 : vector<8x32xf32>
    %698 = vector.broadcast %7 : vector<1x32xf32> to vector<8x32xf32>
    %699 = arith.addf %697, %698 : vector<8x32xf32>
    %cst_388 = arith.constant 0.000000e+00 : f32
    %700 = vector.broadcast %cst_388 : f32 to vector<8x32xf32>
    %701 = arith.maximumf %699, %700 : vector<8x32xf32>
    %cst_389 = arith.constant dense<0.000000e+00> : vector<8x128xf32>
    %702 = tpu.matmul %701, %8, %cst_389 {dimension_numbers = #tpu.dot_dimension_numbers<[1], [0], [0], [1], [0, 0, 1, 1], [], []>} : vector<8x32xf32>, vector<32x128xf32>, vector<8x128xf32> -> vector<8x128xf32>
    %cst_390 = arith.constant dense<0.000000e+00> : vector<8x128xf32>
    %703 = tpu.matmul %486, %9, %cst_390 {dimension_numbers = #tpu.dot_dimension_numbers<[1], [0], [0], [1], [0, 0, 1, 1], [], []>} : vector<8x32xf32>, vector<32x128xf32>, vector<8x128xf32> -> vector<8x128xf32>
    %704 = arith.addf %702, %703 : vector<8x128xf32>
    %705 = vector.broadcast %10 : vector<1x128xf32> to vector<8x128xf32>
    %706 = arith.addf %704, %705 : vector<8x128xf32>
    %707 = vector.extract_strided_slice %706 {offsets = [0, 0], sizes = [8, 32], strides = [1, 1]} : vector<8x128xf32> to vector<8x32xf32>
    %708 = arith.negf %707 : vector<8x32xf32>
    %709 = math.exp %708 : vector<8x32xf32>
    %cst_391 = arith.constant 1.000000e+00 : f32
    %710 = vector.broadcast %cst_391 : f32 to vector<8x32xf32>
    %711 = arith.addf %710, %709 : vector<8x32xf32>
    %712 = arith.divf %710, %711 : vector<8x32xf32>
    %713 = vector.extract_strided_slice %706 {offsets = [0, 32], sizes = [8, 32], strides = [1, 1]} : vector<8x128xf32> to vector<8x32xf32>
    %714 = arith.negf %713 : vector<8x32xf32>
    %715 = math.exp %714 : vector<8x32xf32>
    %cst_392 = arith.constant 1.000000e+00 : f32
    %716 = vector.broadcast %cst_392 : f32 to vector<8x32xf32>
    %717 = arith.addf %716, %715 : vector<8x32xf32>
    %718 = arith.divf %716, %717 : vector<8x32xf32>
    %719 = vector.extract_strided_slice %706 {offsets = [0, 64], sizes = [8, 32], strides = [1, 1]} : vector<8x128xf32> to vector<8x32xf32>
    %720 = math.tanh %719 : vector<8x32xf32>
    %721 = vector.extract_strided_slice %706 {offsets = [0, 96], sizes = [8, 32], strides = [1, 1]} : vector<8x128xf32> to vector<8x32xf32>
    %722 = arith.negf %721 : vector<8x32xf32>
    %723 = math.exp %722 : vector<8x32xf32>
    %cst_393 = arith.constant 1.000000e+00 : f32
    %724 = vector.broadcast %cst_393 : f32 to vector<8x32xf32>
    %725 = arith.addf %724, %723 : vector<8x32xf32>
    %726 = arith.divf %724, %725 : vector<8x32xf32>
    %727 = arith.mulf %718, %484 : vector<8x32xf32>
    %728 = arith.mulf %712, %720 : vector<8x32xf32>
    %729 = arith.addf %727, %728 : vector<8x32xf32>
    %730 = math.tanh %729 : vector<8x32xf32>
    %731 = arith.mulf %726, %730 : vector<8x32xf32>
    %cst_394 = arith.constant dense<0.000000e+00> : vector<8x13xf32>
    %732 = tpu.matmul %731, %11, %cst_394 {dimension_numbers = #tpu.dot_dimension_numbers<[1], [0], [0], [1], [0, 0, 1, 1], [], []>} : vector<8x32xf32>, vector<32x13xf32>, vector<8x13xf32> -> vector<8x13xf32>
    %733 = vector.broadcast %12 : vector<1x13xf32> to vector<8x13xf32>
    %734 = arith.addf %732, %733 : vector<8x13xf32>
    %735 = vector.extract_strided_slice %734 {offsets = [0, 0], sizes = [8, 2], strides = [1, 1]} : vector<8x13xf32> to vector<8x2xf32>
    %736 = math.tanh %735 : vector<8x2xf32>
    %737 = vector.extract_strided_slice %734 {offsets = [0, 2], sizes = [8, 1], strides = [1, 1]} : vector<8x13xf32> to vector<8x1xf32>
    %c2_395 = arith.constant 2 : index
    %c0_396 = arith.constant 0 : index
    %c0_397 = arith.constant 0 : index
    %738 = vector.load %arg2[%c2_395, %c0_396, %c0_397] : memref<4x8x2xf32, #tpu.memory_space<vmem>>, vector<1x8x2xf32>
    %739 = vector.shape_cast %738 : vector<1x8x2xf32> to vector<8x2xf32>
    %cst_398 = arith.constant 2.000000e-01 : f32
    %740 = vector.broadcast %cst_398 : f32 to vector<8x2xf32>
    %741 = arith.mulf %740, %739 : vector<8x2xf32>
    %742 = arith.addf %736, %741 : vector<8x2xf32>
    %743 = arith.subf %742, %736 : vector<8x2xf32>
    %cst_399 = arith.constant 2.000000e-01 : f32
    %744 = vector.broadcast %cst_399 : f32 to vector<8x2xf32>
    %745 = arith.divf %743, %744 : vector<8x2xf32>
    %746 = arith.mulf %745, %745 : vector<8x2xf32>
    %cst_400 = arith.constant -5.000000e-01 : f32
    %747 = vector.broadcast %cst_400 : f32 to vector<8x2xf32>
    %748 = arith.mulf %747, %746 : vector<8x2xf32>
    %cst_401 = arith.constant -1.60943794 : f32
    %749 = vector.broadcast %cst_401 : f32 to vector<8x2xf32>
    %750 = arith.subf %748, %749 : vector<8x2xf32>
    %cst_402 = arith.constant 0.918938517 : f32
    %751 = vector.broadcast %cst_402 : f32 to vector<8x2xf32>
    %752 = arith.subf %750, %751 : vector<8x2xf32>
    %cst_403 = arith.constant dense<0.000000e+00> : vector<8xf32>
    %753 = vector.multi_reduction <add>, %752, %cst_403 [1] : vector<8x2xf32> to vector<8xf32>
    %754 = vector.shape_cast %753 : vector<8xf32> to vector<8x1xf32>
    %c0_404 = arith.constant 0 : index
    %c0_405 = arith.constant 0 : index
    %c0_406 = arith.constant 0 : index
    %755 = vector.load %arg17[%c0_404, %c0_405, %c0_406] : memref<8x1x2xf32, #tpu.memory_space<vmem>>, vector<8x1x2xf32>
    %756 = vector.shape_cast %755 : vector<8x1x2xf32> to vector<8x2xf32>
    %757 = vector.shape_cast %742 : vector<8x2xf32> to vector<8x1x2xf32>
    tpu.vector_store %arg17[%c0_404, %c0_405, %c0_406], %757 {strides = array<i32>} : memref<8x1x2xf32, #tpu.memory_space<vmem>>, vector<8x1x2xf32>,
    %758 = tpu.concatenate %742, %754, %737 in 1 : vector<8x2xf32>, vector<8x1xf32>, vector<8x1xf32> -> vector<8x4xf32>
    %c2_407 = arith.constant 2 : index
    %c0_408 = arith.constant 0 : index
    %c0_409 = arith.constant 0 : index
    %759 = vector.load %arg16[%c2_407, %c0_408, %c0_409] : memref<4x8x4xf32, #tpu.memory_space<vmem>>, vector<1x8x4xf32>
    %760 = vector.shape_cast %759 : vector<1x8x4xf32> to vector<8x4xf32>
    %761 = vector.shape_cast %758 : vector<8x4xf32> to vector<1x8x4xf32>
    tpu.vector_store %arg16[%c2_407, %c0_408, %c0_409], %761 {strides = array<i32>} : memref<4x8x4xf32, #tpu.memory_space<vmem>>, vector<1x8x4xf32>,
    %c0_410 = arith.constant 0 : index
    %c0_411 = arith.constant 0 : index
    %c0_412 = arith.constant 0 : index
    %762 = vector.load %arg17[%c0_410, %c0_411, %c0_412] : memref<8x1x2xf32, #tpu.memory_space<vmem>>, vector<8x1x2xf32>
    %763 = vector.shape_cast %762 : vector<8x1x2xf32> to vector<8x2xf32>
    %c0_413 = arith.constant 0 : index
    %c0_414 = arith.constant 0 : index
    %c0_415 = arith.constant 0 : index
    %764 = vector.load %arg17[%c0_413, %c0_414, %c0_415] : memref<8x1x2xf32, #tpu.memory_space<vmem>>, vector<8x1x1xf32>
    %c0_416 = arith.constant 0 : index
    %c0_417 = arith.constant 0 : index
    %c1_418 = arith.constant 1 : index
    %765 = vector.load %arg17[%c0_416, %c0_417, %c1_418] : memref<8x1x2xf32, #tpu.memory_space<vmem>>, vector<8x1x1xf32>
    %cst_419 = arith.constant 0.533333361 : f32
    %766 = vector.broadcast %cst_419 : f32 to vector<1x8x1xf32>
    %767 = arith.mulf %766, %22 : vector<1x8x1xf32>
    %768 = vector.broadcast %767 : vector<1x8x1xf32> to vector<8x8x1xf32>
    %769 = vector.broadcast %765 : vector<8x1x1xf32> to vector<8x8x1xf32>
    %770 = arith.addf %768, %769 : vector<8x8x1xf32>
    %cst_420 = arith.constant 1.000000e+00 : f32
    %771 = vector.broadcast %cst_420 : f32 to vector<8x8x1xf32>
    %772 = arith.addf %770, %771 : vector<8x8x1xf32>
    %cst_421 = arith.constant 7.500000e+00 : f32
    %773 = vector.broadcast %cst_421 : f32 to vector<8x8x1xf32>
    %774 = arith.mulf %772, %773 : vector<8x8x1xf32>
    %cst_422 = arith.constant 0.533333361 : f32
    %775 = vector.broadcast %cst_422 : f32 to vector<1x8x1xf32>
    %776 = arith.mulf %775, %22 : vector<1x8x1xf32>
    %777 = vector.broadcast %776 : vector<1x8x1xf32> to vector<8x8x1xf32>
    %778 = vector.broadcast %764 : vector<8x1x1xf32> to vector<8x8x1xf32>
    %779 = arith.addf %777, %778 : vector<8x8x1xf32>
    %cst_423 = arith.constant 1.000000e+00 : f32
    %780 = vector.broadcast %cst_423 : f32 to vector<8x8x1xf32>
    %781 = arith.addf %779, %780 : vector<8x8x1xf32>
    %cst_424 = arith.constant 7.500000e+00 : f32
    %782 = vector.broadcast %cst_424 : f32 to vector<8x8x1xf32>
    %783 = arith.mulf %781, %782 : vector<8x8x1xf32>
    %784 = vector.broadcast %774 : vector<8x8x1xf32> to vector<8x8x16xf32>
    %785 = vector.broadcast %24 : vector<1x8x16xf32> to vector<8x8x16xf32>
    %786 = arith.subf %784, %785 : vector<8x8x16xf32>
    %787 = math.absf %786 : vector<8x8x16xf32>
    %cst_425 = arith.constant 1.000000e+00 : f32
    %788 = vector.broadcast %cst_425 : f32 to vector<8x8x16xf32>
    %789 = arith.subf %788, %787 : vector<8x8x16xf32>
    %cst_426 = arith.constant 0.000000e+00 : f32
    %790 = vector.broadcast %cst_426 : f32 to vector<8x8x16xf32>
    %791 = arith.maximumf %789, %790 : vector<8x8x16xf32>
    %792 = vector.broadcast %783 : vector<8x8x1xf32> to vector<8x8x16xf32>
    %793 = vector.broadcast %26 : vector<1x8x16xf32> to vector<8x8x16xf32>
    %794 = arith.subf %792, %793 : vector<8x8x16xf32>
    %795 = math.absf %794 : vector<8x8x16xf32>
    %cst_427 = arith.constant 1.000000e+00 : f32
    %796 = vector.broadcast %cst_427 : f32 to vector<8x8x16xf32>
    %797 = arith.subf %796, %795 : vector<8x8x16xf32>
    %cst_428 = arith.constant 0.000000e+00 : f32
    %798 = vector.broadcast %cst_428 : f32 to vector<8x8x16xf32>
    %799 = arith.maximumf %797, %798 : vector<8x8x16xf32>
    "tpu.trace_start"() <{level = 10 : i32, message = "bgh,bhw->bgw"}> : () -> ()
    %cst_429 = arith.constant dense<0.000000e+00> : vector<8x8x16xf32>
    %800 = tpu.matmul %791, %0, %cst_429 {dimension_numbers = #tpu.dot_dimension_numbers<[2], [1], [1], [2], [0, 0, 0, 1, 1, 2], [0], [0]>} : vector<8x8x16xf32>, vector<8x16x16xf32>, vector<8x8x16xf32> -> vector<8x8x16xf32>
    "tpu.trace_stop"() : () -> ()
    "tpu.trace_start"() <{level = 10 : i32, message = "bgw,bpw->bgp"}> : () -> ()
    %cst_430 = arith.constant dense<0.000000e+00> : vector<8x8x8xf32>
    %801 = tpu.matmul %800, %799, %cst_430 {dimension_numbers = #tpu.dot_dimension_numbers<[2], [2], [1], [1], [0, 0, 0, 1, 1, 1], [0], [0]>} : vector<8x8x16xf32>, vector<8x8x16xf32>, vector<8x8x8xf32> -> vector<8x8x8xf32>
    "tpu.trace_stop"() : () -> ()
    %c0_431 = arith.constant 0 : index
    %c0_432 = arith.constant 0 : index
    %c0_433 = arith.constant 0 : index
    %802 = vector.load %arg18[%c0_431, %c0_432, %c0_433] : memref<8x16x8xf32, #tpu.memory_space<vmem>>, vector<8x8x8xf32>
    tpu.vector_store %arg18[%c0_431, %c0_432, %c0_433], %801 {strides = array<i32>} : memref<8x16x8xf32, #tpu.memory_space<vmem>>, vector<8x8x8xf32>,
    %cst_434 = arith.constant 1.06666672 : f32
    %803 = vector.broadcast %cst_434 : f32 to vector<1x8x1xf32>
    %804 = arith.mulf %803, %22 : vector<1x8x1xf32>
    %805 = vector.broadcast %804 : vector<1x8x1xf32> to vector<8x8x1xf32>
    %806 = vector.broadcast %765 : vector<8x1x1xf32> to vector<8x8x1xf32>
    %807 = arith.addf %805, %806 : vector<8x8x1xf32>
    %cst_435 = arith.constant 1.000000e+00 : f32
    %808 = vector.broadcast %cst_435 : f32 to vector<8x8x1xf32>
    %809 = arith.addf %807, %808 : vector<8x8x1xf32>
    %cst_436 = arith.constant 7.500000e+00 : f32
    %810 = vector.broadcast %cst_436 : f32 to vector<8x8x1xf32>
    %811 = arith.mulf %809, %810 : vector<8x8x1xf32>
    %cst_437 = arith.constant 1.06666672 : f32
    %812 = vector.broadcast %cst_437 : f32 to vector<1x8x1xf32>
    %813 = arith.mulf %812, %22 : vector<1x8x1xf32>
    %814 = vector.broadcast %813 : vector<1x8x1xf32> to vector<8x8x1xf32>
    %815 = vector.broadcast %764 : vector<8x1x1xf32> to vector<8x8x1xf32>
    %816 = arith.addf %814, %815 : vector<8x8x1xf32>
    %cst_438 = arith.constant 1.000000e+00 : f32
    %817 = vector.broadcast %cst_438 : f32 to vector<8x8x1xf32>
    %818 = arith.addf %816, %817 : vector<8x8x1xf32>
    %cst_439 = arith.constant 7.500000e+00 : f32
    %819 = vector.broadcast %cst_439 : f32 to vector<8x8x1xf32>
    %820 = arith.mulf %818, %819 : vector<8x8x1xf32>
    %821 = vector.broadcast %811 : vector<8x8x1xf32> to vector<8x8x16xf32>
    %822 = vector.broadcast %24 : vector<1x8x16xf32> to vector<8x8x16xf32>
    %823 = arith.subf %821, %822 : vector<8x8x16xf32>
    %824 = math.absf %823 : vector<8x8x16xf32>
    %cst_440 = arith.constant 1.000000e+00 : f32
    %825 = vector.broadcast %cst_440 : f32 to vector<8x8x16xf32>
    %826 = arith.subf %825, %824 : vector<8x8x16xf32>
    %cst_441 = arith.constant 0.000000e+00 : f32
    %827 = vector.broadcast %cst_441 : f32 to vector<8x8x16xf32>
    %828 = arith.maximumf %826, %827 : vector<8x8x16xf32>
    %829 = vector.broadcast %820 : vector<8x8x1xf32> to vector<8x8x16xf32>
    %830 = vector.broadcast %26 : vector<1x8x16xf32> to vector<8x8x16xf32>
    %831 = arith.subf %829, %830 : vector<8x8x16xf32>
    %832 = math.absf %831 : vector<8x8x16xf32>
    %cst_442 = arith.constant 1.000000e+00 : f32
    %833 = vector.broadcast %cst_442 : f32 to vector<8x8x16xf32>
    %834 = arith.subf %833, %832 : vector<8x8x16xf32>
    %cst_443 = arith.constant 0.000000e+00 : f32
    %835 = vector.broadcast %cst_443 : f32 to vector<8x8x16xf32>
    %836 = arith.maximumf %834, %835 : vector<8x8x16xf32>
    "tpu.trace_start"() <{level = 10 : i32, message = "bgh,bhw->bgw"}> : () -> ()
    %cst_444 = arith.constant dense<0.000000e+00> : vector<8x8x16xf32>
    %837 = tpu.matmul %828, %0, %cst_444 {dimension_numbers = #tpu.dot_dimension_numbers<[2], [1], [1], [2], [0, 0, 0, 1, 1, 2], [0], [0]>} : vector<8x8x16xf32>, vector<8x16x16xf32>, vector<8x8x16xf32> -> vector<8x8x16xf32>
    "tpu.trace_stop"() : () -> ()
    "tpu.trace_start"() <{level = 10 : i32, message = "bgw,bpw->bgp"}> : () -> ()
    %cst_445 = arith.constant dense<0.000000e+00> : vector<8x8x8xf32>
    %838 = tpu.matmul %837, %836, %cst_445 {dimension_numbers = #tpu.dot_dimension_numbers<[2], [2], [1], [1], [0, 0, 0, 1, 1, 1], [0], [0]>} : vector<8x8x16xf32>, vector<8x8x16xf32>, vector<8x8x8xf32> -> vector<8x8x8xf32>
    "tpu.trace_stop"() : () -> ()
    %c0_446 = arith.constant 0 : index
    %c8_447 = arith.constant 8 : index
    %c0_448 = arith.constant 0 : index
    %839 = vector.load %arg18[%c0_446, %c8_447, %c0_448] : memref<8x16x8xf32, #tpu.memory_space<vmem>>, vector<8x8x8xf32>
    tpu.vector_store %arg18[%c0_446, %c8_447, %c0_448], %838 {strides = array<i32>} : memref<8x16x8xf32, #tpu.memory_space<vmem>>, vector<8x8x8xf32>,
    %cst_449 = arith.constant 0.000000e+00 : f32
    %840 = vector.broadcast %cst_449 : f32 to vector<8x32xf32>
    %c0_450 = arith.constant 0 : index
    %c0_451 = arith.constant 0 : index
    %c0_452 = arith.constant 0 : index
    %841 = vector.load %arg18[%c0_450, %c0_451, %c0_452] : memref<8x16x8xf32, #tpu.memory_space<vmem>>, vector<8x1x8xf32>
    %842 = vector.shape_cast %841 : vector<8x1x8xf32> to vector<8x8xf32>
    %843 = vector.extract_strided_slice %1 {offsets = [0, 0], sizes = [8, 32], strides = [1, 1]} : vector<128x32xf32> to vector<8x32xf32>
    %cst_453 = arith.constant dense<0.000000e+00> : vector<8x32xf32>
    %844 = tpu.matmul %842, %843, %cst_453 {dimension_numbers = #tpu.dot_dimension_numbers<[1], [0], [0], [1], [0, 0, 1, 1], [], []>} : vector<8x8xf32>, vector<8x32xf32>, vector<8x32xf32> -> vector<8x32xf32>
    %845 = arith.addf %840, %844 : vector<8x32xf32>
    %c0_454 = arith.constant 0 : index
    %c1_455 = arith.constant 1 : index
    %c0_456 = arith.constant 0 : index
    %846 = vector.load %arg18[%c0_454, %c1_455, %c0_456] : memref<8x16x8xf32, #tpu.memory_space<vmem>>, vector<8x1x8xf32>
    %847 = vector.shape_cast %846 : vector<8x1x8xf32> to vector<8x8xf32>
    %848 = vector.extract_strided_slice %1 {offsets = [8, 0], sizes = [8, 32], strides = [1, 1]} : vector<128x32xf32> to vector<8x32xf32>
    %cst_457 = arith.constant dense<0.000000e+00> : vector<8x32xf32>
    %849 = tpu.matmul %847, %848, %cst_457 {dimension_numbers = #tpu.dot_dimension_numbers<[1], [0], [0], [1], [0, 0, 1, 1], [], []>} : vector<8x8xf32>, vector<8x32xf32>, vector<8x32xf32> -> vector<8x32xf32>
    %850 = arith.addf %845, %849 : vector<8x32xf32>
    %c0_458 = arith.constant 0 : index
    %c2_459 = arith.constant 2 : index
    %c0_460 = arith.constant 0 : index
    %851 = vector.load %arg18[%c0_458, %c2_459, %c0_460] : memref<8x16x8xf32, #tpu.memory_space<vmem>>, vector<8x1x8xf32>
    %852 = vector.shape_cast %851 : vector<8x1x8xf32> to vector<8x8xf32>
    %853 = vector.extract_strided_slice %1 {offsets = [16, 0], sizes = [8, 32], strides = [1, 1]} : vector<128x32xf32> to vector<8x32xf32>
    %cst_461 = arith.constant dense<0.000000e+00> : vector<8x32xf32>
    %854 = tpu.matmul %852, %853, %cst_461 {dimension_numbers = #tpu.dot_dimension_numbers<[1], [0], [0], [1], [0, 0, 1, 1], [], []>} : vector<8x8xf32>, vector<8x32xf32>, vector<8x32xf32> -> vector<8x32xf32>
    %855 = arith.addf %850, %854 : vector<8x32xf32>
    %c0_462 = arith.constant 0 : index
    %c3_463 = arith.constant 3 : index
    %c0_464 = arith.constant 0 : index
    %856 = vector.load %arg18[%c0_462, %c3_463, %c0_464] : memref<8x16x8xf32, #tpu.memory_space<vmem>>, vector<8x1x8xf32>
    %857 = vector.shape_cast %856 : vector<8x1x8xf32> to vector<8x8xf32>
    %858 = vector.extract_strided_slice %1 {offsets = [24, 0], sizes = [8, 32], strides = [1, 1]} : vector<128x32xf32> to vector<8x32xf32>
    %cst_465 = arith.constant dense<0.000000e+00> : vector<8x32xf32>
    %859 = tpu.matmul %857, %858, %cst_465 {dimension_numbers = #tpu.dot_dimension_numbers<[1], [0], [0], [1], [0, 0, 1, 1], [], []>} : vector<8x8xf32>, vector<8x32xf32>, vector<8x32xf32> -> vector<8x32xf32>
    %860 = arith.addf %855, %859 : vector<8x32xf32>
    %c0_466 = arith.constant 0 : index
    %c4_467 = arith.constant 4 : index
    %c0_468 = arith.constant 0 : index
    %861 = vector.load %arg18[%c0_466, %c4_467, %c0_468] : memref<8x16x8xf32, #tpu.memory_space<vmem>>, vector<8x1x8xf32>
    %862 = vector.shape_cast %861 : vector<8x1x8xf32> to vector<8x8xf32>
    %863 = vector.extract_strided_slice %1 {offsets = [32, 0], sizes = [8, 32], strides = [1, 1]} : vector<128x32xf32> to vector<8x32xf32>
    %cst_469 = arith.constant dense<0.000000e+00> : vector<8x32xf32>
    %864 = tpu.matmul %862, %863, %cst_469 {dimension_numbers = #tpu.dot_dimension_numbers<[1], [0], [0], [1], [0, 0, 1, 1], [], []>} : vector<8x8xf32>, vector<8x32xf32>, vector<8x32xf32> -> vector<8x32xf32>
    %865 = arith.addf %860, %864 : vector<8x32xf32>
    %c0_470 = arith.constant 0 : index
    %c5_471 = arith.constant 5 : index
    %c0_472 = arith.constant 0 : index
    %866 = vector.load %arg18[%c0_470, %c5_471, %c0_472] : memref<8x16x8xf32, #tpu.memory_space<vmem>>, vector<8x1x8xf32>
    %867 = vector.shape_cast %866 : vector<8x1x8xf32> to vector<8x8xf32>
    %868 = vector.extract_strided_slice %1 {offsets = [40, 0], sizes = [8, 32], strides = [1, 1]} : vector<128x32xf32> to vector<8x32xf32>
    %cst_473 = arith.constant dense<0.000000e+00> : vector<8x32xf32>
    %869 = tpu.matmul %867, %868, %cst_473 {dimension_numbers = #tpu.dot_dimension_numbers<[1], [0], [0], [1], [0, 0, 1, 1], [], []>} : vector<8x8xf32>, vector<8x32xf32>, vector<8x32xf32> -> vector<8x32xf32>
    %870 = arith.addf %865, %869 : vector<8x32xf32>
    %c0_474 = arith.constant 0 : index
    %c6_475 = arith.constant 6 : index
    %c0_476 = arith.constant 0 : index
    %871 = vector.load %arg18[%c0_474, %c6_475, %c0_476] : memref<8x16x8xf32, #tpu.memory_space<vmem>>, vector<8x1x8xf32>
    %872 = vector.shape_cast %871 : vector<8x1x8xf32> to vector<8x8xf32>
    %873 = vector.extract_strided_slice %1 {offsets = [48, 0], sizes = [8, 32], strides = [1, 1]} : vector<128x32xf32> to vector<8x32xf32>
    %cst_477 = arith.constant dense<0.000000e+00> : vector<8x32xf32>
    %874 = tpu.matmul %872, %873, %cst_477 {dimension_numbers = #tpu.dot_dimension_numbers<[1], [0], [0], [1], [0, 0, 1, 1], [], []>} : vector<8x8xf32>, vector<8x32xf32>, vector<8x32xf32> -> vector<8x32xf32>
    %875 = arith.addf %870, %874 : vector<8x32xf32>
    %c0_478 = arith.constant 0 : index
    %c7_479 = arith.constant 7 : index
    %c0_480 = arith.constant 0 : index
    %876 = vector.load %arg18[%c0_478, %c7_479, %c0_480] : memref<8x16x8xf32, #tpu.memory_space<vmem>>, vector<8x1x8xf32>
    %877 = vector.shape_cast %876 : vector<8x1x8xf32> to vector<8x8xf32>
    %878 = vector.extract_strided_slice %1 {offsets = [56, 0], sizes = [8, 32], strides = [1, 1]} : vector<128x32xf32> to vector<8x32xf32>
    %cst_481 = arith.constant dense<0.000000e+00> : vector<8x32xf32>
    %879 = tpu.matmul %877, %878, %cst_481 {dimension_numbers = #tpu.dot_dimension_numbers<[1], [0], [0], [1], [0, 0, 1, 1], [], []>} : vector<8x8xf32>, vector<8x32xf32>, vector<8x32xf32> -> vector<8x32xf32>
    %880 = arith.addf %875, %879 : vector<8x32xf32>
    %c0_482 = arith.constant 0 : index
    %c8_483 = arith.constant 8 : index
    %c0_484 = arith.constant 0 : index
    %881 = vector.load %arg18[%c0_482, %c8_483, %c0_484] : memref<8x16x8xf32, #tpu.memory_space<vmem>>, vector<8x1x8xf32>
    %882 = vector.shape_cast %881 : vector<8x1x8xf32> to vector<8x8xf32>
    %883 = vector.extract_strided_slice %1 {offsets = [64, 0], sizes = [8, 32], strides = [1, 1]} : vector<128x32xf32> to vector<8x32xf32>
    %cst_485 = arith.constant dense<0.000000e+00> : vector<8x32xf32>
    %884 = tpu.matmul %882, %883, %cst_485 {dimension_numbers = #tpu.dot_dimension_numbers<[1], [0], [0], [1], [0, 0, 1, 1], [], []>} : vector<8x8xf32>, vector<8x32xf32>, vector<8x32xf32> -> vector<8x32xf32>
    %885 = arith.addf %880, %884 : vector<8x32xf32>
    %c0_486 = arith.constant 0 : index
    %c9_487 = arith.constant 9 : index
    %c0_488 = arith.constant 0 : index
    %886 = vector.load %arg18[%c0_486, %c9_487, %c0_488] : memref<8x16x8xf32, #tpu.memory_space<vmem>>, vector<8x1x8xf32>
    %887 = vector.shape_cast %886 : vector<8x1x8xf32> to vector<8x8xf32>
    %888 = vector.extract_strided_slice %1 {offsets = [72, 0], sizes = [8, 32], strides = [1, 1]} : vector<128x32xf32> to vector<8x32xf32>
    %cst_489 = arith.constant dense<0.000000e+00> : vector<8x32xf32>
    %889 = tpu.matmul %887, %888, %cst_489 {dimension_numbers = #tpu.dot_dimension_numbers<[1], [0], [0], [1], [0, 0, 1, 1], [], []>} : vector<8x8xf32>, vector<8x32xf32>, vector<8x32xf32> -> vector<8x32xf32>
    %890 = arith.addf %885, %889 : vector<8x32xf32>
    %c0_490 = arith.constant 0 : index
    %c10_491 = arith.constant 10 : index
    %c0_492 = arith.constant 0 : index
    %891 = vector.load %arg18[%c0_490, %c10_491, %c0_492] : memref<8x16x8xf32, #tpu.memory_space<vmem>>, vector<8x1x8xf32>
    %892 = vector.shape_cast %891 : vector<8x1x8xf32> to vector<8x8xf32>
    %893 = vector.extract_strided_slice %1 {offsets = [80, 0], sizes = [8, 32], strides = [1, 1]} : vector<128x32xf32> to vector<8x32xf32>
    %cst_493 = arith.constant dense<0.000000e+00> : vector<8x32xf32>
    %894 = tpu.matmul %892, %893, %cst_493 {dimension_numbers = #tpu.dot_dimension_numbers<[1], [0], [0], [1], [0, 0, 1, 1], [], []>} : vector<8x8xf32>, vector<8x32xf32>, vector<8x32xf32> -> vector<8x32xf32>
    %895 = arith.addf %890, %894 : vector<8x32xf32>
    %c0_494 = arith.constant 0 : index
    %c11_495 = arith.constant 11 : index
    %c0_496 = arith.constant 0 : index
    %896 = vector.load %arg18[%c0_494, %c11_495, %c0_496] : memref<8x16x8xf32, #tpu.memory_space<vmem>>, vector<8x1x8xf32>
    %897 = vector.shape_cast %896 : vector<8x1x8xf32> to vector<8x8xf32>
    %898 = vector.extract_strided_slice %1 {offsets = [88, 0], sizes = [8, 32], strides = [1, 1]} : vector<128x32xf32> to vector<8x32xf32>
    %cst_497 = arith.constant dense<0.000000e+00> : vector<8x32xf32>
    %899 = tpu.matmul %897, %898, %cst_497 {dimension_numbers = #tpu.dot_dimension_numbers<[1], [0], [0], [1], [0, 0, 1, 1], [], []>} : vector<8x8xf32>, vector<8x32xf32>, vector<8x32xf32> -> vector<8x32xf32>
    %900 = arith.addf %895, %899 : vector<8x32xf32>
    %c0_498 = arith.constant 0 : index
    %c12_499 = arith.constant 12 : index
    %c0_500 = arith.constant 0 : index
    %901 = vector.load %arg18[%c0_498, %c12_499, %c0_500] : memref<8x16x8xf32, #tpu.memory_space<vmem>>, vector<8x1x8xf32>
    %902 = vector.shape_cast %901 : vector<8x1x8xf32> to vector<8x8xf32>
    %903 = vector.extract_strided_slice %1 {offsets = [96, 0], sizes = [8, 32], strides = [1, 1]} : vector<128x32xf32> to vector<8x32xf32>
    %cst_501 = arith.constant dense<0.000000e+00> : vector<8x32xf32>
    %904 = tpu.matmul %902, %903, %cst_501 {dimension_numbers = #tpu.dot_dimension_numbers<[1], [0], [0], [1], [0, 0, 1, 1], [], []>} : vector<8x8xf32>, vector<8x32xf32>, vector<8x32xf32> -> vector<8x32xf32>
    %905 = arith.addf %900, %904 : vector<8x32xf32>
    %c0_502 = arith.constant 0 : index
    %c13_503 = arith.constant 13 : index
    %c0_504 = arith.constant 0 : index
    %906 = vector.load %arg18[%c0_502, %c13_503, %c0_504] : memref<8x16x8xf32, #tpu.memory_space<vmem>>, vector<8x1x8xf32>
    %907 = vector.shape_cast %906 : vector<8x1x8xf32> to vector<8x8xf32>
    %908 = vector.extract_strided_slice %1 {offsets = [104, 0], sizes = [8, 32], strides = [1, 1]} : vector<128x32xf32> to vector<8x32xf32>
    %cst_505 = arith.constant dense<0.000000e+00> : vector<8x32xf32>
    %909 = tpu.matmul %907, %908, %cst_505 {dimension_numbers = #tpu.dot_dimension_numbers<[1], [0], [0], [1], [0, 0, 1, 1], [], []>} : vector<8x8xf32>, vector<8x32xf32>, vector<8x32xf32> -> vector<8x32xf32>
    %910 = arith.addf %905, %909 : vector<8x32xf32>
    %c0_506 = arith.constant 0 : index
    %c14_507 = arith.constant 14 : index
    %c0_508 = arith.constant 0 : index
    %911 = vector.load %arg18[%c0_506, %c14_507, %c0_508] : memref<8x16x8xf32, #tpu.memory_space<vmem>>, vector<8x1x8xf32>
    %912 = vector.shape_cast %911 : vector<8x1x8xf32> to vector<8x8xf32>
    %913 = vector.extract_strided_slice %1 {offsets = [112, 0], sizes = [8, 32], strides = [1, 1]} : vector<128x32xf32> to vector<8x32xf32>
    %cst_509 = arith.constant dense<0.000000e+00> : vector<8x32xf32>
    %914 = tpu.matmul %912, %913, %cst_509 {dimension_numbers = #tpu.dot_dimension_numbers<[1], [0], [0], [1], [0, 0, 1, 1], [], []>} : vector<8x8xf32>, vector<8x32xf32>, vector<8x32xf32> -> vector<8x32xf32>
    %915 = arith.addf %910, %914 : vector<8x32xf32>
    %c0_510 = arith.constant 0 : index
    %c15_511 = arith.constant 15 : index
    %c0_512 = arith.constant 0 : index
    %916 = vector.load %arg18[%c0_510, %c15_511, %c0_512] : memref<8x16x8xf32, #tpu.memory_space<vmem>>, vector<8x1x8xf32>
    %917 = vector.shape_cast %916 : vector<8x1x8xf32> to vector<8x8xf32>
    %918 = vector.extract_strided_slice %1 {offsets = [120, 0], sizes = [8, 32], strides = [1, 1]} : vector<128x32xf32> to vector<8x32xf32>
    %cst_513 = arith.constant dense<0.000000e+00> : vector<8x32xf32>
    %919 = tpu.matmul %917, %918, %cst_513 {dimension_numbers = #tpu.dot_dimension_numbers<[1], [0], [0], [1], [0, 0, 1, 1], [], []>} : vector<8x8xf32>, vector<8x32xf32>, vector<8x32xf32> -> vector<8x32xf32>
    %920 = arith.addf %915, %919 : vector<8x32xf32>
    %921 = vector.broadcast %2 : vector<1x32xf32> to vector<8x32xf32>
    %922 = arith.addf %920, %921 : vector<8x32xf32>
    %cst_514 = arith.constant 0.000000e+00 : f32
    %923 = vector.broadcast %cst_514 : f32 to vector<8x32xf32>
    %924 = arith.maximumf %922, %923 : vector<8x32xf32>
    %925 = vector.extract_strided_slice %763 {offsets = [0, 0], sizes = [8, 1], strides = [1, 1]} : vector<8x2xf32> to vector<8x1xf32>
    %926 = vector.extract_strided_slice %3 {offsets = [0, 0], sizes = [1, 32], strides = [1, 1]} : vector<2x32xf32> to vector<1x32xf32>
    %927 = vector.broadcast %925 : vector<8x1xf32> to vector<8x32xf32>
    %928 = vector.broadcast %926 : vector<1x32xf32> to vector<8x32xf32>
    %929 = arith.mulf %927, %928 : vector<8x32xf32>
    %930 = vector.extract_strided_slice %763 {offsets = [0, 1], sizes = [8, 1], strides = [1, 1]} : vector<8x2xf32> to vector<8x1xf32>
    %931 = vector.extract_strided_slice %3 {offsets = [1, 0], sizes = [1, 32], strides = [1, 1]} : vector<2x32xf32> to vector<1x32xf32>
    %932 = vector.broadcast %930 : vector<8x1xf32> to vector<8x32xf32>
    %933 = vector.broadcast %931 : vector<1x32xf32> to vector<8x32xf32>
    %934 = arith.mulf %932, %933 : vector<8x32xf32>
    %935 = arith.addf %929, %934 : vector<8x32xf32>
    %936 = vector.broadcast %4 : vector<1x32xf32> to vector<8x32xf32>
    %937 = arith.addf %935, %936 : vector<8x32xf32>
    %cst_515 = arith.constant 0.000000e+00 : f32
    %938 = vector.broadcast %cst_515 : f32 to vector<8x32xf32>
    %939 = arith.maximumf %937, %938 : vector<8x32xf32>
    %cst_516 = arith.constant dense<0.000000e+00> : vector<8x32xf32>
    %940 = tpu.matmul %924, %5, %cst_516 {dimension_numbers = #tpu.dot_dimension_numbers<[1], [0], [0], [1], [0, 0, 1, 1], [], []>} : vector<8x32xf32>, vector<32x32xf32>, vector<8x32xf32> -> vector<8x32xf32>
    %cst_517 = arith.constant dense<0.000000e+00> : vector<8x32xf32>
    %941 = tpu.matmul %939, %6, %cst_517 {dimension_numbers = #tpu.dot_dimension_numbers<[1], [0], [0], [1], [0, 0, 1, 1], [], []>} : vector<8x32xf32>, vector<32x32xf32>, vector<8x32xf32> -> vector<8x32xf32>
    %942 = arith.addf %940, %941 : vector<8x32xf32>
    %943 = vector.broadcast %7 : vector<1x32xf32> to vector<8x32xf32>
    %944 = arith.addf %942, %943 : vector<8x32xf32>
    %cst_518 = arith.constant 0.000000e+00 : f32
    %945 = vector.broadcast %cst_518 : f32 to vector<8x32xf32>
    %946 = arith.maximumf %944, %945 : vector<8x32xf32>
    %cst_519 = arith.constant dense<0.000000e+00> : vector<8x128xf32>
    %947 = tpu.matmul %946, %8, %cst_519 {dimension_numbers = #tpu.dot_dimension_numbers<[1], [0], [0], [1], [0, 0, 1, 1], [], []>} : vector<8x32xf32>, vector<32x128xf32>, vector<8x128xf32> -> vector<8x128xf32>
    %cst_520 = arith.constant dense<0.000000e+00> : vector<8x128xf32>
    %948 = tpu.matmul %731, %9, %cst_520 {dimension_numbers = #tpu.dot_dimension_numbers<[1], [0], [0], [1], [0, 0, 1, 1], [], []>} : vector<8x32xf32>, vector<32x128xf32>, vector<8x128xf32> -> vector<8x128xf32>
    %949 = arith.addf %947, %948 : vector<8x128xf32>
    %950 = vector.broadcast %10 : vector<1x128xf32> to vector<8x128xf32>
    %951 = arith.addf %949, %950 : vector<8x128xf32>
    %952 = vector.extract_strided_slice %951 {offsets = [0, 0], sizes = [8, 32], strides = [1, 1]} : vector<8x128xf32> to vector<8x32xf32>
    %953 = arith.negf %952 : vector<8x32xf32>
    %954 = math.exp %953 : vector<8x32xf32>
    %cst_521 = arith.constant 1.000000e+00 : f32
    %955 = vector.broadcast %cst_521 : f32 to vector<8x32xf32>
    %956 = arith.addf %955, %954 : vector<8x32xf32>
    %957 = arith.divf %955, %956 : vector<8x32xf32>
    %958 = vector.extract_strided_slice %951 {offsets = [0, 32], sizes = [8, 32], strides = [1, 1]} : vector<8x128xf32> to vector<8x32xf32>
    %959 = arith.negf %958 : vector<8x32xf32>
    %960 = math.exp %959 : vector<8x32xf32>
    %cst_522 = arith.constant 1.000000e+00 : f32
    %961 = vector.broadcast %cst_522 : f32 to vector<8x32xf32>
    %962 = arith.addf %961, %960 : vector<8x32xf32>
    %963 = arith.divf %961, %962 : vector<8x32xf32>
    %964 = vector.extract_strided_slice %951 {offsets = [0, 64], sizes = [8, 32], strides = [1, 1]} : vector<8x128xf32> to vector<8x32xf32>
    %965 = math.tanh %964 : vector<8x32xf32>
    %966 = vector.extract_strided_slice %951 {offsets = [0, 96], sizes = [8, 32], strides = [1, 1]} : vector<8x128xf32> to vector<8x32xf32>
    %967 = arith.negf %966 : vector<8x32xf32>
    %968 = math.exp %967 : vector<8x32xf32>
    %cst_523 = arith.constant 1.000000e+00 : f32
    %969 = vector.broadcast %cst_523 : f32 to vector<8x32xf32>
    %970 = arith.addf %969, %968 : vector<8x32xf32>
    %971 = arith.divf %969, %970 : vector<8x32xf32>
    %972 = arith.mulf %963, %729 : vector<8x32xf32>
    %973 = arith.mulf %957, %965 : vector<8x32xf32>
    %974 = arith.addf %972, %973 : vector<8x32xf32>
    %975 = math.tanh %974 : vector<8x32xf32>
    %976 = arith.mulf %971, %975 : vector<8x32xf32>
    %cst_524 = arith.constant dense<0.000000e+00> : vector<8x13xf32>
    %977 = tpu.matmul %976, %11, %cst_524 {dimension_numbers = #tpu.dot_dimension_numbers<[1], [0], [0], [1], [0, 0, 1, 1], [], []>} : vector<8x32xf32>, vector<32x13xf32>, vector<8x13xf32> -> vector<8x13xf32>
    %978 = vector.broadcast %12 : vector<1x13xf32> to vector<8x13xf32>
    %979 = arith.addf %977, %978 : vector<8x13xf32>
    %980 = vector.extract_strided_slice %979 {offsets = [0, 0], sizes = [8, 2], strides = [1, 1]} : vector<8x13xf32> to vector<8x2xf32>
    %981 = math.tanh %980 : vector<8x2xf32>
    %982 = vector.extract_strided_slice %979 {offsets = [0, 2], sizes = [8, 1], strides = [1, 1]} : vector<8x13xf32> to vector<8x1xf32>
    %983 = vector.extract_strided_slice %979 {offsets = [0, 3], sizes = [8, 10], strides = [1, 1]} : vector<8x13xf32> to vector<8x10xf32>
    %c3_525 = arith.constant 3 : index
    %c0_526 = arith.constant 0 : index
    %c0_527 = arith.constant 0 : index
    %984 = vector.load %arg2[%c3_525, %c0_526, %c0_527] : memref<4x8x2xf32, #tpu.memory_space<vmem>>, vector<1x8x2xf32>
    %985 = vector.shape_cast %984 : vector<1x8x2xf32> to vector<8x2xf32>
    %cst_528 = arith.constant 2.000000e-01 : f32
    %986 = vector.broadcast %cst_528 : f32 to vector<8x2xf32>
    %987 = arith.mulf %986, %985 : vector<8x2xf32>
    %988 = arith.addf %981, %987 : vector<8x2xf32>
    %989 = arith.subf %988, %981 : vector<8x2xf32>
    %cst_529 = arith.constant 2.000000e-01 : f32
    %990 = vector.broadcast %cst_529 : f32 to vector<8x2xf32>
    %991 = arith.divf %989, %990 : vector<8x2xf32>
    %992 = arith.mulf %991, %991 : vector<8x2xf32>
    %cst_530 = arith.constant -5.000000e-01 : f32
    %993 = vector.broadcast %cst_530 : f32 to vector<8x2xf32>
    %994 = arith.mulf %993, %992 : vector<8x2xf32>
    %cst_531 = arith.constant -1.60943794 : f32
    %995 = vector.broadcast %cst_531 : f32 to vector<8x2xf32>
    %996 = arith.subf %994, %995 : vector<8x2xf32>
    %cst_532 = arith.constant 0.918938517 : f32
    %997 = vector.broadcast %cst_532 : f32 to vector<8x2xf32>
    %998 = arith.subf %996, %997 : vector<8x2xf32>
    %cst_533 = arith.constant dense<0.000000e+00> : vector<8xf32>
    %999 = vector.multi_reduction <add>, %998, %cst_533 [1] : vector<8x2xf32> to vector<8xf32>
    %1000 = vector.shape_cast %999 : vector<8xf32> to vector<8x1xf32>
    %c0_534 = arith.constant 0 : index
    %c0_535 = arith.constant 0 : index
    %c0_536 = arith.constant 0 : index
    %1001 = vector.load %arg17[%c0_534, %c0_535, %c0_536] : memref<8x1x2xf32, #tpu.memory_space<vmem>>, vector<8x1x2xf32>
    %1002 = vector.shape_cast %1001 : vector<8x1x2xf32> to vector<8x2xf32>
    %1003 = vector.shape_cast %988 : vector<8x2xf32> to vector<8x1x2xf32>
    tpu.vector_store %arg17[%c0_534, %c0_535, %c0_536], %1003 {strides = array<i32>} : memref<8x1x2xf32, #tpu.memory_space<vmem>>, vector<8x1x2xf32>,
    %1004 = tpu.concatenate %988, %1000, %982 in 1 : vector<8x2xf32>, vector<8x1xf32>, vector<8x1xf32> -> vector<8x4xf32>
    %c3_537 = arith.constant 3 : index
    %c0_538 = arith.constant 0 : index
    %c0_539 = arith.constant 0 : index
    %1005 = vector.load %arg16[%c3_537, %c0_538, %c0_539] : memref<4x8x4xf32, #tpu.memory_space<vmem>>, vector<1x8x4xf32>
    %1006 = vector.shape_cast %1005 : vector<1x8x4xf32> to vector<8x4xf32>
    %1007 = vector.shape_cast %1004 : vector<8x4xf32> to vector<1x8x4xf32>
    tpu.vector_store %arg16[%c3_537, %c0_538, %c0_539], %1007 {strides = array<i32>} : memref<4x8x4xf32, #tpu.memory_space<vmem>>, vector<1x8x4xf32>,
    %cst_540 = arith.constant dense<0xFF800000> : vector<8xf32>
    %1008 = vector.multi_reduction <maximumf>, %983, %cst_540 [1] : vector<8x10xf32> to vector<8xf32>
    %1009 = vector.shape_cast %1008 : vector<8xf32> to vector<8x1xf32>
    %1010 = vector.broadcast %1009 : vector<8x1xf32> to vector<8x10xf32>
    %1011 = arith.subf %983, %1010 : vector<8x10xf32>
    %1012 = math.exp %1011 : vector<8x10xf32>
    %cst_541 = arith.constant dense<0.000000e+00> : vector<8xf32>
    %1013 = vector.multi_reduction <add>, %1012, %cst_541 [1] : vector<8x10xf32> to vector<8xf32>
    %1014 = vector.shape_cast %1013 : vector<8xf32> to vector<8x1xf32>
    %1015 = math.log %1014 : vector<8x1xf32>
    %1016 = arith.addf %1009, %1015 : vector<8x1xf32>
    %1017 = vector.broadcast %1016 : vector<8x1xf32> to vector<8x10xf32>
    %1018 = arith.subf %983, %1017 : vector<8x10xf32>
    %c0_542 = arith.constant 0 : index
    %c0_543 = arith.constant 0 : index
    %1019 = vector.load %arg15[%c0_542, %c0_543] : memref<8x10xf32, #tpu.memory_space<vmem>>, vector<8x10xf32>
    tpu.vector_store %arg15[%c0_542, %c0_543], %1018 {strides = array<i32>} : memref<8x10xf32, #tpu.memory_space<vmem>>, vector<8x10xf32>,
    return
  }
}

</mosaic_0001>

<llo_original>
// kernel: ram_forward.3
$region0: #{ram_forward.3}
  #allocation0 [shape = 'u32[]', space=smem, size = 0x4, offset = 0x4, fixed_abs, tag = 'smem constant byte address 0x4 - core index']
  #allocation1 [shape = 'u32[72,128]{1,0:T(1,128)}', space=vmem, size = 0x9000, scoped, tag = 'internal scratch']
  #allocation2 [shape = 'f32[8,1,2]{2,1,0:T(1,128)}', space=vmem, size = 0x1000, scoped, tag = 'scratch operand']
  #allocation3 [shape = 'f32[8,16,8]{2,1,0:T(8,128)}', space=vmem, size = 0x10000, scoped, tag = 'scratch operand']
  %s0 = inlined_call_operand.vmem [shape: f32[8,16,16], index: 0, kind: input, shape index: {}]
  %s1 = inlined_call_operand.vmem [shape: f32[8,1,2], index: 1, kind: input, shape index: {}]
  %s2 = inlined_call_operand.vmem [shape: f32[4,8,2], index: 2, kind: input, shape index: {}]
  %s3 = inlined_call_operand.vmem [shape: f32[128,32], index: 3, kind: input, shape index: {}]
  %s4 = inlined_call_operand.vmem [shape: f32[1,32], index: 4, kind: input, shape index: {}]
  %s5 = inlined_call_operand.vmem [shape: f32[2,32], index: 5, kind: input, shape index: {}]
  %s6 = inlined_call_operand.vmem [shape: f32[1,32], index: 6, kind: input, shape index: {}]
  %s7 = inlined_call_operand.vmem [shape: f32[32,32], index: 7, kind: input, shape index: {}]
  %s8 = inlined_call_operand.vmem [shape: f32[32,32], index: 8, kind: input, shape index: {}]
  %s9 = inlined_call_operand.vmem [shape: f32[1,32], index: 9, kind: input, shape index: {}]
  %s10 = inlined_call_operand.vmem [shape: f32[32,128], index: 10, kind: input, shape index: {}]
  %s11 = inlined_call_operand.vmem [shape: f32[32,128], index: 11, kind: input, shape index: {}]
  %s12 = inlined_call_operand.vmem [shape: f32[1,128], index: 12, kind: input, shape index: {}]
  %s13 = inlined_call_operand.vmem [shape: f32[32,13], index: 13, kind: input, shape index: {}]
  %s14 = inlined_call_operand.vmem [shape: f32[1,13], index: 14, kind: input, shape index: {}]
  %s15 = inlined_call_operand.vmem [shape: f32[8,10], index: 15, kind: output, shape index: {0}]
  %s16 = inlined_call_operand.vmem [shape: f32[4,8,4], index: 16, kind: output, shape index: {1}]
  %17 = xla_tuple %s15, %s16
  %s18 = sld [smem:[#allocation0]]
  $region78: #{ram_forward.3} parent=0
    _
  %s20 = ssub.s32 1, %s18
  %s21 = scalar_select 0, %s20, %s18
  // Predicated region
  $region2: #{ram_forward.3} parent=0 // pred_check
    _
  $region3: #{ram_forward.3} parent=0 // pred_check_branch
    %23 = sbr.rel (0) target = $region5
  $region4: #{ram_forward.3} parent=0 // pred_region
    _
  $region5: #{ram_forward.3} parent=0 // pred_fallthru
    _
  // Predicated region
  $region6: #{ram_forward.3} parent=0 // pred_check
    _
  $region7: #{ram_forward.3} parent=0 // pred_check_branch
    %25 = sbr.rel (0) target = $region9
  $region8: #{ram_forward.3} parent=0 // pred_region
    _
  $region9: #{ram_forward.3} parent=0 // pred_fallthru
    _
  // Predicated region
  $region10: #{ram_forward.3} parent=0 // pred_check
    _
  $region11: #{ram_forward.3} parent=0 // pred_check_branch
    %27 = sbr.rel (0) target = $region13
  $region12: #{ram_forward.3} parent=0 // pred_region
    _
  $region13: #{ram_forward.3} parent=0 // pred_fallthru
    _
  // Predicated region
  $region14: #{ram_forward.3} parent=0 // pred_check
    _
  $region15: #{ram_forward.3} parent=0 // pred_check_branch
    %29 = sbr.rel (0) target = $region17
  $region16: #{ram_forward.3} parent=0 // pred_region
    _
  $region17: #{ram_forward.3} parent=0 // pred_fallthru
    _
  // Predicated region
  $region18: #{ram_forward.3} parent=0 // pred_check
    _
  $region19: #{ram_forward.3} parent=0 // pred_check_branch
    %31 = sbr.rel (0) target = $region21
  $region20: #{ram_forward.3} parent=0 // pred_region
    _
  $region21: #{ram_forward.3} parent=0 // pred_fallthru
    _
  // Predicated region
  $region22: #{ram_forward.3} parent=0 // pred_check
    _
  $region23: #{ram_forward.3} parent=0 // pred_check_branch
    %33 = sbr.rel (0) target = $region25
  $region24: #{ram_forward.3} parent=0 // pred_region
    _
  $region25: #{ram_forward.3} parent=0 // pred_fallthru
    _
  // Predicated region
  $region26: #{ram_forward.3} parent=0 // pred_check
    _
  $region27: #{ram_forward.3} parent=0 // pred_check_branch
    %35 = sbr.rel (0) target = $region29
  $region28: #{ram_forward.3} parent=0 // pred_region
    _
  $region29: #{ram_forward.3} parent=0 // pred_fallthru
    _
  // Predicated region
  $region30: #{ram_forward.3} parent=0 // pred_check
    _
  $region31: #{ram_forward.3} parent=0 // pred_check_branch
    %37 = sbr.rel (0) target = $region33
  $region32: #{ram_forward.3} parent=0 // pred_region
    _
  $region33: #{ram_forward.3} parent=0 // pred_fallthru
    _
  // Predicated region
  $region34: #{ram_forward.3} parent=0 // pred_check
    _
  $region35: #{ram_forward.3} parent=0 // pred_check_branch
    %39 = sbr.rel (0) target = $region37
  $region36: #{ram_forward.3} parent=0 // pred_region
    _
  $region37: #{ram_forward.3} parent=0 // pred_fallthru
    _
  // Predicated region
  $region38: #{ram_forward.3} parent=0 // pred_check
    _
  $region39: #{ram_forward.3} parent=0 // pred_check_branch
    %41 = sbr.rel (0) target = $region41
  $region40: #{ram_forward.3} parent=0 // pred_region
    _
  $region41: #{ram_forward.3} parent=0 // pred_fallthru
    _
  // Predicated region
  $region42: #{ram_forward.3} parent=0 // pred_check
    _
  $region43: #{ram_forward.3} parent=0 // pred_check_branch
    %43 = sbr.rel (0) target = $region45
  $region44: #{ram_forward.3} parent=0 // pred_region
    _
  $region45: #{ram_forward.3} parent=0 // pred_fallthru
    _
  // Predicated region
  $region46: #{ram_forward.3} parent=0 // pred_check
    _
  $region47: #{ram_forward.3} parent=0 // pred_check_branch
    %45 = sbr.rel (0) target = $region49
  $region48: #{ram_forward.3} parent=0 // pred_region
    _
  $region49: #{ram_forward.3} parent=0 // pred_fallthru
    _
  // Predicated region
  $region50: #{ram_forward.3} parent=0 // pred_check
    _
  $region51: #{ram_forward.3} parent=0 // pred_check_branch
    %47 = sbr.rel (0) target = $region53
  $region52: #{ram_forward.3} parent=0 // pred_region
    _
  $region53: #{ram_forward.3} parent=0 // pred_fallthru
    _
  // Predicated region
  $region54: #{ram_forward.3} parent=0 // pred_check
    _
  $region55: #{ram_forward.3} parent=0 // pred_check_branch
    %49 = sbr.rel (0) target = $region57
  $region56: #{ram_forward.3} parent=0 // pred_region
    _
  $region57: #{ram_forward.3} parent=0 // pred_fallthru
    _
  // Predicated region
  $region58: #{ram_forward.3} parent=0 // pred_check
    _
  $region59: #{ram_forward.3} parent=0 // pred_check_branch
    %51 = sbr.rel (0) target = $region61
  $region60: #{ram_forward.3} parent=0 // pred_region
    _
  $region61: #{ram_forward.3} parent=0 // pred_fallthru
    _
  %v52 = vld [vmem:[%s0] sm:$0xff]
  %v53 = vld [vmem:[%s0 + $0x8] sm:$0xff]
  %v54 = vld [vmem:[%s0 + $0x10] sm:$0xff]
  %v55 = vld [vmem:[%s0 + $0x18] sm:$0xff]
  %v56 = vld [vmem:[%s0 + $0x20] sm:$0xff]
  %v57 = vld [vmem:[%s0 + $0x28] sm:$0xff]
  %v58 = vld [vmem:[%s0 + $0x30] sm:$0xff]
  %v59 = vld [vmem:[%s0 + $0x38] sm:$0xff]
  %v60 = vld [vmem:[%s0 + $0x40] sm:$0xff]
  %v61 = vld [vmem:[%s0 + $0x48] sm:$0xff]
  %v62 = vld [vmem:[%s0 + $0x50] sm:$0xff]
  %v63 = vld [vmem:[%s0 + $0x58] sm:$0xff]
  %v64 = vld [vmem:[%s0 + $0x60] sm:$0xff]
  %v65 = vld [vmem:[%s0 + $0x68] sm:$0xff]
  %v66 = vld [vmem:[%s0 + $0x70] sm:$0xff]
  %v67 = vld [vmem:[%s0 + $0x78] sm:$0xff]
  %v68 = vld [vmem:[%s3] sm:$0xff]
  %v69 = vld [vmem:[%s3 + $0x8] sm:$0xff]
  %v70 = vld [vmem:[%s3 + $0x10] sm:$0xff]
  %v71 = vld [vmem:[%s3 + $0x18] sm:$0xff]
  %v72 = vld [vmem:[%s3 + $0x20] sm:$0xff]
  %v73 = vld [vmem:[%s3 + $0x28] sm:$0xff]
  %v74 = vld [vmem:[%s3 + $0x30] sm:$0xff]
  %v75 = vld [vmem:[%s3 + $0x38] sm:$0xff]
  %v76 = vld [vmem:[%s3 + $0x40] sm:$0xff]
  %v77 = vld [vmem:[%s3 + $0x48] sm:$0xff]
  %v78 = vld [vmem:[%s3 + $0x50] sm:$0xff]
  %v79 = vld [vmem:[%s3 + $0x58] sm:$0xff]
  %v80 = vld [vmem:[%s3 + $0x60] sm:$0xff]
  %v81 = vld [vmem:[%s3 + $0x68] sm:$0xff]
  %v82 = vld [vmem:[%s3 + $0x70] sm:$0xff]
  %v83 = vld [vmem:[%s3 + $0x78] sm:$0xff]
  %v84 = vld [vmem:[%s4] sm:$0x1]
  %v85 = vld [vmem:[%s5] sm:$0x3]
  %v86 = vld [vmem:[%s6] sm:$0x1]
  %v87 = vld [vmem:[%s7] sm:$0xff]
  %v88 = vld [vmem:[%s7 + $0x8] sm:$0xff]
  %v89 = vld [vmem:[%s7 + $0x10] sm:$0xff]
  %v90 = vld [vmem:[%s7 + $0x18] sm:$0xff]
  %v91 = vld [vmem:[%s8] sm:$0xff]
  %v92 = vld [vmem:[%s8 + $0x8] sm:$0xff]
  %v93 = vld [vmem:[%s8 + $0x10] sm:$0xff]
  %v94 = vld [vmem:[%s8 + $0x18] sm:$0xff]
  %v95 = vld [vmem:[%s9] sm:$0x1]
  %v96 = vld [vmem:[%s10] sm:$0xff]
  %v97 = vld [vmem:[%s10 + $0x8] sm:$0xff]
  %v98 = vld [vmem:[%s10 + $0x10] sm:$0xff]
  %v99 = vld [vmem:[%s10 + $0x18] sm:$0xff]
  %v100 = vld [vmem:[%s11] sm:$0xff]
  %v101 = vld [vmem:[%s11 + $0x8] sm:$0xff]
  %v102 = vld [vmem:[%s11 + $0x10] sm:$0xff]
  %v103 = vld [vmem:[%s11 + $0x18] sm:$0xff]
  %v104 = vld [vmem:[%s12] sm:$0x1]
  %v105 = vld [vmem:[%s13] sm:$0xff]
  %v106 = vld [vmem:[%s13 + $0x8] sm:$0xff]
  %v107 = vld [vmem:[%s13 + $0x10] sm:$0xff]
  %v108 = vld [vmem:[%s13 + $0x18] sm:$0xff]
  %v109 = vld [vmem:[%s14] sm:$0x1]
  %v110 = vld [vmem:[%s1] sm:$0x1]
  %v111 = vld [vmem:[%s1 + $0x1] sm:$0x1]
  %v112 = vld [vmem:[%s1 + $0x2] sm:$0x1]
  %v113 = vld [vmem:[%s1 + $0x3] sm:$0x1]
  %v114 = vld [vmem:[%s1 + $0x4] sm:$0x1]
  %v115 = vld [vmem:[%s1 + $0x5] sm:$0x1]
  %v116 = vld [vmem:[%s1 + $0x6] sm:$0x1]
  %v117 = vld [vmem:[%s1 + $0x7] sm:$0x1]
  %vm118 = vcmask 8192
  %119 = vst.msk [vmem:[#allocation2] sm:$0x1] %vm118, %v110
  %120 = vst.msk [vmem:[#allocation2 + $0x1] sm:$0x1] %vm118, %v111
  %121 = vst.msk [vmem:[#allocation2 + $0x2] sm:$0x1] %vm118, %v112
  %122 = vst.msk [vmem:[#allocation2 + $0x3] sm:$0x1] %vm118, %v113
  %123 = vst.msk [vmem:[#allocation2 + $0x4] sm:$0x1] %vm118, %v114
  %124 = vst.msk [vmem:[#allocation2 + $0x5] sm:$0x1] %vm118, %v115
  %125 = vst.msk [vmem:[#allocation2 + $0x6] sm:$0x1] %vm118, %v116
  %126 = vst.msk [vmem:[#allocation2 + $0x7] sm:$0x1] %vm118, %v117
  %v127 = vlaneseq
  %v128 = vshrl.u32 %v127, 7
  %v129 = vcvt.s32.f32 %v128
  %v130 = vmul.f32 %v129, 0.2857143
  %v131 = vsub.f32 %v130, 1.0
  %v132 = vlaneseq
  %v133 = vand.u32 %v132, 127
  %v134 = vcvt.s32.f32 %v133
  %v135 = vld [vmem:[#allocation2] sm:$0x1]
  %v136 = vld [vmem:[#allocation2 + $0x1] sm:$0x1]
  %v137 = vld [vmem:[#allocation2 + $0x2] sm:$0x1]
  %v138 = vld [vmem:[#allocation2 + $0x3] sm:$0x1]
  %v139 = vld [vmem:[#allocation2 + $0x4] sm:$0x1]
  %v140 = vld [vmem:[#allocation2 + $0x5] sm:$0x1]
  %v141 = vld [vmem:[#allocation2 + $0x6] sm:$0x1]
  %v142 = vld [vmem:[#allocation2 + $0x7] sm:$0x1]
  %v143 = vmul.f32 %v131, 0.53333336
  %v152 = vperm.slane %v135, 0
  %v153 = vperm.slane %v136, 0
  %v154 = vperm.slane %v137, 0
  %v155 = vperm.slane %v138, 0
  %v156 = vperm.slane %v139, 0
  %v157 = vperm.slane %v140, 0
  %v158 = vperm.slane %v141, 0
  %v159 = vperm.slane %v142, 0
  %v168 = vadd.f32 %v143, %v152
  %v169 = vadd.f32 %v143, %v153
  %v170 = vadd.f32 %v143, %v154
  %v171 = vadd.f32 %v143, %v155
  %v172 = vadd.f32 %v143, %v156
  %v173 = vadd.f32 %v143, %v157
  %v174 = vadd.f32 %v143, %v158
  %v175 = vadd.f32 %v143, %v159
  %v176 = vadd.f32 %v168, 1.0
  %v177 = vadd.f32 %v169, 1.0
  %v178 = vadd.f32 %v170, 1.0
  %v179 = vadd.f32 %v171, 1.0
  %v180 = vadd.f32 %v172, 1.0
  %v181 = vadd.f32 %v173, 1.0
  %v182 = vadd.f32 %v174, 1.0
  %v183 = vadd.f32 %v175, 1.0
  %v184 = vmul.f32 %v176, 7.5
  %v185 = vmul.f32 %v177, 7.5
  %v186 = vmul.f32 %v178, 7.5
  %v187 = vmul.f32 %v179, 7.5
  %v188 = vmul.f32 %v180, 7.5
  %v189 = vmul.f32 %v181, 7.5
  %v190 = vmul.f32 %v182, 7.5
  %v191 = vmul.f32 %v183, 7.5
  %193 = vset.pattern.permute.xlu0 1
  %194 = vperm.xlu0 %193, %v184
  %v195 = vpop.permute.xlu0 %194
  %198 = vset.pattern.permute.xlu0 1
  %199 = vperm.xlu0 %198, %v185
  %v200 = vpop.permute.xlu0 %199
  %203 = vset.pattern.permute.xlu0 1
  %204 = vperm.xlu0 %203, %v186
  %v205 = vpop.permute.xlu0 %204
  %208 = vset.pattern.permute.xlu0 1
  %209 = vperm.xlu0 %208, %v187
  %v210 = vpop.permute.xlu0 %209
  %213 = vset.pattern.permute.xlu0 1
  %214 = vperm.xlu0 %213, %v188
  %v215 = vpop.permute.xlu0 %214
  %218 = vset.pattern.permute.xlu0 1
  %219 = vperm.xlu0 %218, %v189
  %v220 = vpop.permute.xlu0 %219
  %223 = vset.pattern.permute.xlu0 1
  %224 = vperm.xlu0 %223, %v190
  %v225 = vpop.permute.xlu0 %224
  %228 = vset.pattern.permute.xlu0 1
  %229 = vperm.xlu0 %228, %v191
  %v230 = vpop.permute.xlu0 %229
  %v232 = vsub.f32 %v195, %v134
  %v233 = vsub.f32 %v200, %v134
  %v234 = vsub.f32 %v205, %v134
  %v235 = vsub.f32 %v210, %v134
  %v236 = vsub.f32 %v215, %v134
  %v237 = vsub.f32 %v220, %v134
  %v238 = vsub.f32 %v225, %v134
  %v239 = vsub.f32 %v230, %v134
  %v240 = vand.u32 2147483647, %v232
  %v241 = vand.u32 2147483647, %v233
  %v242 = vand.u32 2147483647, %v234
  %v243 = vand.u32 2147483647, %v235
  %v244 = vand.u32 2147483647, %v236
  %v245 = vand.u32 2147483647, %v237
  %v246 = vand.u32 2147483647, %v238
  %v247 = vand.u32 2147483647, %v239
  %v248 = vsub.f32 1.0, %v240
  %v249 = vsub.f32 1.0, %v241
  %v250 = vsub.f32 1.0, %v242
  %v251 = vsub.f32 1.0, %v243
  %v252 = vsub.f32 1.0, %v244
  %v253 = vsub.f32 1.0, %v245
  %v254 = vsub.f32 1.0, %v246
  %v255 = vsub.f32 1.0, %v247
  %v256 = vmax.f32 %v248, 0.0
  %v257 = vmax.f32 %v249, 0.0
  %v258 = vmax.f32 %v250, 0.0
  %v259 = vmax.f32 %v251, 0.0
  %v260 = vmax.f32 %v252, 0.0
  %v261 = vmax.f32 %v253, 0.0
  %v262 = vmax.f32 %v254, 0.0
  %v263 = vmax.f32 %v255, 0.0
  %264 = vset.pattern.permute.xlu0 0
  %265 = vperm.xlu0 %264, %v184
  %v266 = vpop.permute.xlu0 %265
  %268 = vset.pattern.permute.xlu0 0
  %269 = vperm.xlu0 %268, %v185
  %v270 = vpop.permute.xlu0 %269
  %272 = vset.pattern.permute.xlu0 0
  %273 = vperm.xlu0 %272, %v186
  %v274 = vpop.permute.xlu0 %273
  %276 = vset.pattern.permute.xlu0 0
  %277 = vperm.xlu0 %276, %v187
  %v278 = vpop.permute.xlu0 %277
  %280 = vset.pattern.permute.xlu0 0
  %281 = vperm.xlu0 %280, %v188
  %v282 = vpop.permute.xlu0 %281
  %284 = vset.pattern.permute.xlu0 0
  %285 = vperm.xlu0 %284, %v189
  %v286 = vpop.permute.xlu0 %285
  %288 = vset.pattern.permute.xlu0 0
  %289 = vperm.xlu0 %288, %v190
  %v290 = vpop.permute.xlu0 %289
  %292 = vset.pattern.permute.xlu0 0
  %293 = vperm.xlu0 %292, %v191
  %v294 = vpop.permute.xlu0 %293
  %v296 = vsub.f32 %v266, %v134
  %v297 = vsub.f32 %v270, %v134
  %v298 = vsub.f32 %v274, %v134
  %v299 = vsub.f32 %v278, %v134
  %v300 = vsub.f32 %v282, %v134
  %v301 = vsub.f32 %v286, %v134
  %v302 = vsub.f32 %v290, %v134
  %v303 = vsub.f32 %v294, %v134
  %v304 = vand.u32 2147483647, %v296
  %v305 = vand.u32 2147483647, %v297
  %v306 = vand.u32 2147483647, %v298
  %v307 = vand.u32 2147483647, %v299
  %v308 = vand.u32 2147483647, %v300
  %v309 = vand.u32 2147483647, %v301
  %v310 = vand.u32 2147483647, %v302
  %v311 = vand.u32 2147483647, %v303
  %v312 = vsub.f32 1.0, %v304
  %v313 = vsub.f32 1.0, %v305
  %v314 = vsub.f32 1.0, %v306
  %v315 = vsub.f32 1.0, %v307
  %v316 = vsub.f32 1.0, %v308
  %v317 = vsub.f32 1.0, %v309
  %v318 = vsub.f32 1.0, %v310
  %v319 = vsub.f32 1.0, %v311
  %v320 = vmax.f32 %v312, 0.0
  %v321 = vmax.f32 %v313, 0.0
  %v322 = vmax.f32 %v314, 0.0
  %v323 = vmax.f32 %v315, 0.0
  %v324 = vmax.f32 %v316, 0.0
  %v325 = vmax.f32 %v317, 0.0
  %v326 = vmax.f32 %v318, 0.0
  %v327 = vmax.f32 %v319, 0.0
  %vm328 = vcmask 130048
  %v330 = vsel %vm328, %v256, 0
  %332 = vmatpush.msra.mxu0 0.0
  %333 = vmatpush.msra.mxu0 0.0
  %334 = vmatpush.msra.mxu0 0.0
  %335 = vmatpush.msra.mxu0 0.0
  %336 = vmatpush.msra.mxu0 0.0
  %337 = vmatpush.msra.mxu0 0.0
  %338 = vmatpush.msra.mxu0 0.0
  %339 = vmatpush.msra.mxu0 0.0
  %340 = vmatpush.msra.mxu0 0.0
  %341 = vmatpush.msra.mxu0 0.0
  %342 = vmatpush.msra.mxu0 0.0
  %343 = vmatpush.msra.mxu0 0.0
  %344 = vmatpush.msra.mxu0 0.0
  %345 = vmatpush.msra.mxu0 0.0
  %346 = vmatpush.msra.mxu0 %v53
  %347 = vmatpush.msra.mxu0 %v52
  %348 = vmatmul.f32.gmra.mxu0 %v330
  %v349 = vpop.f32.mrf.mxu0
  %v350 = vadd.f32 0.0, %v349
  %351 = vdwg.mxu0
  %v353 = vsel %vm328, %v257, 0
  %355 = vmatpush.msra.mxu0 0.0
  %356 = vmatpush.msra.mxu0 0.0
  %357 = vmatpush.msra.mxu0 0.0
  %358 = vmatpush.msra.mxu0 0.0
  %359 = vmatpush.msra.mxu0 0.0
  %360 = vmatpush.msra.mxu0 0.0
  %361 = vmatpush.msra.mxu0 0.0
  %362 = vmatpush.msra.mxu0 0.0
  %363 = vmatpush.msra.mxu0 0.0
  %364 = vmatpush.msra.mxu0 0.0
  %365 = vmatpush.msra.mxu0 0.0
  %366 = vmatpush.msra.mxu0 0.0
  %367 = vmatpush.msra.mxu0 0.0
  %368 = vmatpush.msra.mxu0 0.0
  %369 = vmatpush.msra.mxu0 %v55
  %370 = vmatpush.msra.mxu0 %v54
  %371 = vmatmul.f32.gmra.mxu0 %v353
  %v372 = vpop.f32.mrf.mxu0
  %v373 = vadd.f32 0.0, %v372
  %374 = vdwg.mxu0
  %v376 = vsel %vm328, %v258, 0
  %378 = vmatpush.msra.mxu0 0.0
  %379 = vmatpush.msra.mxu0 0.0
  %380 = vmatpush.msra.mxu0 0.0
  %381 = vmatpush.msra.mxu0 0.0
  %382 = vmatpush.msra.mxu0 0.0
  %383 = vmatpush.msra.mxu0 0.0
  %384 = vmatpush.msra.mxu0 0.0
  %385 = vmatpush.msra.mxu0 0.0
  %386 = vmatpush.msra.mxu0 0.0
  %387 = vmatpush.msra.mxu0 0.0
  %388 = vmatpush.msra.mxu0 0.0
  %389 = vmatpush.msra.mxu0 0.0
  %390 = vmatpush.msra.mxu0 0.0
  %391 = vmatpush.msra.mxu0 0.0
  %392 = vmatpush.msra.mxu0 %v57
  %393 = vmatpush.msra.mxu0 %v56
  %394 = vmatmul.f32.gmra.mxu0 %v376
  %v395 = vpop.f32.mrf.mxu0
  %v396 = vadd.f32 0.0, %v395
  %397 = vdwg.mxu0
  %v399 = vsel %vm328, %v259, 0
  %401 = vmatpush.msra.mxu0 0.0
  %402 = vmatpush.msra.mxu0 0.0
  %403 = vmatpush.msra.mxu0 0.0
  %404 = vmatpush.msra.mxu0 0.0
  %405 = vmatpush.msra.mxu0 0.0
  %406 = vmatpush.msra.mxu0 0.0
  %407 = vmatpush.msra.mxu0 0.0
  %408 = vmatpush.msra.mxu0 0.0
  %409 = vmatpush.msra.mxu0 0.0
  %410 = vmatpush.msra.mxu0 0.0
  %411 = vmatpush.msra.mxu0 0.0
  %412 = vmatpush.msra.mxu0 0.0
  %413 = vmatpush.msra.mxu0 0.0
  %414 = vmatpush.msra.mxu0 0.0
  %415 = vmatpush.msra.mxu0 %v59
  %416 = vmatpush.msra.mxu0 %v58
  %417 = vmatmul.f32.gmra.mxu0 %v399
  %v418 = vpop.f32.mrf.mxu0
  %v419 = vadd.f32 0.0, %v418
  %420 = vdwg.mxu0
  %v422 = vsel %vm328, %v260, 0
  %424 = vmatpush.msra.mxu0 0.0
  %425 = vmatpush.msra.mxu0 0.0
  %426 = vmatpush.msra.mxu0 0.0
  %427 = vmatpush.msra.mxu0 0.0
  %428 = vmatpush.msra.mxu0 0.0
  %429 = vmatpush.msra.mxu0 0.0
  %430 = vmatpush.msra.mxu0 0.0
  %431 = vmatpush.msra.mxu0 0.0
  %432 = vmatpush.msra.mxu0 0.0
  %433 = vmatpush.msra.mxu0 0.0
  %434 = vmatpush.msra.mxu0 0.0
  %435 = vmatpush.msra.mxu0 0.0
  %436 = vmatpush.msra.mxu0 0.0
  %437 = vmatpush.msra.mxu0 0.0
  %438 = vmatpush.msra.mxu0 %v61
  %439 = vmatpush.msra.mxu0 %v60
  %440 = vmatmul.f32.gmra.mxu0 %v422
  %v441 = vpop.f32.mrf.mxu0
  %v442 = vadd.f32 0.0, %v441
  %443 = vdwg.mxu0
  %v445 = vsel %vm328, %v261, 0
  %447 = vmatpush.msra.mxu0 0.0
  %448 = vmatpush.msra.mxu0 0.0
  %449 = vmatpush.msra.mxu0 0.0
  %450 = vmatpush.msra.mxu0 0.0
  %451 = vmatpush.msra.mxu0 0.0
  %452 = vmatpush.msra.mxu0 0.0
  %453 = vmatpush.msra.mxu0 0.0
  %454 = vmatpush.msra.mxu0 0.0
  %455 = vmatpush.msra.mxu0 0.0
  %456 = vmatpush.msra.mxu0 0.0
  %457 = vmatpush.msra.mxu0 0.0
  %458 = vmatpush.msra.mxu0 0.0
  %459 = vmatpush.msra.mxu0 0.0
  %460 = vmatpush.msra.mxu0 0.0
  %461 = vmatpush.msra.mxu0 %v63
  %462 = vmatpush.msra.mxu0 %v62
  %463 = vmatmul.f32.gmra.mxu0 %v445
  %v464 = vpop.f32.mrf.mxu0
  %v465 = vadd.f32 0.0, %v464
  %466 = vdwg.mxu0
  %v468 = vsel %vm328, %v262, 0
  %470 = vmatpush.msra.mxu0 0.0
  %471 = vmatpush.msra.mxu0 0.0
  %472 = vmatpush.msra.mxu0 0.0
  %473 = vmatpush.msra.mxu0 0.0
  %474 = vmatpush.msra.mxu0 0.0
  %475 = vmatpush.msra.mxu0 0.0
  %476 = vmatpush.msra.mxu0 0.0
  %477 = vmatpush.msra.mxu0 0.0
  %478 = vmatpush.msra.mxu0 0.0
  %479 = vmatpush.msra.mxu0 0.0
  %480 = vmatpush.msra.mxu0 0.0
  %481 = vmatpush.msra.mxu0 0.0
  %482 = vmatpush.msra.mxu0 0.0
  %483 = vmatpush.msra.mxu0 0.0
  %484 = vmatpush.msra.mxu0 %v65
  %485 = vmatpush.msra.mxu0 %v64
  %486 = vmatmul.f32.gmra.mxu0 %v468
  %v487 = vpop.f32.mrf.mxu0
  %v488 = vadd.f32 0.0, %v487
  %489 = vdwg.mxu0
  %v491 = vsel %vm328, %v263, 0
  %493 = vmatpush.msra.mxu0 0.0
  %494 = vmatpush.msra.mxu0 0.0
  %495 = vmatpush.msra.mxu0 0.0
  %496 = vmatpush.msra.mxu0 0.0
  %497 = vmatpush.msra.mxu0 0.0
  %498 = vmatpush.msra.mxu0 0.0
  %499 = vmatpush.msra.mxu0 0.0
  %500 = vmatpush.msra.mxu0 0.0
  %501 = vmatpush.msra.mxu0 0.0
  %502 = vmatpush.msra.mxu0 0.0
  %503 = vmatpush.msra.mxu0 0.0
  %504 = vmatpush.msra.mxu0 0.0
  %505 = vmatpush.msra.mxu0 0.0
  %506 = vmatpush.msra.mxu0 0.0
  %507 = vmatpush.msra.mxu0 %v67
  %508 = vmatpush.msra.mxu0 %v66
  %509 = vmatmul.f32.gmra.mxu0 %v491
  %v510 = vpop.f32.mrf.mxu0
  %v511 = vadd.f32 0.0, %v510
  %512 = vdwg.mxu0
  %v514 = vsel %vm328, %v350, 0
  %v517 = vsel %vm328, %v320, 0
  %519 = vmatpush.xpose.msra.mxu0 0.0
  %520 = vmatpush.xpose.msra.mxu0 0.0
  %521 = vmatpush.xpose.msra.mxu0 0.0
  %522 = vmatpush.xpose.msra.mxu0 0.0
  %523 = vmatpush.xpose.msra.mxu0 0.0
  %524 = vmatpush.xpose.msra.mxu0 0.0
  %525 = vmatpush.xpose.msra.mxu0 0.0
  %526 = vmatpush.xpose.msra.mxu0 0.0
  %527 = vmatpush.xpose.msra.mxu0 0.0
  %528 = vmatpush.xpose.msra.mxu0 0.0
  %529 = vmatpush.xpose.msra.mxu0 0.0
  %530 = vmatpush.xpose.msra.mxu0 0.0
  %531 = vmatpush.xpose.msra.mxu0 0.0
  %532 = vmatpush.xpose.msra.mxu0 0.0
  %533 = vmatpush.xpose.msra.mxu0 0.0
  %534 = vmatpush.xpose.msra.mxu0 %v517
  %535 = vmatmul.f32.gmra.mxu0 %v514
  %v536 = vpop.f32.mrf.mxu0
  %v537 = vadd.f32 0.0, %v536
  %538 = vdwg.mxu0
  %v540 = vsel %vm328, %v373, 0
  %v543 = vsel %vm328, %v321, 0
  %545 = vmatpush.xpose.msra.mxu0 0.0
  %546 = vmatpush.xpose.msra.mxu0 0.0
  %547 = vmatpush.xpose.msra.mxu0 0.0
  %548 = vmatpush.xpose.msra.mxu0 0.0
  %549 = vmatpush.xpose.msra.mxu0 0.0
  %550 = vmatpush.xpose.msra.mxu0 0.0
  %551 = vmatpush.xpose.msra.mxu0 0.0
  %552 = vmatpush.xpose.msra.mxu0 0.0
  %553 = vmatpush.xpose.msra.mxu0 0.0
  %554 = vmatpush.xpose.msra.mxu0 0.0
  %555 = vmatpush.xpose.msra.mxu0 0.0
  %556 = vmatpush.xpose.msra.mxu0 0.0
  %557 = vmatpush.xpose.msra.mxu0 0.0
  %558 = vmatpush.xpose.msra.mxu0 0.0
  %559 = vmatpush.xpose.msra.mxu0 0.0
  %560 = vmatpush.xpose.msra.mxu0 %v543
  %561 = vmatmul.f32.gmra.mxu0 %v540
  %v562 = vpop.f32.mrf.mxu0
  %v563 = vadd.f32 0.0, %v562
  %564 = vdwg.mxu0
  %v566 = vsel %vm328, %v396, 0
  %v569 = vsel %vm328, %v322, 0
  %571 = vmatpush.xpose.msra.mxu0 0.0
  %572 = vmatpush.xpose.msra.mxu0 0.0
  %573 = vmatpush.xpose.msra.mxu0 0.0
  %574 = vmatpush.xpose.msra.mxu0 0.0
  %575 = vmatpush.xpose.msra.mxu0 0.0
  %576 = vmatpush.xpose.msra.mxu0 0.0
  %577 = vmatpush.xpose.msra.mxu0 0.0
  %578 = vmatpush.xpose.msra.mxu0 0.0
  %579 = vmatpush.xpose.msra.mxu0 0.0
  %580 = vmatpush.xpose.msra.mxu0 0.0
  %581 = vmatpush.xpose.msra.mxu0 0.0
  %582 = vmatpush.xpose.msra.mxu0 0.0
  %583 = vmatpush.xpose.msra.mxu0 0.0
  %584 = vmatpush.xpose.msra.mxu0 0.0
  %585 = vmatpush.xpose.msra.mxu0 0.0
  %586 = vmatpush.xpose.msra.mxu0 %v569
  %587 = vmatmul.f32.gmra.mxu0 %v566
  %v588 = vpop.f32.mrf.mxu0
  %v589 = vadd.f32 0.0, %v588
  %590 = vdwg.mxu0
  %v592 = vsel %vm328, %v419, 0
  %v595 = vsel %vm328, %v323, 0
  %597 = vmatpush.xpose.msra.mxu0 0.0
  %598 = vmatpush.xpose.msra.mxu0 0.0
  %599 = vmatpush.xpose.msra.mxu0 0.0
  %600 = vmatpush.xpose.msra.mxu0 0.0
  %601 = vmatpush.xpose.msra.mxu0 0.0
  %602 = vmatpush.xpose.msra.mxu0 0.0
  %603 = vmatpush.xpose.msra.mxu0 0.0
  %604 = vmatpush.xpose.msra.mxu0 0.0
  %605 = vmatpush.xpose.msra.mxu0 0.0
  %606 = vmatpush.xpose.msra.mxu0 0.0
  %607 = vmatpush.xpose.msra.mxu0 0.0
  %608 = vmatpush.xpose.msra.mxu0 0.0
  %609 = vmatpush.xpose.msra.mxu0 0.0
  %610 = vmatpush.xpose.msra.mxu0 0.0
  %611 = vmatpush.xpose.msra.mxu0 0.0
  %612 = vmatpush.xpose.msra.mxu0 %v595
  %613 = vmatmul.f32.gmra.mxu0 %v592
  %v614 = vpop.f32.mrf.mxu0
  %v615 = vadd.f32 0.0, %v614
  %616 = vdwg.mxu0
  %v618 = vsel %vm328, %v442, 0
  %v621 = vsel %vm328, %v324, 0
  %623 = vmatpush.xpose.msra.mxu0 0.0
  %624 = vmatpush.xpose.msra.mxu0 0.0
  %625 = vmatpush.xpose.msra.mxu0 0.0
  %626 = vmatpush.xpose.msra.mxu0 0.0
  %627 = vmatpush.xpose.msra.mxu0 0.0
  %628 = vmatpush.xpose.msra.mxu0 0.0
  %629 = vmatpush.xpose.msra.mxu0 0.0
  %630 = vmatpush.xpose.msra.mxu0 0.0
  %631 = vmatpush.xpose.msra.mxu0 0.0
  %632 = vmatpush.xpose.msra.mxu0 0.0
  %633 = vmatpush.xpose.msra.mxu0 0.0
  %634 = vmatpush.xpose.msra.mxu0 0.0
  %635 = vmatpush.xpose.msra.mxu0 0.0
  %636 = vmatpush.xpose.msra.mxu0 0.0
  %637 = vmatpush.xpose.msra.mxu0 0.0
  %638 = vmatpush.xpose.msra.mxu0 %v621
  %639 = vmatmul.f32.gmra.mxu0 %v618
  %v640 = vpop.f32.mrf.mxu0
  %v641 = vadd.f32 0.0, %v640
  %642 = vdwg.mxu0
  %v644 = vsel %vm328, %v465, 0
  %v647 = vsel %vm328, %v325, 0
  %649 = vmatpush.xpose.msra.mxu0 0.0
  %650 = vmatpush.xpose.msra.mxu0 0.0
  %651 = vmatpush.xpose.msra.mxu0 0.0
  %652 = vmatpush.xpose.msra.mxu0 0.0
  %653 = vmatpush.xpose.msra.mxu0 0.0
  %654 = vmatpush.xpose.msra.mxu0 0.0
  %655 = vmatpush.xpose.msra.mxu0 0.0
  %656 = vmatpush.xpose.msra.mxu0 0.0
  %657 = vmatpush.xpose.msra.mxu0 0.0
  %658 = vmatpush.xpose.msra.mxu0 0.0
  %659 = vmatpush.xpose.msra.mxu0 0.0
  %660 = vmatpush.xpose.msra.mxu0 0.0
  %661 = vmatpush.xpose.msra.mxu0 0.0
  %662 = vmatpush.xpose.msra.mxu0 0.0
  %663 = vmatpush.xpose.msra.mxu0 0.0
  %664 = vmatpush.xpose.msra.mxu0 %v647
  %665 = vmatmul.f32.gmra.mxu0 %v644
  %v666 = vpop.f32.mrf.mxu0
  %v667 = vadd.f32 0.0, %v666
  %668 = vdwg.mxu0
  %v670 = vsel %vm328, %v488, 0
  %v673 = vsel %vm328, %v326, 0
  %675 = vmatpush.xpose.msra.mxu0 0.0
  %676 = vmatpush.xpose.msra.mxu0 0.0
  %677 = vmatpush.xpose.msra.mxu0 0.0
  %678 = vmatpush.xpose.msra.mxu0 0.0
  %679 = vmatpush.xpose.msra.mxu0 0.0
  %680 = vmatpush.xpose.msra.mxu0 0.0
  %681 = vmatpush.xpose.msra.mxu0 0.0
  %682 = vmatpush.xpose.msra.mxu0 0.0
  %683 = vmatpush.xpose.msra.mxu0 0.0
  %684 = vmatpush.xpose.msra.mxu0 0.0
  %685 = vmatpush.xpose.msra.mxu0 0.0
  %686 = vmatpush.xpose.msra.mxu0 0.0
  %687 = vmatpush.xpose.msra.mxu0 0.0
  %688 = vmatpush.xpose.msra.mxu0 0.0
  %689 = vmatpush.xpose.msra.mxu0 0.0
  %690 = vmatpush.xpose.msra.mxu0 %v673
  %691 = vmatmul.f32.gmra.mxu0 %v670
  %v692 = vpop.f32.mrf.mxu0
  %v693 = vadd.f32 0.0, %v692
  %694 = vdwg.mxu0
  %v696 = vsel %vm328, %v511, 0
  %v699 = vsel %vm328, %v327, 0
  %701 = vmatpush.xpose.msra.mxu0 0.0
  %702 = vmatpush.xpose.msra.mxu0 0.0
  %703 = vmatpush.xpose.msra.mxu0 0.0
  %704 = vmatpush.xpose.msra.mxu0 0.0
  %705 = vmatpush.xpose.msra.mxu0 0.0
  %706 = vmatpush.xpose.msra.mxu0 0.0
  %707 = vmatpush.xpose.msra.mxu0 0.0
  %708 = vmatpush.xpose.msra.mxu0 0.0
  %709 = vmatpush.xpose.msra.mxu0 0.0
  %710 = vmatpush.xpose.msra.mxu0 0.0
  %711 = vmatpush.xpose.msra.mxu0 0.0
  %712 = vmatpush.xpose.msra.mxu0 0.0
  %713 = vmatpush.xpose.msra.mxu0 0.0
  %714 = vmatpush.xpose.msra.mxu0 0.0
  %715 = vmatpush.xpose.msra.mxu0 0.0
  %716 = vmatpush.xpose.msra.mxu0 %v699
  %717 = vmatmul.f32.gmra.mxu0 %v696
  %v718 = vpop.f32.mrf.mxu0
  %v719 = vadd.f32 0.0, %v718
  %720 = vdwg.mxu0
  %vm721 = vcmask 64512
  %722 = vst.msk [vmem:[#allocation3] sm:$0xff] %vm721, %v537
  %723 = vst.msk [vmem:[#allocation3 + $0x10] sm:$0xff] %vm721, %v563
  %724 = vst.msk [vmem:[#allocation3 + $0x20] sm:$0xff] %vm721, %v589
  %725 = vst.msk [vmem:[#allocation3 + $0x30] sm:$0xff] %vm721, %v615
  %726 = vst.msk [vmem:[#allocation3 + $0x40] sm:$0xff] %vm721, %v641
  %727 = vst.msk [vmem:[#allocation3 + $0x50] sm:$0xff] %vm721, %v667
  %728 = vst.msk [vmem:[#allocation3 + $0x60] sm:$0xff] %vm721, %v693
  %729 = vst.msk [vmem:[#allocation3 + $0x70] sm:$0xff] %vm721, %v719
  %v730 = vmul.f32 %v131, 1.0666667
  %v731 = vadd.f32 %v730, %v152
  %v732 = vadd.f32 %v730, %v153
  %v733 = vadd.f32 %v730, %v154
  %v734 = vadd.f32 %v730, %v155
  %v735 = vadd.f32 %v730, %v156
  %v736 = vadd.f32 %v730, %v157
  %v737 = vadd.f32 %v730, %v158
  %v738 = vadd.f32 %v730, %v159
  %v739 = vadd.f32 %v731, 1.0
  %v740 = vadd.f32 %v732, 1.0
  %v741 = vadd.f32 %v733, 1.0
  %v742 = vadd.f32 %v734, 1.0
  %v743 = vadd.f32 %v735, 1.0
  %v744 = vadd.f32 %v736, 1.0
  %v745 = vadd.f32 %v737, 1.0
  %v746 = vadd.f32 %v738, 1.0
  %v747 = vmul.f32 %v739, 7.5
  %v748 = vmul.f32 %v740, 7.5
  %v749 = vmul.f32 %v741, 7.5
  %v750 = vmul.f32 %v742, 7.5
  %v751 = vmul.f32 %v743, 7.5
  %v752 = vmul.f32 %v744, 7.5
  %v753 = vmul.f32 %v745, 7.5
  %v754 = vmul.f32 %v746, 7.5
  %756 = vset.pattern.permute.xlu0 1
  %757 = vperm.xlu0 %756, %v747
  %v758 = vpop.permute.xlu0 %757
  %761 = vset.pattern.permute.xlu0 1
  %762 = vperm.xlu0 %761, %v748
  %v763 = vpop.permute.xlu0 %762
  %766 = vset.pattern.permute.xlu0 1
  %767 = vperm.xlu0 %766, %v749
  %v768 = vpop.permute.xlu0 %767
  %771 = vset.pattern.permute.xlu0 1
  %772 = vperm.xlu0 %771, %v750
  %v773 = vpop.permute.xlu0 %772
  %776 = vset.pattern.permute.xlu0 1
  %777 = vperm.xlu0 %776, %v751
  %v778 = vpop.permute.xlu0 %777
  %781 = vset.pattern.permute.xlu0 1
  %782 = vperm.xlu0 %781, %v752
  %v783 = vpop.permute.xlu0 %782
  %786 = vset.pattern.permute.xlu0 1
  %787 = vperm.xlu0 %786, %v753
  %v788 = vpop.permute.xlu0 %787
  %791 = vset.pattern.permute.xlu0 1
  %792 = vperm.xlu0 %791, %v754
  %v793 = vpop.permute.xlu0 %792
  %v795 = vsub.f32 %v758, %v134
  %v796 = vsub.f32 %v763, %v134
  %v797 = vsub.f32 %v768, %v134
  %v798 = vsub.f32 %v773, %v134
  %v799 = vsub.f32 %v778, %v134
  %v800 = vsub.f32 %v783, %v134
  %v801 = vsub.f32 %v788, %v134
  %v802 = vsub.f32 %v793, %v134
  %v803 = vand.u32 2147483647, %v795
  %v804 = vand.u32 2147483647, %v796
  %v805 = vand.u32 2147483647, %v797
  %v806 = vand.u32 2147483647, %v798
  %v807 = vand.u32 2147483647, %v799
  %v808 = vand.u32 2147483647, %v800
  %v809 = vand.u32 2147483647, %v801
  %v810 = vand.u32 2147483647, %v802
  %v811 = vsub.f32 1.0, %v803
  %v812 = vsub.f32 1.0, %v804
  %v813 = vsub.f32 1.0, %v805
  %v814 = vsub.f32 1.0, %v806
  %v815 = vsub.f32 1.0, %v807
  %v816 = vsub.f32 1.0, %v808
  %v817 = vsub.f32 1.0, %v809
  %v818 = vsub.f32 1.0, %v810
  %v819 = vmax.f32 %v811, 0.0
  %v820 = vmax.f32 %v812, 0.0
  %v821 = vmax.f32 %v813, 0.0
  %v822 = vmax.f32 %v814, 0.0
  %v823 = vmax.f32 %v815, 0.0
  %v824 = vmax.f32 %v816, 0.0
  %v825 = vmax.f32 %v817, 0.0
  %v826 = vmax.f32 %v818, 0.0
  %827 = vset.pattern.permute.xlu0 0
  %828 = vperm.xlu0 %827, %v747
  %v829 = vpop.permute.xlu0 %828
  %831 = vset.pattern.permute.xlu0 0
  %832 = vperm.xlu0 %831, %v748
  %v833 = vpop.permute.xlu0 %832
  %835 = vset.pattern.permute.xlu0 0
  %836 = vperm.xlu0 %835, %v749
  %v837 = vpop.permute.xlu0 %836
  %839 = vset.pattern.permute.xlu0 0
  %840 = vperm.xlu0 %839, %v750
  %v841 = vpop.permute.xlu0 %840
  %843 = vset.pattern.permute.xlu0 0
  %844 = vperm.xlu0 %843, %v751
  %v845 = vpop.permute.xlu0 %844
  %847 = vset.pattern.permute.xlu0 0
  %848 = vperm.xlu0 %847, %v752
  %v849 = vpop.permute.xlu0 %848
  %851 = vset.pattern.permute.xlu0 0
  %852 = vperm.xlu0 %851, %v753
  %v853 = vpop.permute.xlu0 %852
  %855 = vset.pattern.permute.xlu0 0
  %856 = vperm.xlu0 %855, %v754
  %v857 = vpop.permute.xlu0 %856
  %v859 = vsub.f32 %v829, %v134
  %v860 = vsub.f32 %v833, %v134
  %v861 = vsub.f32 %v837, %v134
  %v862 = vsub.f32 %v841, %v134
  %v863 = vsub.f32 %v845, %v134
  %v864 = vsub.f32 %v849, %v134
  %v865 = vsub.f32 %v853, %v134
  %v866 = vsub.f32 %v857, %v134
  %v867 = vand.u32 2147483647, %v859
  %v868 = vand.u32 2147483647, %v860
  %v869 = vand.u32 2147483647, %v861
  %v870 = vand.u32 2147483647, %v862
  %v871 = vand.u32 2147483647, %v863
  %v872 = vand.u32 2147483647, %v864
  %v873 = vand.u32 2147483647, %v865
  %v874 = vand.u32 2147483647, %v866
  %v875 = vsub.f32 1.0, %v867
  %v876 = vsub.f32 1.0, %v868
  %v877 = vsub.f32 1.0, %v869
  %v878 = vsub.f32 1.0, %v870
  %v879 = vsub.f32 1.0, %v871
  %v880 = vsub.f32 1.0, %v872
  %v881 = vsub.f32 1.0, %v873
  %v882 = vsub.f32 1.0, %v874
  %v883 = vmax.f32 %v875, 0.0
  %v884 = vmax.f32 %v876, 0.0
  %v885 = vmax.f32 %v877, 0.0
  %v886 = vmax.f32 %v878, 0.0
  %v887 = vmax.f32 %v879, 0.0
  %v888 = vmax.f32 %v880, 0.0
  %v889 = vmax.f32 %v881, 0.0
  %v890 = vmax.f32 %v882, 0.0
  %v892 = vsel %vm328, %v819, 0
  %894 = vmatpush.msra.mxu0 0.0
  %895 = vmatpush.msra.mxu0 0.0
  %896 = vmatpush.msra.mxu0 0.0
  %897 = vmatpush.msra.mxu0 0.0
  %898 = vmatpush.msra.mxu0 0.0
  %899 = vmatpush.msra.mxu0 0.0
  %900 = vmatpush.msra.mxu0 0.0
  %901 = vmatpush.msra.mxu0 0.0
  %902 = vmatpush.msra.mxu0 0.0
  %903 = vmatpush.msra.mxu0 0.0
  %904 = vmatpush.msra.mxu0 0.0
  %905 = vmatpush.msra.mxu0 0.0
  %906 = vmatpush.msra.mxu0 0.0
  %907 = vmatpush.msra.mxu0 0.0
  %908 = vmatpush.msra.mxu0 %v53
  %909 = vmatpush.msra.mxu0 %v52
  %910 = vmatmul.f32.gmra.mxu0 %v892
  %v911 = vpop.f32.mrf.mxu0
  %v912 = vadd.f32 0.0, %v911
  %913 = vdwg.mxu0
  %v915 = vsel %vm328, %v820, 0
  %917 = vmatpush.msra.mxu0 0.0
  %918 = vmatpush.msra.mxu0 0.0
  %919 = vmatpush.msra.mxu0 0.0
  %920 = vmatpush.msra.mxu0 0.0
  %921 = vmatpush.msra.mxu0 0.0
  %922 = vmatpush.msra.mxu0 0.0
  %923 = vmatpush.msra.mxu0 0.0
  %924 = vmatpush.msra.mxu0 0.0
  %925 = vmatpush.msra.mxu0 0.0
  %926 = vmatpush.msra.mxu0 0.0
  %927 = vmatpush.msra.mxu0 0.0
  %928 = vmatpush.msra.mxu0 0.0
  %929 = vmatpush.msra.mxu0 0.0
  %930 = vmatpush.msra.mxu0 0.0
  %931 = vmatpush.msra.mxu0 %v55
  %932 = vmatpush.msra.mxu0 %v54
  %933 = vmatmul.f32.gmra.mxu0 %v915
  %v934 = vpop.f32.mrf.mxu0
  %v935 = vadd.f32 0.0, %v934
  %936 = vdwg.mxu0
  %v938 = vsel %vm328, %v821, 0
  %940 = vmatpush.msra.mxu0 0.0
  %941 = vmatpush.msra.mxu0 0.0
  %942 = vmatpush.msra.mxu0 0.0
  %943 = vmatpush.msra.mxu0 0.0
  %944 = vmatpush.msra.mxu0 0.0
  %945 = vmatpush.msra.mxu0 0.0
  %946 = vmatpush.msra.mxu0 0.0
  %947 = vmatpush.msra.mxu0 0.0
  %948 = vmatpush.msra.mxu0 0.0
  %949 = vmatpush.msra.mxu0 0.0
  %950 = vmatpush.msra.mxu0 0.0
  %951 = vmatpush.msra.mxu0 0.0
  %952 = vmatpush.msra.mxu0 0.0
  %953 = vmatpush.msra.mxu0 0.0
  %954 = vmatpush.msra.mxu0 %v57
  %955 = vmatpush.msra.mxu0 %v56
  %956 = vmatmul.f32.gmra.mxu0 %v938
  %v957 = vpop.f32.mrf.mxu0
  %v958 = vadd.f32 0.0, %v957
  %959 = vdwg.mxu0
  %v961 = vsel %vm328, %v822, 0
  %963 = vmatpush.msra.mxu0 0.0
  %964 = vmatpush.msra.mxu0 0.0
  %965 = vmatpush.msra.mxu0 0.0
  %966 = vmatpush.msra.mxu0 0.0
  %967 = vmatpush.msra.mxu0 0.0
  %968 = vmatpush.msra.mxu0 0.0
  %969 = vmatpush.msra.mxu0 0.0
  %970 = vmatpush.msra.mxu0 0.0
  %971 = vmatpush.msra.mxu0 0.0
  %972 = vmatpush.msra.mxu0 0.0
  %973 = vmatpush.msra.mxu0 0.0
  %974 = vmatpush.msra.mxu0 0.0
  %975 = vmatpush.msra.mxu0 0.0
  %976 = vmatpush.msra.mxu0 0.0
  %977 = vmatpush.msra.mxu0 %v59
  %978 = vmatpush.msra.mxu0 %v58
  %979 = vmatmul.f32.gmra.mxu0 %v961
  %v980 = vpop.f32.mrf.mxu0
  %v981 = vadd.f32 0.0, %v980
  %982 = vdwg.mxu0
  %v984 = vsel %vm328, %v823, 0
  %986 = vmatpush.msra.mxu0 0.0
  %987 = vmatpush.msra.mxu0 0.0
  %988 = vmatpush.msra.mxu0 0.0
  %989 = vmatpush.msra.mxu0 0.0
  %990 = vmatpush.msra.mxu0 0.0
  %991 = vmatpush.msra.mxu0 0.0
  %992 = vmatpush.msra.mxu0 0.0
  %993 = vmatpush.msra.mxu0 0.0
  %994 = vmatpush.msra.mxu0 0.0
  %995 = vmatpush.msra.mxu0 0.0
  %996 = vmatpush.msra.mxu0 0.0
  %997 = vmatpush.msra.mxu0 0.0
  %998 = vmatpush.msra.mxu0 0.0
  %999 = vmatpush.msra.mxu0 0.0
  %1000 = vmatpush.msra.mxu0 %v61
  %1001 = vmatpush.msra.mxu0 %v60
  %1002 = vmatmul.f32.gmra.mxu0 %v984
  %v1003 = vpop.f32.mrf.mxu0
  %v1004 = vadd.f32 0.0, %v1003
  %1005 = vdwg.mxu0
  %v1007 = vsel %vm328, %v824, 0
  %1009 = vmatpush.msra.mxu0 0.0
  %1010 = vmatpush.msra.mxu0 0.0
  %1011 = vmatpush.msra.mxu0 0.0
  %1012 = vmatpush.msra.mxu0 0.0
  %1013 = vmatpush.msra.mxu0 0.0
  %1014 = vmatpush.msra.mxu0 0.0
  %1015 = vmatpush.msra.mxu0 0.0
  %1016 = vmatpush.msra.mxu0 0.0
  %1017 = vmatpush.msra.mxu0 0.0
  %1018 = vmatpush.msra.mxu0 0.0
  %1019 = vmatpush.msra.mxu0 0.0
  %1020 = vmatpush.msra.mxu0 0.0
  %1021 = vmatpush.msra.mxu0 0.0
  %1022 = vmatpush.msra.mxu0 0.0
  %1023 = vmatpush.msra.mxu0 %v63
  %1024 = vmatpush.msra.mxu0 %v62
  %1025 = vmatmul.f32.gmra.mxu0 %v1007
  %v1026 = vpop.f32.mrf.mxu0
  %v1027 = vadd.f32 0.0, %v1026
  %1028 = vdwg.mxu0
  %v1030 = vsel %vm328, %v825, 0
  %1032 = vmatpush.msra.mxu0 0.0
  %1033 = vmatpush.msra.mxu0 0.0
  %1034 = vmatpush.msra.mxu0 0.0
  %1035 = vmatpush.msra.mxu0 0.0
  %1036 = vmatpush.msra.mxu0 0.0
  %1037 = vmatpush.msra.mxu0 0.0
  %1038 = vmatpush.msra.mxu0 0.0
  %1039 = vmatpush.msra.mxu0 0.0
  %1040 = vmatpush.msra.mxu0 0.0
  %1041 = vmatpush.msra.mxu0 0.0
  %1042 = vmatpush.msra.mxu0 0.0
  %1043 = vmatpush.msra.mxu0 0.0
  %1044 = vmatpush.msra.mxu0 0.0
  %1045 = vmatpush.msra.mxu0 0.0
  %1046 = vmatpush.msra.mxu0 %v65
  %1047 = vmatpush.msra.mxu0 %v64
  %1048 = vmatmul.f32.gmra.mxu0 %v1030
  %v1049 = vpop.f32.mrf.mxu0
  %v1050 = vadd.f32 0.0, %v1049
  %1051 = vdwg.mxu0
  %v1053 = vsel %vm328, %v826, 0
  %1055 = vmatpush.msra.mxu0 0.0
  %1056 = vmatpush.msra.mxu0 0.0
  %1057 = vmatpush.msra.mxu0 0.0
  %1058 = vmatpush.msra.mxu0 0.0
  %1059 = vmatpush.msra.mxu0 0.0
  %1060 = vmatpush.msra.mxu0 0.0
  %1061 = vmatpush.msra.mxu0 0.0
  %1062 = vmatpush.msra.mxu0 0.0
  %1063 = vmatpush.msra.mxu0 0.0
  %1064 = vmatpush.msra.mxu0 0.0
  %1065 = vmatpush.msra.mxu0 0.0
  %1066 = vmatpush.msra.mxu0 0.0
  %1067 = vmatpush.msra.mxu0 0.0
  %1068 = vmatpush.msra.mxu0 0.0
  %1069 = vmatpush.msra.mxu0 %v67
  %1070 = vmatpush.msra.mxu0 %v66
  %1071 = vmatmul.f32.gmra.mxu0 %v1053
  %v1072 = vpop.f32.mrf.mxu0
  %v1073 = vadd.f32 0.0, %v1072
  %1074 = vdwg.mxu0
  %v1076 = vsel %vm328, %v912, 0
  %v1079 = vsel %vm328, %v883, 0
  %1081 = vmatpush.xpose.msra.mxu0 0.0
  %1082 = vmatpush.xpose.msra.mxu0 0.0
  %1083 = vmatpush.xpose.msra.mxu0 0.0
  %1084 = vmatpush.xpose.msra.mxu0 0.0
  %1085 = vmatpush.xpose.msra.mxu0 0.0
  %1086 = vmatpush.xpose.msra.mxu0 0.0
  %1087 = vmatpush.xpose.msra.mxu0 0.0
  %1088 = vmatpush.xpose.msra.mxu0 0.0
  %1089 = vmatpush.xpose.msra.mxu0 0.0
  %1090 = vmatpush.xpose.msra.mxu0 0.0
  %1091 = vmatpush.xpose.msra.mxu0 0.0
  %1092 = vmatpush.xpose.msra.mxu0 0.0
  %1093 = vmatpush.xpose.msra.mxu0 0.0
  %1094 = vmatpush.xpose.msra.mxu0 0.0
  %1095 = vmatpush.xpose.msra.mxu0 0.0
  %1096 = vmatpush.xpose.msra.mxu0 %v1079
  %1097 = vmatmul.f32.gmra.mxu0 %v1076
  %v1098 = vpop.f32.mrf.mxu0
  %v1099 = vadd.f32 0.0, %v1098
  %1100 = vdwg.mxu0
  %v1102 = vsel %vm328, %v935, 0
  %v1105 = vsel %vm328, %v884, 0
  %1107 = vmatpush.xpose.msra.mxu0 0.0
  %1108 = vmatpush.xpose.msra.mxu0 0.0
  %1109 = vmatpush.xpose.msra.mxu0 0.0
  %1110 = vmatpush.xpose.msra.mxu0 0.0
  %1111 = vmatpush.xpose.msra.mxu0 0.0
  %1112 = vmatpush.xpose.msra.mxu0 0.0
  %1113 = vmatpush.xpose.msra.mxu0 0.0
  %1114 = vmatpush.xpose.msra.mxu0 0.0
  %1115 = vmatpush.xpose.msra.mxu0 0.0
  %1116 = vmatpush.xpose.msra.mxu0 0.0
  %1117 = vmatpush.xpose.msra.mxu0 0.0
  %1118 = vmatpush.xpose.msra.mxu0 0.0
  %1119 = vmatpush.xpose.msra.mxu0 0.0
  %1120 = vmatpush.xpose.msra.mxu0 0.0
  %1121 = vmatpush.xpose.msra.mxu0 0.0
  %1122 = vmatpush.xpose.msra.mxu0 %v1105
  %1123 = vmatmul.f32.gmra.mxu0 %v1102
  %v1124 = vpop.f32.mrf.mxu0
  %v1125 = vadd.f32 0.0, %v1124
  %1126 = vdwg.mxu0
  %v1128 = vsel %vm328, %v958, 0
  %v1131 = vsel %vm328, %v885, 0
  %1133 = vmatpush.xpose.msra.mxu0 0.0
  %1134 = vmatpush.xpose.msra.mxu0 0.0
  %1135 = vmatpush.xpose.msra.mxu0 0.0
  %1136 = vmatpush.xpose.msra.mxu0 0.0
  %1137 = vmatpush.xpose.msra.mxu0 0.0
  %1138 = vmatpush.xpose.msra.mxu0 0.0
  %1139 = vmatpush.xpose.msra.mxu0 0.0
  %1140 = vmatpush.xpose.msra.mxu0 0.0
  %1141 = vmatpush.xpose.msra.mxu0 0.0
  %1142 = vmatpush.xpose.msra.mxu0 0.0
  %1143 = vmatpush.xpose.msra.mxu0 0.0
  %1144 = vmatpush.xpose.msra.mxu0 0.0
  %1145 = vmatpush.xpose.msra.mxu0 0.0
  %1146 = vmatpush.xpose.msra.mxu0 0.0
  %1147 = vmatpush.xpose.msra.mxu0 0.0
  %1148 = vmatpush.xpose.msra.mxu0 %v1131
  %1149 = vmatmul.f32.gmra.mxu0 %v1128
  %v1150 = vpop.f32.mrf.mxu0
  %v1151 = vadd.f32 0.0, %v1150
  %1152 = vdwg.mxu0
  %v1154 = vsel %vm328, %v981, 0
  %v1157 = vsel %vm328, %v886, 0
  %1159 = vmatpush.xpose.msra.mxu0 0.0
  %1160 = vmatpush.xpose.msra.mxu0 0.0
  %1161 = vmatpush.xpose.msra.mxu0 0.0
  %1162 = vmatpush.xpose.msra.mxu0 0.0
  %1163 = vmatpush.xpose.msra.mxu0 0.0
  %1164 = vmatpush.xpose.msra.mxu0 0.0
  %1165 = vmatpush.xpose.msra.mxu0 0.0
  %1166 = vmatpush.xpose.msra.mxu0 0.0
  %1167 = vmatpush.xpose.msra.mxu0 0.0
  %1168 = vmatpush.xpose.msra.mxu0 0.0
  %1169 = vmatpush.xpose.msra.mxu0 0.0
  %1170 = vmatpush.xpose.msra.mxu0 0.0
  %1171 = vmatpush.xpose.msra.mxu0 0.0
  %1172 = vmatpush.xpose.msra.mxu0 0.0
  %1173 = vmatpush.xpose.msra.mxu0 0.0
  %1174 = vmatpush.xpose.msra.mxu0 %v1157
  %1175 = vmatmul.f32.gmra.mxu0 %v1154
  %v1176 = vpop.f32.mrf.mxu0
  %v1177 = vadd.f32 0.0, %v1176
  %1178 = vdwg.mxu0
  %v1180 = vsel %vm328, %v1004, 0
  %v1183 = vsel %vm328, %v887, 0
  %1185 = vmatpush.xpose.msra.mxu0 0.0
  %1186 = vmatpush.xpose.msra.mxu0 0.0
  %1187 = vmatpush.xpose.msra.mxu0 0.0
  %1188 = vmatpush.xpose.msra.mxu0 0.0
  %1189 = vmatpush.xpose.msra.mxu0 0.0
  %1190 = vmatpush.xpose.msra.mxu0 0.0
  %1191 = vmatpush.xpose.msra.mxu0 0.0
  %1192 = vmatpush.xpose.msra.mxu0 0.0
  %1193 = vmatpush.xpose.msra.mxu0 0.0
  %1194 = vmatpush.xpose.msra.mxu0 0.0
  %1195 = vmatpush.xpose.msra.mxu0 0.0
  %1196 = vmatpush.xpose.msra.mxu0 0.0
  %1197 = vmatpush.xpose.msra.mxu0 0.0
  %1198 = vmatpush.xpose.msra.mxu0 0.0
  %1199 = vmatpush.xpose.msra.mxu0 0.0
  %1200 = vmatpush.xpose.msra.mxu0 %v1183
  %1201 = vmatmul.f32.gmra.mxu0 %v1180
  %v1202 = vpop.f32.mrf.mxu0
  %v1203 = vadd.f32 0.0, %v1202
  %1204 = vdwg.mxu0
  %v1206 = vsel %vm328, %v1027, 0
  %v1209 = vsel %vm328, %v888, 0
  %1211 = vmatpush.xpose.msra.mxu0 0.0
  %1212 = vmatpush.xpose.msra.mxu0 0.0
  %1213 = vmatpush.xpose.msra.mxu0 0.0
  %1214 = vmatpush.xpose.msra.mxu0 0.0
  %1215 = vmatpush.xpose.msra.mxu0 0.0
  %1216 = vmatpush.xpose.msra.mxu0 0.0
  %1217 = vmatpush.xpose.msra.mxu0 0.0
  %1218 = vmatpush.xpose.msra.mxu0 0.0
  %1219 = vmatpush.xpose.msra.mxu0 0.0
  %1220 = vmatpush.xpose.msra.mxu0 0.0
  %1221 = vmatpush.xpose.msra.mxu0 0.0
  %1222 = vmatpush.xpose.msra.mxu0 0.0
  %1223 = vmatpush.xpose.msra.mxu0 0.0
  %1224 = vmatpush.xpose.msra.mxu0 0.0
  %1225 = vmatpush.xpose.msra.mxu0 0.0
  %1226 = vmatpush.xpose.msra.mxu0 %v1209
  %1227 = vmatmul.f32.gmra.mxu0 %v1206
  %v1228 = vpop.f32.mrf.mxu0
  %v1229 = vadd.f32 0.0, %v1228
  %1230 = vdwg.mxu0
  %v1232 = vsel %vm328, %v1050, 0
  %v1235 = vsel %vm328, %v889, 0
  %1237 = vmatpush.xpose.msra.mxu0 0.0
  %1238 = vmatpush.xpose.msra.mxu0 0.0
  %1239 = vmatpush.xpose.msra.mxu0 0.0
  %1240 = vmatpush.xpose.msra.mxu0 0.0
  %1241 = vmatpush.xpose.msra.mxu0 0.0
  %1242 = vmatpush.xpose.msra.mxu0 0.0
  %1243 = vmatpush.xpose.msra.mxu0 0.0
  %1244 = vmatpush.xpose.msra.mxu0 0.0
  %1245 = vmatpush.xpose.msra.mxu0 0.0
  %1246 = vmatpush.xpose.msra.mxu0 0.0
  %1247 = vmatpush.xpose.msra.mxu0 0.0
  %1248 = vmatpush.xpose.msra.mxu0 0.0
  %1249 = vmatpush.xpose.msra.mxu0 0.0
  %1250 = vmatpush.xpose.msra.mxu0 0.0
  %1251 = vmatpush.xpose.msra.mxu0 0.0
  %1252 = vmatpush.xpose.msra.mxu0 %v1235
  %1253 = vmatmul.f32.gmra.mxu0 %v1232
  %v1254 = vpop.f32.mrf.mxu0
  %v1255 = vadd.f32 0.0, %v1254
  %1256 = vdwg.mxu0
  %v1258 = vsel %vm328, %v1073, 0
  %v1261 = vsel %vm328, %v890, 0
  %1263 = vmatpush.xpose.msra.mxu0 0.0
  %1264 = vmatpush.xpose.msra.mxu0 0.0
  %1265 = vmatpush.xpose.msra.mxu0 0.0
  %1266 = vmatpush.xpose.msra.mxu0 0.0
  %1267 = vmatpush.xpose.msra.mxu0 0.0
  %1268 = vmatpush.xpose.msra.mxu0 0.0
  %1269 = vmatpush.xpose.msra.mxu0 0.0
  %1270 = vmatpush.xpose.msra.mxu0 0.0
  %1271 = vmatpush.xpose.msra.mxu0 0.0
  %1272 = vmatpush.xpose.msra.mxu0 0.0
  %1273 = vmatpush.xpose.msra.mxu0 0.0
  %1274 = vmatpush.xpose.msra.mxu0 0.0
  %1275 = vmatpush.xpose.msra.mxu0 0.0
  %1276 = vmatpush.xpose.msra.mxu0 0.0
  %1277 = vmatpush.xpose.msra.mxu0 0.0
  %1278 = vmatpush.xpose.msra.mxu0 %v1261
  %1279 = vmatmul.f32.gmra.mxu0 %v1258
  %v1280 = vpop.f32.mrf.mxu0
  %v1281 = vadd.f32 0.0, %v1280
  %1282 = vdwg.mxu0
  %1283 = vst.msk [vmem:[#allocation3 + $0x8] sm:$0xff] %vm721, %v1099
  %1284 = vst.msk [vmem:[#allocation3 + $0x18] sm:$0xff] %vm721, %v1125
  %1285 = vst.msk [vmem:[#allocation3 + $0x28] sm:$0xff] %vm721, %v1151
  %1286 = vst.msk [vmem:[#allocation3 + $0x38] sm:$0xff] %vm721, %v1177
  %1287 = vst.msk [vmem:[#allocation3 + $0x48] sm:$0xff] %vm721, %v1203
  %1288 = vst.msk [vmem:[#allocation3 + $0x58] sm:$0xff] %vm721, %v1229
  %1289 = vst.msk [vmem:[#allocation3 + $0x68] sm:$0xff] %vm721, %v1255
  %1290 = vst.msk [vmem:[#allocation3 + $0x78] sm:$0xff] %vm721, %v1281
  %v1291 = vld [vmem:[#allocation3] sm:$0x1]
  %v1292 = vld [vmem:[#allocation3 + $0x10] sm:$0x1]
  %v1293 = vld [vmem:[#allocation3 + $0x20] sm:$0x1]
  %v1294 = vld [vmem:[#allocation3 + $0x30] sm:$0x1]
  %v1295 = vld [vmem:[#allocation3 + $0x40] sm:$0x1]
  %v1296 = vld [vmem:[#allocation3 + $0x50] sm:$0x1]
  %v1297 = vld [vmem:[#allocation3 + $0x60] sm:$0x1]
  %v1298 = vld [vmem:[#allocation3 + $0x70] sm:$0x1]
  %v1299 = vld [vmem:[#allocation3 + $0x1] sm:$0x1]
  %v1300 = vld [vmem:[#allocation3 + $0x11] sm:$0x1]
  %v1301 = vld [vmem:[#allocation3 + $0x21] sm:$0x1]
  %v1302 = vld [vmem:[#allocation3 + $0x31] sm:$0x1]
  %v1303 = vld [vmem:[#allocation3 + $0x41] sm:$0x1]
  %v1304 = vld [vmem:[#allocation3 + $0x51] sm:$0x1]
  %v1305 = vld [vmem:[#allocation3 + $0x61] sm:$0x1]
  %v1306 = vld [vmem:[#allocation3 + $0x71] sm:$0x1]
  %v1315 = vrot.slane %v1300, 7
  %vm1316 = vcmask 1041409
  %v1317 = vsel %vm1316, %v1315, %v1299
  %v1318 = vrot.slane %v1301, 6
  %vm1319 = vcmask 1042434
  %v1320 = vsel %vm1319, %v1318, %v1317
  %v1321 = vrot.slane %v1302, 5
  %vm1322 = vcmask 1043459
  %v1323 = vsel %vm1322, %v1321, %v1320
  %v1324 = vrot.slane %v1303, 4
  %vm1325 = vcmask 1044484
  %v1326 = vsel %vm1325, %v1324, %v1323
  %v1327 = vrot.slane %v1304, 3
  %vm1328 = vcmask 1045509
  %v1329 = vsel %vm1328, %v1327, %v1326
  %v1330 = vrot.slane %v1305, 2
  %vm1331 = vcmask 1046534
  %v1332 = vsel %vm1331, %v1330, %v1329
  %v1333 = vrot.slane %v1306, 1
  %vm1334 = vcmask 1047559
  %v1335 = vsel %vm1334, %v1333, %v1332
  %v1336 = vsel %vm721, %v1335, 0
  %1338 = vmatpush.msra.mxu0 0.0
  %1339 = vmatpush.msra.mxu0 0.0
  %1340 = vmatpush.msra.mxu0 0.0
  %1341 = vmatpush.msra.mxu0 0.0
  %1342 = vmatpush.msra.mxu0 0.0
  %1343 = vmatpush.msra.mxu0 0.0
  %1344 = vmatpush.msra.mxu0 0.0
  %1345 = vmatpush.msra.mxu0 0.0
  %1346 = vmatpush.msra.mxu0 0.0
  %1347 = vmatpush.msra.mxu0 0.0
  %1348 = vmatpush.msra.mxu0 0.0
  %1349 = vmatpush.msra.mxu0 0.0
  %1350 = vmatpush.msra.mxu0 0.0
  %1351 = vmatpush.msra.mxu0 0.0
  %1352 = vmatpush.msra.mxu0 0.0
  %1353 = vmatpush.msra.mxu0 %v69
  %1354 = vmatmul.f32.gmra.mxu0 %v1336
  %v1355 = vpop.f32.mrf.mxu0
  %v1356 = vadd.f32 0.0, %v1355
  %1357 = vdwg.mxu0
  %v1366 = vrot.slane %v1292, 7
  %v1367 = vsel %vm1316, %v1366, %v1291
  %v1368 = vrot.slane %v1293, 6
  %v1369 = vsel %vm1319, %v1368, %v1367
  %v1370 = vrot.slane %v1294, 5
  %v1371 = vsel %vm1322, %v1370, %v1369
  %v1372 = vrot.slane %v1295, 4
  %v1373 = vsel %vm1325, %v1372, %v1371
  %v1374 = vrot.slane %v1296, 3
  %v1375 = vsel %vm1328, %v1374, %v1373
  %v1376 = vrot.slane %v1297, 2
  %v1377 = vsel %vm1331, %v1376, %v1375
  %v1378 = vrot.slane %v1298, 1
  %v1379 = vsel %vm1334, %v1378, %v1377
  %v1380 = vsel %vm721, %v1379, 0
  %1382 = vmatpush.msra.mxu0 0.0
  %1383 = vmatpush.msra.mxu0 0.0
  %1384 = vmatpush.msra.mxu0 0.0
  %1385 = vmatpush.msra.mxu0 0.0
  %1386 = vmatpush.msra.mxu0 0.0
  %1387 = vmatpush.msra.mxu0 0.0
  %1388 = vmatpush.msra.mxu0 0.0
  %1389 = vmatpush.msra.mxu0 0.0
  %1390 = vmatpush.msra.mxu0 0.0
  %1391 = vmatpush.msra.mxu0 0.0
  %1392 = vmatpush.msra.mxu0 0.0
  %1393 = vmatpush.msra.mxu0 0.0
  %1394 = vmatpush.msra.mxu0 0.0
  %1395 = vmatpush.msra.mxu0 0.0
  %1396 = vmatpush.msra.mxu0 0.0
  %1397 = vmatpush.msra.mxu0 %v68
  %1398 = vmatmul.f32.gmra.mxu0 %v1380
  %v1399 = vpop.f32.mrf.mxu0
  %v1400 = vadd.f32 %v1356, %v1399
  %1401 = vdwg.mxu0
  %v1402 = vld [vmem:[#allocation3 + $0x2] sm:$0x1]
  %v1403 = vld [vmem:[#allocation3 + $0x12] sm:$0x1]
  %v1404 = vld [vmem:[#allocation3 + $0x22] sm:$0x1]
  %v1405 = vld [vmem:[#allocation3 + $0x32] sm:$0x1]
  %v1406 = vld [vmem:[#allocation3 + $0x42] sm:$0x1]
  %v1407 = vld [vmem:[#allocation3 + $0x52] sm:$0x1]
  %v1408 = vld [vmem:[#allocation3 + $0x62] sm:$0x1]
  %v1409 = vld [vmem:[#allocation3 + $0x72] sm:$0x1]
  %v1418 = vrot.slane %v1403, 7
  %v1419 = vsel %vm1316, %v1418, %v1402
  %v1420 = vrot.slane %v1404, 6
  %v1421 = vsel %vm1319, %v1420, %v1419
  %v1422 = vrot.slane %v1405, 5
  %v1423 = vsel %vm1322, %v1422, %v1421
  %v1424 = vrot.slane %v1406, 4
  %v1425 = vsel %vm1325, %v1424, %v1423
  %v1426 = vrot.slane %v1407, 3
  %v1427 = vsel %vm1328, %v1426, %v1425
  %v1428 = vrot.slane %v1408, 2
  %v1429 = vsel %vm1331, %v1428, %v1427
  %v1430 = vrot.slane %v1409, 1
  %v1431 = vsel %vm1334, %v1430, %v1429
  %v1432 = vsel %vm721, %v1431, 0
  %1434 = vmatpush.msra.mxu0 0.0
  %1435 = vmatpush.msra.mxu0 0.0
  %1436 = vmatpush.msra.mxu0 0.0
  %1437 = vmatpush.msra.mxu0 0.0
  %1438 = vmatpush.msra.mxu0 0.0
  %1439 = vmatpush.msra.mxu0 0.0
  %1440 = vmatpush.msra.mxu0 0.0
  %1441 = vmatpush.msra.mxu0 0.0
  %1442 = vmatpush.msra.mxu0 0.0
  %1443 = vmatpush.msra.mxu0 0.0
  %1444 = vmatpush.msra.mxu0 0.0
  %1445 = vmatpush.msra.mxu0 0.0
  %1446 = vmatpush.msra.mxu0 0.0
  %1447 = vmatpush.msra.mxu0 0.0
  %1448 = vmatpush.msra.mxu0 0.0
  %1449 = vmatpush.msra.mxu0 %v70
  %1450 = vmatmul.f32.gmra.mxu0 %v1432
  %v1451 = vpop.f32.mrf.mxu0
  %v1452 = vadd.f32 0.0, %v1451
  %1453 = vdwg.mxu0
  %v1454 = vadd.f32 %v1400, %v1452
  %v1455 = vld [vmem:[#allocation3 + $0x3] sm:$0x1]
  %v1456 = vld [vmem:[#allocation3 + $0x13] sm:$0x1]
  %v1457 = vld [vmem:[#allocation3 + $0x23] sm:$0x1]
  %v1458 = vld [vmem:[#allocation3 + $0x33] sm:$0x1]
  %v1459 = vld [vmem:[#allocation3 + $0x43] sm:$0x1]
  %v1460 = vld [vmem:[#allocation3 + $0x53] sm:$0x1]
  %v1461 = vld [vmem:[#allocation3 + $0x63] sm:$0x1]
  %v1462 = vld [vmem:[#allocation3 + $0x73] sm:$0x1]
  %v1471 = vrot.slane %v1456, 7
  %v1472 = vsel %vm1316, %v1471, %v1455
  %v1473 = vrot.slane %v1457, 6
  %v1474 = vsel %vm1319, %v1473, %v1472
  %v1475 = vrot.slane %v1458, 5
  %v1476 = vsel %vm1322, %v1475, %v1474
  %v1477 = vrot.slane %v1459, 4
  %v1478 = vsel %vm1325, %v1477, %v1476
  %v1479 = vrot.slane %v1460, 3
  %v1480 = vsel %vm1328, %v1479, %v1478
  %v1481 = vrot.slane %v1461, 2
  %v1482 = vsel %vm1331, %v1481, %v1480
  %v1483 = vrot.slane %v1462, 1
  %v1484 = vsel %vm1334, %v1483, %v1482
  %v1485 = vsel %vm721, %v1484, 0
  %1487 = vmatpush.msra.mxu0 0.0
  %1488 = vmatpush.msra.mxu0 0.0
  %1489 = vmatpush.msra.mxu0 0.0
  %1490 = vmatpush.msra.mxu0 0.0
  %1491 = vmatpush.msra.mxu0 0.0
  %1492 = vmatpush.msra.mxu0 0.0
  %1493 = vmatpush.msra.mxu0 0.0
  %1494 = vmatpush.msra.mxu0 0.0
  %1495 = vmatpush.msra.mxu0 0.0
  %1496 = vmatpush.msra.mxu0 0.0
  %1497 = vmatpush.msra.mxu0 0.0
  %1498 = vmatpush.msra.mxu0 0.0
  %1499 = vmatpush.msra.mxu0 0.0
  %1500 = vmatpush.msra.mxu0 0.0
  %1501 = vmatpush.msra.mxu0 0.0
  %1502 = vmatpush.msra.mxu0 %v71
  %1503 = vmatmul.f32.gmra.mxu0 %v1485
  %v1504 = vpop.f32.mrf.mxu0
  %v1505 = vadd.f32 0.0, %v1504
  %1506 = vdwg.mxu0
  %v1507 = vadd.f32 %v1454, %v1505
  %v1508 = vld [vmem:[#allocation3 + $0x4] sm:$0x1]
  %v1509 = vld [vmem:[#allocation3 + $0x14] sm:$0x1]
  %v1510 = vld [vmem:[#allocation3 + $0x24] sm:$0x1]
  %v1511 = vld [vmem:[#allocation3 + $0x34] sm:$0x1]
  %v1512 = vld [vmem:[#allocation3 + $0x44] sm:$0x1]
  %v1513 = vld [vmem:[#allocation3 + $0x54] sm:$0x1]
  %v1514 = vld [vmem:[#allocation3 + $0x64] sm:$0x1]
  %v1515 = vld [vmem:[#allocation3 + $0x74] sm:$0x1]
  %v1524 = vrot.slane %v1509, 7
  %v1525 = vsel %vm1316, %v1524, %v1508
  %v1526 = vrot.slane %v1510, 6
  %v1527 = vsel %vm1319, %v1526, %v1525
  %v1528 = vrot.slane %v1511, 5
  %v1529 = vsel %vm1322, %v1528, %v1527
  %v1530 = vrot.slane %v1512, 4
  %v1531 = vsel %vm1325, %v1530, %v1529
  %v1532 = vrot.slane %v1513, 3
  %v1533 = vsel %vm1328, %v1532, %v1531
  %v1534 = vrot.slane %v1514, 2
  %v1535 = vsel %vm1331, %v1534, %v1533
  %v1536 = vrot.slane %v1515, 1
  %v1537 = vsel %vm1334, %v1536, %v1535
  %v1538 = vsel %vm721, %v1537, 0
  %1540 = vmatpush.msra.mxu0 0.0
  %1541 = vmatpush.msra.mxu0 0.0
  %1542 = vmatpush.msra.mxu0 0.0
  %1543 = vmatpush.msra.mxu0 0.0
  %1544 = vmatpush.msra.mxu0 0.0
  %1545 = vmatpush.msra.mxu0 0.0
  %1546 = vmatpush.msra.mxu0 0.0
  %1547 = vmatpush.msra.mxu0 0.0
  %1548 = vmatpush.msra.mxu0 0.0
  %1549 = vmatpush.msra.mxu0 0.0
  %1550 = vmatpush.msra.mxu0 0.0
  %1551 = vmatpush.msra.mxu0 0.0
  %1552 = vmatpush.msra.mxu0 0.0
  %1553 = vmatpush.msra.mxu0 0.0
  %1554 = vmatpush.msra.mxu0 0.0
  %1555 = vmatpush.msra.mxu0 %v72
  %1556 = vmatmul.f32.gmra.mxu0 %v1538
  %v1557 = vpop.f32.mrf.mxu0
  %v1558 = vadd.f32 0.0, %v1557
  %1559 = vdwg.mxu0
  %v1560 = vadd.f32 %v1507, %v1558
  %v1561 = vld [vmem:[#allocation3 + $0x5] sm:$0x1]
  %v1562 = vld [vmem:[#allocation3 + $0x15] sm:$0x1]
  %v1563 = vld [vmem:[#allocation3 + $0x25] sm:$0x1]
  %v1564 = vld [vmem:[#allocation3 + $0x35] sm:$0x1]
  %v1565 = vld [vmem:[#allocation3 + $0x45] sm:$0x1]
  %v1566 = vld [vmem:[#allocation3 + $0x55] sm:$0x1]
  %v1567 = vld [vmem:[#allocation3 + $0x65] sm:$0x1]
  %v1568 = vld [vmem:[#allocation3 + $0x75] sm:$0x1]
  %v1577 = vrot.slane %v1562, 7
  %v1578 = vsel %vm1316, %v1577, %v1561
  %v1579 = vrot.slane %v1563, 6
  %v1580 = vsel %vm1319, %v1579, %v1578
  %v1581 = vrot.slane %v1564, 5
  %v1582 = vsel %vm1322, %v1581, %v1580
  %v1583 = vrot.slane %v1565, 4
  %v1584 = vsel %vm1325, %v1583, %v1582
  %v1585 = vrot.slane %v1566, 3
  %v1586 = vsel %vm1328, %v1585, %v1584
  %v1587 = vrot.slane %v1567, 2
  %v1588 = vsel %vm1331, %v1587, %v1586
  %v1589 = vrot.slane %v1568, 1
  %v1590 = vsel %vm1334, %v1589, %v1588
  %v1591 = vsel %vm721, %v1590, 0
  %1593 = vmatpush.msra.mxu0 0.0
  %1594 = vmatpush.msra.mxu0 0.0
  %1595 = vmatpush.msra.mxu0 0.0
  %1596 = vmatpush.msra.mxu0 0.0
  %1597 = vmatpush.msra.mxu0 0.0
  %1598 = vmatpush.msra.mxu0 0.0
  %1599 = vmatpush.msra.mxu0 0.0
  %1600 = vmatpush.msra.mxu0 0.0
  %1601 = vmatpush.msra.mxu0 0.0
  %1602 = vmatpush.msra.mxu0 0.0
  %1603 = vmatpush.msra.mxu0 0.0
  %1604 = vmatpush.msra.mxu0 0.0
  %1605 = vmatpush.msra.mxu0 0.0
  %1606 = vmatpush.msra.mxu0 0.0
  %1607 = vmatpush.msra.mxu0 0.0
  %1608 = vmatpush.msra.mxu0 %v73
  %1609 = vmatmul.f32.gmra.mxu0 %v1591
  %v1610 = vpop.f32.mrf.mxu0
  %v1611 = vadd.f32 0.0, %v1610
  %1612 = vdwg.mxu0
  %v1613 = vadd.f32 %v1560, %v1611
  %v1614 = vld [vmem:[#allocation3 + $0x6] sm:$0x1]
  %v1615 = vld [vmem:[#allocation3 + $0x16] sm:$0x1]
  %v1616 = vld [vmem:[#allocation3 + $0x26] sm:$0x1]
  %v1617 = vld [vmem:[#allocation3 + $0x36] sm:$0x1]
  %v1618 = vld [vmem:[#allocation3 + $0x46] sm:$0x1]
  %v1619 = vld [vmem:[#allocation3 + $0x56] sm:$0x1]
  %v1620 = vld [vmem:[#allocation3 + $0x66] sm:$0x1]
  %v1621 = vld [vmem:[#allocation3 + $0x76] sm:$0x1]
  %v1630 = vrot.slane %v1615, 7
  %v1631 = vsel %vm1316, %v1630, %v1614
  %v1632 = vrot.slane %v1616, 6
  %v1633 = vsel %vm1319, %v1632, %v1631
  %v1634 = vrot.slane %v1617, 5
  %v1635 = vsel %vm1322, %v1634, %v1633
  %v1636 = vrot.slane %v1618, 4
  %v1637 = vsel %vm1325, %v1636, %v1635
  %v1638 = vrot.slane %v1619, 3
  %v1639 = vsel %vm1328, %v1638, %v1637
  %v1640 = vrot.slane %v1620, 2
  %v1641 = vsel %vm1331, %v1640, %v1639
  %v1642 = vrot.slane %v1621, 1
  %v1643 = vsel %vm1334, %v1642, %v1641
  %v1644 = vsel %vm721, %v1643, 0
  %1646 = vmatpush.msra.mxu0 0.0
  %1647 = vmatpush.msra.mxu0 0.0
  %1648 = vmatpush.msra.mxu0 0.0
  %1649 = vmatpush.msra.mxu0 0.0
  %1650 = vmatpush.msra.mxu0 0.0
  %1651 = vmatpush.msra.mxu0 0.0
  %1652 = vmatpush.msra.mxu0 0.0
  %1653 = vmatpush.msra.mxu0 0.0
  %1654 = vmatpush.msra.mxu0 0.0
  %1655 = vmatpush.msra.mxu0 0.0
  %1656 = vmatpush.msra.mxu0 0.0
  %1657 = vmatpush.msra.mxu0 0.0
  %1658 = vmatpush.msra.mxu0 0.0
  %1659 = vmatpush.msra.mxu0 0.0
  %1660 = vmatpush.msra.mxu0 0.0
  %1661 = vmatpush.msra.mxu0 %v74
  %1662 = vmatmul.f32.gmra.mxu0 %v1644
  %v1663 = vpop.f32.mrf.mxu0
  %v1664 = vadd.f32 0.0, %v1663
  %1665 = vdwg.mxu0
  %v1666 = vadd.f32 %v1613, %v1664
  %v1667 = vld [vmem:[#allocation3 + $0x7] sm:$0x1]
  %v1668 = vld [vmem:[#allocation3 + $0x17] sm:$0x1]
  %v1669 = vld [vmem:[#allocation3 + $0x27] sm:$0x1]
  %v1670 = vld [vmem:[#allocation3 + $0x37] sm:$0x1]
  %v1671 = vld [vmem:[#allocation3 + $0x47] sm:$0x1]
  %v1672 = vld [vmem:[#allocation3 + $0x57] sm:$0x1]
  %v1673 = vld [vmem:[#allocation3 + $0x67] sm:$0x1]
  %v1674 = vld [vmem:[#allocation3 + $0x77] sm:$0x1]
  %v1683 = vrot.slane %v1668, 7
  %v1684 = vsel %vm1316, %v1683, %v1667
  %v1685 = vrot.slane %v1669, 6
  %v1686 = vsel %vm1319, %v1685, %v1684
  %v1687 = vrot.slane %v1670, 5
  %v1688 = vsel %vm1322, %v1687, %v1686
  %v1689 = vrot.slane %v1671, 4
  %v1690 = vsel %vm1325, %v1689, %v1688
  %v1691 = vrot.slane %v1672, 3
  %v1692 = vsel %vm1328, %v1691, %v1690
  %v1693 = vrot.slane %v1673, 2
  %v1694 = vsel %vm1331, %v1693, %v1692
  %v1695 = vrot.slane %v1674, 1
  %v1696 = vsel %vm1334, %v1695, %v1694
  %v1697 = vsel %vm721, %v1696, 0
  %1699 = vmatpush.msra.mxu0 0.0
  %1700 = vmatpush.msra.mxu0 0.0
  %1701 = vmatpush.msra.mxu0 0.0
  %1702 = vmatpush.msra.mxu0 0.0
  %1703 = vmatpush.msra.mxu0 0.0
  %1704 = vmatpush.msra.mxu0 0.0
  %1705 = vmatpush.msra.mxu0 0.0
  %1706 = vmatpush.msra.mxu0 0.0
  %1707 = vmatpush.msra.mxu0 0.0
  %1708 = vmatpush.msra.mxu0 0.0
  %1709 = vmatpush.msra.mxu0 0.0
  %1710 = vmatpush.msra.mxu0 0.0
  %1711 = vmatpush.msra.mxu0 0.0
  %1712 = vmatpush.msra.mxu0 0.0
  %1713 = vmatpush.msra.mxu0 0.0
  %1714 = vmatpush.msra.mxu0 %v75
  %1715 = vmatmul.f32.gmra.mxu0 %v1697
  %v1716 = vpop.f32.mrf.mxu0
  %v1717 = vadd.f32 0.0, %v1716
  %1718 = vdwg.mxu0
  %v1719 = vadd.f32 %v1666, %v1717
  %v1720 = vld [vmem:[#allocation3 + $0x8] sm:$0x1]
  %v1721 = vld [vmem:[#allocation3 + $0x18] sm:$0x1]
  %v1722 = vld [vmem:[#allocation3 + $0x28] sm:$0x1]
  %v1723 = vld [vmem:[#allocation3 + $0x38] sm:$0x1]
  %v1724 = vld [vmem:[#allocation3 + $0x48] sm:$0x1]
  %v1725 = vld [vmem:[#allocation3 + $0x58] sm:$0x1]
  %v1726 = vld [vmem:[#allocation3 + $0x68] sm:$0x1]
  %v1727 = vld [vmem:[#allocation3 + $0x78] sm:$0x1]
  %v1736 = vrot.slane %v1721, 7
  %v1737 = vsel %vm1316, %v1736, %v1720
  %v1738 = vrot.slane %v1722, 6
  %v1739 = vsel %vm1319, %v1738, %v1737
  %v1740 = vrot.slane %v1723, 5
  %v1741 = vsel %vm1322, %v1740, %v1739
  %v1742 = vrot.slane %v1724, 4
  %v1743 = vsel %vm1325, %v1742, %v1741
  %v1744 = vrot.slane %v1725, 3
  %v1745 = vsel %vm1328, %v1744, %v1743
  %v1746 = vrot.slane %v1726, 2
  %v1747 = vsel %vm1331, %v1746, %v1745
  %v1748 = vrot.slane %v1727, 1
  %v1749 = vsel %vm1334, %v1748, %v1747
  %v1750 = vsel %vm721, %v1749, 0
  %1752 = vmatpush.msra.mxu0 0.0
  %1753 = vmatpush.msra.mxu0 0.0
  %1754 = vmatpush.msra.mxu0 0.0
  %1755 = vmatpush.msra.mxu0 0.0
  %1756 = vmatpush.msra.mxu0 0.0
  %1757 = vmatpush.msra.mxu0 0.0
  %1758 = vmatpush.msra.mxu0 0.0
  %1759 = vmatpush.msra.mxu0 0.0
  %1760 = vmatpush.msra.mxu0 0.0
  %1761 = vmatpush.msra.mxu0 0.0
  %1762 = vmatpush.msra.mxu0 0.0
  %1763 = vmatpush.msra.mxu0 0.0
  %1764 = vmatpush.msra.mxu0 0.0
  %1765 = vmatpush.msra.mxu0 0.0
  %1766 = vmatpush.msra.mxu0 0.0
  %1767 = vmatpush.msra.mxu0 %v76
  %1768 = vmatmul.f32.gmra.mxu0 %v1750
  %v1769 = vpop.f32.mrf.mxu0
  %v1770 = vadd.f32 0.0, %v1769
  %1771 = vdwg.mxu0
  %v1772 = vadd.f32 %v1719, %v1770
  %v1773 = vld [vmem:[#allocation3 + $0x9] sm:$0x1]
  %v1774 = vld [vmem:[#allocation3 + $0x19] sm:$0x1]
  %v1775 = vld [vmem:[#allocation3 + $0x29] sm:$0x1]
  %v1776 = vld [vmem:[#allocation3 + $0x39] sm:$0x1]
  %v1777 = vld [vmem:[#allocation3 + $0x49] sm:$0x1]
  %v1778 = vld [vmem:[#allocation3 + $0x59] sm:$0x1]
  %v1779 = vld [vmem:[#allocation3 + $0x69] sm:$0x1]
  %v1780 = vld [vmem:[#allocation3 + $0x79] sm:$0x1]
  %v1789 = vrot.slane %v1774, 7
  %v1790 = vsel %vm1316, %v1789, %v1773
  %v1791 = vrot.slane %v1775, 6
  %v1792 = vsel %vm1319, %v1791, %v1790
  %v1793 = vrot.slane %v1776, 5
  %v1794 = vsel %vm1322, %v1793, %v1792
  %v1795 = vrot.slane %v1777, 4
  %v1796 = vsel %vm1325, %v1795, %v1794
  %v1797 = vrot.slane %v1778, 3
  %v1798 = vsel %vm1328, %v1797, %v1796
  %v1799 = vrot.slane %v1779, 2
  %v1800 = vsel %vm1331, %v1799, %v1798
  %v1801 = vrot.slane %v1780, 1
  %v1802 = vsel %vm1334, %v1801, %v1800
  %v1803 = vsel %vm721, %v1802, 0
  %1805 = vmatpush.msra.mxu0 0.0
  %1806 = vmatpush.msra.mxu0 0.0
  %1807 = vmatpush.msra.mxu0 0.0
  %1808 = vmatpush.msra.mxu0 0.0
  %1809 = vmatpush.msra.mxu0 0.0
  %1810 = vmatpush.msra.mxu0 0.0
  %1811 = vmatpush.msra.mxu0 0.0
  %1812 = vmatpush.msra.mxu0 0.0
  %1813 = vmatpush.msra.mxu0 0.0
  %1814 = vmatpush.msra.mxu0 0.0
  %1815 = vmatpush.msra.mxu0 0.0
  %1816 = vmatpush.msra.mxu0 0.0
  %1817 = vmatpush.msra.mxu0 0.0
  %1818 = vmatpush.msra.mxu0 0.0
  %1819 = vmatpush.msra.mxu0 0.0
  %1820 = vmatpush.msra.mxu0 %v77
  %1821 = vmatmul.f32.gmra.mxu0 %v1803
  %v1822 = vpop.f32.mrf.mxu0
  %v1823 = vadd.f32 0.0, %v1822
  %1824 = vdwg.mxu0
  %v1825 = vadd.f32 %v1772, %v1823
  %v1826 = vld [vmem:[#allocation3 + $0xa] sm:$0x1]
  %v1827 = vld [vmem:[#allocation3 + $0x1a] sm:$0x1]
  %v1828 = vld [vmem:[#allocation3 + $0x2a] sm:$0x1]
  %v1829 = vld [vmem:[#allocation3 + $0x3a] sm:$0x1]
  %v1830 = vld [vmem:[#allocation3 + $0x4a] sm:$0x1]
  %v1831 = vld [vmem:[#allocation3 + $0x5a] sm:$0x1]
  %v1832 = vld [vmem:[#allocation3 + $0x6a] sm:$0x1]
  %v1833 = vld [vmem:[#allocation3 + $0x7a] sm:$0x1]
  %v1842 = vrot.slane %v1827, 7
  %v1843 = vsel %vm1316, %v1842, %v1826
  %v1844 = vrot.slane %v1828, 6
  %v1845 = vsel %vm1319, %v1844, %v1843
  %v1846 = vrot.slane %v1829, 5
  %v1847 = vsel %vm1322, %v1846, %v1845
  %v1848 = vrot.slane %v1830, 4
  %v1849 = vsel %vm1325, %v1848, %v1847
  %v1850 = vrot.slane %v1831, 3
  %v1851 = vsel %vm1328, %v1850, %v1849
  %v1852 = vrot.slane %v1832, 2
  %v1853 = vsel %vm1331, %v1852, %v1851
  %v1854 = vrot.slane %v1833, 1
  %v1855 = vsel %vm1334, %v1854, %v1853
  %v1856 = vsel %vm721, %v1855, 0
  %1858 = vmatpush.msra.mxu0 0.0
  %1859 = vmatpush.msra.mxu0 0.0
  %1860 = vmatpush.msra.mxu0 0.0
  %1861 = vmatpush.msra.mxu0 0.0
  %1862 = vmatpush.msra.mxu0 0.0
  %1863 = vmatpush.msra.mxu0 0.0
  %1864 = vmatpush.msra.mxu0 0.0
  %1865 = vmatpush.msra.mxu0 0.0
  %1866 = vmatpush.msra.mxu0 0.0
  %1867 = vmatpush.msra.mxu0 0.0
  %1868 = vmatpush.msra.mxu0 0.0
  %1869 = vmatpush.msra.mxu0 0.0
  %1870 = vmatpush.msra.mxu0 0.0
  %1871 = vmatpush.msra.mxu0 0.0
  %1872 = vmatpush.msra.mxu0 0.0
  %1873 = vmatpush.msra.mxu0 %v78
  %1874 = vmatmul.f32.gmra.mxu0 %v1856
  %v1875 = vpop.f32.mrf.mxu0
  %v1876 = vadd.f32 0.0, %v1875
  %1877 = vdwg.mxu0
  %v1878 = vadd.f32 %v1825, %v1876
  %v1879 = vld [vmem:[#allocation3 + $0xb] sm:$0x1]
  %v1880 = vld [vmem:[#allocation3 + $0x1b] sm:$0x1]
  %v1881 = vld [vmem:[#allocation3 + $0x2b] sm:$0x1]
  %v1882 = vld [vmem:[#allocation3 + $0x3b] sm:$0x1]
  %v1883 = vld [vmem:[#allocation3 + $0x4b] sm:$0x1]
  %v1884 = vld [vmem:[#allocation3 + $0x5b] sm:$0x1]
  %v1885 = vld [vmem:[#allocation3 + $0x6b] sm:$0x1]
  %v1886 = vld [vmem:[#allocation3 + $0x7b] sm:$0x1]
  %v1895 = vrot.slane %v1880, 7
  %v1896 = vsel %vm1316, %v1895, %v1879
  %v1897 = vrot.slane %v1881, 6
  %v1898 = vsel %vm1319, %v1897, %v1896
  %v1899 = vrot.slane %v1882, 5
  %v1900 = vsel %vm1322, %v1899, %v1898
  %v1901 = vrot.slane %v1883, 4
  %v1902 = vsel %vm1325, %v1901, %v1900
  %v1903 = vrot.slane %v1884, 3
  %v1904 = vsel %vm1328, %v1903, %v1902
  %v1905 = vrot.slane %v1885, 2
  %v1906 = vsel %vm1331, %v1905, %v1904
  %v1907 = vrot.slane %v1886, 1
  %v1908 = vsel %vm1334, %v1907, %v1906
  %v1909 = vsel %vm721, %v1908, 0
  %1911 = vmatpush.msra.mxu0 0.0
  %1912 = vmatpush.msra.mxu0 0.0
  %1913 = vmatpush.msra.mxu0 0.0
  %1914 = vmatpush.msra.mxu0 0.0
  %1915 = vmatpush.msra.mxu0 0.0
  %1916 = vmatpush.msra.mxu0 0.0
  %1917 = vmatpush.msra.mxu0 0.0
  %1918 = vmatpush.msra.mxu0 0.0
  %1919 = vmatpush.msra.mxu0 0.0
  %1920 = vmatpush.msra.mxu0 0.0
  %1921 = vmatpush.msra.mxu0 0.0
  %1922 = vmatpush.msra.mxu0 0.0
  %1923 = vmatpush.msra.mxu0 0.0
  %1924 = vmatpush.msra.mxu0 0.0
  %1925 = vmatpush.msra.mxu0 0.0
  %1926 = vmatpush.msra.mxu0 %v79
  %1927 = vmatmul.f32.gmra.mxu0 %v1909
  %v1928 = vpop.f32.mrf.mxu0
  %v1929 = vadd.f32 0.0, %v1928
  %1930 = vdwg.mxu0
  %v1931 = vadd.f32 %v1878, %v1929
  %v1932 = vld [vmem:[#allocation3 + $0xc] sm:$0x1]
  %v1933 = vld [vmem:[#allocation3 + $0x1c] sm:$0x1]
  %v1934 = vld [vmem:[#allocation3 + $0x2c] sm:$0x1]
  %v1935 = vld [vmem:[#allocation3 + $0x3c] sm:$0x1]
  %v1936 = vld [vmem:[#allocation3 + $0x4c] sm:$0x1]
  %v1937 = vld [vmem:[#allocation3 + $0x5c] sm:$0x1]
  %v1938 = vld [vmem:[#allocation3 + $0x6c] sm:$0x1]
  %v1939 = vld [vmem:[#allocation3 + $0x7c] sm:$0x1]
  %v1948 = vrot.slane %v1933, 7
  %v1949 = vsel %vm1316, %v1948, %v1932
  %v1950 = vrot.slane %v1934, 6
  %v1951 = vsel %vm1319, %v1950, %v1949
  %v1952 = vrot.slane %v1935, 5
  %v1953 = vsel %vm1322, %v1952, %v1951
  %v1954 = vrot.slane %v1936, 4
  %v1955 = vsel %vm1325, %v1954, %v1953
  %v1956 = vrot.slane %v1937, 3
  %v1957 = vsel %vm1328, %v1956, %v1955
  %v1958 = vrot.slane %v1938, 2
  %v1959 = vsel %vm1331, %v1958, %v1957
  %v1960 = vrot.slane %v1939, 1
  %v1961 = vsel %vm1334, %v1960, %v1959
  %v1962 = vsel %vm721, %v1961, 0
  %1964 = vmatpush.msra.mxu0 0.0
  %1965 = vmatpush.msra.mxu0 0.0
  %1966 = vmatpush.msra.mxu0 0.0
  %1967 = vmatpush.msra.mxu0 0.0
  %1968 = vmatpush.msra.mxu0 0.0
  %1969 = vmatpush.msra.mxu0 0.0
  %1970 = vmatpush.msra.mxu0 0.0
  %1971 = vmatpush.msra.mxu0 0.0
  %1972 = vmatpush.msra.mxu0 0.0
  %1973 = vmatpush.msra.mxu0 0.0
  %1974 = vmatpush.msra.mxu0 0.0
  %1975 = vmatpush.msra.mxu0 0.0
  %1976 = vmatpush.msra.mxu0 0.0
  %1977 = vmatpush.msra.mxu0 0.0
  %1978 = vmatpush.msra.mxu0 0.0
  %1979 = vmatpush.msra.mxu0 %v80
  %1980 = vmatmul.f32.gmra.mxu0 %v1962
  %v1981 = vpop.f32.mrf.mxu0
  %v1982 = vadd.f32 0.0, %v1981
  %1983 = vdwg.mxu0
  %v1984 = vadd.f32 %v1931, %v1982
  %v1985 = vld [vmem:[#allocation3 + $0xd] sm:$0x1]
  %v1986 = vld [vmem:[#allocation3 + $0x1d] sm:$0x1]
  %v1987 = vld [vmem:[#allocation3 + $0x2d] sm:$0x1]
  %v1988 = vld [vmem:[#allocation3 + $0x3d] sm:$0x1]
  %v1989 = vld [vmem:[#allocation3 + $0x4d] sm:$0x1]
  %v1990 = vld [vmem:[#allocation3 + $0x5d] sm:$0x1]
  %v1991 = vld [vmem:[#allocation3 + $0x6d] sm:$0x1]
  %v1992 = vld [vmem:[#allocation3 + $0x7d] sm:$0x1]
  %v2001 = vrot.slane %v1986, 7
  %v2002 = vsel %vm1316, %v2001, %v1985
  %v2003 = vrot.slane %v1987, 6
  %v2004 = vsel %vm1319, %v2003, %v2002
  %v2005 = vrot.slane %v1988, 5
  %v2006 = vsel %vm1322, %v2005, %v2004
  %v2007 = vrot.slane %v1989, 4
  %v2008 = vsel %vm1325, %v2007, %v2006
  %v2009 = vrot.slane %v1990, 3
  %v2010 = vsel %vm1328, %v2009, %v2008
  %v2011 = vrot.slane %v1991, 2
  %v2012 = vsel %vm1331, %v2011, %v2010
  %v2013 = vrot.slane %v1992, 1
  %v2014 = vsel %vm1334, %v2013, %v2012
  %v2015 = vsel %vm721, %v2014, 0
  %2017 = vmatpush.msra.mxu0 0.0
  %2018 = vmatpush.msra.mxu0 0.0
  %2019 = vmatpush.msra.mxu0 0.0
  %2020 = vmatpush.msra.mxu0 0.0
  %2021 = vmatpush.msra.mxu0 0.0
  %2022 = vmatpush.msra.mxu0 0.0
  %2023 = vmatpush.msra.mxu0 0.0
  %2024 = vmatpush.msra.mxu0 0.0
  %2025 = vmatpush.msra.mxu0 0.0
  %2026 = vmatpush.msra.mxu0 0.0
  %2027 = vmatpush.msra.mxu0 0.0
  %2028 = vmatpush.msra.mxu0 0.0
  %2029 = vmatpush.msra.mxu0 0.0
  %2030 = vmatpush.msra.mxu0 0.0
  %2031 = vmatpush.msra.mxu0 0.0
  %2032 = vmatpush.msra.mxu0 %v81
  %2033 = vmatmul.f32.gmra.mxu0 %v2015
  %v2034 = vpop.f32.mrf.mxu0
  %v2035 = vadd.f32 0.0, %v2034
  %2036 = vdwg.mxu0
  %v2037 = vadd.f32 %v1984, %v2035
  %v2038 = vld [vmem:[#allocation3 + $0xe] sm:$0x1]
  %v2039 = vld [vmem:[#allocation3 + $0x1e] sm:$0x1]
  %v2040 = vld [vmem:[#allocation3 + $0x2e] sm:$0x1]
  %v2041 = vld [vmem:[#allocation3 + $0x3e] sm:$0x1]
  %v2042 = vld [vmem:[#allocation3 + $0x4e] sm:$0x1]
  %v2043 = vld [vmem:[#allocation3 + $0x5e] sm:$0x1]
  %v2044 = vld [vmem:[#allocation3 + $0x6e] sm:$0x1]
  %v2045 = vld [vmem:[#allocation3 + $0x7e] sm:$0x1]
  %v2054 = vrot.slane %v2039, 7
  %v2055 = vsel %vm1316, %v2054, %v2038
  %v2056 = vrot.slane %v2040, 6
  %v2057 = vsel %vm1319, %v2056, %v2055
  %v2058 = vrot.slane %v2041, 5
  %v2059 = vsel %vm1322, %v2058, %v2057
  %v2060 = vrot.slane %v2042, 4
  %v2061 = vsel %vm1325, %v2060, %v2059
  %v2062 = vrot.slane %v2043, 3
  %v2063 = vsel %vm1328, %v2062, %v2061
  %v2064 = vrot.slane %v2044, 2
  %v2065 = vsel %vm1331, %v2064, %v2063
  %v2066 = vrot.slane %v2045, 1
  %v2067 = vsel %vm1334, %v2066, %v2065
  %v2068 = vsel %vm721, %v2067, 0
  %2070 = vmatpush.msra.mxu0 0.0
  %2071 = vmatpush.msra.mxu0 0.0
  %2072 = vmatpush.msra.mxu0 0.0
  %2073 = vmatpush.msra.mxu0 0.0
  %2074 = vmatpush.msra.mxu0 0.0
  %2075 = vmatpush.msra.mxu0 0.0
  %2076 = vmatpush.msra.mxu0 0.0
  %2077 = vmatpush.msra.mxu0 0.0
  %2078 = vmatpush.msra.mxu0 0.0
  %2079 = vmatpush.msra.mxu0 0.0
  %2080 = vmatpush.msra.mxu0 0.0
  %2081 = vmatpush.msra.mxu0 0.0
  %2082 = vmatpush.msra.mxu0 0.0
  %2083 = vmatpush.msra.mxu0 0.0
  %2084 = vmatpush.msra.mxu0 0.0
  %2085 = vmatpush.msra.mxu0 %v82
  %2086 = vmatmul.f32.gmra.mxu0 %v2068
  %v2087 = vpop.f32.mrf.mxu0
  %v2088 = vadd.f32 0.0, %v2087
  %2089 = vdwg.mxu0
  %v2090 = vadd.f32 %v2037, %v2088
  %v2091 = vld [vmem:[#allocation3 + $0xf] sm:$0x1]
  %v2092 = vld [vmem:[#allocation3 + $0x1f] sm:$0x1]
  %v2093 = vld [vmem:[#allocation3 + $0x2f] sm:$0x1]
  %v2094 = vld [vmem:[#allocation3 + $0x3f] sm:$0x1]
  %v2095 = vld [vmem:[#allocation3 + $0x4f] sm:$0x1]
  %v2096 = vld [vmem:[#allocation3 + $0x5f] sm:$0x1]
  %v2097 = vld [vmem:[#allocation3 + $0x6f] sm:$0x1]
  %v2098 = vld [vmem:[#allocation3 + $0x7f] sm:$0x1]
  %v2107 = vrot.slane %v2092, 7
  %v2108 = vsel %vm1316, %v2107, %v2091
  %v2109 = vrot.slane %v2093, 6
  %v2110 = vsel %vm1319, %v2109, %v2108
  %v2111 = vrot.slane %v2094, 5
  %v2112 = vsel %vm1322, %v2111, %v2110
  %v2113 = vrot.slane %v2095, 4
  %v2114 = vsel %vm1325, %v2113, %v2112
  %v2115 = vrot.slane %v2096, 3
  %v2116 = vsel %vm1328, %v2115, %v2114
  %v2117 = vrot.slane %v2097, 2
  %v2118 = vsel %vm1331, %v2117, %v2116
  %v2119 = vrot.slane %v2098, 1
  %v2120 = vsel %vm1334, %v2119, %v2118
  %v2121 = vsel %vm721, %v2120, 0
  %2123 = vmatpush.msra.mxu0 0.0
  %2124 = vmatpush.msra.mxu0 0.0
  %2125 = vmatpush.msra.mxu0 0.0
  %2126 = vmatpush.msra.mxu0 0.0
  %2127 = vmatpush.msra.mxu0 0.0
  %2128 = vmatpush.msra.mxu0 0.0
  %2129 = vmatpush.msra.mxu0 0.0
  %2130 = vmatpush.msra.mxu0 0.0
  %2131 = vmatpush.msra.mxu0 0.0
  %2132 = vmatpush.msra.mxu0 0.0
  %2133 = vmatpush.msra.mxu0 0.0
  %2134 = vmatpush.msra.mxu0 0.0
  %2135 = vmatpush.msra.mxu0 0.0
  %2136 = vmatpush.msra.mxu0 0.0
  %2137 = vmatpush.msra.mxu0 0.0
  %2138 = vmatpush.msra.mxu0 %v83
  %2139 = vmatmul.f32.gmra.mxu0 %v2121
  %v2140 = vpop.f32.mrf.mxu0
  %v2141 = vadd.f32 0.0, %v2140
  %2142 = vdwg.mxu0
  %v2143 = vadd.f32 %v2090, %v2141
  %v2145 = vperm.slane %v84, 0
  %v2147 = vadd.f32 %v2143, %v2145
  %v2148 = vmax.f32 %v2147, 0.0
  %2149 = vset.pattern.permute.xlu0 0
  %2150 = vperm.xlu0 %2149, %v135
  %v2151 = vpop.permute.xlu0 %2150
  %v2153 = vperm.slane %v2151, 0
  %2154 = vset.pattern.permute.xlu0 0
  %2155 = vperm.xlu0 %2154, %v136
  %v2156 = vpop.permute.xlu0 %2155
  %v2158 = vperm.slane %v2156, 0
  %2159 = vset.pattern.permute.xlu0 0
  %2160 = vperm.xlu0 %2159, %v137
  %v2161 = vpop.permute.xlu0 %2160
  %v2163 = vperm.slane %v2161, 0
  %2164 = vset.pattern.permute.xlu0 0
  %2165 = vperm.xlu0 %2164, %v138
  %v2166 = vpop.permute.xlu0 %2165
  %v2168 = vperm.slane %v2166, 0
  %2169 = vset.pattern.permute.xlu0 0
  %2170 = vperm.xlu0 %2169, %v139
  %v2171 = vpop.permute.xlu0 %2170
  %v2173 = vperm.slane %v2171, 0
  %2174 = vset.pattern.permute.xlu0 0
  %2175 = vperm.xlu0 %2174, %v140
  %v2176 = vpop.permute.xlu0 %2175
  %v2178 = vperm.slane %v2176, 0
  %2179 = vset.pattern.permute.xlu0 0
  %2180 = vperm.xlu0 %2179, %v141
  %v2181 = vpop.permute.xlu0 %2180
  %v2183 = vperm.slane %v2181, 0
  %2184 = vset.pattern.permute.xlu0 0
  %2185 = vperm.xlu0 %2184, %v142
  %v2186 = vpop.permute.xlu0 %2185
  %v2188 = vperm.slane %v2186, 0
  %v2189 = vperm.slane %v85, 0
  %v2191 = vrot.slane %v2189, 1
  %v2192 = vrot.slane %v2189, 2
  %v2193 = vrot.slane %v2189, 3
  %v2194 = vrot.slane %v2189, 4
  %v2195 = vrot.slane %v2189, 5
  %v2196 = vrot.slane %v2189, 6
  %v2197 = vrot.slane %v2189, 7
  %v2205 = vmul.f32 %v2153, %v2189
  %v2206 = vmul.f32 %v2158, %v2191
  %v2207 = vmul.f32 %v2163, %v2192
  %v2208 = vmul.f32 %v2168, %v2193
  %v2209 = vmul.f32 %v2173, %v2194
  %v2210 = vmul.f32 %v2178, %v2195
  %v2211 = vmul.f32 %v2183, %v2196
  %v2212 = vmul.f32 %v2188, %v2197
  %2213 = vset.pattern.permute.xlu0 1
  %2214 = vperm.xlu0 %2213, %v135
  %v2215 = vpop.permute.xlu0 %2214
  %v2217 = vperm.slane %v2215, 0
  %2218 = vset.pattern.permute.xlu0 1
  %2219 = vperm.xlu0 %2218, %v136
  %v2220 = vpop.permute.xlu0 %2219
  %v2222 = vperm.slane %v2220, 0
  %2223 = vset.pattern.permute.xlu0 1
  %2224 = vperm.xlu0 %2223, %v137
  %v2225 = vpop.permute.xlu0 %2224
  %v2227 = vperm.slane %v2225, 0
  %2228 = vset.pattern.permute.xlu0 1
  %2229 = vperm.xlu0 %2228, %v138
  %v2230 = vpop.permute.xlu0 %2229
  %v2232 = vperm.slane %v2230, 0
  %2233 = vset.pattern.permute.xlu0 1
  %2234 = vperm.xlu0 %2233, %v139
  %v2235 = vpop.permute.xlu0 %2234
  %v2237 = vperm.slane %v2235, 0
  %2238 = vset.pattern.permute.xlu0 1
  %2239 = vperm.xlu0 %2238, %v140
  %v2240 = vpop.permute.xlu0 %2239
  %v2242 = vperm.slane %v2240, 0
  %2243 = vset.pattern.permute.xlu0 1
  %2244 = vperm.xlu0 %2243, %v141
  %v2245 = vpop.permute.xlu0 %2244
  %v2247 = vperm.slane %v2245, 0
  %2248 = vset.pattern.permute.xlu0 1
  %2249 = vperm.xlu0 %2248, %v142
  %v2250 = vpop.permute.xlu0 %2249
  %v2252 = vperm.slane %v2250, 0
  %v2253 = vperm.slane %v85, 1
  %v2255 = vrot.slane %v2253, 1
  %v2256 = vrot.slane %v2253, 2
  %v2257 = vrot.slane %v2253, 3
  %v2258 = vrot.slane %v2253, 4
  %v2259 = vrot.slane %v2253, 5
  %v2260 = vrot.slane %v2253, 6
  %v2261 = vrot.slane %v2253, 7
  %v2269 = vmul.f32 %v2217, %v2253
  %v2270 = vmul.f32 %v2222, %v2255
  %v2271 = vmul.f32 %v2227, %v2256
  %v2272 = vmul.f32 %v2232, %v2257
  %v2273 = vmul.f32 %v2237, %v2258
  %v2274 = vmul.f32 %v2242, %v2259
  %v2275 = vmul.f32 %v2247, %v2260
  %v2276 = vmul.f32 %v2252, %v2261
  %v2277 = vadd.f32 %v2205, %v2269
  %v2278 = vadd.f32 %v2206, %v2270
  %v2279 = vadd.f32 %v2207, %v2271
  %v2280 = vadd.f32 %v2208, %v2272
  %v2281 = vadd.f32 %v2209, %v2273
  %v2282 = vadd.f32 %v2210, %v2274
  %v2283 = vadd.f32 %v2211, %v2275
  %v2284 = vadd.f32 %v2212, %v2276
  %v2286 = vperm.slane %v86, 0
  %v2288 = vrot.slane %v2286, 1
  %v2289 = vrot.slane %v2286, 2
  %v2290 = vrot.slane %v2286, 3
  %v2291 = vrot.slane %v2286, 4
  %v2292 = vrot.slane %v2286, 5
  %v2293 = vrot.slane %v2286, 6
  %v2294 = vrot.slane %v2286, 7
  %v2302 = vadd.f32 %v2277, %v2286
  %v2303 = vadd.f32 %v2278, %v2288
  %v2304 = vadd.f32 %v2279, %v2289
  %v2305 = vadd.f32 %v2280, %v2290
  %v2306 = vadd.f32 %v2281, %v2291
  %v2307 = vadd.f32 %v2282, %v2292
  %v2308 = vadd.f32 %v2283, %v2293
  %v2309 = vadd.f32 %v2284, %v2294
  %v2310 = vmax.f32 %v2302, 0.0
  %v2311 = vmax.f32 %v2303, 0.0
  %v2312 = vmax.f32 %v2304, 0.0
  %v2313 = vmax.f32 %v2305, 0.0
  %v2314 = vmax.f32 %v2306, 0.0
  %v2315 = vmax.f32 %v2307, 0.0
  %v2316 = vmax.f32 %v2308, 0.0
  %v2317 = vmax.f32 %v2309, 0.0
  %2326 = vst [vmem:[#allocation1] ss:$9 sm:$0xff] %v2310
  %s2327 = scalar_lea.vmem [#allocation1], 1
  %2328 = vst [vmem:[%s2327] ss:$9 sm:$0xff] %v2311
  %s2329 = scalar_lea.vmem [#allocation1], 2
  %2330 = vst [vmem:[%s2329] ss:$9 sm:$0xff] %v2312
  %s2331 = scalar_lea.vmem [#allocation1], 3
  %2332 = vst [vmem:[%s2331] ss:$9 sm:$0xff] %v2313
  %s2333 = scalar_lea.vmem [#allocation1], 4
  %2334 = vst [vmem:[%s2333] ss:$9 sm:$0xff] %v2314
  %s2335 = scalar_lea.vmem [#allocation1], 5
  %2336 = vst [vmem:[%s2335] ss:$9 sm:$0xff] %v2315
  %s2337 = scalar_lea.vmem [#allocation1], 6
  %2338 = vst [vmem:[%s2337] ss:$9 sm:$0xff] %v2316
  %s2339 = scalar_lea.vmem [#allocation1], 7
  %2340 = vst [vmem:[%s2339] ss:$9 sm:$0xff] %v2317
  %v2341 = vld [vmem:[#allocation1] sm:$0xff]
  %vm2342 = vcmask 261120
  %v2343 = vsel %vm2342, %v2341, 0
  %2345 = vmatpush.msra.mxu0 0.0
  %2346 = vmatpush.msra.mxu0 0.0
  %2347 = vmatpush.msra.mxu0 0.0
  %2348 = vmatpush.msra.mxu0 0.0
  %2349 = vmatpush.msra.mxu0 0.0
  %2350 = vmatpush.msra.mxu0 0.0
  %2351 = vmatpush.msra.mxu0 0.0
  %2352 = vmatpush.msra.mxu0 0.0
  %2353 = vmatpush.msra.mxu0 0.0
  %2354 = vmatpush.msra.mxu0 0.0
  %2355 = vmatpush.msra.mxu0 0.0
  %2356 = vmatpush.msra.mxu0 0.0
  %2357 = vmatpush.msra.mxu0 %v94
  %2358 = vmatpush.msra.mxu0 %v93
  %2359 = vmatpush.msra.mxu0 %v92
  %2360 = vmatpush.msra.mxu0 %v91
  %2361 = vmatmul.f32.gmra.mxu0 %v2343
  %v2362 = vpop.f32.mrf.mxu0
  %v2363 = vadd.f32 0.0, %v2362
  %2364 = vdwg.mxu0
  %v2366 = vsel %vm2342, %v2148, 0
  %2368 = vmatpush.msra.mxu0 0.0
  %2369 = vmatpush.msra.mxu0 0.0
  %2370 = vmatpush.msra.mxu0 0.0
  %2371 = vmatpush.msra.mxu0 0.0
  %2372 = vmatpush.msra.mxu0 0.0
  %2373 = vmatpush.msra.mxu0 0.0
  %2374 = vmatpush.msra.mxu0 0.0
  %2375 = vmatpush.msra.mxu0 0.0
  %2376 = vmatpush.msra.mxu0 0.0
  %2377 = vmatpush.msra.mxu0 0.0
  %2378 = vmatpush.msra.mxu0 0.0
  %2379 = vmatpush.msra.mxu0 0.0
  %2380 = vmatpush.msra.mxu0 %v90
  %2381 = vmatpush.msra.mxu0 %v89
  %2382 = vmatpush.msra.mxu0 %v88
  %2383 = vmatpush.msra.mxu0 %v87
  %2384 = vmatmul.f32.gmra.mxu0 %v2366
  %v2385 = vpop.f32.mrf.mxu0
  %v2386 = vadd.f32 %v2363, %v2385
  %2387 = vdwg.mxu0
  %v2389 = vperm.slane %v95, 0
  %v2391 = vadd.f32 %v2386, %v2389
  %v2392 = vmax.f32 %v2391, 0.0
  %v2394 = vsel %vm2342, 0.0, 0
  %2396 = vmatpush.msra.mxu0 0.0
  %2397 = vmatpush.msra.mxu0 0.0
  %2398 = vmatpush.msra.mxu0 0.0
  %2399 = vmatpush.msra.mxu0 0.0
  %2400 = vmatpush.msra.mxu0 0.0
  %2401 = vmatpush.msra.mxu0 0.0
  %2402 = vmatpush.msra.mxu0 0.0
  %2403 = vmatpush.msra.mxu0 0.0
  %2404 = vmatpush.msra.mxu0 0.0
  %2405 = vmatpush.msra.mxu0 0.0
  %2406 = vmatpush.msra.mxu0 0.0
  %2407 = vmatpush.msra.mxu0 0.0
  %2408 = vmatpush.msra.mxu0 %v103
  %2409 = vmatpush.msra.mxu0 %v102
  %2410 = vmatpush.msra.mxu0 %v101
  %2411 = vmatpush.msra.mxu0 %v100
  %2412 = vmatmul.f32.gmra.mxu0 %v2394
  %v2413 = vpop.f32.mrf.mxu0
  %v2414 = vadd.f32 0.0, %v2413
  %2415 = vdwg.mxu0
  %v2417 = vsel %vm2342, %v2392, 0
  %2419 = vmatpush.msra.mxu0 0.0
  %2420 = vmatpush.msra.mxu0 0.0
  %2421 = vmatpush.msra.mxu0 0.0
  %2422 = vmatpush.msra.mxu0 0.0
  %2423 = vmatpush.msra.mxu0 0.0
  %2424 = vmatpush.msra.mxu0 0.0
  %2425 = vmatpush.msra.mxu0 0.0
  %2426 = vmatpush.msra.mxu0 0.0
  %2427 = vmatpush.msra.mxu0 0.0
  %2428 = vmatpush.msra.mxu0 0.0
  %2429 = vmatpush.msra.mxu0 0.0
  %2430 = vmatpush.msra.mxu0 0.0
  %2431 = vmatpush.msra.mxu0 %v99
  %2432 = vmatpush.msra.mxu0 %v98
  %2433 = vmatpush.msra.mxu0 %v97
  %2434 = vmatpush.msra.mxu0 %v96
  %2435 = vmatmul.f32.gmra.mxu0 %v2417
  %v2436 = vpop.f32.mrf.mxu0
  %v2437 = vadd.f32 %v2414, %v2436
  %2438 = vdwg.mxu0
  %v2440 = vperm.slane %v104, 0
  %v2442 = vadd.f32 %v2437, %v2440
  %v2443 = vxor.u32 %v2442, 2147483648
  %v2444 = vmul.f32 %v2443, 1.442695
  %v2445 = vpow.pop %v2444
  %v2446 = vadd.f32 %v2445, 1.0
  %v2447 = vrcp.pop %v2446
  %v2448 = vmul.f32 %v2446, %v2447
  %v2449 = vsub.f32 1.0, %v2448
  %v2450 = vmul.f32 %v2447, %v2449
  %v2451 = vadd.f32 %v2447, %v2450
  %vm2452 = vweird.f32 %v2446
  %vm2453 = vweird.f32 %v2447
  %vm2454 = vmor %vm2452, %vm2453
  %v2455 = vsel %vm2454, %v2447, %v2451
  %v2456 = vand.u32 2147483647, %v2446
  %vm2457 = vcmp.eq.f32.partialorder %v2456, 8.507059e+37
  %v2458 = vand.u32 %v2446, 2147483648
  %v2459 = vor.u32 1.1754944e-38, %v2458
  %v2460 = vsel %vm2457, %v2459, %v2455
  %v2461 = vmul.f32 1.0, %v2460
  %v2462 = vtanh.pop %v2442
  %v2463 = vmul.f32 %v2461, 0.0
  %2465 = vrot.lane.b32.xlu0 %v2462, 64
  %v2466 = vpop.permute.xlu0 %2465
  %v2468 = vmul.f32 %v2461, %v2466
  %2470 = vrot.lane.b32.xlu0 %v2468, 32
  %v2471 = vpop.permute.xlu0 %2470
  %v2473 = vadd.f32 %v2463, %v2471
  %v2474 = vtanh.pop %v2473
  %2476 = vrot.lane.b32.xlu0 %v2474, 64
  %v2477 = vpop.permute.xlu0 %2476
  %v2479 = vmul.f32 %v2461, %v2477
  %v2481 = vperm.slane %v109, 0
  %2484 = vrot.lane.b32.xlu0 %v2479, 32
  %v2485 = vpop.permute.xlu0 %2484
  %v2486 = vsel %vm2342, %v2485, 0
  %2488 = vmatpush.msra.mxu0 0.0
  %2489 = vmatpush.msra.mxu0 0.0
  %2490 = vmatpush.msra.mxu0 0.0
  %2491 = vmatpush.msra.mxu0 0.0
  %2492 = vmatpush.msra.mxu0 0.0
  %2493 = vmatpush.msra.mxu0 0.0
  %2494 = vmatpush.msra.mxu0 0.0
  %2495 = vmatpush.msra.mxu0 0.0
  %2496 = vmatpush.msra.mxu0 0.0
  %2497 = vmatpush.msra.mxu0 0.0
  %2498 = vmatpush.msra.mxu0 0.0
  %2499 = vmatpush.msra.mxu0 0.0
  %2500 = vmatpush.msra.mxu0 %v108
  %2501 = vmatpush.msra.mxu0 %v107
  %2502 = vmatpush.msra.mxu0 %v106
  %2503 = vmatpush.msra.mxu0 %v105
  %2504 = vmatmul.f32.gmra.mxu0 %v2486
  %v2505 = vpop.f32.mrf.mxu0
  %v2506 = vadd.f32 %v2481, %v2505
  %2507 = vdwg.mxu0
  %v2508 = vtanh.pop %v2506
  %v2509 = vld [vmem:[%s2] sm:$0xff]
  %v2510 = vmul.f32 %v2509, 0.2
  %v2511 = vadd.f32 %v2508, %v2510
  %v2512 = vsub.f32 %v2511, %v2508
  %v2513 = vrcp.pop 0.2
  %v2514 = vmul.f32 0.2, %v2513
  %v2515 = vsub.f32 1.0, %v2514
  %v2516 = vmul.f32 %v2513, %v2515
  %v2517 = vadd.f32 %v2513, %v2516
  %vm2518 = vweird.f32 %v2513
  %v2519 = vsel %vm2518, %v2513, %v2517
  %v2520 = vmul.f32 %v2512, %v2519
  %v2521 = vmul.f32 %v2520, %v2520
  %v2522 = vmul.f32 %v2521, -0.5
  %v2523 = vsub.f32 %v2522, -1.609438
  %v2524 = vsub.f32 %v2523, 0.9189385
  %vm2525 = vcmask 15360
  %v2526 = vsel %vm2525, %v2524, 0.0
  %2527 = vadd.xlane.f32.xlu0 %v2526
  %v2528 = vpop.xlane.xlu0 %2527
  %v2530 = vrot.slane %v2511, 1
  %v2531 = vrot.slane %v2511, 2
  %v2532 = vrot.slane %v2511, 3
  %v2533 = vrot.slane %v2511, 4
  %v2534 = vrot.slane %v2511, 5
  %v2535 = vrot.slane %v2511, 6
  %v2536 = vrot.slane %v2511, 7
  %2544 = vst.msk [vmem:[#allocation2] sm:$0x1] %vm118, %v2511
  %2545 = vst.msk [vmem:[#allocation2 + $0x1] sm:$0x1] %vm118, %v2530
  %2546 = vst.msk [vmem:[#allocation2 + $0x2] sm:$0x1] %vm118, %v2531
  %2547 = vst.msk [vmem:[#allocation2 + $0x3] sm:$0x1] %vm118, %v2532
  %2548 = vst.msk [vmem:[#allocation2 + $0x4] sm:$0x1] %vm118, %v2533
  %2549 = vst.msk [vmem:[#allocation2 + $0x5] sm:$0x1] %vm118, %v2534
  %2550 = vst.msk [vmem:[#allocation2 + $0x6] sm:$0x1] %vm118, %v2535
  %2551 = vst.msk [vmem:[#allocation2 + $0x7] sm:$0x1] %vm118, %v2536
  %2553 = vrot.lane.b32.xlu0 %v2506, 1
  %v2554 = vpop.permute.xlu0 %2553
  %v2556 = vsel %vm2525, %v2511, %v2528
  %vm2557 = vcmask 23552
  %v2558 = vsel %vm2557, %v2556, %v2554
  %vm2559 = vcmask 31744
  %2560 = vst.msk [vmem:[%s16] sm:$0xff] %vm2559, %v2558
  %v2561 = vld [vmem:[#allocation2] sm:$0x1]
  %v2562 = vld [vmem:[#allocation2 + $0x1] sm:$0x1]
  %v2563 = vld [vmem:[#allocation2 + $0x2] sm:$0x1]
  %v2564 = vld [vmem:[#allocation2 + $0x3] sm:$0x1]
  %v2565 = vld [vmem:[#allocation2 + $0x4] sm:$0x1]
  %v2566 = vld [vmem:[#allocation2 + $0x5] sm:$0x1]
  %v2567 = vld [vmem:[#allocation2 + $0x6] sm:$0x1]
  %v2568 = vld [vmem:[#allocation2 + $0x7] sm:$0x1]
  %v2577 = vperm.slane %v2561, 0
  %v2578 = vperm.slane %v2562, 0
  %v2579 = vperm.slane %v2563, 0
  %v2580 = vperm.slane %v2564, 0
  %v2581 = vperm.slane %v2565, 0
  %v2582 = vperm.slane %v2566, 0
  %v2583 = vperm.slane %v2567, 0
  %v2584 = vperm.slane %v2568, 0
  %v2593 = vadd.f32 %v143, %v2577
  %v2594 = vadd.f32 %v143, %v2578
  %v2595 = vadd.f32 %v143, %v2579
  %v2596 = vadd.f32 %v143, %v2580
  %v2597 = vadd.f32 %v143, %v2581
  %v2598 = vadd.f32 %v143, %v2582
  %v2599 = vadd.f32 %v143, %v2583
  %v2600 = vadd.f32 %v143, %v2584
  %v2601 = vadd.f32 %v2593, 1.0
  %v2602 = vadd.f32 %v2594, 1.0
  %v2603 = vadd.f32 %v2595, 1.0
  %v2604 = vadd.f32 %v2596, 1.0
  %v2605 = vadd.f32 %v2597, 1.0
  %v2606 = vadd.f32 %v2598, 1.0
  %v2607 = vadd.f32 %v2599, 1.0
  %v2608 = vadd.f32 %v2600, 1.0
  %v2609 = vmul.f32 %v2601, 7.5
  %v2610 = vmul.f32 %v2602, 7.5
  %v2611 = vmul.f32 %v2603, 7.5
  %v2612 = vmul.f32 %v2604, 7.5
  %v2613 = vmul.f32 %v2605, 7.5
  %v2614 = vmul.f32 %v2606, 7.5
  %v2615 = vmul.f32 %v2607, 7.5
  %v2616 = vmul.f32 %v2608, 7.5
  %2618 = vset.pattern.permute.xlu0 1
  %2619 = vperm.xlu0 %2618, %v2609
  %v2620 = vpop.permute.xlu0 %2619
  %2623 = vset.pattern.permute.xlu0 1
  %2624 = vperm.xlu0 %2623, %v2610
  %v2625 = vpop.permute.xlu0 %2624
  %2628 = vset.pattern.permute.xlu0 1
  %2629 = vperm.xlu0 %2628, %v2611
  %v2630 = vpop.permute.xlu0 %2629
  %2633 = vset.pattern.permute.xlu0 1
  %2634 = vperm.xlu0 %2633, %v2612
  %v2635 = vpop.permute.xlu0 %2634
  %2638 = vset.pattern.permute.xlu0 1
  %2639 = vperm.xlu0 %2638, %v2613
  %v2640 = vpop.permute.xlu0 %2639
  %2643 = vset.pattern.permute.xlu0 1
  %2644 = vperm.xlu0 %2643, %v2614
  %v2645 = vpop.permute.xlu0 %2644
  %2648 = vset.pattern.permute.xlu0 1
  %2649 = vperm.xlu0 %2648, %v2615
  %v2650 = vpop.permute.xlu0 %2649
  %2653 = vset.pattern.permute.xlu0 1
  %2654 = vperm.xlu0 %2653, %v2616
  %v2655 = vpop.permute.xlu0 %2654
  %v2657 = vsub.f32 %v2620, %v134
  %v2658 = vsub.f32 %v2625, %v134
  %v2659 = vsub.f32 %v2630, %v134
  %v2660 = vsub.f32 %v2635, %v134
  %v2661 = vsub.f32 %v2640, %v134
  %v2662 = vsub.f32 %v2645, %v134
  %v2663 = vsub.f32 %v2650, %v134
  %v2664 = vsub.f32 %v2655, %v134
  %v2665 = vand.u32 2147483647, %v2657
  %v2666 = vand.u32 2147483647, %v2658
  %v2667 = vand.u32 2147483647, %v2659
  %v2668 = vand.u32 2147483647, %v2660
  %v2669 = vand.u32 2147483647, %v2661
  %v2670 = vand.u32 2147483647, %v2662
  %v2671 = vand.u32 2147483647, %v2663
  %v2672 = vand.u32 2147483647, %v2664
  %v2673 = vsub.f32 1.0, %v2665
  %v2674 = vsub.f32 1.0, %v2666
  %v2675 = vsub.f32 1.0, %v2667
  %v2676 = vsub.f32 1.0, %v2668
  %v2677 = vsub.f32 1.0, %v2669
  %v2678 = vsub.f32 1.0, %v2670
  %v2679 = vsub.f32 1.0, %v2671
  %v2680 = vsub.f32 1.0, %v2672
  %v2681 = vmax.f32 %v2673, 0.0
  %v2682 = vmax.f32 %v2674, 0.0
  %v2683 = vmax.f32 %v2675, 0.0
  %v2684 = vmax.f32 %v2676, 0.0
  %v2685 = vmax.f32 %v2677, 0.0
  %v2686 = vmax.f32 %v2678, 0.0
  %v2687 = vmax.f32 %v2679, 0.0
  %v2688 = vmax.f32 %v2680, 0.0
  %2689 = vset.pattern.permute.xlu0 0
  %2690 = vperm.xlu0 %2689, %v2609
  %v2691 = vpop.permute.xlu0 %2690
  %2693 = vset.pattern.permute.xlu0 0
  %2694 = vperm.xlu0 %2693, %v2610
  %v2695 = vpop.permute.xlu0 %2694
  %2697 = vset.pattern.permute.xlu0 0
  %2698 = vperm.xlu0 %2697, %v2611
  %v2699 = vpop.permute.xlu0 %2698
  %2701 = vset.pattern.permute.xlu0 0
  %2702 = vperm.xlu0 %2701, %v2612
  %v2703 = vpop.permute.xlu0 %2702
  %2705 = vset.pattern.permute.xlu0 0
  %2706 = vperm.xlu0 %2705, %v2613
  %v2707 = vpop.permute.xlu0 %2706
  %2709 = vset.pattern.permute.xlu0 0
  %2710 = vperm.xlu0 %2709, %v2614
  %v2711 = vpop.permute.xlu0 %2710
  %2713 = vset.pattern.permute.xlu0 0
  %2714 = vperm.xlu0 %2713, %v2615
  %v2715 = vpop.permute.xlu0 %2714
  %2717 = vset.pattern.permute.xlu0 0
  %2718 = vperm.xlu0 %2717, %v2616
  %v2719 = vpop.permute.xlu0 %2718
  %v2721 = vsub.f32 %v2691, %v134
  %v2722 = vsub.f32 %v2695, %v134
  %v2723 = vsub.f32 %v2699, %v134
  %v2724 = vsub.f32 %v2703, %v134
  %v2725 = vsub.f32 %v2707, %v134
  %v2726 = vsub.f32 %v2711, %v134
  %v2727 = vsub.f32 %v2715, %v134
  %v2728 = vsub.f32 %v2719, %v134
  %v2729 = vand.u32 2147483647, %v2721
  %v2730 = vand.u32 2147483647, %v2722
  %v2731 = vand.u32 2147483647, %v2723
  %v2732 = vand.u32 2147483647, %v2724
  %v2733 = vand.u32 2147483647, %v2725
  %v2734 = vand.u32 2147483647, %v2726
  %v2735 = vand.u32 2147483647, %v2727
  %v2736 = vand.u32 2147483647, %v2728
  %v2737 = vsub.f32 1.0, %v2729
  %v2738 = vsub.f32 1.0, %v2730
  %v2739 = vsub.f32 1.0, %v2731
  %v2740 = vsub.f32 1.0, %v2732
  %v2741 = vsub.f32 1.0, %v2733
  %v2742 = vsub.f32 1.0, %v2734
  %v2743 = vsub.f32 1.0, %v2735
  %v2744 = vsub.f32 1.0, %v2736
  %v2745 = vmax.f32 %v2737, 0.0
  %v2746 = vmax.f32 %v2738, 0.0
  %v2747 = vmax.f32 %v2739, 0.0
  %v2748 = vmax.f32 %v2740, 0.0
  %v2749 = vmax.f32 %v2741, 0.0
  %v2750 = vmax.f32 %v2742, 0.0
  %v2751 = vmax.f32 %v2743, 0.0
  %v2752 = vmax.f32 %v2744, 0.0
  %v2754 = vsel %vm328, %v2681, 0
  %2756 = vmatpush.msra.mxu0 0.0
  %2757 = vmatpush.msra.mxu0 0.0
  %2758 = vmatpush.msra.mxu0 0.0
  %2759 = vmatpush.msra.mxu0 0.0
  %2760 = vmatpush.msra.mxu0 0.0
  %2761 = vmatpush.msra.mxu0 0.0
  %2762 = vmatpush.msra.mxu0 0.0
  %2763 = vmatpush.msra.mxu0 0.0
  %2764 = vmatpush.msra.mxu0 0.0
  %2765 = vmatpush.msra.mxu0 0.0
  %2766 = vmatpush.msra.mxu0 0.0
  %2767 = vmatpush.msra.mxu0 0.0
  %2768 = vmatpush.msra.mxu0 0.0
  %2769 = vmatpush.msra.mxu0 0.0
  %2770 = vmatpush.msra.mxu0 %v53
  %2771 = vmatpush.msra.mxu0 %v52
  %2772 = vmatmul.f32.gmra.mxu0 %v2754
  %v2773 = vpop.f32.mrf.mxu0
  %v2774 = vadd.f32 0.0, %v2773
  %2775 = vdwg.mxu0
  %v2777 = vsel %vm328, %v2682, 0
  %2779 = vmatpush.msra.mxu0 0.0
  %2780 = vmatpush.msra.mxu0 0.0
  %2781 = vmatpush.msra.mxu0 0.0
  %2782 = vmatpush.msra.mxu0 0.0
  %2783 = vmatpush.msra.mxu0 0.0
  %2784 = vmatpush.msra.mxu0 0.0
  %2785 = vmatpush.msra.mxu0 0.0
  %2786 = vmatpush.msra.mxu0 0.0
  %2787 = vmatpush.msra.mxu0 0.0
  %2788 = vmatpush.msra.mxu0 0.0
  %2789 = vmatpush.msra.mxu0 0.0
  %2790 = vmatpush.msra.mxu0 0.0
  %2791 = vmatpush.msra.mxu0 0.0
  %2792 = vmatpush.msra.mxu0 0.0
  %2793 = vmatpush.msra.mxu0 %v55
  %2794 = vmatpush.msra.mxu0 %v54
  %2795 = vmatmul.f32.gmra.mxu0 %v2777
  %v2796 = vpop.f32.mrf.mxu0
  %v2797 = vadd.f32 0.0, %v2796
  %2798 = vdwg.mxu0
  %v2800 = vsel %vm328, %v2683, 0
  %2802 = vmatpush.msra.mxu0 0.0
  %2803 = vmatpush.msra.mxu0 0.0
  %2804 = vmatpush.msra.mxu0 0.0
  %2805 = vmatpush.msra.mxu0 0.0
  %2806 = vmatpush.msra.mxu0 0.0
  %2807 = vmatpush.msra.mxu0 0.0
  %2808 = vmatpush.msra.mxu0 0.0
  %2809 = vmatpush.msra.mxu0 0.0
  %2810 = vmatpush.msra.mxu0 0.0
  %2811 = vmatpush.msra.mxu0 0.0
  %2812 = vmatpush.msra.mxu0 0.0
  %2813 = vmatpush.msra.mxu0 0.0
  %2814 = vmatpush.msra.mxu0 0.0
  %2815 = vmatpush.msra.mxu0 0.0
  %2816 = vmatpush.msra.mxu0 %v57
  %2817 = vmatpush.msra.mxu0 %v56
  %2818 = vmatmul.f32.gmra.mxu0 %v2800
  %v2819 = vpop.f32.mrf.mxu0
  %v2820 = vadd.f32 0.0, %v2819
  %2821 = vdwg.mxu0
  %v2823 = vsel %vm328, %v2684, 0
  %2825 = vmatpush.msra.mxu0 0.0
  %2826 = vmatpush.msra.mxu0 0.0
  %2827 = vmatpush.msra.mxu0 0.0
  %2828 = vmatpush.msra.mxu0 0.0
  %2829 = vmatpush.msra.mxu0 0.0
  %2830 = vmatpush.msra.mxu0 0.0
  %2831 = vmatpush.msra.mxu0 0.0
  %2832 = vmatpush.msra.mxu0 0.0
  %2833 = vmatpush.msra.mxu0 0.0
  %2834 = vmatpush.msra.mxu0 0.0
  %2835 = vmatpush.msra.mxu0 0.0
  %2836 = vmatpush.msra.mxu0 0.0
  %2837 = vmatpush.msra.mxu0 0.0
  %2838 = vmatpush.msra.mxu0 0.0
  %2839 = vmatpush.msra.mxu0 %v59
  %2840 = vmatpush.msra.mxu0 %v58
  %2841 = vmatmul.f32.gmra.mxu0 %v2823
  %v2842 = vpop.f32.mrf.mxu0
  %v2843 = vadd.f32 0.0, %v2842
  %2844 = vdwg.mxu0
  %v2846 = vsel %vm328, %v2685, 0
  %2848 = vmatpush.msra.mxu0 0.0
  %2849 = vmatpush.msra.mxu0 0.0
  %2850 = vmatpush.msra.mxu0 0.0
  %2851 = vmatpush.msra.mxu0 0.0
  %2852 = vmatpush.msra.mxu0 0.0
  %2853 = vmatpush.msra.mxu0 0.0
  %2854 = vmatpush.msra.mxu0 0.0
  %2855 = vmatpush.msra.mxu0 0.0
  %2856 = vmatpush.msra.mxu0 0.0
  %2857 = vmatpush.msra.mxu0 0.0
  %2858 = vmatpush.msra.mxu0 0.0
  %2859 = vmatpush.msra.mxu0 0.0
  %2860 = vmatpush.msra.mxu0 0.0
  %2861 = vmatpush.msra.mxu0 0.0
  %2862 = vmatpush.msra.mxu0 %v61
  %2863 = vmatpush.msra.mxu0 %v60
  %2864 = vmatmul.f32.gmra.mxu0 %v2846
  %v2865 = vpop.f32.mrf.mxu0
  %v2866 = vadd.f32 0.0, %v2865
  %2867 = vdwg.mxu0
  %v2869 = vsel %vm328, %v2686, 0
  %2871 = vmatpush.msra.mxu0 0.0
  %2872 = vmatpush.msra.mxu0 0.0
  %2873 = vmatpush.msra.mxu0 0.0
  %2874 = vmatpush.msra.mxu0 0.0
  %2875 = vmatpush.msra.mxu0 0.0
  %2876 = vmatpush.msra.mxu0 0.0
  %2877 = vmatpush.msra.mxu0 0.0
  %2878 = vmatpush.msra.mxu0 0.0
  %2879 = vmatpush.msra.mxu0 0.0
  %2880 = vmatpush.msra.mxu0 0.0
  %2881 = vmatpush.msra.mxu0 0.0
  %2882 = vmatpush.msra.mxu0 0.0
  %2883 = vmatpush.msra.mxu0 0.0
  %2884 = vmatpush.msra.mxu0 0.0
  %2885 = vmatpush.msra.mxu0 %v63
  %2886 = vmatpush.msra.mxu0 %v62
  %2887 = vmatmul.f32.gmra.mxu0 %v2869
  %v2888 = vpop.f32.mrf.mxu0
  %v2889 = vadd.f32 0.0, %v2888
  %2890 = vdwg.mxu0
  %v2892 = vsel %vm328, %v2687, 0
  %2894 = vmatpush.msra.mxu0 0.0
  %2895 = vmatpush.msra.mxu0 0.0
  %2896 = vmatpush.msra.mxu0 0.0
  %2897 = vmatpush.msra.mxu0 0.0
  %2898 = vmatpush.msra.mxu0 0.0
  %2899 = vmatpush.msra.mxu0 0.0
  %2900 = vmatpush.msra.mxu0 0.0
  %2901 = vmatpush.msra.mxu0 0.0
  %2902 = vmatpush.msra.mxu0 0.0
  %2903 = vmatpush.msra.mxu0 0.0
  %2904 = vmatpush.msra.mxu0 0.0
  %2905 = vmatpush.msra.mxu0 0.0
  %2906 = vmatpush.msra.mxu0 0.0
  %2907 = vmatpush.msra.mxu0 0.0
  %2908 = vmatpush.msra.mxu0 %v65
  %2909 = vmatpush.msra.mxu0 %v64
  %2910 = vmatmul.f32.gmra.mxu0 %v2892
  %v2911 = vpop.f32.mrf.mxu0
  %v2912 = vadd.f32 0.0, %v2911
  %2913 = vdwg.mxu0
  %v2915 = vsel %vm328, %v2688, 0
  %2917 = vmatpush.msra.mxu0 0.0
  %2918 = vmatpush.msra.mxu0 0.0
  %2919 = vmatpush.msra.mxu0 0.0
  %2920 = vmatpush.msra.mxu0 0.0
  %2921 = vmatpush.msra.mxu0 0.0
  %2922 = vmatpush.msra.mxu0 0.0
  %2923 = vmatpush.msra.mxu0 0.0
  %2924 = vmatpush.msra.mxu0 0.0
  %2925 = vmatpush.msra.mxu0 0.0
  %2926 = vmatpush.msra.mxu0 0.0
  %2927 = vmatpush.msra.mxu0 0.0
  %2928 = vmatpush.msra.mxu0 0.0
  %2929 = vmatpush.msra.mxu0 0.0
  %2930 = vmatpush.msra.mxu0 0.0
  %2931 = vmatpush.msra.mxu0 %v67
  %2932 = vmatpush.msra.mxu0 %v66
  %2933 = vmatmul.f32.gmra.mxu0 %v2915
  %v2934 = vpop.f32.mrf.mxu0
  %v2935 = vadd.f32 0.0, %v2934
  %2936 = vdwg.mxu0
  %v2938 = vsel %vm328, %v2774, 0
  %v2941 = vsel %vm328, %v2745, 0
  %2943 = vmatpush.xpose.msra.mxu0 0.0
  %2944 = vmatpush.xpose.msra.mxu0 0.0
  %2945 = vmatpush.xpose.msra.mxu0 0.0
  %2946 = vmatpush.xpose.msra.mxu0 0.0
  %2947 = vmatpush.xpose.msra.mxu0 0.0
  %2948 = vmatpush.xpose.msra.mxu0 0.0
  %2949 = vmatpush.xpose.msra.mxu0 0.0
  %2950 = vmatpush.xpose.msra.mxu0 0.0
  %2951 = vmatpush.xpose.msra.mxu0 0.0
  %2952 = vmatpush.xpose.msra.mxu0 0.0
  %2953 = vmatpush.xpose.msra.mxu0 0.0
  %2954 = vmatpush.xpose.msra.mxu0 0.0
  %2955 = vmatpush.xpose.msra.mxu0 0.0
  %2956 = vmatpush.xpose.msra.mxu0 0.0
  %2957 = vmatpush.xpose.msra.mxu0 0.0
  %2958 = vmatpush.xpose.msra.mxu0 %v2941
  %2959 = vmatmul.f32.gmra.mxu0 %v2938
  %v2960 = vpop.f32.mrf.mxu0
  %v2961 = vadd.f32 0.0, %v2960
  %2962 = vdwg.mxu0
  %v2964 = vsel %vm328, %v2797, 0
  %v2967 = vsel %vm328, %v2746, 0
  %2969 = vmatpush.xpose.msra.mxu0 0.0
  %2970 = vmatpush.xpose.msra.mxu0 0.0
  %2971 = vmatpush.xpose.msra.mxu0 0.0
  %2972 = vmatpush.xpose.msra.mxu0 0.0
  %2973 = vmatpush.xpose.msra.mxu0 0.0
  %2974 = vmatpush.xpose.msra.mxu0 0.0
  %2975 = vmatpush.xpose.msra.mxu0 0.0
  %2976 = vmatpush.xpose.msra.mxu0 0.0
  %2977 = vmatpush.xpose.msra.mxu0 0.0
  %2978 = vmatpush.xpose.msra.mxu0 0.0
  %2979 = vmatpush.xpose.msra.mxu0 0.0
  %2980 = vmatpush.xpose.msra.mxu0 0.0
  %2981 = vmatpush.xpose.msra.mxu0 0.0
  %2982 = vmatpush.xpose.msra.mxu0 0.0
  %2983 = vmatpush.xpose.msra.mxu0 0.0
  %2984 = vmatpush.xpose.msra.mxu0 %v2967
  %2985 = vmatmul.f32.gmra.mxu0 %v2964
  %v2986 = vpop.f32.mrf.mxu0
  %v2987 = vadd.f32 0.0, %v2986
  %2988 = vdwg.mxu0
  %v2990 = vsel %vm328, %v2820, 0
  %v2993 = vsel %vm328, %v2747, 0
  %2995 = vmatpush.xpose.msra.mxu0 0.0
  %2996 = vmatpush.xpose.msra.mxu0 0.0
  %2997 = vmatpush.xpose.msra.mxu0 0.0
  %2998 = vmatpush.xpose.msra.mxu0 0.0
  %2999 = vmatpush.xpose.msra.mxu0 0.0
  %3000 = vmatpush.xpose.msra.mxu0 0.0
  %3001 = vmatpush.xpose.msra.mxu0 0.0
  %3002 = vmatpush.xpose.msra.mxu0 0.0
  %3003 = vmatpush.xpose.msra.mxu0 0.0
  %3004 = vmatpush.xpose.msra.mxu0 0.0
  %3005 = vmatpush.xpose.msra.mxu0 0.0
  %3006 = vmatpush.xpose.msra.mxu0 0.0
  %3007 = vmatpush.xpose.msra.mxu0 0.0
  %3008 = vmatpush.xpose.msra.mxu0 0.0
  %3009 = vmatpush.xpose.msra.mxu0 0.0
  %3010 = vmatpush.xpose.msra.mxu0 %v2993
  %3011 = vmatmul.f32.gmra.mxu0 %v2990
  %v3012 = vpop.f32.mrf.mxu0
  %v3013 = vadd.f32 0.0, %v3012
  %3014 = vdwg.mxu0
  %v3016 = vsel %vm328, %v2843, 0
  %v3019 = vsel %vm328, %v2748, 0
  %3021 = vmatpush.xpose.msra.mxu0 0.0
  %3022 = vmatpush.xpose.msra.mxu0 0.0
  %3023 = vmatpush.xpose.msra.mxu0 0.0
  %3024 = vmatpush.xpose.msra.mxu0 0.0
  %3025 = vmatpush.xpose.msra.mxu0 0.0
  %3026 = vmatpush.xpose.msra.mxu0 0.0
  %3027 = vmatpush.xpose.msra.mxu0 0.0
  %3028 = vmatpush.xpose.msra.mxu0 0.0
  %3029 = vmatpush.xpose.msra.mxu0 0.0
  %3030 = vmatpush.xpose.msra.mxu0 0.0
  %3031 = vmatpush.xpose.msra.mxu0 0.0
  %3032 = vmatpush.xpose.msra.mxu0 0.0
  %3033 = vmatpush.xpose.msra.mxu0 0.0
  %3034 = vmatpush.xpose.msra.mxu0 0.0
  %3035 = vmatpush.xpose.msra.mxu0 0.0
  %3036 = vmatpush.xpose.msra.mxu0 %v3019
  %3037 = vmatmul.f32.gmra.mxu0 %v3016
  %v3038 = vpop.f32.mrf.mxu0
  %v3039 = vadd.f32 0.0, %v3038
  %3040 = vdwg.mxu0
  %v3042 = vsel %vm328, %v2866, 0
  %v3045 = vsel %vm328, %v2749, 0
  %3047 = vmatpush.xpose.msra.mxu0 0.0
  %3048 = vmatpush.xpose.msra.mxu0 0.0
  %3049 = vmatpush.xpose.msra.mxu0 0.0
  %3050 = vmatpush.xpose.msra.mxu0 0.0
  %3051 = vmatpush.xpose.msra.mxu0 0.0
  %3052 = vmatpush.xpose.msra.mxu0 0.0
  %3053 = vmatpush.xpose.msra.mxu0 0.0
  %3054 = vmatpush.xpose.msra.mxu0 0.0
  %3055 = vmatpush.xpose.msra.mxu0 0.0
  %3056 = vmatpush.xpose.msra.mxu0 0.0
  %3057 = vmatpush.xpose.msra.mxu0 0.0
  %3058 = vmatpush.xpose.msra.mxu0 0.0
  %3059 = vmatpush.xpose.msra.mxu0 0.0
  %3060 = vmatpush.xpose.msra.mxu0 0.0
  %3061 = vmatpush.xpose.msra.mxu0 0.0
  %3062 = vmatpush.xpose.msra.mxu0 %v3045
  %3063 = vmatmul.f32.gmra.mxu0 %v3042
  %v3064 = vpop.f32.mrf.mxu0
  %v3065 = vadd.f32 0.0, %v3064
  %3066 = vdwg.mxu0
  %v3068 = vsel %vm328, %v2889, 0
  %v3071 = vsel %vm328, %v2750, 0
  %3073 = vmatpush.xpose.msra.mxu0 0.0
  %3074 = vmatpush.xpose.msra.mxu0 0.0
  %3075 = vmatpush.xpose.msra.mxu0 0.0
  %3076 = vmatpush.xpose.msra.mxu0 0.0
  %3077 = vmatpush.xpose.msra.mxu0 0.0
  %3078 = vmatpush.xpose.msra.mxu0 0.0
  %3079 = vmatpush.xpose.msra.mxu0 0.0
  %3080 = vmatpush.xpose.msra.mxu0 0.0
  %3081 = vmatpush.xpose.msra.mxu0 0.0
  %3082 = vmatpush.xpose.msra.mxu0 0.0
  %3083 = vmatpush.xpose.msra.mxu0 0.0
  %3084 = vmatpush.xpose.msra.mxu0 0.0
  %3085 = vmatpush.xpose.msra.mxu0 0.0
  %3086 = vmatpush.xpose.msra.mxu0 0.0
  %3087 = vmatpush.xpose.msra.mxu0 0.0
  %3088 = vmatpush.xpose.msra.mxu0 %v3071
  %3089 = vmatmul.f32.gmra.mxu0 %v3068
  %v3090 = vpop.f32.mrf.mxu0
  %v3091 = vadd.f32 0.0, %v3090
  %3092 = vdwg.mxu0
  %v3094 = vsel %vm328, %v2912, 0
  %v3097 = vsel %vm328, %v2751, 0
  %3099 = vmatpush.xpose.msra.mxu0 0.0
  %3100 = vmatpush.xpose.msra.mxu0 0.0
  %3101 = vmatpush.xpose.msra.mxu0 0.0
  %3102 = vmatpush.xpose.msra.mxu0 0.0
  %3103 = vmatpush.xpose.msra.mxu0 0.0
  %3104 = vmatpush.xpose.msra.mxu0 0.0
  %3105 = vmatpush.xpose.msra.mxu0 0.0
  %3106 = vmatpush.xpose.msra.mxu0 0.0
  %3107 = vmatpush.xpose.msra.mxu0 0.0
  %3108 = vmatpush.xpose.msra.mxu0 0.0
  %3109 = vmatpush.xpose.msra.mxu0 0.0
  %3110 = vmatpush.xpose.msra.mxu0 0.0
  %3111 = vmatpush.xpose.msra.mxu0 0.0
  %3112 = vmatpush.xpose.msra.mxu0 0.0
  %3113 = vmatpush.xpose.msra.mxu0 0.0
  %3114 = vmatpush.xpose.msra.mxu0 %v3097
  %3115 = vmatmul.f32.gmra.mxu0 %v3094
  %v3116 = vpop.f32.mrf.mxu0
  %v3117 = vadd.f32 0.0, %v3116
  %3118 = vdwg.mxu0
  %v3120 = vsel %vm328, %v2935, 0
  %v3123 = vsel %vm328, %v2752, 0
  %3125 = vmatpush.xpose.msra.mxu0 0.0
  %3126 = vmatpush.xpose.msra.mxu0 0.0
  %3127 = vmatpush.xpose.msra.mxu0 0.0
  %3128 = vmatpush.xpose.msra.mxu0 0.0
  %3129 = vmatpush.xpose.msra.mxu0 0.0
  %3130 = vmatpush.xpose.msra.mxu0 0.0
  %3131 = vmatpush.xpose.msra.mxu0 0.0
  %3132 = vmatpush.xpose.msra.mxu0 0.0
  %3133 = vmatpush.xpose.msra.mxu0 0.0
  %3134 = vmatpush.xpose.msra.mxu0 0.0
  %3135 = vmatpush.xpose.msra.mxu0 0.0
  %3136 = vmatpush.xpose.msra.mxu0 0.0
  %3137 = vmatpush.xpose.msra.mxu0 0.0
  %3138 = vmatpush.xpose.msra.mxu0 0.0
  %3139 = vmatpush.xpose.msra.mxu0 0.0
  %3140 = vmatpush.xpose.msra.mxu0 %v3123
  %3141 = vmatmul.f32.gmra.mxu0 %v3120
  %v3142 = vpop.f32.mrf.mxu0
  %v3143 = vadd.f32 0.0, %v3142
  %3144 = vdwg.mxu0
  %3145 = vst.msk [vmem:[#allocation3] sm:$0xff] %vm721, %v2961
  %3146 = vst.msk [vmem:[#allocation3 + $0x10] sm:$0xff] %vm721, %v2987
  %3147 = vst.msk [vmem:[#allocation3 + $0x20] sm:$0xff] %vm721, %v3013
  %3148 = vst.msk [vmem:[#allocation3 + $0x30] sm:$0xff] %vm721, %v3039
  %3149 = vst.msk [vmem:[#allocation3 + $0x40] sm:$0xff] %vm721, %v3065
  %3150 = vst.msk [vmem:[#allocation3 + $0x50] sm:$0xff] %vm721, %v3091
  %3151 = vst.msk [vmem:[#allocation3 + $0x60] sm:$0xff] %vm721, %v3117
  %3152 = vst.msk [vmem:[#allocation3 + $0x70] sm:$0xff] %vm721, %v3143
  %v3153 = vadd.f32 %v730, %v2577
  %v3154 = vadd.f32 %v730, %v2578
  %v3155 = vadd.f32 %v730, %v2579
  %v3156 = vadd.f32 %v730, %v2580
  %v3157 = vadd.f32 %v730, %v2581
  %v3158 = vadd.f32 %v730, %v2582
  %v3159 = vadd.f32 %v730, %v2583
  %v3160 = vadd.f32 %v730, %v2584
  %v3161 = vadd.f32 %v3153, 1.0
  %v3162 = vadd.f32 %v3154, 1.0
  %v3163 = vadd.f32 %v3155, 1.0
  %v3164 = vadd.f32 %v3156, 1.0
  %v3165 = vadd.f32 %v3157, 1.0
  %v3166 = vadd.f32 %v3158, 1.0
  %v3167 = vadd.f32 %v3159, 1.0
  %v3168 = vadd.f32 %v3160, 1.0
  %v3169 = vmul.f32 %v3161, 7.5
  %v3170 = vmul.f32 %v3162, 7.5
  %v3171 = vmul.f32 %v3163, 7.5
  %v3172 = vmul.f32 %v3164, 7.5
  %v3173 = vmul.f32 %v3165, 7.5
  %v3174 = vmul.f32 %v3166, 7.5
  %v3175 = vmul.f32 %v3167, 7.5
  %v3176 = vmul.f32 %v3168, 7.5
  %3178 = vset.pattern.permute.xlu0 1
  %3179 = vperm.xlu0 %3178, %v3169
  %v3180 = vpop.permute.xlu0 %3179
  %3183 = vset.pattern.permute.xlu0 1
  %3184 = vperm.xlu0 %3183, %v3170
  %v3185 = vpop.permute.xlu0 %3184
  %3188 = vset.pattern.permute.xlu0 1
  %3189 = vperm.xlu0 %3188, %v3171
  %v3190 = vpop.permute.xlu0 %3189
  %3193 = vset.pattern.permute.xlu0 1
  %3194 = vperm.xlu0 %3193, %v3172
  %v3195 = vpop.permute.xlu0 %3194
  %3198 = vset.pattern.permute.xlu0 1
  %3199 = vperm.xlu0 %3198, %v3173
  %v3200 = vpop.permute.xlu0 %3199
  %3203 = vset.pattern.permute.xlu0 1
  %3204 = vperm.xlu0 %3203, %v3174
  %v3205 = vpop.permute.xlu0 %3204
  %3208 = vset.pattern.permute.xlu0 1
  %3209 = vperm.xlu0 %3208, %v3175
  %v3210 = vpop.permute.xlu0 %3209
  %3213 = vset.pattern.permute.xlu0 1
  %3214 = vperm.xlu0 %3213, %v3176
  %v3215 = vpop.permute.xlu0 %3214
  %v3217 = vsub.f32 %v3180, %v134
  %v3218 = vsub.f32 %v3185, %v134
  %v3219 = vsub.f32 %v3190, %v134
  %v3220 = vsub.f32 %v3195, %v134
  %v3221 = vsub.f32 %v3200, %v134
  %v3222 = vsub.f32 %v3205, %v134
  %v3223 = vsub.f32 %v3210, %v134
  %v3224 = vsub.f32 %v3215, %v134
  %v3225 = vand.u32 2147483647, %v3217
  %v3226 = vand.u32 2147483647, %v3218
  %v3227 = vand.u32 2147483647, %v3219
  %v3228 = vand.u32 2147483647, %v3220
  %v3229 = vand.u32 2147483647, %v3221
  %v3230 = vand.u32 2147483647, %v3222
  %v3231 = vand.u32 2147483647, %v3223
  %v3232 = vand.u32 2147483647, %v3224
  %v3233 = vsub.f32 1.0, %v3225
  %v3234 = vsub.f32 1.0, %v3226
  %v3235 = vsub.f32 1.0, %v3227
  %v3236 = vsub.f32 1.0, %v3228
  %v3237 = vsub.f32 1.0, %v3229
  %v3238 = vsub.f32 1.0, %v3230
  %v3239 = vsub.f32 1.0, %v3231
  %v3240 = vsub.f32 1.0, %v3232
  %v3241 = vmax.f32 %v3233, 0.0
  %v3242 = vmax.f32 %v3234, 0.0
  %v3243 = vmax.f32 %v3235, 0.0
  %v3244 = vmax.f32 %v3236, 0.0
  %v3245 = vmax.f32 %v3237, 0.0
  %v3246 = vmax.f32 %v3238, 0.0
  %v3247 = vmax.f32 %v3239, 0.0
  %v3248 = vmax.f32 %v3240, 0.0
  %3249 = vset.pattern.permute.xlu0 0
  %3250 = vperm.xlu0 %3249, %v3169
  %v3251 = vpop.permute.xlu0 %3250
  %3253 = vset.pattern.permute.xlu0 0
  %3254 = vperm.xlu0 %3253, %v3170
  %v3255 = vpop.permute.xlu0 %3254
  %3257 = vset.pattern.permute.xlu0 0
  %3258 = vperm.xlu0 %3257, %v3171
  %v3259 = vpop.permute.xlu0 %3258
  %3261 = vset.pattern.permute.xlu0 0
  %3262 = vperm.xlu0 %3261, %v3172
  %v3263 = vpop.permute.xlu0 %3262
  %3265 = vset.pattern.permute.xlu0 0
  %3266 = vperm.xlu0 %3265, %v3173
  %v3267 = vpop.permute.xlu0 %3266
  %3269 = vset.pattern.permute.xlu0 0
  %3270 = vperm.xlu0 %3269, %v3174
  %v3271 = vpop.permute.xlu0 %3270
  %3273 = vset.pattern.permute.xlu0 0
  %3274 = vperm.xlu0 %3273, %v3175
  %v3275 = vpop.permute.xlu0 %3274
  %3277 = vset.pattern.permute.xlu0 0
  %3278 = vperm.xlu0 %3277, %v3176
  %v3279 = vpop.permute.xlu0 %3278
  %v3281 = vsub.f32 %v3251, %v134
  %v3282 = vsub.f32 %v3255, %v134
  %v3283 = vsub.f32 %v3259, %v134
  %v3284 = vsub.f32 %v3263, %v134
  %v3285 = vsub.f32 %v3267, %v134
  %v3286 = vsub.f32 %v3271, %v134
  %v3287 = vsub.f32 %v3275, %v134
  %v3288 = vsub.f32 %v3279, %v134
  %v3289 = vand.u32 2147483647, %v3281
  %v3290 = vand.u32 2147483647, %v3282
  %v3291 = vand.u32 2147483647, %v3283
  %v3292 = vand.u32 2147483647, %v3284
  %v3293 = vand.u32 2147483647, %v3285
  %v3294 = vand.u32 2147483647, %v3286
  %v3295 = vand.u32 2147483647, %v3287
  %v3296 = vand.u32 2147483647, %v3288
  %v3297 = vsub.f32 1.0, %v3289
  %v3298 = vsub.f32 1.0, %v3290
  %v3299 = vsub.f32 1.0, %v3291
  %v3300 = vsub.f32 1.0, %v3292
  %v3301 = vsub.f32 1.0, %v3293
  %v3302 = vsub.f32 1.0, %v3294
  %v3303 = vsub.f32 1.0, %v3295
  %v3304 = vsub.f32 1.0, %v3296
  %v3305 = vmax.f32 %v3297, 0.0
  %v3306 = vmax.f32 %v3298, 0.0
  %v3307 = vmax.f32 %v3299, 0.0
  %v3308 = vmax.f32 %v3300, 0.0
  %v3309 = vmax.f32 %v3301, 0.0
  %v3310 = vmax.f32 %v3302, 0.0
  %v3311 = vmax.f32 %v3303, 0.0
  %v3312 = vmax.f32 %v3304, 0.0
  %v3314 = vsel %vm328, %v3241, 0
  %3316 = vmatpush.msra.mxu0 0.0
  %3317 = vmatpush.msra.mxu0 0.0
  %3318 = vmatpush.msra.mxu0 0.0
  %3319 = vmatpush.msra.mxu0 0.0
  %3320 = vmatpush.msra.mxu0 0.0
  %3321 = vmatpush.msra.mxu0 0.0
  %3322 = vmatpush.msra.mxu0 0.0
  %3323 = vmatpush.msra.mxu0 0.0
  %3324 = vmatpush.msra.mxu0 0.0
  %3325 = vmatpush.msra.mxu0 0.0
  %3326 = vmatpush.msra.mxu0 0.0
  %3327 = vmatpush.msra.mxu0 0.0
  %3328 = vmatpush.msra.mxu0 0.0
  %3329 = vmatpush.msra.mxu0 0.0
  %3330 = vmatpush.msra.mxu0 %v53
  %3331 = vmatpush.msra.mxu0 %v52
  %3332 = vmatmul.f32.gmra.mxu0 %v3314
  %v3333 = vpop.f32.mrf.mxu0
  %v3334 = vadd.f32 0.0, %v3333
  %3335 = vdwg.mxu0
  %v3337 = vsel %vm328, %v3242, 0
  %3339 = vmatpush.msra.mxu0 0.0
  %3340 = vmatpush.msra.mxu0 0.0
  %3341 = vmatpush.msra.mxu0 0.0
  %3342 = vmatpush.msra.mxu0 0.0
  %3343 = vmatpush.msra.mxu0 0.0
  %3344 = vmatpush.msra.mxu0 0.0
  %3345 = vmatpush.msra.mxu0 0.0
  %3346 = vmatpush.msra.mxu0 0.0
  %3347 = vmatpush.msra.mxu0 0.0
  %3348 = vmatpush.msra.mxu0 0.0
  %3349 = vmatpush.msra.mxu0 0.0
  %3350 = vmatpush.msra.mxu0 0.0
  %3351 = vmatpush.msra.mxu0 0.0
  %3352 = vmatpush.msra.mxu0 0.0
  %3353 = vmatpush.msra.mxu0 %v55
  %3354 = vmatpush.msra.mxu0 %v54
  %3355 = vmatmul.f32.gmra.mxu0 %v3337
  %v3356 = vpop.f32.mrf.mxu0
  %v3357 = vadd.f32 0.0, %v3356
  %3358 = vdwg.mxu0
  %v3360 = vsel %vm328, %v3243, 0
  %3362 = vmatpush.msra.mxu0 0.0
  %3363 = vmatpush.msra.mxu0 0.0
  %3364 = vmatpush.msra.mxu0 0.0
  %3365 = vmatpush.msra.mxu0 0.0
  %3366 = vmatpush.msra.mxu0 0.0
  %3367 = vmatpush.msra.mxu0 0.0
  %3368 = vmatpush.msra.mxu0 0.0
  %3369 = vmatpush.msra.mxu0 0.0
  %3370 = vmatpush.msra.mxu0 0.0
  %3371 = vmatpush.msra.mxu0 0.0
  %3372 = vmatpush.msra.mxu0 0.0
  %3373 = vmatpush.msra.mxu0 0.0
  %3374 = vmatpush.msra.mxu0 0.0
  %3375 = vmatpush.msra.mxu0 0.0
  %3376 = vmatpush.msra.mxu0 %v57
  %3377 = vmatpush.msra.mxu0 %v56
  %3378 = vmatmul.f32.gmra.mxu0 %v3360
  %v3379 = vpop.f32.mrf.mxu0
  %v3380 = vadd.f32 0.0, %v3379
  %3381 = vdwg.mxu0
  %v3383 = vsel %vm328, %v3244, 0
  %3385 = vmatpush.msra.mxu0 0.0
  %3386 = vmatpush.msra.mxu0 0.0
  %3387 = vmatpush.msra.mxu0 0.0
  %3388 = vmatpush.msra.mxu0 0.0
  %3389 = vmatpush.msra.mxu0 0.0
  %3390 = vmatpush.msra.mxu0 0.0
  %3391 = vmatpush.msra.mxu0 0.0
  %3392 = vmatpush.msra.mxu0 0.0
  %3393 = vmatpush.msra.mxu0 0.0
  %3394 = vmatpush.msra.mxu0 0.0
  %3395 = vmatpush.msra.mxu0 0.0
  %3396 = vmatpush.msra.mxu0 0.0
  %3397 = vmatpush.msra.mxu0 0.0
  %3398 = vmatpush.msra.mxu0 0.0
  %3399 = vmatpush.msra.mxu0 %v59
  %3400 = vmatpush.msra.mxu0 %v58
  %3401 = vmatmul.f32.gmra.mxu0 %v3383
  %v3402 = vpop.f32.mrf.mxu0
  %v3403 = vadd.f32 0.0, %v3402
  %3404 = vdwg.mxu0
  %v3406 = vsel %vm328, %v3245, 0
  %3408 = vmatpush.msra.mxu0 0.0
  %3409 = vmatpush.msra.mxu0 0.0
  %3410 = vmatpush.msra.mxu0 0.0
  %3411 = vmatpush.msra.mxu0 0.0
  %3412 = vmatpush.msra.mxu0 0.0
  %3413 = vmatpush.msra.mxu0 0.0
  %3414 = vmatpush.msra.mxu0 0.0
  %3415 = vmatpush.msra.mxu0 0.0
  %3416 = vmatpush.msra.mxu0 0.0
  %3417 = vmatpush.msra.mxu0 0.0
  %3418 = vmatpush.msra.mxu0 0.0
  %3419 = vmatpush.msra.mxu0 0.0
  %3420 = vmatpush.msra.mxu0 0.0
  %3421 = vmatpush.msra.mxu0 0.0
  %3422 = vmatpush.msra.mxu0 %v61
  %3423 = vmatpush.msra.mxu0 %v60
  %3424 = vmatmul.f32.gmra.mxu0 %v3406
  %v3425 = vpop.f32.mrf.mxu0
  %v3426 = vadd.f32 0.0, %v3425
  %3427 = vdwg.mxu0
  %v3429 = vsel %vm328, %v3246, 0
  %3431 = vmatpush.msra.mxu0 0.0
  %3432 = vmatpush.msra.mxu0 0.0
  %3433 = vmatpush.msra.mxu0 0.0
  %3434 = vmatpush.msra.mxu0 0.0
  %3435 = vmatpush.msra.mxu0 0.0
  %3436 = vmatpush.msra.mxu0 0.0
  %3437 = vmatpush.msra.mxu0 0.0
  %3438 = vmatpush.msra.mxu0 0.0
  %3439 = vmatpush.msra.mxu0 0.0
  %3440 = vmatpush.msra.mxu0 0.0
  %3441 = vmatpush.msra.mxu0 0.0
  %3442 = vmatpush.msra.mxu0 0.0
  %3443 = vmatpush.msra.mxu0 0.0
  %3444 = vmatpush.msra.mxu0 0.0
  %3445 = vmatpush.msra.mxu0 %v63
  %3446 = vmatpush.msra.mxu0 %v62
  %3447 = vmatmul.f32.gmra.mxu0 %v3429
  %v3448 = vpop.f32.mrf.mxu0
  %v3449 = vadd.f32 0.0, %v3448
  %3450 = vdwg.mxu0
  %v3452 = vsel %vm328, %v3247, 0
  %3454 = vmatpush.msra.mxu0 0.0
  %3455 = vmatpush.msra.mxu0 0.0
  %3456 = vmatpush.msra.mxu0 0.0
  %3457 = vmatpush.msra.mxu0 0.0
  %3458 = vmatpush.msra.mxu0 0.0
  %3459 = vmatpush.msra.mxu0 0.0
  %3460 = vmatpush.msra.mxu0 0.0
  %3461 = vmatpush.msra.mxu0 0.0
  %3462 = vmatpush.msra.mxu0 0.0
  %3463 = vmatpush.msra.mxu0 0.0
  %3464 = vmatpush.msra.mxu0 0.0
  %3465 = vmatpush.msra.mxu0 0.0
  %3466 = vmatpush.msra.mxu0 0.0
  %3467 = vmatpush.msra.mxu0 0.0
  %3468 = vmatpush.msra.mxu0 %v65
  %3469 = vmatpush.msra.mxu0 %v64
  %3470 = vmatmul.f32.gmra.mxu0 %v3452
  %v3471 = vpop.f32.mrf.mxu0
  %v3472 = vadd.f32 0.0, %v3471
  %3473 = vdwg.mxu0
  %v3475 = vsel %vm328, %v3248, 0
  %3477 = vmatpush.msra.mxu0 0.0
  %3478 = vmatpush.msra.mxu0 0.0
  %3479 = vmatpush.msra.mxu0 0.0
  %3480 = vmatpush.msra.mxu0 0.0
  %3481 = vmatpush.msra.mxu0 0.0
  %3482 = vmatpush.msra.mxu0 0.0
  %3483 = vmatpush.msra.mxu0 0.0
  %3484 = vmatpush.msra.mxu0 0.0
  %3485 = vmatpush.msra.mxu0 0.0
  %3486 = vmatpush.msra.mxu0 0.0
  %3487 = vmatpush.msra.mxu0 0.0
  %3488 = vmatpush.msra.mxu0 0.0
  %3489 = vmatpush.msra.mxu0 0.0
  %3490 = vmatpush.msra.mxu0 0.0
  %3491 = vmatpush.msra.mxu0 %v67
  %3492 = vmatpush.msra.mxu0 %v66
  %3493 = vmatmul.f32.gmra.mxu0 %v3475
  %v3494 = vpop.f32.mrf.mxu0
  %v3495 = vadd.f32 0.0, %v3494
  %3496 = vdwg.mxu0
  %v3498 = vsel %vm328, %v3334, 0
  %v3501 = vsel %vm328, %v3305, 0
  %3503 = vmatpush.xpose.msra.mxu0 0.0
  %3504 = vmatpush.xpose.msra.mxu0 0.0
  %3505 = vmatpush.xpose.msra.mxu0 0.0
  %3506 = vmatpush.xpose.msra.mxu0 0.0
  %3507 = vmatpush.xpose.msra.mxu0 0.0
  %3508 = vmatpush.xpose.msra.mxu0 0.0
  %3509 = vmatpush.xpose.msra.mxu0 0.0
  %3510 = vmatpush.xpose.msra.mxu0 0.0
  %3511 = vmatpush.xpose.msra.mxu0 0.0
  %3512 = vmatpush.xpose.msra.mxu0 0.0
  %3513 = vmatpush.xpose.msra.mxu0 0.0
  %3514 = vmatpush.xpose.msra.mxu0 0.0
  %3515 = vmatpush.xpose.msra.mxu0 0.0
  %3516 = vmatpush.xpose.msra.mxu0 0.0
  %3517 = vmatpush.xpose.msra.mxu0 0.0
  %3518 = vmatpush.xpose.msra.mxu0 %v3501
  %3519 = vmatmul.f32.gmra.mxu0 %v3498
  %v3520 = vpop.f32.mrf.mxu0
  %v3521 = vadd.f32 0.0, %v3520
  %3522 = vdwg.mxu0
  %v3524 = vsel %vm328, %v3357, 0
  %v3527 = vsel %vm328, %v3306, 0
  %3529 = vmatpush.xpose.msra.mxu0 0.0
  %3530 = vmatpush.xpose.msra.mxu0 0.0
  %3531 = vmatpush.xpose.msra.mxu0 0.0
  %3532 = vmatpush.xpose.msra.mxu0 0.0
  %3533 = vmatpush.xpose.msra.mxu0 0.0
  %3534 = vmatpush.xpose.msra.mxu0 0.0
  %3535 = vmatpush.xpose.msra.mxu0 0.0
  %3536 = vmatpush.xpose.msra.mxu0 0.0
  %3537 = vmatpush.xpose.msra.mxu0 0.0
  %3538 = vmatpush.xpose.msra.mxu0 0.0
  %3539 = vmatpush.xpose.msra.mxu0 0.0
  %3540 = vmatpush.xpose.msra.mxu0 0.0
  %3541 = vmatpush.xpose.msra.mxu0 0.0
  %3542 = vmatpush.xpose.msra.mxu0 0.0
  %3543 = vmatpush.xpose.msra.mxu0 0.0
  %3544 = vmatpush.xpose.msra.mxu0 %v3527
  %3545 = vmatmul.f32.gmra.mxu0 %v3524
  %v3546 = vpop.f32.mrf.mxu0
  %v3547 = vadd.f32 0.0, %v3546
  %3548 = vdwg.mxu0
  %v3550 = vsel %vm328, %v3380, 0
  %v3553 = vsel %vm328, %v3307, 0
  %3555 = vmatpush.xpose.msra.mxu0 0.0
  %3556 = vmatpush.xpose.msra.mxu0 0.0
  %3557 = vmatpush.xpose.msra.mxu0 0.0
  %3558 = vmatpush.xpose.msra.mxu0 0.0
  %3559 = vmatpush.xpose.msra.mxu0 0.0
  %3560 = vmatpush.xpose.msra.mxu0 0.0
  %3561 = vmatpush.xpose.msra.mxu0 0.0
  %3562 = vmatpush.xpose.msra.mxu0 0.0
  %3563 = vmatpush.xpose.msra.mxu0 0.0
  %3564 = vmatpush.xpose.msra.mxu0 0.0
  %3565 = vmatpush.xpose.msra.mxu0 0.0
  %3566 = vmatpush.xpose.msra.mxu0 0.0
  %3567 = vmatpush.xpose.msra.mxu0 0.0
  %3568 = vmatpush.xpose.msra.mxu0 0.0
  %3569 = vmatpush.xpose.msra.mxu0 0.0
  %3570 = vmatpush.xpose.msra.mxu0 %v3553
  %3571 = vmatmul.f32.gmra.mxu0 %v3550
  %v3572 = vpop.f32.mrf.mxu0
  %v3573 = vadd.f32 0.0, %v3572
  %3574 = vdwg.mxu0
  %v3576 = vsel %vm328, %v3403, 0
  %v3579 = vsel %vm328, %v3308, 0
  %3581 = vmatpush.xpose.msra.mxu0 0.0
  %3582 = vmatpush.xpose.msra.mxu0 0.0
  %3583 = vmatpush.xpose.msra.mxu0 0.0
  %3584 = vmatpush.xpose.msra.mxu0 0.0
  %3585 = vmatpush.xpose.msra.mxu0 0.0
  %3586 = vmatpush.xpose.msra.mxu0 0.0
  %3587 = vmatpush.xpose.msra.mxu0 0.0
  %3588 = vmatpush.xpose.msra.mxu0 0.0
  %3589 = vmatpush.xpose.msra.mxu0 0.0
  %3590 = vmatpush.xpose.msra.mxu0 0.0
  %3591 = vmatpush.xpose.msra.mxu0 0.0
  %3592 = vmatpush.xpose.msra.mxu0 0.0
  %3593 = vmatpush.xpose.msra.mxu0 0.0
  %3594 = vmatpush.xpose.msra.mxu0 0.0
  %3595 = vmatpush.xpose.msra.mxu0 0.0
  %3596 = vmatpush.xpose.msra.mxu0 %v3579
  %3597 = vmatmul.f32.gmra.mxu0 %v3576
  %v3598 = vpop.f32.mrf.mxu0
  %v3599 = vadd.f32 0.0, %v3598
  %3600 = vdwg.mxu0
  %v3602 = vsel %vm328, %v3426, 0
  %v3605 = vsel %vm328, %v3309, 0
  %3607 = vmatpush.xpose.msra.mxu0 0.0
  %3608 = vmatpush.xpose.msra.mxu0 0.0
  %3609 = vmatpush.xpose.msra.mxu0 0.0
  %3610 = vmatpush.xpose.msra.mxu0 0.0
  %3611 = vmatpush.xpose.msra.mxu0 0.0
  %3612 = vmatpush.xpose.msra.mxu0 0.0
  %3613 = vmatpush.xpose.msra.mxu0 0.0
  %3614 = vmatpush.xpose.msra.mxu0 0.0
  %3615 = vmatpush.xpose.msra.mxu0 0.0
  %3616 = vmatpush.xpose.msra.mxu0 0.0
  %3617 = vmatpush.xpose.msra.mxu0 0.0
  %3618 = vmatpush.xpose.msra.mxu0 0.0
  %3619 = vmatpush.xpose.msra.mxu0 0.0
  %3620 = vmatpush.xpose.msra.mxu0 0.0
  %3621 = vmatpush.xpose.msra.mxu0 0.0
  %3622 = vmatpush.xpose.msra.mxu0 %v3605
  %3623 = vmatmul.f32.gmra.mxu0 %v3602
  %v3624 = vpop.f32.mrf.mxu0
  %v3625 = vadd.f32 0.0, %v3624
  %3626 = vdwg.mxu0
  %v3628 = vsel %vm328, %v3449, 0
  %v3631 = vsel %vm328, %v3310, 0
  %3633 = vmatpush.xpose.msra.mxu0 0.0
  %3634 = vmatpush.xpose.msra.mxu0 0.0
  %3635 = vmatpush.xpose.msra.mxu0 0.0
  %3636 = vmatpush.xpose.msra.mxu0 0.0
  %3637 = vmatpush.xpose.msra.mxu0 0.0
  %3638 = vmatpush.xpose.msra.mxu0 0.0
  %3639 = vmatpush.xpose.msra.mxu0 0.0
  %3640 = vmatpush.xpose.msra.mxu0 0.0
  %3641 = vmatpush.xpose.msra.mxu0 0.0
  %3642 = vmatpush.xpose.msra.mxu0 0.0
  %3643 = vmatpush.xpose.msra.mxu0 0.0
  %3644 = vmatpush.xpose.msra.mxu0 0.0
  %3645 = vmatpush.xpose.msra.mxu0 0.0
  %3646 = vmatpush.xpose.msra.mxu0 0.0
  %3647 = vmatpush.xpose.msra.mxu0 0.0
  %3648 = vmatpush.xpose.msra.mxu0 %v3631
  %3649 = vmatmul.f32.gmra.mxu0 %v3628
  %v3650 = vpop.f32.mrf.mxu0
  %v3651 = vadd.f32 0.0, %v3650
  %3652 = vdwg.mxu0
  %v3654 = vsel %vm328, %v3472, 0
  %v3657 = vsel %vm328, %v3311, 0
  %3659 = vmatpush.xpose.msra.mxu0 0.0
  %3660 = vmatpush.xpose.msra.mxu0 0.0
  %3661 = vmatpush.xpose.msra.mxu0 0.0
  %3662 = vmatpush.xpose.msra.mxu0 0.0
  %3663 = vmatpush.xpose.msra.mxu0 0.0
  %3664 = vmatpush.xpose.msra.mxu0 0.0
  %3665 = vmatpush.xpose.msra.mxu0 0.0
  %3666 = vmatpush.xpose.msra.mxu0 0.0
  %3667 = vmatpush.xpose.msra.mxu0 0.0
  %3668 = vmatpush.xpose.msra.mxu0 0.0
  %3669 = vmatpush.xpose.msra.mxu0 0.0
  %3670 = vmatpush.xpose.msra.mxu0 0.0
  %3671 = vmatpush.xpose.msra.mxu0 0.0
  %3672 = vmatpush.xpose.msra.mxu0 0.0
  %3673 = vmatpush.xpose.msra.mxu0 0.0
  %3674 = vmatpush.xpose.msra.mxu0 %v3657
  %3675 = vmatmul.f32.gmra.mxu0 %v3654
  %v3676 = vpop.f32.mrf.mxu0
  %v3677 = vadd.f32 0.0, %v3676
  %3678 = vdwg.mxu0
  %v3680 = vsel %vm328, %v3495, 0
  %v3683 = vsel %vm328, %v3312, 0
  %3685 = vmatpush.xpose.msra.mxu0 0.0
  %3686 = vmatpush.xpose.msra.mxu0 0.0
  %3687 = vmatpush.xpose.msra.mxu0 0.0
  %3688 = vmatpush.xpose.msra.mxu0 0.0
  %3689 = vmatpush.xpose.msra.mxu0 0.0
  %3690 = vmatpush.xpose.msra.mxu0 0.0
  %3691 = vmatpush.xpose.msra.mxu0 0.0
  %3692 = vmatpush.xpose.msra.mxu0 0.0
  %3693 = vmatpush.xpose.msra.mxu0 0.0
  %3694 = vmatpush.xpose.msra.mxu0 0.0
  %3695 = vmatpush.xpose.msra.mxu0 0.0
  %3696 = vmatpush.xpose.msra.mxu0 0.0
  %3697 = vmatpush.xpose.msra.mxu0 0.0
  %3698 = vmatpush.xpose.msra.mxu0 0.0
  %3699 = vmatpush.xpose.msra.mxu0 0.0
  %3700 = vmatpush.xpose.msra.mxu0 %v3683
  %3701 = vmatmul.f32.gmra.mxu0 %v3680
  %v3702 = vpop.f32.mrf.mxu0
  %v3703 = vadd.f32 0.0, %v3702
  %3704 = vdwg.mxu0
  %3705 = vst.msk [vmem:[#allocation3 + $0x8] sm:$0xff] %vm721, %v3521
  %3706 = vst.msk [vmem:[#allocation3 + $0x18] sm:$0xff] %vm721, %v3547
  %3707 = vst.msk [vmem:[#allocation3 + $0x28] sm:$0xff] %vm721, %v3573
  %3708 = vst.msk [vmem:[#allocation3 + $0x38] sm:$0xff] %vm721, %v3599
  %3709 = vst.msk [vmem:[#allocation3 + $0x48] sm:$0xff] %vm721, %v3625
  %3710 = vst.msk [vmem:[#allocation3 + $0x58] sm:$0xff] %vm721, %v3651
  %3711 = vst.msk [vmem:[#allocation3 + $0x68] sm:$0xff] %vm721, %v3677
  %3712 = vst.msk [vmem:[#allocation3 + $0x78] sm:$0xff] %vm721, %v3703
  %v3713 = vld [vmem:[#allocation3] sm:$0x1]
  %v3714 = vld [vmem:[#allocation3 + $0x10] sm:$0x1]
  %v3715 = vld [vmem:[#allocation3 + $0x20] sm:$0x1]
  %v3716 = vld [vmem:[#allocation3 + $0x30] sm:$0x1]
  %v3717 = vld [vmem:[#allocation3 + $0x40] sm:$0x1]
  %v3718 = vld [vmem:[#allocation3 + $0x50] sm:$0x1]
  %v3719 = vld [vmem:[#allocation3 + $0x60] sm:$0x1]
  %v3720 = vld [vmem:[#allocation3 + $0x70] sm:$0x1]
  %v3721 = vld [vmem:[#allocation3 + $0x1] sm:$0x1]
  %v3722 = vld [vmem:[#allocation3 + $0x11] sm:$0x1]
  %v3723 = vld [vmem:[#allocation3 + $0x21] sm:$0x1]
  %v3724 = vld [vmem:[#allocation3 + $0x31] sm:$0x1]
  %v3725 = vld [vmem:[#allocation3 + $0x41] sm:$0x1]
  %v3726 = vld [vmem:[#allocation3 + $0x51] sm:$0x1]
  %v3727 = vld [vmem:[#allocation3 + $0x61] sm:$0x1]
  %v3728 = vld [vmem:[#allocation3 + $0x71] sm:$0x1]
  %v3737 = vrot.slane %v3722, 7
  %v3738 = vsel %vm1316, %v3737, %v3721
  %v3739 = vrot.slane %v3723, 6
  %v3740 = vsel %vm1319, %v3739, %v3738
  %v3741 = vrot.slane %v3724, 5
  %v3742 = vsel %vm1322, %v3741, %v3740
  %v3743 = vrot.slane %v3725, 4
  %v3744 = vsel %vm1325, %v3743, %v3742
  %v3745 = vrot.slane %v3726, 3
  %v3746 = vsel %vm1328, %v3745, %v3744
  %v3747 = vrot.slane %v3727, 2
  %v3748 = vsel %vm1331, %v3747, %v3746
  %v3749 = vrot.slane %v3728, 1
  %v3750 = vsel %vm1334, %v3749, %v3748
  %v3751 = vsel %vm721, %v3750, 0
  %3753 = vmatpush.msra.mxu0 0.0
  %3754 = vmatpush.msra.mxu0 0.0
  %3755 = vmatpush.msra.mxu0 0.0
  %3756 = vmatpush.msra.mxu0 0.0
  %3757 = vmatpush.msra.mxu0 0.0
  %3758 = vmatpush.msra.mxu0 0.0
  %3759 = vmatpush.msra.mxu0 0.0
  %3760 = vmatpush.msra.mxu0 0.0
  %3761 = vmatpush.msra.mxu0 0.0
  %3762 = vmatpush.msra.mxu0 0.0
  %3763 = vmatpush.msra.mxu0 0.0
  %3764 = vmatpush.msra.mxu0 0.0
  %3765 = vmatpush.msra.mxu0 0.0
  %3766 = vmatpush.msra.mxu0 0.0
  %3767 = vmatpush.msra.mxu0 0.0
  %3768 = vmatpush.msra.mxu0 %v69
  %3769 = vmatmul.f32.gmra.mxu0 %v3751
  %v3770 = vpop.f32.mrf.mxu0
  %v3771 = vadd.f32 0.0, %v3770
  %3772 = vdwg.mxu0
  %v3781 = vrot.slane %v3714, 7
  %v3782 = vsel %vm1316, %v3781, %v3713
  %v3783 = vrot.slane %v3715, 6
  %v3784 = vsel %vm1319, %v3783, %v3782
  %v3785 = vrot.slane %v3716, 5
  %v3786 = vsel %vm1322, %v3785, %v3784
  %v3787 = vrot.slane %v3717, 4
  %v3788 = vsel %vm1325, %v3787, %v3786
  %v3789 = vrot.slane %v3718, 3
  %v3790 = vsel %vm1328, %v3789, %v3788
  %v3791 = vrot.slane %v3719, 2
  %v3792 = vsel %vm1331, %v3791, %v3790
  %v3793 = vrot.slane %v3720, 1
  %v3794 = vsel %vm1334, %v3793, %v3792
  %v3795 = vsel %vm721, %v3794, 0
  %3797 = vmatpush.msra.mxu0 0.0
  %3798 = vmatpush.msra.mxu0 0.0
  %3799 = vmatpush.msra.mxu0 0.0
  %3800 = vmatpush.msra.mxu0 0.0
  %3801 = vmatpush.msra.mxu0 0.0
  %3802 = vmatpush.msra.mxu0 0.0
  %3803 = vmatpush.msra.mxu0 0.0
  %3804 = vmatpush.msra.mxu0 0.0
  %3805 = vmatpush.msra.mxu0 0.0
  %3806 = vmatpush.msra.mxu0 0.0
  %3807 = vmatpush.msra.mxu0 0.0
  %3808 = vmatpush.msra.mxu0 0.0
  %3809 = vmatpush.msra.mxu0 0.0
  %3810 = vmatpush.msra.mxu0 0.0
  %3811 = vmatpush.msra.mxu0 0.0
  %3812 = vmatpush.msra.mxu0 %v68
  %3813 = vmatmul.f32.gmra.mxu0 %v3795
  %v3814 = vpop.f32.mrf.mxu0
  %v3815 = vadd.f32 %v3771, %v3814
  %3816 = vdwg.mxu0
  %v3817 = vld [vmem:[#allocation3 + $0x2] sm:$0x1]
  %v3818 = vld [vmem:[#allocation3 + $0x12] sm:$0x1]
  %v3819 = vld [vmem:[#allocation3 + $0x22] sm:$0x1]
  %v3820 = vld [vmem:[#allocation3 + $0x32] sm:$0x1]
  %v3821 = vld [vmem:[#allocation3 + $0x42] sm:$0x1]
  %v3822 = vld [vmem:[#allocation3 + $0x52] sm:$0x1]
  %v3823 = vld [vmem:[#allocation3 + $0x62] sm:$0x1]
  %v3824 = vld [vmem:[#allocation3 + $0x72] sm:$0x1]
  %v3833 = vrot.slane %v3818, 7
  %v3834 = vsel %vm1316, %v3833, %v3817
  %v3835 = vrot.slane %v3819, 6
  %v3836 = vsel %vm1319, %v3835, %v3834
  %v3837 = vrot.slane %v3820, 5
  %v3838 = vsel %vm1322, %v3837, %v3836
  %v3839 = vrot.slane %v3821, 4
  %v3840 = vsel %vm1325, %v3839, %v3838
  %v3841 = vrot.slane %v3822, 3
  %v3842 = vsel %vm1328, %v3841, %v3840
  %v3843 = vrot.slane %v3823, 2
  %v3844 = vsel %vm1331, %v3843, %v3842
  %v3845 = vrot.slane %v3824, 1
  %v3846 = vsel %vm1334, %v3845, %v3844
  %v3847 = vsel %vm721, %v3846, 0
  %3849 = vmatpush.msra.mxu0 0.0
  %3850 = vmatpush.msra.mxu0 0.0
  %3851 = vmatpush.msra.mxu0 0.0
  %3852 = vmatpush.msra.mxu0 0.0
  %3853 = vmatpush.msra.mxu0 0.0
  %3854 = vmatpush.msra.mxu0 0.0
  %3855 = vmatpush.msra.mxu0 0.0
  %3856 = vmatpush.msra.mxu0 0.0
  %3857 = vmatpush.msra.mxu0 0.0
  %3858 = vmatpush.msra.mxu0 0.0
  %3859 = vmatpush.msra.mxu0 0.0
  %3860 = vmatpush.msra.mxu0 0.0
  %3861 = vmatpush.msra.mxu0 0.0
  %3862 = vmatpush.msra.mxu0 0.0
  %3863 = vmatpush.msra.mxu0 0.0
  %3864 = vmatpush.msra.mxu0 %v70
  %3865 = vmatmul.f32.gmra.mxu0 %v3847
  %v3866 = vpop.f32.mrf.mxu0
  %v3867 = vadd.f32 0.0, %v3866
  %3868 = vdwg.mxu0
  %v3869 = vadd.f32 %v3815, %v3867
  %v3870 = vld [vmem:[#allocation3 + $0x3] sm:$0x1]
  %v3871 = vld [vmem:[#allocation3 + $0x13] sm:$0x1]
  %v3872 = vld [vmem:[#allocation3 + $0x23] sm:$0x1]
  %v3873 = vld [vmem:[#allocation3 + $0x33] sm:$0x1]
  %v3874 = vld [vmem:[#allocation3 + $0x43] sm:$0x1]
  %v3875 = vld [vmem:[#allocation3 + $0x53] sm:$0x1]
  %v3876 = vld [vmem:[#allocation3 + $0x63] sm:$0x1]
  %v3877 = vld [vmem:[#allocation3 + $0x73] sm:$0x1]
  %v3886 = vrot.slane %v3871, 7
  %v3887 = vsel %vm1316, %v3886, %v3870
  %v3888 = vrot.slane %v3872, 6
  %v3889 = vsel %vm1319, %v3888, %v3887
  %v3890 = vrot.slane %v3873, 5
  %v3891 = vsel %vm1322, %v3890, %v3889
  %v3892 = vrot.slane %v3874, 4
  %v3893 = vsel %vm1325, %v3892, %v3891
  %v3894 = vrot.slane %v3875, 3
  %v3895 = vsel %vm1328, %v3894, %v3893
  %v3896 = vrot.slane %v3876, 2
  %v3897 = vsel %vm1331, %v3896, %v3895
  %v3898 = vrot.slane %v3877, 1
  %v3899 = vsel %vm1334, %v3898, %v3897
  %v3900 = vsel %vm721, %v3899, 0
  %3902 = vmatpush.msra.mxu0 0.0
  %3903 = vmatpush.msra.mxu0 0.0
  %3904 = vmatpush.msra.mxu0 0.0
  %3905 = vmatpush.msra.mxu0 0.0
  %3906 = vmatpush.msra.mxu0 0.0
  %3907 = vmatpush.msra.mxu0 0.0
  %3908 = vmatpush.msra.mxu0 0.0
  %3909 = vmatpush.msra.mxu0 0.0
  %3910 = vmatpush.msra.mxu0 0.0
  %3911 = vmatpush.msra.mxu0 0.0
  %3912 = vmatpush.msra.mxu0 0.0
  %3913 = vmatpush.msra.mxu0 0.0
  %3914 = vmatpush.msra.mxu0 0.0
  %3915 = vmatpush.msra.mxu0 0.0
  %3916 = vmatpush.msra.mxu0 0.0
  %3917 = vmatpush.msra.mxu0 %v71
  %3918 = vmatmul.f32.gmra.mxu0 %v3900
  %v3919 = vpop.f32.mrf.mxu0
  %v3920 = vadd.f32 0.0, %v3919
  %3921 = vdwg.mxu0
  %v3922 = vadd.f32 %v3869, %v3920
  %v3923 = vld [vmem:[#allocation3 + $0x4] sm:$0x1]
  %v3924 = vld [vmem:[#allocation3 + $0x14] sm:$0x1]
  %v3925 = vld [vmem:[#allocation3 + $0x24] sm:$0x1]
  %v3926 = vld [vmem:[#allocation3 + $0x34] sm:$0x1]
  %v3927 = vld [vmem:[#allocation3 + $0x44] sm:$0x1]
  %v3928 = vld [vmem:[#allocation3 + $0x54] sm:$0x1]
  %v3929 = vld [vmem:[#allocation3 + $0x64] sm:$0x1]
  %v3930 = vld [vmem:[#allocation3 + $0x74] sm:$0x1]
  %v3939 = vrot.slane %v3924, 7
  %v3940 = vsel %vm1316, %v3939, %v3923
  %v3941 = vrot.slane %v3925, 6
  %v3942 = vsel %vm1319, %v3941, %v3940
  %v3943 = vrot.slane %v3926, 5
  %v3944 = vsel %vm1322, %v3943, %v3942
  %v3945 = vrot.slane %v3927, 4
  %v3946 = vsel %vm1325, %v3945, %v3944
  %v3947 = vrot.slane %v3928, 3
  %v3948 = vsel %vm1328, %v3947, %v3946
  %v3949 = vrot.slane %v3929, 2
  %v3950 = vsel %vm1331, %v3949, %v3948
  %v3951 = vrot.slane %v3930, 1
  %v3952 = vsel %vm1334, %v3951, %v3950
  %v3953 = vsel %vm721, %v3952, 0
  %3955 = vmatpush.msra.mxu0 0.0
  %3956 = vmatpush.msra.mxu0 0.0
  %3957 = vmatpush.msra.mxu0 0.0
  %3958 = vmatpush.msra.mxu0 0.0
  %3959 = vmatpush.msra.mxu0 0.0
  %3960 = vmatpush.msra.mxu0 0.0
  %3961 = vmatpush.msra.mxu0 0.0
  %3962 = vmatpush.msra.mxu0 0.0
  %3963 = vmatpush.msra.mxu0 0.0
  %3964 = vmatpush.msra.mxu0 0.0
  %3965 = vmatpush.msra.mxu0 0.0
  %3966 = vmatpush.msra.mxu0 0.0
  %3967 = vmatpush.msra.mxu0 0.0
  %3968 = vmatpush.msra.mxu0 0.0
  %3969 = vmatpush.msra.mxu0 0.0
  %3970 = vmatpush.msra.mxu0 %v72
  %3971 = vmatmul.f32.gmra.mxu0 %v3953
  %v3972 = vpop.f32.mrf.mxu0
  %v3973 = vadd.f32 0.0, %v3972
  %3974 = vdwg.mxu0
  %v3975 = vadd.f32 %v3922, %v3973
  %v3976 = vld [vmem:[#allocation3 + $0x5] sm:$0x1]
  %v3977 = vld [vmem:[#allocation3 + $0x15] sm:$0x1]
  %v3978 = vld [vmem:[#allocation3 + $0x25] sm:$0x1]
  %v3979 = vld [vmem:[#allocation3 + $0x35] sm:$0x1]
  %v3980 = vld [vmem:[#allocation3 + $0x45] sm:$0x1]
  %v3981 = vld [vmem:[#allocation3 + $0x55] sm:$0x1]
  %v3982 = vld [vmem:[#allocation3 + $0x65] sm:$0x1]
  %v3983 = vld [vmem:[#allocation3 + $0x75] sm:$0x1]
  %v3992 = vrot.slane %v3977, 7
  %v3993 = vsel %vm1316, %v3992, %v3976
  %v3994 = vrot.slane %v3978, 6
  %v3995 = vsel %vm1319, %v3994, %v3993
  %v3996 = vrot.slane %v3979, 5
  %v3997 = vsel %vm1322, %v3996, %v3995
  %v3998 = vrot.slane %v3980, 4
  %v3999 = vsel %vm1325, %v3998, %v3997
  %v4000 = vrot.slane %v3981, 3
  %v4001 = vsel %vm1328, %v4000, %v3999
  %v4002 = vrot.slane %v3982, 2
  %v4003 = vsel %vm1331, %v4002, %v4001
  %v4004 = vrot.slane %v3983, 1
  %v4005 = vsel %vm1334, %v4004, %v4003
  %v4006 = vsel %vm721, %v4005, 0
  %4008 = vmatpush.msra.mxu0 0.0
  %4009 = vmatpush.msra.mxu0 0.0
  %4010 = vmatpush.msra.mxu0 0.0
  %4011 = vmatpush.msra.mxu0 0.0
  %4012 = vmatpush.msra.mxu0 0.0
  %4013 = vmatpush.msra.mxu0 0.0
  %4014 = vmatpush.msra.mxu0 0.0
  %4015 = vmatpush.msra.mxu0 0.0
  %4016 = vmatpush.msra.mxu0 0.0
  %4017 = vmatpush.msra.mxu0 0.0
  %4018 = vmatpush.msra.mxu0 0.0
  %4019 = vmatpush.msra.mxu0 0.0
  %4020 = vmatpush.msra.mxu0 0.0
  %4021 = vmatpush.msra.mxu0 0.0
  %4022 = vmatpush.msra.mxu0 0.0
  %4023 = vmatpush.msra.mxu0 %v73
  %4024 = vmatmul.f32.gmra.mxu0 %v4006
  %v4025 = vpop.f32.mrf.mxu0
  %v4026 = vadd.f32 0.0, %v4025
  %4027 = vdwg.mxu0
  %v4028 = vadd.f32 %v3975, %v4026
  %v4029 = vld [vmem:[#allocation3 + $0x6] sm:$0x1]
  %v4030 = vld [vmem:[#allocation3 + $0x16] sm:$0x1]
  %v4031 = vld [vmem:[#allocation3 + $0x26] sm:$0x1]
  %v4032 = vld [vmem:[#allocation3 + $0x36] sm:$0x1]
  %v4033 = vld [vmem:[#allocation3 + $0x46] sm:$0x1]
  %v4034 = vld [vmem:[#allocation3 + $0x56] sm:$0x1]
  %v4035 = vld [vmem:[#allocation3 + $0x66] sm:$0x1]
  %v4036 = vld [vmem:[#allocation3 + $0x76] sm:$0x1]
  %v4045 = vrot.slane %v4030, 7
  %v4046 = vsel %vm1316, %v4045, %v4029
  %v4047 = vrot.slane %v4031, 6
  %v4048 = vsel %vm1319, %v4047, %v4046
  %v4049 = vrot.slane %v4032, 5
  %v4050 = vsel %vm1322, %v4049, %v4048
  %v4051 = vrot.slane %v4033, 4
  %v4052 = vsel %vm1325, %v4051, %v4050
  %v4053 = vrot.slane %v4034, 3
  %v4054 = vsel %vm1328, %v4053, %v4052
  %v4055 = vrot.slane %v4035, 2
  %v4056 = vsel %vm1331, %v4055, %v4054
  %v4057 = vrot.slane %v4036, 1
  %v4058 = vsel %vm1334, %v4057, %v4056
  %v4059 = vsel %vm721, %v4058, 0
  %4061 = vmatpush.msra.mxu0 0.0
  %4062 = vmatpush.msra.mxu0 0.0
  %4063 = vmatpush.msra.mxu0 0.0
  %4064 = vmatpush.msra.mxu0 0.0
  %4065 = vmatpush.msra.mxu0 0.0
  %4066 = vmatpush.msra.mxu0 0.0
  %4067 = vmatpush.msra.mxu0 0.0
  %4068 = vmatpush.msra.mxu0 0.0
  %4069 = vmatpush.msra.mxu0 0.0
  %4070 = vmatpush.msra.mxu0 0.0
  %4071 = vmatpush.msra.mxu0 0.0
  %4072 = vmatpush.msra.mxu0 0.0
  %4073 = vmatpush.msra.mxu0 0.0
  %4074 = vmatpush.msra.mxu0 0.0
  %4075 = vmatpush.msra.mxu0 0.0
  %4076 = vmatpush.msra.mxu0 %v74
  %4077 = vmatmul.f32.gmra.mxu0 %v4059
  %v4078 = vpop.f32.mrf.mxu0
  %v4079 = vadd.f32 0.0, %v4078
  %4080 = vdwg.mxu0
  %v4081 = vadd.f32 %v4028, %v4079
  %v4082 = vld [vmem:[#allocation3 + $0x7] sm:$0x1]
  %v4083 = vld [vmem:[#allocation3 + $0x17] sm:$0x1]
  %v4084 = vld [vmem:[#allocation3 + $0x27] sm:$0x1]
  %v4085 = vld [vmem:[#allocation3 + $0x37] sm:$0x1]
  %v4086 = vld [vmem:[#allocation3 + $0x47] sm:$0x1]
  %v4087 = vld [vmem:[#allocation3 + $0x57] sm:$0x1]
  %v4088 = vld [vmem:[#allocation3 + $0x67] sm:$0x1]
  %v4089 = vld [vmem:[#allocation3 + $0x77] sm:$0x1]
  %v4098 = vrot.slane %v4083, 7
  %v4099 = vsel %vm1316, %v4098, %v4082
  %v4100 = vrot.slane %v4084, 6
  %v4101 = vsel %vm1319, %v4100, %v4099
  %v4102 = vrot.slane %v4085, 5
  %v4103 = vsel %vm1322, %v4102, %v4101
  %v4104 = vrot.slane %v4086, 4
  %v4105 = vsel %vm1325, %v4104, %v4103
  %v4106 = vrot.slane %v4087, 3
  %v4107 = vsel %vm1328, %v4106, %v4105
  %v4108 = vrot.slane %v4088, 2
  %v4109 = vsel %vm1331, %v4108, %v4107
  %v4110 = vrot.slane %v4089, 1
  %v4111 = vsel %vm1334, %v4110, %v4109
  %v4112 = vsel %vm721, %v4111, 0
  %4114 = vmatpush.msra.mxu0 0.0
  %4115 = vmatpush.msra.mxu0 0.0
  %4116 = vmatpush.msra.mxu0 0.0
  %4117 = vmatpush.msra.mxu0 0.0
  %4118 = vmatpush.msra.mxu0 0.0
  %4119 = vmatpush.msra.mxu0 0.0
  %4120 = vmatpush.msra.mxu0 0.0
  %4121 = vmatpush.msra.mxu0 0.0
  %4122 = vmatpush.msra.mxu0 0.0
  %4123 = vmatpush.msra.mxu0 0.0
  %4124 = vmatpush.msra.mxu0 0.0
  %4125 = vmatpush.msra.mxu0 0.0
  %4126 = vmatpush.msra.mxu0 0.0
  %4127 = vmatpush.msra.mxu0 0.0
  %4128 = vmatpush.msra.mxu0 0.0
  %4129 = vmatpush.msra.mxu0 %v75
  %4130 = vmatmul.f32.gmra.mxu0 %v4112
  %v4131 = vpop.f32.mrf.mxu0
  %v4132 = vadd.f32 0.0, %v4131
  %4133 = vdwg.mxu0
  %v4134 = vadd.f32 %v4081, %v4132
  %v4135 = vld [vmem:[#allocation3 + $0x8] sm:$0x1]
  %v4136 = vld [vmem:[#allocation3 + $0x18] sm:$0x1]
  %v4137 = vld [vmem:[#allocation3 + $0x28] sm:$0x1]
  %v4138 = vld [vmem:[#allocation3 + $0x38] sm:$0x1]
  %v4139 = vld [vmem:[#allocation3 + $0x48] sm:$0x1]
  %v4140 = vld [vmem:[#allocation3 + $0x58] sm:$0x1]
  %v4141 = vld [vmem:[#allocation3 + $0x68] sm:$0x1]
  %v4142 = vld [vmem:[#allocation3 + $0x78] sm:$0x1]
  %v4151 = vrot.slane %v4136, 7
  %v4152 = vsel %vm1316, %v4151, %v4135
  %v4153 = vrot.slane %v4137, 6
  %v4154 = vsel %vm1319, %v4153, %v4152
  %v4155 = vrot.slane %v4138, 5
  %v4156 = vsel %vm1322, %v4155, %v4154
  %v4157 = vrot.slane %v4139, 4
  %v4158 = vsel %vm1325, %v4157, %v4156
  %v4159 = vrot.slane %v4140, 3
  %v4160 = vsel %vm1328, %v4159, %v4158
  %v4161 = vrot.slane %v4141, 2
  %v4162 = vsel %vm1331, %v4161, %v4160
  %v4163 = vrot.slane %v4142, 1
  %v4164 = vsel %vm1334, %v4163, %v4162
  %v4165 = vsel %vm721, %v4164, 0
  %4167 = vmatpush.msra.mxu0 0.0
  %4168 = vmatpush.msra.mxu0 0.0
  %4169 = vmatpush.msra.mxu0 0.0
  %4170 = vmatpush.msra.mxu0 0.0
  %4171 = vmatpush.msra.mxu0 0.0
  %4172 = vmatpush.msra.mxu0 0.0
  %4173 = vmatpush.msra.mxu0 0.0
  %4174 = vmatpush.msra.mxu0 0.0
  %4175 = vmatpush.msra.mxu0 0.0
  %4176 = vmatpush.msra.mxu0 0.0
  %4177 = vmatpush.msra.mxu0 0.0
  %4178 = vmatpush.msra.mxu0 0.0
  %4179 = vmatpush.msra.mxu0 0.0
  %4180 = vmatpush.msra.mxu0 0.0
  %4181 = vmatpush.msra.mxu0 0.0
  %4182 = vmatpush.msra.mxu0 %v76
  %4183 = vmatmul.f32.gmra.mxu0 %v4165
  %v4184 = vpop.f32.mrf.mxu0
  %v4185 = vadd.f32 0.0, %v4184
  %4186 = vdwg.mxu0
  %v4187 = vadd.f32 %v4134, %v4185
  %v4188 = vld [vmem:[#allocation3 + $0x9] sm:$0x1]
  %v4189 = vld [vmem:[#allocation3 + $0x19] sm:$0x1]
  %v4190 = vld [vmem:[#allocation3 + $0x29] sm:$0x1]
  %v4191 = vld [vmem:[#allocation3 + $0x39] sm:$0x1]
  %v4192 = vld [vmem:[#allocation3 + $0x49] sm:$0x1]
  %v4193 = vld [vmem:[#allocation3 + $0x59] sm:$0x1]
  %v4194 = vld [vmem:[#allocation3 + $0x69] sm:$0x1]
  %v4195 = vld [vmem:[#allocation3 + $0x79] sm:$0x1]
  %v4204 = vrot.slane %v4189, 7
  %v4205 = vsel %vm1316, %v4204, %v4188
  %v4206 = vrot.slane %v4190, 6
  %v4207 = vsel %vm1319, %v4206, %v4205
  %v4208 = vrot.slane %v4191, 5
  %v4209 = vsel %vm1322, %v4208, %v4207
  %v4210 = vrot.slane %v4192, 4
  %v4211 = vsel %vm1325, %v4210, %v4209
  %v4212 = vrot.slane %v4193, 3
  %v4213 = vsel %vm1328, %v4212, %v4211
  %v4214 = vrot.slane %v4194, 2
  %v4215 = vsel %vm1331, %v4214, %v4213
  %v4216 = vrot.slane %v4195, 1
  %v4217 = vsel %vm1334, %v4216, %v4215
  %v4218 = vsel %vm721, %v4217, 0
  %4220 = vmatpush.msra.mxu0 0.0
  %4221 = vmatpush.msra.mxu0 0.0
  %4222 = vmatpush.msra.mxu0 0.0
  %4223 = vmatpush.msra.mxu0 0.0
  %4224 = vmatpush.msra.mxu0 0.0
  %4225 = vmatpush.msra.mxu0 0.0
  %4226 = vmatpush.msra.mxu0 0.0
  %4227 = vmatpush.msra.mxu0 0.0
  %4228 = vmatpush.msra.mxu0 0.0
  %4229 = vmatpush.msra.mxu0 0.0
  %4230 = vmatpush.msra.mxu0 0.0
  %4231 = vmatpush.msra.mxu0 0.0
  %4232 = vmatpush.msra.mxu0 0.0
  %4233 = vmatpush.msra.mxu0 0.0
  %4234 = vmatpush.msra.mxu0 0.0
  %4235 = vmatpush.msra.mxu0 %v77
  %4236 = vmatmul.f32.gmra.mxu0 %v4218
  %v4237 = vpop.f32.mrf.mxu0
  %v4238 = vadd.f32 0.0, %v4237
  %4239 = vdwg.mxu0
  %v4240 = vadd.f32 %v4187, %v4238
  %v4241 = vld [vmem:[#allocation3 + $0xa] sm:$0x1]
  %v4242 = vld [vmem:[#allocation3 + $0x1a] sm:$0x1]
  %v4243 = vld [vmem:[#allocation3 + $0x2a] sm:$0x1]
  %v4244 = vld [vmem:[#allocation3 + $0x3a] sm:$0x1]
  %v4245 = vld [vmem:[#allocation3 + $0x4a] sm:$0x1]
  %v4246 = vld [vmem:[#allocation3 + $0x5a] sm:$0x1]
  %v4247 = vld [vmem:[#allocation3 + $0x6a] sm:$0x1]
  %v4248 = vld [vmem:[#allocation3 + $0x7a] sm:$0x1]
  %v4257 = vrot.slane %v4242, 7
  %v4258 = vsel %vm1316, %v4257, %v4241
  %v4259 = vrot.slane %v4243, 6
  %v4260 = vsel %vm1319, %v4259, %v4258
  %v4261 = vrot.slane %v4244, 5
  %v4262 = vsel %vm1322, %v4261, %v4260
  %v4263 = vrot.slane %v4245, 4
  %v4264 = vsel %vm1325, %v4263, %v4262
  %v4265 = vrot.slane %v4246, 3
  %v4266 = vsel %vm1328, %v4265, %v4264
  %v4267 = vrot.slane %v4247, 2
  %v4268 = vsel %vm1331, %v4267, %v4266
  %v4269 = vrot.slane %v4248, 1
  %v4270 = vsel %vm1334, %v4269, %v4268
  %v4271 = vsel %vm721, %v4270, 0
  %4273 = vmatpush.msra.mxu0 0.0
  %4274 = vmatpush.msra.mxu0 0.0
  %4275 = vmatpush.msra.mxu0 0.0
  %4276 = vmatpush.msra.mxu0 0.0
  %4277 = vmatpush.msra.mxu0 0.0
  %4278 = vmatpush.msra.mxu0 0.0
  %4279 = vmatpush.msra.mxu0 0.0
  %4280 = vmatpush.msra.mxu0 0.0
  %4281 = vmatpush.msra.mxu0 0.0
  %4282 = vmatpush.msra.mxu0 0.0
  %4283 = vmatpush.msra.mxu0 0.0
  %4284 = vmatpush.msra.mxu0 0.0
  %4285 = vmatpush.msra.mxu0 0.0
  %4286 = vmatpush.msra.mxu0 0.0
  %4287 = vmatpush.msra.mxu0 0.0
  %4288 = vmatpush.msra.mxu0 %v78
  %4289 = vmatmul.f32.gmra.mxu0 %v4271
  %v4290 = vpop.f32.mrf.mxu0
  %v4291 = vadd.f32 0.0, %v4290
  %4292 = vdwg.mxu0
  %v4293 = vadd.f32 %v4240, %v4291
  %v4294 = vld [vmem:[#allocation3 + $0xb] sm:$0x1]
  %v4295 = vld [vmem:[#allocation3 + $0x1b] sm:$0x1]
  %v4296 = vld [vmem:[#allocation3 + $0x2b] sm:$0x1]
  %v4297 = vld [vmem:[#allocation3 + $0x3b] sm:$0x1]
  %v4298 = vld [vmem:[#allocation3 + $0x4b] sm:$0x1]
  %v4299 = vld [vmem:[#allocation3 + $0x5b] sm:$0x1]
  %v4300 = vld [vmem:[#allocation3 + $0x6b] sm:$0x1]
  %v4301 = vld [vmem:[#allocation3 + $0x7b] sm:$0x1]
  %v4310 = vrot.slane %v4295, 7
  %v4311 = vsel %vm1316, %v4310, %v4294
  %v4312 = vrot.slane %v4296, 6
  %v4313 = vsel %vm1319, %v4312, %v4311
  %v4314 = vrot.slane %v4297, 5
  %v4315 = vsel %vm1322, %v4314, %v4313
  %v4316 = vrot.slane %v4298, 4
  %v4317 = vsel %vm1325, %v4316, %v4315
  %v4318 = vrot.slane %v4299, 3
  %v4319 = vsel %vm1328, %v4318, %v4317
  %v4320 = vrot.slane %v4300, 2
  %v4321 = vsel %vm1331, %v4320, %v4319
  %v4322 = vrot.slane %v4301, 1
  %v4323 = vsel %vm1334, %v4322, %v4321
  %v4324 = vsel %vm721, %v4323, 0
  %4326 = vmatpush.msra.mxu0 0.0
  %4327 = vmatpush.msra.mxu0 0.0
  %4328 = vmatpush.msra.mxu0 0.0
  %4329 = vmatpush.msra.mxu0 0.0
  %4330 = vmatpush.msra.mxu0 0.0
  %4331 = vmatpush.msra.mxu0 0.0
  %4332 = vmatpush.msra.mxu0 0.0
  %4333 = vmatpush.msra.mxu0 0.0
  %4334 = vmatpush.msra.mxu0 0.0
  %4335 = vmatpush.msra.mxu0 0.0
  %4336 = vmatpush.msra.mxu0 0.0
  %4337 = vmatpush.msra.mxu0 0.0
  %4338 = vmatpush.msra.mxu0 0.0
  %4339 = vmatpush.msra.mxu0 0.0
  %4340 = vmatpush.msra.mxu0 0.0
  %4341 = vmatpush.msra.mxu0 %v79
  %4342 = vmatmul.f32.gmra.mxu0 %v4324
  %v4343 = vpop.f32.mrf.mxu0
  %v4344 = vadd.f32 0.0, %v4343
  %4345 = vdwg.mxu0
  %v4346 = vadd.f32 %v4293, %v4344
  %v4347 = vld [vmem:[#allocation3 + $0xc] sm:$0x1]
  %v4348 = vld [vmem:[#allocation3 + $0x1c] sm:$0x1]
  %v4349 = vld [vmem:[#allocation3 + $0x2c] sm:$0x1]
  %v4350 = vld [vmem:[#allocation3 + $0x3c] sm:$0x1]
  %v4351 = vld [vmem:[#allocation3 + $0x4c] sm:$0x1]
  %v4352 = vld [vmem:[#allocation3 + $0x5c] sm:$0x1]
  %v4353 = vld [vmem:[#allocation3 + $0x6c] sm:$0x1]
  %v4354 = vld [vmem:[#allocation3 + $0x7c] sm:$0x1]
  %v4363 = vrot.slane %v4348, 7
  %v4364 = vsel %vm1316, %v4363, %v4347
  %v4365 = vrot.slane %v4349, 6
  %v4366 = vsel %vm1319, %v4365, %v4364
  %v4367 = vrot.slane %v4350, 5
  %v4368 = vsel %vm1322, %v4367, %v4366
  %v4369 = vrot.slane %v4351, 4
  %v4370 = vsel %vm1325, %v4369, %v4368
  %v4371 = vrot.slane %v4352, 3
  %v4372 = vsel %vm1328, %v4371, %v4370
  %v4373 = vrot.slane %v4353, 2
  %v4374 = vsel %vm1331, %v4373, %v4372
  %v4375 = vrot.slane %v4354, 1
  %v4376 = vsel %vm1334, %v4375, %v4374
  %v4377 = vsel %vm721, %v4376, 0
  %4379 = vmatpush.msra.mxu0 0.0
  %4380 = vmatpush.msra.mxu0 0.0
  %4381 = vmatpush.msra.mxu0 0.0
  %4382 = vmatpush.msra.mxu0 0.0
  %4383 = vmatpush.msra.mxu0 0.0
  %4384 = vmatpush.msra.mxu0 0.0
  %4385 = vmatpush.msra.mxu0 0.0
  %4386 = vmatpush.msra.mxu0 0.0
  %4387 = vmatpush.msra.mxu0 0.0
  %4388 = vmatpush.msra.mxu0 0.0
  %4389 = vmatpush.msra.mxu0 0.0
  %4390 = vmatpush.msra.mxu0 0.0
  %4391 = vmatpush.msra.mxu0 0.0
  %4392 = vmatpush.msra.mxu0 0.0
  %4393 = vmatpush.msra.mxu0 0.0
  %4394 = vmatpush.msra.mxu0 %v80
  %4395 = vmatmul.f32.gmra.mxu0 %v4377
  %v4396 = vpop.f32.mrf.mxu0
  %v4397 = vadd.f32 0.0, %v4396
  %4398 = vdwg.mxu0
  %v4399 = vadd.f32 %v4346, %v4397
  %v4400 = vld [vmem:[#allocation3 + $0xd] sm:$0x1]
  %v4401 = vld [vmem:[#allocation3 + $0x1d] sm:$0x1]
  %v4402 = vld [vmem:[#allocation3 + $0x2d] sm:$0x1]
  %v4403 = vld [vmem:[#allocation3 + $0x3d] sm:$0x1]
  %v4404 = vld [vmem:[#allocation3 + $0x4d] sm:$0x1]
  %v4405 = vld [vmem:[#allocation3 + $0x5d] sm:$0x1]
  %v4406 = vld [vmem:[#allocation3 + $0x6d] sm:$0x1]
  %v4407 = vld [vmem:[#allocation3 + $0x7d] sm:$0x1]
  %v4416 = vrot.slane %v4401, 7
  %v4417 = vsel %vm1316, %v4416, %v4400
  %v4418 = vrot.slane %v4402, 6
  %v4419 = vsel %vm1319, %v4418, %v4417
  %v4420 = vrot.slane %v4403, 5
  %v4421 = vsel %vm1322, %v4420, %v4419
  %v4422 = vrot.slane %v4404, 4
  %v4423 = vsel %vm1325, %v4422, %v4421
  %v4424 = vrot.slane %v4405, 3
  %v4425 = vsel %vm1328, %v4424, %v4423
  %v4426 = vrot.slane %v4406, 2
  %v4427 = vsel %vm1331, %v4426, %v4425
  %v4428 = vrot.slane %v4407, 1
  %v4429 = vsel %vm1334, %v4428, %v4427
  %v4430 = vsel %vm721, %v4429, 0
  %4432 = vmatpush.msra.mxu0 0.0
  %4433 = vmatpush.msra.mxu0 0.0
  %4434 = vmatpush.msra.mxu0 0.0
  %4435 = vmatpush.msra.mxu0 0.0
  %4436 = vmatpush.msra.mxu0 0.0
  %4437 = vmatpush.msra.mxu0 0.0
  %4438 = vmatpush.msra.mxu0 0.0
  %4439 = vmatpush.msra.mxu0 0.0
  %4440 = vmatpush.msra.mxu0 0.0
  %4441 = vmatpush.msra.mxu0 0.0
  %4442 = vmatpush.msra.mxu0 0.0
  %4443 = vmatpush.msra.mxu0 0.0
  %4444 = vmatpush.msra.mxu0 0.0
  %4445 = vmatpush.msra.mxu0 0.0
  %4446 = vmatpush.msra.mxu0 0.0
  %4447 = vmatpush.msra.mxu0 %v81
  %4448 = vmatmul.f32.gmra.mxu0 %v4430
  %v4449 = vpop.f32.mrf.mxu0
  %v4450 = vadd.f32 0.0, %v4449
  %4451 = vdwg.mxu0
  %v4452 = vadd.f32 %v4399, %v4450
  %v4453 = vld [vmem:[#allocation3 + $0xe] sm:$0x1]
  %v4454 = vld [vmem:[#allocation3 + $0x1e] sm:$0x1]
  %v4455 = vld [vmem:[#allocation3 + $0x2e] sm:$0x1]
  %v4456 = vld [vmem:[#allocation3 + $0x3e] sm:$0x1]
  %v4457 = vld [vmem:[#allocation3 + $0x4e] sm:$0x1]
  %v4458 = vld [vmem:[#allocation3 + $0x5e] sm:$0x1]
  %v4459 = vld [vmem:[#allocation3 + $0x6e] sm:$0x1]
  %v4460 = vld [vmem:[#allocation3 + $0x7e] sm:$0x1]
  %v4469 = vrot.slane %v4454, 7
  %v4470 = vsel %vm1316, %v4469, %v4453
  %v4471 = vrot.slane %v4455, 6
  %v4472 = vsel %vm1319, %v4471, %v4470
  %v4473 = vrot.slane %v4456, 5
  %v4474 = vsel %vm1322, %v4473, %v4472
  %v4475 = vrot.slane %v4457, 4
  %v4476 = vsel %vm1325, %v4475, %v4474
  %v4477 = vrot.slane %v4458, 3
  %v4478 = vsel %vm1328, %v4477, %v4476
  %v4479 = vrot.slane %v4459, 2
  %v4480 = vsel %vm1331, %v4479, %v4478
  %v4481 = vrot.slane %v4460, 1
  %v4482 = vsel %vm1334, %v4481, %v4480
  %v4483 = vsel %vm721, %v4482, 0
  %4485 = vmatpush.msra.mxu0 0.0
  %4486 = vmatpush.msra.mxu0 0.0
  %4487 = vmatpush.msra.mxu0 0.0
  %4488 = vmatpush.msra.mxu0 0.0
  %4489 = vmatpush.msra.mxu0 0.0
  %4490 = vmatpush.msra.mxu0 0.0
  %4491 = vmatpush.msra.mxu0 0.0
  %4492 = vmatpush.msra.mxu0 0.0
  %4493 = vmatpush.msra.mxu0 0.0
  %4494 = vmatpush.msra.mxu0 0.0
  %4495 = vmatpush.msra.mxu0 0.0
  %4496 = vmatpush.msra.mxu0 0.0
  %4497 = vmatpush.msra.mxu0 0.0
  %4498 = vmatpush.msra.mxu0 0.0
  %4499 = vmatpush.msra.mxu0 0.0
  %4500 = vmatpush.msra.mxu0 %v82
  %4501 = vmatmul.f32.gmra.mxu0 %v4483
  %v4502 = vpop.f32.mrf.mxu0
  %v4503 = vadd.f32 0.0, %v4502
  %4504 = vdwg.mxu0
  %v4505 = vadd.f32 %v4452, %v4503
  %v4506 = vld [vmem:[#allocation3 + $0xf] sm:$0x1]
  %v4507 = vld [vmem:[#allocation3 + $0x1f] sm:$0x1]
  %v4508 = vld [vmem:[#allocation3 + $0x2f] sm:$0x1]
  %v4509 = vld [vmem:[#allocation3 + $0x3f] sm:$0x1]
  %v4510 = vld [vmem:[#allocation3 + $0x4f] sm:$0x1]
  %v4511 = vld [vmem:[#allocation3 + $0x5f] sm:$0x1]
  %v4512 = vld [vmem:[#allocation3 + $0x6f] sm:$0x1]
  %v4513 = vld [vmem:[#allocation3 + $0x7f] sm:$0x1]
  %v4522 = vrot.slane %v4507, 7
  %v4523 = vsel %vm1316, %v4522, %v4506
  %v4524 = vrot.slane %v4508, 6
  %v4525 = vsel %vm1319, %v4524, %v4523
  %v4526 = vrot.slane %v4509, 5
  %v4527 = vsel %vm1322, %v4526, %v4525
  %v4528 = vrot.slane %v4510, 4
  %v4529 = vsel %vm1325, %v4528, %v4527
  %v4530 = vrot.slane %v4511, 3
  %v4531 = vsel %vm1328, %v4530, %v4529
  %v4532 = vrot.slane %v4512, 2
  %v4533 = vsel %vm1331, %v4532, %v4531
  %v4534 = vrot.slane %v4513, 1
  %v4535 = vsel %vm1334, %v4534, %v4533
  %v4536 = vsel %vm721, %v4535, 0
  %4538 = vmatpush.msra.mxu0 0.0
  %4539 = vmatpush.msra.mxu0 0.0
  %4540 = vmatpush.msra.mxu0 0.0
  %4541 = vmatpush.msra.mxu0 0.0
  %4542 = vmatpush.msra.mxu0 0.0
  %4543 = vmatpush.msra.mxu0 0.0
  %4544 = vmatpush.msra.mxu0 0.0
  %4545 = vmatpush.msra.mxu0 0.0
  %4546 = vmatpush.msra.mxu0 0.0
  %4547 = vmatpush.msra.mxu0 0.0
  %4548 = vmatpush.msra.mxu0 0.0
  %4549 = vmatpush.msra.mxu0 0.0
  %4550 = vmatpush.msra.mxu0 0.0
  %4551 = vmatpush.msra.mxu0 0.0
  %4552 = vmatpush.msra.mxu0 0.0
  %4553 = vmatpush.msra.mxu0 %v83
  %4554 = vmatmul.f32.gmra.mxu0 %v4536
  %v4555 = vpop.f32.mrf.mxu0
  %v4556 = vadd.f32 0.0, %v4555
  %4557 = vdwg.mxu0
  %v4558 = vadd.f32 %v4505, %v4556
  %v4559 = vadd.f32 %v4558, %v2145
  %v4560 = vmax.f32 %v4559, 0.0
  %4561 = vset.pattern.permute.xlu0 0
  %4562 = vperm.xlu0 %4561, %v2561
  %v4563 = vpop.permute.xlu0 %4562
  %v4565 = vperm.slane %v4563, 0
  %4566 = vset.pattern.permute.xlu0 0
  %4567 = vperm.xlu0 %4566, %v2562
  %v4568 = vpop.permute.xlu0 %4567
  %v4570 = vperm.slane %v4568, 0
  %4571 = vset.pattern.permute.xlu0 0
  %4572 = vperm.xlu0 %4571, %v2563
  %v4573 = vpop.permute.xlu0 %4572
  %v4575 = vperm.slane %v4573, 0
  %4576 = vset.pattern.permute.xlu0 0
  %4577 = vperm.xlu0 %4576, %v2564
  %v4578 = vpop.permute.xlu0 %4577
  %v4580 = vperm.slane %v4578, 0
  %4581 = vset.pattern.permute.xlu0 0
  %4582 = vperm.xlu0 %4581, %v2565
  %v4583 = vpop.permute.xlu0 %4582
  %v4585 = vperm.slane %v4583, 0
  %4586 = vset.pattern.permute.xlu0 0
  %4587 = vperm.xlu0 %4586, %v2566
  %v4588 = vpop.permute.xlu0 %4587
  %v4590 = vperm.slane %v4588, 0
  %4591 = vset.pattern.permute.xlu0 0
  %4592 = vperm.xlu0 %4591, %v2567
  %v4593 = vpop.permute.xlu0 %4592
  %v4595 = vperm.slane %v4593, 0
  %4596 = vset.pattern.permute.xlu0 0
  %4597 = vperm.xlu0 %4596, %v2568
  %v4598 = vpop.permute.xlu0 %4597
  %v4600 = vperm.slane %v4598, 0
  %v4601 = vmul.f32 %v4565, %v2189
  %v4602 = vmul.f32 %v4570, %v2191
  %v4603 = vmul.f32 %v4575, %v2192
  %v4604 = vmul.f32 %v4580, %v2193
  %v4605 = vmul.f32 %v4585, %v2194
  %v4606 = vmul.f32 %v4590, %v2195
  %v4607 = vmul.f32 %v4595, %v2196
  %v4608 = vmul.f32 %v4600, %v2197
  %4609 = vset.pattern.permute.xlu0 1
  %4610 = vperm.xlu0 %4609, %v2561
  %v4611 = vpop.permute.xlu0 %4610
  %v4613 = vperm.slane %v4611, 0
  %4614 = vset.pattern.permute.xlu0 1
  %4615 = vperm.xlu0 %4614, %v2562
  %v4616 = vpop.permute.xlu0 %4615
  %v4618 = vperm.slane %v4616, 0
  %4619 = vset.pattern.permute.xlu0 1
  %4620 = vperm.xlu0 %4619, %v2563
  %v4621 = vpop.permute.xlu0 %4620
  %v4623 = vperm.slane %v4621, 0
  %4624 = vset.pattern.permute.xlu0 1
  %4625 = vperm.xlu0 %4624, %v2564
  %v4626 = vpop.permute.xlu0 %4625
  %v4628 = vperm.slane %v4626, 0
  %4629 = vset.pattern.permute.xlu0 1
  %4630 = vperm.xlu0 %4629, %v2565
  %v4631 = vpop.permute.xlu0 %4630
  %v4633 = vperm.slane %v4631, 0
  %4634 = vset.pattern.permute.xlu0 1
  %4635 = vperm.xlu0 %4634, %v2566
  %v4636 = vpop.permute.xlu0 %4635
  %v4638 = vperm.slane %v4636, 0
  %4639 = vset.pattern.permute.xlu0 1
  %4640 = vperm.xlu0 %4639, %v2567
  %v4641 = vpop.permute.xlu0 %4640
  %v4643 = vperm.slane %v4641, 0
  %4644 = vset.pattern.permute.xlu0 1
  %4645 = vperm.xlu0 %4644, %v2568
  %v4646 = vpop.permute.xlu0 %4645
  %v4648 = vperm.slane %v4646, 0
  %v4649 = vmul.f32 %v4613, %v2253
  %v4650 = vmul.f32 %v4618, %v2255
  %v4651 = vmul.f32 %v4623, %v2256
  %v4652 = vmul.f32 %v4628, %v2257
  %v4653 = vmul.f32 %v4633, %v2258
  %v4654 = vmul.f32 %v4638, %v2259
  %v4655 = vmul.f32 %v4643, %v2260
  %v4656 = vmul.f32 %v4648, %v2261
  %v4657 = vadd.f32 %v4601, %v4649
  %v4658 = vadd.f32 %v4602, %v4650
  %v4659 = vadd.f32 %v4603, %v4651
  %v4660 = vadd.f32 %v4604, %v4652
  %v4661 = vadd.f32 %v4605, %v4653
  %v4662 = vadd.f32 %v4606, %v4654
  %v4663 = vadd.f32 %v4607, %v4655
  %v4664 = vadd.f32 %v4608, %v4656
  %v4665 = vadd.f32 %v4657, %v2286
  %v4666 = vadd.f32 %v4658, %v2288
  %v4667 = vadd.f32 %v4659, %v2289
  %v4668 = vadd.f32 %v4660, %v2290
  %v4669 = vadd.f32 %v4661, %v2291
  %v4670 = vadd.f32 %v4662, %v2292
  %v4671 = vadd.f32 %v4663, %v2293
  %v4672 = vadd.f32 %v4664, %v2294
  %v4673 = vmax.f32 %v4665, 0.0
  %v4674 = vmax.f32 %v4666, 0.0
  %v4675 = vmax.f32 %v4667, 0.0
  %v4676 = vmax.f32 %v4668, 0.0
  %v4677 = vmax.f32 %v4669, 0.0
  %v4678 = vmax.f32 %v4670, 0.0
  %v4679 = vmax.f32 %v4671, 0.0
  %v4680 = vmax.f32 %v4672, 0.0
  %4689 = vst [vmem:[#allocation1] ss:$9 sm:$0xff] %v4673
  %s4690 = scalar_lea.vmem [#allocation1], 1
  %4691 = vst [vmem:[%s4690] ss:$9 sm:$0xff] %v4674
  %s4692 = scalar_lea.vmem [#allocation1], 2
  %4693 = vst [vmem:[%s4692] ss:$9 sm:$0xff] %v4675
  %s4694 = scalar_lea.vmem [#allocation1], 3
  %4695 = vst [vmem:[%s4694] ss:$9 sm:$0xff] %v4676
  %s4696 = scalar_lea.vmem [#allocation1], 4
  %4697 = vst [vmem:[%s4696] ss:$9 sm:$0xff] %v4677
  %s4698 = scalar_lea.vmem [#allocation1], 5
  %4699 = vst [vmem:[%s4698] ss:$9 sm:$0xff] %v4678
  %s4700 = scalar_lea.vmem [#allocation1], 6
  %4701 = vst [vmem:[%s4700] ss:$9 sm:$0xff] %v4679
  %s4702 = scalar_lea.vmem [#allocation1], 7
  %4703 = vst [vmem:[%s4702] ss:$9 sm:$0xff] %v4680
  %v4704 = vld [vmem:[#allocation1] sm:$0xff]
  %v4705 = vsel %vm2342, %v4704, 0
  %4707 = vmatpush.msra.mxu0 0.0
  %4708 = vmatpush.msra.mxu0 0.0
  %4709 = vmatpush.msra.mxu0 0.0
  %4710 = vmatpush.msra.mxu0 0.0
  %4711 = vmatpush.msra.mxu0 0.0
  %4712 = vmatpush.msra.mxu0 0.0
  %4713 = vmatpush.msra.mxu0 0.0
  %4714 = vmatpush.msra.mxu0 0.0
  %4715 = vmatpush.msra.mxu0 0.0
  %4716 = vmatpush.msra.mxu0 0.0
  %4717 = vmatpush.msra.mxu0 0.0
  %4718 = vmatpush.msra.mxu0 0.0
  %4719 = vmatpush.msra.mxu0 %v94
  %4720 = vmatpush.msra.mxu0 %v93
  %4721 = vmatpush.msra.mxu0 %v92
  %4722 = vmatpush.msra.mxu0 %v91
  %4723 = vmatmul.f32.gmra.mxu0 %v4705
  %v4724 = vpop.f32.mrf.mxu0
  %v4725 = vadd.f32 0.0, %v4724
  %4726 = vdwg.mxu0
  %v4728 = vsel %vm2342, %v4560, 0
  %4730 = vmatpush.msra.mxu0 0.0
  %4731 = vmatpush.msra.mxu0 0.0
  %4732 = vmatpush.msra.mxu0 0.0
  %4733 = vmatpush.msra.mxu0 0.0
  %4734 = vmatpush.msra.mxu0 0.0
  %4735 = vmatpush.msra.mxu0 0.0
  %4736 = vmatpush.msra.mxu0 0.0
  %4737 = vmatpush.msra.mxu0 0.0
  %4738 = vmatpush.msra.mxu0 0.0
  %4739 = vmatpush.msra.mxu0 0.0
  %4740 = vmatpush.msra.mxu0 0.0
  %4741 = vmatpush.msra.mxu0 0.0
  %4742 = vmatpush.msra.mxu0 %v90
  %4743 = vmatpush.msra.mxu0 %v89
  %4744 = vmatpush.msra.mxu0 %v88
  %4745 = vmatpush.msra.mxu0 %v87
  %4746 = vmatmul.f32.gmra.mxu0 %v4728
  %v4747 = vpop.f32.mrf.mxu0
  %v4748 = vadd.f32 %v4725, %v4747
  %4749 = vdwg.mxu0
  %v4750 = vadd.f32 %v4748, %v2389
  %v4751 = vmax.f32 %v4750, 0.0
  %4752 = vmatpush.msra.mxu0 0.0
  %4753 = vmatpush.msra.mxu0 0.0
  %4754 = vmatpush.msra.mxu0 0.0
  %4755 = vmatpush.msra.mxu0 0.0
  %4756 = vmatpush.msra.mxu0 0.0
  %4757 = vmatpush.msra.mxu0 0.0
  %4758 = vmatpush.msra.mxu0 0.0
  %4759 = vmatpush.msra.mxu0 0.0
  %4760 = vmatpush.msra.mxu0 0.0
  %4761 = vmatpush.msra.mxu0 0.0
  %4762 = vmatpush.msra.mxu0 0.0
  %4763 = vmatpush.msra.mxu0 0.0
  %4764 = vmatpush.msra.mxu0 %v103
  %4765 = vmatpush.msra.mxu0 %v102
  %4766 = vmatpush.msra.mxu0 %v101
  %4767 = vmatpush.msra.mxu0 %v100
  %4768 = vmatmul.f32.gmra.mxu0 %v2486
  %v4769 = vpop.f32.mrf.mxu0
  %v4770 = vadd.f32 0.0, %v4769
  %4771 = vdwg.mxu0
  %v4773 = vsel %vm2342, %v4751, 0
  %4775 = vmatpush.msra.mxu0 0.0
  %4776 = vmatpush.msra.mxu0 0.0
  %4777 = vmatpush.msra.mxu0 0.0
  %4778 = vmatpush.msra.mxu0 0.0
  %4779 = vmatpush.msra.mxu0 0.0
  %4780 = vmatpush.msra.mxu0 0.0
  %4781 = vmatpush.msra.mxu0 0.0
  %4782 = vmatpush.msra.mxu0 0.0
  %4783 = vmatpush.msra.mxu0 0.0
  %4784 = vmatpush.msra.mxu0 0.0
  %4785 = vmatpush.msra.mxu0 0.0
  %4786 = vmatpush.msra.mxu0 0.0
  %4787 = vmatpush.msra.mxu0 %v99
  %4788 = vmatpush.msra.mxu0 %v98
  %4789 = vmatpush.msra.mxu0 %v97
  %4790 = vmatpush.msra.mxu0 %v96
  %4791 = vmatmul.f32.gmra.mxu0 %v4773
  %v4792 = vpop.f32.mrf.mxu0
  %v4793 = vadd.f32 %v4770, %v4792
  %4794 = vdwg.mxu0
  %v4795 = vadd.f32 %v4793, %v2440
  %v4796 = vxor.u32 %v4795, 2147483648
  %v4797 = vmul.f32 %v4796, 1.442695
  %v4798 = vpow.pop %v4797
  %v4799 = vadd.f32 %v4798, 1.0
  %v4800 = vrcp.pop %v4799
  %v4801 = vmul.f32 %v4799, %v4800
  %v4802 = vsub.f32 1.0, %v4801
  %v4803 = vmul.f32 %v4800, %v4802
  %v4804 = vadd.f32 %v4800, %v4803
  %vm4805 = vweird.f32 %v4799
  %vm4806 = vweird.f32 %v4800
  %vm4807 = vmor %vm4805, %vm4806
  %v4808 = vsel %vm4807, %v4800, %v4804
  %v4809 = vand.u32 2147483647, %v4799
  %vm4810 = vcmp.eq.f32.partialorder %v4809, 8.507059e+37
  %v4811 = vand.u32 %v4799, 2147483648
  %v4812 = vor.u32 1.1754944e-38, %v4811
  %v4813 = vsel %vm4810, %v4812, %v4808
  %v4814 = vmul.f32 1.0, %v4813
  %v4815 = vtanh.pop %v4795
  %v4816 = vmul.f32 %v4814, %v2473
  %4818 = vrot.lane.b32.xlu0 %v4815, 64
  %v4819 = vpop.permute.xlu0 %4818
  %v4821 = vmul.f32 %v4814, %v4819
  %4823 = vrot.lane.b32.xlu0 %v4821, 32
  %v4824 = vpop.permute.xlu0 %4823
  %v4826 = vadd.f32 %v4816, %v4824
  %v4827 = vtanh.pop %v4826
  %4829 = vrot.lane.b32.xlu0 %v4827, 64
  %v4830 = vpop.permute.xlu0 %4829
  %v4832 = vmul.f32 %v4814, %v4830
  %4834 = vrot.lane.b32.xlu0 %v4832, 32
  %v4835 = vpop.permute.xlu0 %4834
  %v4836 = vsel %vm2342, %v4835, 0
  %4838 = vmatpush.msra.mxu0 0.0
  %4839 = vmatpush.msra.mxu0 0.0
  %4840 = vmatpush.msra.mxu0 0.0
  %4841 = vmatpush.msra.mxu0 0.0
  %4842 = vmatpush.msra.mxu0 0.0
  %4843 = vmatpush.msra.mxu0 0.0
  %4844 = vmatpush.msra.mxu0 0.0
  %4845 = vmatpush.msra.mxu0 0.0
  %4846 = vmatpush.msra.mxu0 0.0
  %4847 = vmatpush.msra.mxu0 0.0
  %4848 = vmatpush.msra.mxu0 0.0
  %4849 = vmatpush.msra.mxu0 0.0
  %4850 = vmatpush.msra.mxu0 %v108
  %4851 = vmatpush.msra.mxu0 %v107
  %4852 = vmatpush.msra.mxu0 %v106
  %4853 = vmatpush.msra.mxu0 %v105
  %4854 = vmatmul.f32.gmra.mxu0 %v4836
  %v4855 = vpop.f32.mrf.mxu0
  %v4856 = vadd.f32 %v2481, %v4855
  %4857 = vdwg.mxu0
  %v4858 = vtanh.pop %v4856
  %s4859 = scalar_lea.vmem %s2, 8
  %v4860 = vld [vmem:[%s4859] sm:$0xff]
  %v4861 = vmul.f32 %v4860, 0.2
  %v4862 = vadd.f32 %v4858, %v4861
  %v4863 = vsub.f32 %v4862, %v4858
  %v4864 = vmul.f32 %v4863, %v2519
  %v4865 = vmul.f32 %v4864, %v4864
  %v4866 = vmul.f32 %v4865, -0.5
  %v4867 = vsub.f32 %v4866, -1.609438
  %v4868 = vsub.f32 %v4867, 0.9189385
  %v4869 = vsel %vm2525, %v4868, 0.0
  %4870 = vadd.xlane.f32.xlu0 %v4869
  %v4871 = vpop.xlane.xlu0 %4870
  %v4873 = vrot.slane %v4862, 1
  %v4874 = vrot.slane %v4862, 2
  %v4875 = vrot.slane %v4862, 3
  %v4876 = vrot.slane %v4862, 4
  %v4877 = vrot.slane %v4862, 5
  %v4878 = vrot.slane %v4862, 6
  %v4879 = vrot.slane %v4862, 7
  %4887 = vst.msk [vmem:[#allocation2] sm:$0x1] %vm118, %v4862
  %4888 = vst.msk [vmem:[#allocation2 + $0x1] sm:$0x1] %vm118, %v4873
  %4889 = vst.msk [vmem:[#allocation2 + $0x2] sm:$0x1] %vm118, %v4874
  %4890 = vst.msk [vmem:[#allocation2 + $0x3] sm:$0x1] %vm118, %v4875
  %4891 = vst.msk [vmem:[#allocation2 + $0x4] sm:$0x1] %vm118, %v4876
  %4892 = vst.msk [vmem:[#allocation2 + $0x5] sm:$0x1] %vm118, %v4877
  %4893 = vst.msk [vmem:[#allocation2 + $0x6] sm:$0x1] %vm118, %v4878
  %4894 = vst.msk [vmem:[#allocation2 + $0x7] sm:$0x1] %vm118, %v4879
  %4896 = vrot.lane.b32.xlu0 %v4856, 1
  %v4897 = vpop.permute.xlu0 %4896
  %v4899 = vsel %vm2525, %v4862, %v4871
  %v4900 = vsel %vm2557, %v4899, %v4897
  %s4901 = scalar_lea.vmem %s16, 8
  %4902 = vst.msk [vmem:[%s4901] sm:$0xff] %vm2559, %v4900
  %v4903 = vld [vmem:[#allocation2] sm:$0x1]
  %v4904 = vld [vmem:[#allocation2 + $0x1] sm:$0x1]
  %v4905 = vld [vmem:[#allocation2 + $0x2] sm:$0x1]
  %v4906 = vld [vmem:[#allocation2 + $0x3] sm:$0x1]
  %v4907 = vld [vmem:[#allocation2 + $0x4] sm:$0x1]
  %v4908 = vld [vmem:[#allocation2 + $0x5] sm:$0x1]
  %v4909 = vld [vmem:[#allocation2 + $0x6] sm:$0x1]
  %v4910 = vld [vmem:[#allocation2 + $0x7] sm:$0x1]
  %v4919 = vperm.slane %v4903, 0
  %v4920 = vperm.slane %v4904, 0
  %v4921 = vperm.slane %v4905, 0
  %v4922 = vperm.slane %v4906, 0
  %v4923 = vperm.slane %v4907, 0
  %v4924 = vperm.slane %v4908, 0
  %v4925 = vperm.slane %v4909, 0
  %v4926 = vperm.slane %v4910, 0
  %v4935 = vadd.f32 %v143, %v4919
  %v4936 = vadd.f32 %v143, %v4920
  %v4937 = vadd.f32 %v143, %v4921
  %v4938 = vadd.f32 %v143, %v4922
  %v4939 = vadd.f32 %v143, %v4923
  %v4940 = vadd.f32 %v143, %v4924
  %v4941 = vadd.f32 %v143, %v4925
  %v4942 = vadd.f32 %v143, %v4926
  %v4943 = vadd.f32 %v4935, 1.0
  %v4944 = vadd.f32 %v4936, 1.0
  %v4945 = vadd.f32 %v4937, 1.0
  %v4946 = vadd.f32 %v4938, 1.0
  %v4947 = vadd.f32 %v4939, 1.0
  %v4948 = vadd.f32 %v4940, 1.0
  %v4949 = vadd.f32 %v4941, 1.0
  %v4950 = vadd.f32 %v4942, 1.0
  %v4951 = vmul.f32 %v4943, 7.5
  %v4952 = vmul.f32 %v4944, 7.5
  %v4953 = vmul.f32 %v4945, 7.5
  %v4954 = vmul.f32 %v4946, 7.5
  %v4955 = vmul.f32 %v4947, 7.5
  %v4956 = vmul.f32 %v4948, 7.5
  %v4957 = vmul.f32 %v4949, 7.5
  %v4958 = vmul.f32 %v4950, 7.5
  %4960 = vset.pattern.permute.xlu0 1
  %4961 = vperm.xlu0 %4960, %v4951
  %v4962 = vpop.permute.xlu0 %4961
  %4965 = vset.pattern.permute.xlu0 1
  %4966 = vperm.xlu0 %4965, %v4952
  %v4967 = vpop.permute.xlu0 %4966
  %4970 = vset.pattern.permute.xlu0 1
  %4971 = vperm.xlu0 %4970, %v4953
  %v4972 = vpop.permute.xlu0 %4971
  %4975 = vset.pattern.permute.xlu0 1
  %4976 = vperm.xlu0 %4975, %v4954
  %v4977 = vpop.permute.xlu0 %4976
  %4980 = vset.pattern.permute.xlu0 1
  %4981 = vperm.xlu0 %4980, %v4955
  %v4982 = vpop.permute.xlu0 %4981
  %4985 = vset.pattern.permute.xlu0 1
  %4986 = vperm.xlu0 %4985, %v4956
  %v4987 = vpop.permute.xlu0 %4986
  %4990 = vset.pattern.permute.xlu0 1
  %4991 = vperm.xlu0 %4990, %v4957
  %v4992 = vpop.permute.xlu0 %4991
  %4995 = vset.pattern.permute.xlu0 1
  %4996 = vperm.xlu0 %4995, %v4958
  %v4997 = vpop.permute.xlu0 %4996
  %v4999 = vsub.f32 %v4962, %v134
  %v5000 = vsub.f32 %v4967, %v134
  %v5001 = vsub.f32 %v4972, %v134
  %v5002 = vsub.f32 %v4977, %v134
  %v5003 = vsub.f32 %v4982, %v134
  %v5004 = vsub.f32 %v4987, %v134
  %v5005 = vsub.f32 %v4992, %v134
  %v5006 = vsub.f32 %v4997, %v134
  %v5007 = vand.u32 2147483647, %v4999
  %v5008 = vand.u32 2147483647, %v5000
  %v5009 = vand.u32 2147483647, %v5001
  %v5010 = vand.u32 2147483647, %v5002
  %v5011 = vand.u32 2147483647, %v5003
  %v5012 = vand.u32 2147483647, %v5004
  %v5013 = vand.u32 2147483647, %v5005
  %v5014 = vand.u32 2147483647, %v5006
  %v5015 = vsub.f32 1.0, %v5007
  %v5016 = vsub.f32 1.0, %v5008
  %v5017 = vsub.f32 1.0, %v5009
  %v5018 = vsub.f32 1.0, %v5010
  %v5019 = vsub.f32 1.0, %v5011
  %v5020 = vsub.f32 1.0, %v5012
  %v5021 = vsub.f32 1.0, %v5013
  %v5022 = vsub.f32 1.0, %v5014
  %v5023 = vmax.f32 %v5015, 0.0
  %v5024 = vmax.f32 %v5016, 0.0
  %v5025 = vmax.f32 %v5017, 0.0
  %v5026 = vmax.f32 %v5018, 0.0
  %v5027 = vmax.f32 %v5019, 0.0
  %v5028 = vmax.f32 %v5020, 0.0
  %v5029 = vmax.f32 %v5021, 0.0
  %v5030 = vmax.f32 %v5022, 0.0
  %5031 = vset.pattern.permute.xlu0 0
  %5032 = vperm.xlu0 %5031, %v4951
  %v5033 = vpop.permute.xlu0 %5032
  %5035 = vset.pattern.permute.xlu0 0
  %5036 = vperm.xlu0 %5035, %v4952
  %v5037 = vpop.permute.xlu0 %5036
  %5039 = vset.pattern.permute.xlu0 0
  %5040 = vperm.xlu0 %5039, %v4953
  %v5041 = vpop.permute.xlu0 %5040
  %5043 = vset.pattern.permute.xlu0 0
  %5044 = vperm.xlu0 %5043, %v4954
  %v5045 = vpop.permute.xlu0 %5044
  %5047 = vset.pattern.permute.xlu0 0
  %5048 = vperm.xlu0 %5047, %v4955
  %v5049 = vpop.permute.xlu0 %5048
  %5051 = vset.pattern.permute.xlu0 0
  %5052 = vperm.xlu0 %5051, %v4956
  %v5053 = vpop.permute.xlu0 %5052
  %5055 = vset.pattern.permute.xlu0 0
  %5056 = vperm.xlu0 %5055, %v4957
  %v5057 = vpop.permute.xlu0 %5056
  %5059 = vset.pattern.permute.xlu0 0
  %5060 = vperm.xlu0 %5059, %v4958
  %v5061 = vpop.permute.xlu0 %5060
  %v5063 = vsub.f32 %v5033, %v134
  %v5064 = vsub.f32 %v5037, %v134
  %v5065 = vsub.f32 %v5041, %v134
  %v5066 = vsub.f32 %v5045, %v134
  %v5067 = vsub.f32 %v5049, %v134
  %v5068 = vsub.f32 %v5053, %v134
  %v5069 = vsub.f32 %v5057, %v134
  %v5070 = vsub.f32 %v5061, %v134
  %v5071 = vand.u32 2147483647, %v5063
  %v5072 = vand.u32 2147483647, %v5064
  %v5073 = vand.u32 2147483647, %v5065
  %v5074 = vand.u32 2147483647, %v5066
  %v5075 = vand.u32 2147483647, %v5067
  %v5076 = vand.u32 2147483647, %v5068
  %v5077 = vand.u32 2147483647, %v5069
  %v5078 = vand.u32 2147483647, %v5070
  %v5079 = vsub.f32 1.0, %v5071
  %v5080 = vsub.f32 1.0, %v5072
  %v5081 = vsub.f32 1.0, %v5073
  %v5082 = vsub.f32 1.0, %v5074
  %v5083 = vsub.f32 1.0, %v5075
  %v5084 = vsub.f32 1.0, %v5076
  %v5085 = vsub.f32 1.0, %v5077
  %v5086 = vsub.f32 1.0, %v5078
  %v5087 = vmax.f32 %v5079, 0.0
  %v5088 = vmax.f32 %v5080, 0.0
  %v5089 = vmax.f32 %v5081, 0.0
  %v5090 = vmax.f32 %v5082, 0.0
  %v5091 = vmax.f32 %v5083, 0.0
  %v5092 = vmax.f32 %v5084, 0.0
  %v5093 = vmax.f32 %v5085, 0.0
  %v5094 = vmax.f32 %v5086, 0.0
  %v5096 = vsel %vm328, %v5023, 0
  %5098 = vmatpush.msra.mxu0 0.0
  %5099 = vmatpush.msra.mxu0 0.0
  %5100 = vmatpush.msra.mxu0 0.0
  %5101 = vmatpush.msra.mxu0 0.0
  %5102 = vmatpush.msra.mxu0 0.0
  %5103 = vmatpush.msra.mxu0 0.0
  %5104 = vmatpush.msra.mxu0 0.0
  %5105 = vmatpush.msra.mxu0 0.0
  %5106 = vmatpush.msra.mxu0 0.0
  %5107 = vmatpush.msra.mxu0 0.0
  %5108 = vmatpush.msra.mxu0 0.0
  %5109 = vmatpush.msra.mxu0 0.0
  %5110 = vmatpush.msra.mxu0 0.0
  %5111 = vmatpush.msra.mxu0 0.0
  %5112 = vmatpush.msra.mxu0 %v53
  %5113 = vmatpush.msra.mxu0 %v52
  %5114 = vmatmul.f32.gmra.mxu0 %v5096
  %v5115 = vpop.f32.mrf.mxu0
  %v5116 = vadd.f32 0.0, %v5115
  %5117 = vdwg.mxu0
  %v5119 = vsel %vm328, %v5024, 0
  %5121 = vmatpush.msra.mxu0 0.0
  %5122 = vmatpush.msra.mxu0 0.0
  %5123 = vmatpush.msra.mxu0 0.0
  %5124 = vmatpush.msra.mxu0 0.0
  %5125 = vmatpush.msra.mxu0 0.0
  %5126 = vmatpush.msra.mxu0 0.0
  %5127 = vmatpush.msra.mxu0 0.0
  %5128 = vmatpush.msra.mxu0 0.0
  %5129 = vmatpush.msra.mxu0 0.0
  %5130 = vmatpush.msra.mxu0 0.0
  %5131 = vmatpush.msra.mxu0 0.0
  %5132 = vmatpush.msra.mxu0 0.0
  %5133 = vmatpush.msra.mxu0 0.0
  %5134 = vmatpush.msra.mxu0 0.0
  %5135 = vmatpush.msra.mxu0 %v55
  %5136 = vmatpush.msra.mxu0 %v54
  %5137 = vmatmul.f32.gmra.mxu0 %v5119
  %v5138 = vpop.f32.mrf.mxu0
  %v5139 = vadd.f32 0.0, %v5138
  %5140 = vdwg.mxu0
  %v5142 = vsel %vm328, %v5025, 0
  %5144 = vmatpush.msra.mxu0 0.0
  %5145 = vmatpush.msra.mxu0 0.0
  %5146 = vmatpush.msra.mxu0 0.0
  %5147 = vmatpush.msra.mxu0 0.0
  %5148 = vmatpush.msra.mxu0 0.0
  %5149 = vmatpush.msra.mxu0 0.0
  %5150 = vmatpush.msra.mxu0 0.0
  %5151 = vmatpush.msra.mxu0 0.0
  %5152 = vmatpush.msra.mxu0 0.0
  %5153 = vmatpush.msra.mxu0 0.0
  %5154 = vmatpush.msra.mxu0 0.0
  %5155 = vmatpush.msra.mxu0 0.0
  %5156 = vmatpush.msra.mxu0 0.0
  %5157 = vmatpush.msra.mxu0 0.0
  %5158 = vmatpush.msra.mxu0 %v57
  %5159 = vmatpush.msra.mxu0 %v56
  %5160 = vmatmul.f32.gmra.mxu0 %v5142
  %v5161 = vpop.f32.mrf.mxu0
  %v5162 = vadd.f32 0.0, %v5161
  %5163 = vdwg.mxu0
  %v5165 = vsel %vm328, %v5026, 0
  %5167 = vmatpush.msra.mxu0 0.0
  %5168 = vmatpush.msra.mxu0 0.0
  %5169 = vmatpush.msra.mxu0 0.0
  %5170 = vmatpush.msra.mxu0 0.0
  %5171 = vmatpush.msra.mxu0 0.0
  %5172 = vmatpush.msra.mxu0 0.0
  %5173 = vmatpush.msra.mxu0 0.0
  %5174 = vmatpush.msra.mxu0 0.0
  %5175 = vmatpush.msra.mxu0 0.0
  %5176 = vmatpush.msra.mxu0 0.0
  %5177 = vmatpush.msra.mxu0 0.0
  %5178 = vmatpush.msra.mxu0 0.0
  %5179 = vmatpush.msra.mxu0 0.0
  %5180 = vmatpush.msra.mxu0 0.0
  %5181 = vmatpush.msra.mxu0 %v59
  %5182 = vmatpush.msra.mxu0 %v58
  %5183 = vmatmul.f32.gmra.mxu0 %v5165
  %v5184 = vpop.f32.mrf.mxu0
  %v5185 = vadd.f32 0.0, %v5184
  %5186 = vdwg.mxu0
  %v5188 = vsel %vm328, %v5027, 0
  %5190 = vmatpush.msra.mxu0 0.0
  %5191 = vmatpush.msra.mxu0 0.0
  %5192 = vmatpush.msra.mxu0 0.0
  %5193 = vmatpush.msra.mxu0 0.0
  %5194 = vmatpush.msra.mxu0 0.0
  %5195 = vmatpush.msra.mxu0 0.0
  %5196 = vmatpush.msra.mxu0 0.0
  %5197 = vmatpush.msra.mxu0 0.0
  %5198 = vmatpush.msra.mxu0 0.0
  %5199 = vmatpush.msra.mxu0 0.0
  %5200 = vmatpush.msra.mxu0 0.0
  %5201 = vmatpush.msra.mxu0 0.0
  %5202 = vmatpush.msra.mxu0 0.0
  %5203 = vmatpush.msra.mxu0 0.0
  %5204 = vmatpush.msra.mxu0 %v61
  %5205 = vmatpush.msra.mxu0 %v60
  %5206 = vmatmul.f32.gmra.mxu0 %v5188
  %v5207 = vpop.f32.mrf.mxu0
  %v5208 = vadd.f32 0.0, %v5207
  %5209 = vdwg.mxu0
  %v5211 = vsel %vm328, %v5028, 0
  %5213 = vmatpush.msra.mxu0 0.0
  %5214 = vmatpush.msra.mxu0 0.0
  %5215 = vmatpush.msra.mxu0 0.0
  %5216 = vmatpush.msra.mxu0 0.0
  %5217 = vmatpush.msra.mxu0 0.0
  %5218 = vmatpush.msra.mxu0 0.0
  %5219 = vmatpush.msra.mxu0 0.0
  %5220 = vmatpush.msra.mxu0 0.0
  %5221 = vmatpush.msra.mxu0 0.0
  %5222 = vmatpush.msra.mxu0 0.0
  %5223 = vmatpush.msra.mxu0 0.0
  %5224 = vmatpush.msra.mxu0 0.0
  %5225 = vmatpush.msra.mxu0 0.0
  %5226 = vmatpush.msra.mxu0 0.0
  %5227 = vmatpush.msra.mxu0 %v63
  %5228 = vmatpush.msra.mxu0 %v62
  %5229 = vmatmul.f32.gmra.mxu0 %v5211
  %v5230 = vpop.f32.mrf.mxu0
  %v5231 = vadd.f32 0.0, %v5230
  %5232 = vdwg.mxu0
  %v5234 = vsel %vm328, %v5029, 0
  %5236 = vmatpush.msra.mxu0 0.0
  %5237 = vmatpush.msra.mxu0 0.0
  %5238 = vmatpush.msra.mxu0 0.0
  %5239 = vmatpush.msra.mxu0 0.0
  %5240 = vmatpush.msra.mxu0 0.0
  %5241 = vmatpush.msra.mxu0 0.0
  %5242 = vmatpush.msra.mxu0 0.0
  %5243 = vmatpush.msra.mxu0 0.0
  %5244 = vmatpush.msra.mxu0 0.0
  %5245 = vmatpush.msra.mxu0 0.0
  %5246 = vmatpush.msra.mxu0 0.0
  %5247 = vmatpush.msra.mxu0 0.0
  %5248 = vmatpush.msra.mxu0 0.0
  %5249 = vmatpush.msra.mxu0 0.0
  %5250 = vmatpush.msra.mxu0 %v65
  %5251 = vmatpush.msra.mxu0 %v64
  %5252 = vmatmul.f32.gmra.mxu0 %v5234
  %v5253 = vpop.f32.mrf.mxu0
  %v5254 = vadd.f32 0.0, %v5253
  %5255 = vdwg.mxu0
  %v5257 = vsel %vm328, %v5030, 0
  %5259 = vmatpush.msra.mxu0 0.0
  %5260 = vmatpush.msra.mxu0 0.0
  %5261 = vmatpush.msra.mxu0 0.0
  %5262 = vmatpush.msra.mxu0 0.0
  %5263 = vmatpush.msra.mxu0 0.0
  %5264 = vmatpush.msra.mxu0 0.0
  %5265 = vmatpush.msra.mxu0 0.0
  %5266 = vmatpush.msra.mxu0 0.0
  %5267 = vmatpush.msra.mxu0 0.0
  %5268 = vmatpush.msra.mxu0 0.0
  %5269 = vmatpush.msra.mxu0 0.0
  %5270 = vmatpush.msra.mxu0 0.0
  %5271 = vmatpush.msra.mxu0 0.0
  %5272 = vmatpush.msra.mxu0 0.0
  %5273 = vmatpush.msra.mxu0 %v67
  %5274 = vmatpush.msra.mxu0 %v66
  %5275 = vmatmul.f32.gmra.mxu0 %v5257
  %v5276 = vpop.f32.mrf.mxu0
  %v5277 = vadd.f32 0.0, %v5276
  %5278 = vdwg.mxu0
  %v5280 = vsel %vm328, %v5116, 0
  %v5283 = vsel %vm328, %v5087, 0
  %5285 = vmatpush.xpose.msra.mxu0 0.0
  %5286 = vmatpush.xpose.msra.mxu0 0.0
  %5287 = vmatpush.xpose.msra.mxu0 0.0
  %5288 = vmatpush.xpose.msra.mxu0 0.0
  %5289 = vmatpush.xpose.msra.mxu0 0.0
  %5290 = vmatpush.xpose.msra.mxu0 0.0
  %5291 = vmatpush.xpose.msra.mxu0 0.0
  %5292 = vmatpush.xpose.msra.mxu0 0.0
  %5293 = vmatpush.xpose.msra.mxu0 0.0
  %5294 = vmatpush.xpose.msra.mxu0 0.0
  %5295 = vmatpush.xpose.msra.mxu0 0.0
  %5296 = vmatpush.xpose.msra.mxu0 0.0
  %5297 = vmatpush.xpose.msra.mxu0 0.0
  %5298 = vmatpush.xpose.msra.mxu0 0.0
  %5299 = vmatpush.xpose.msra.mxu0 0.0
  %5300 = vmatpush.xpose.msra.mxu0 %v5283
  %5301 = vmatmul.f32.gmra.mxu0 %v5280
  %v5302 = vpop.f32.mrf.mxu0
  %v5303 = vadd.f32 0.0, %v5302
  %5304 = vdwg.mxu0
  %v5306 = vsel %vm328, %v5139, 0
  %v5309 = vsel %vm328, %v5088, 0
  %5311 = vmatpush.xpose.msra.mxu0 0.0
  %5312 = vmatpush.xpose.msra.mxu0 0.0
  %5313 = vmatpush.xpose.msra.mxu0 0.0
  %5314 = vmatpush.xpose.msra.mxu0 0.0
  %5315 = vmatpush.xpose.msra.mxu0 0.0
  %5316 = vmatpush.xpose.msra.mxu0 0.0
  %5317 = vmatpush.xpose.msra.mxu0 0.0
  %5318 = vmatpush.xpose.msra.mxu0 0.0
  %5319 = vmatpush.xpose.msra.mxu0 0.0
  %5320 = vmatpush.xpose.msra.mxu0 0.0
  %5321 = vmatpush.xpose.msra.mxu0 0.0
  %5322 = vmatpush.xpose.msra.mxu0 0.0
  %5323 = vmatpush.xpose.msra.mxu0 0.0
  %5324 = vmatpush.xpose.msra.mxu0 0.0
  %5325 = vmatpush.xpose.msra.mxu0 0.0
  %5326 = vmatpush.xpose.msra.mxu0 %v5309
  %5327 = vmatmul.f32.gmra.mxu0 %v5306
  %v5328 = vpop.f32.mrf.mxu0
  %v5329 = vadd.f32 0.0, %v5328
  %5330 = vdwg.mxu0
  %v5332 = vsel %vm328, %v5162, 0
  %v5335 = vsel %vm328, %v5089, 0
  %5337 = vmatpush.xpose.msra.mxu0 0.0
  %5338 = vmatpush.xpose.msra.mxu0 0.0
  %5339 = vmatpush.xpose.msra.mxu0 0.0
  %5340 = vmatpush.xpose.msra.mxu0 0.0
  %5341 = vmatpush.xpose.msra.mxu0 0.0
  %5342 = vmatpush.xpose.msra.mxu0 0.0
  %5343 = vmatpush.xpose.msra.mxu0 0.0
  %5344 = vmatpush.xpose.msra.mxu0 0.0
  %5345 = vmatpush.xpose.msra.mxu0 0.0
  %5346 = vmatpush.xpose.msra.mxu0 0.0
  %5347 = vmatpush.xpose.msra.mxu0 0.0
  %5348 = vmatpush.xpose.msra.mxu0 0.0
  %5349 = vmatpush.xpose.msra.mxu0 0.0
  %5350 = vmatpush.xpose.msra.mxu0 0.0
  %5351 = vmatpush.xpose.msra.mxu0 0.0
  %5352 = vmatpush.xpose.msra.mxu0 %v5335
  %5353 = vmatmul.f32.gmra.mxu0 %v5332
  %v5354 = vpop.f32.mrf.mxu0
  %v5355 = vadd.f32 0.0, %v5354
  %5356 = vdwg.mxu0
  %v5358 = vsel %vm328, %v5185, 0
  %v5361 = vsel %vm328, %v5090, 0
  %5363 = vmatpush.xpose.msra.mxu0 0.0
  %5364 = vmatpush.xpose.msra.mxu0 0.0
  %5365 = vmatpush.xpose.msra.mxu0 0.0
  %5366 = vmatpush.xpose.msra.mxu0 0.0
  %5367 = vmatpush.xpose.msra.mxu0 0.0
  %5368 = vmatpush.xpose.msra.mxu0 0.0
  %5369 = vmatpush.xpose.msra.mxu0 0.0
  %5370 = vmatpush.xpose.msra.mxu0 0.0
  %5371 = vmatpush.xpose.msra.mxu0 0.0
  %5372 = vmatpush.xpose.msra.mxu0 0.0
  %5373 = vmatpush.xpose.msra.mxu0 0.0
  %5374 = vmatpush.xpose.msra.mxu0 0.0
  %5375 = vmatpush.xpose.msra.mxu0 0.0
  %5376 = vmatpush.xpose.msra.mxu0 0.0
  %5377 = vmatpush.xpose.msra.mxu0 0.0
  %5378 = vmatpush.xpose.msra.mxu0 %v5361
  %5379 = vmatmul.f32.gmra.mxu0 %v5358
  %v5380 = vpop.f32.mrf.mxu0
  %v5381 = vadd.f32 0.0, %v5380
  %5382 = vdwg.mxu0
  %v5384 = vsel %vm328, %v5208, 0
  %v5387 = vsel %vm328, %v5091, 0
  %5389 = vmatpush.xpose.msra.mxu0 0.0
  %5390 = vmatpush.xpose.msra.mxu0 0.0
  %5391 = vmatpush.xpose.msra.mxu0 0.0
  %5392 = vmatpush.xpose.msra.mxu0 0.0
  %5393 = vmatpush.xpose.msra.mxu0 0.0
  %5394 = vmatpush.xpose.msra.mxu0 0.0
  %5395 = vmatpush.xpose.msra.mxu0 0.0
  %5396 = vmatpush.xpose.msra.mxu0 0.0
  %5397 = vmatpush.xpose.msra.mxu0 0.0
  %5398 = vmatpush.xpose.msra.mxu0 0.0
  %5399 = vmatpush.xpose.msra.mxu0 0.0
  %5400 = vmatpush.xpose.msra.mxu0 0.0
  %5401 = vmatpush.xpose.msra.mxu0 0.0
  %5402 = vmatpush.xpose.msra.mxu0 0.0
  %5403 = vmatpush.xpose.msra.mxu0 0.0
  %5404 = vmatpush.xpose.msra.mxu0 %v5387
  %5405 = vmatmul.f32.gmra.mxu0 %v5384
  %v5406 = vpop.f32.mrf.mxu0
  %v5407 = vadd.f32 0.0, %v5406
  %5408 = vdwg.mxu0
  %v5410 = vsel %vm328, %v5231, 0
  %v5413 = vsel %vm328, %v5092, 0
  %5415 = vmatpush.xpose.msra.mxu0 0.0
  %5416 = vmatpush.xpose.msra.mxu0 0.0
  %5417 = vmatpush.xpose.msra.mxu0 0.0
  %5418 = vmatpush.xpose.msra.mxu0 0.0
  %5419 = vmatpush.xpose.msra.mxu0 0.0
  %5420 = vmatpush.xpose.msra.mxu0 0.0
  %5421 = vmatpush.xpose.msra.mxu0 0.0
  %5422 = vmatpush.xpose.msra.mxu0 0.0
  %5423 = vmatpush.xpose.msra.mxu0 0.0
  %5424 = vmatpush.xpose.msra.mxu0 0.0
  %5425 = vmatpush.xpose.msra.mxu0 0.0
  %5426 = vmatpush.xpose.msra.mxu0 0.0
  %5427 = vmatpush.xpose.msra.mxu0 0.0
  %5428 = vmatpush.xpose.msra.mxu0 0.0
  %5429 = vmatpush.xpose.msra.mxu0 0.0
  %5430 = vmatpush.xpose.msra.mxu0 %v5413
  %5431 = vmatmul.f32.gmra.mxu0 %v5410
  %v5432 = vpop.f32.mrf.mxu0
  %v5433 = vadd.f32 0.0, %v5432
  %5434 = vdwg.mxu0
  %v5436 = vsel %vm328, %v5254, 0
  %v5439 = vsel %vm328, %v5093, 0
  %5441 = vmatpush.xpose.msra.mxu0 0.0
  %5442 = vmatpush.xpose.msra.mxu0 0.0
  %5443 = vmatpush.xpose.msra.mxu0 0.0
  %5444 = vmatpush.xpose.msra.mxu0 0.0
  %5445 = vmatpush.xpose.msra.mxu0 0.0
  %5446 = vmatpush.xpose.msra.mxu0 0.0
  %5447 = vmatpush.xpose.msra.mxu0 0.0
  %5448 = vmatpush.xpose.msra.mxu0 0.0
  %5449 = vmatpush.xpose.msra.mxu0 0.0
  %5450 = vmatpush.xpose.msra.mxu0 0.0
  %5451 = vmatpush.xpose.msra.mxu0 0.0
  %5452 = vmatpush.xpose.msra.mxu0 0.0
  %5453 = vmatpush.xpose.msra.mxu0 0.0
  %5454 = vmatpush.xpose.msra.mxu0 0.0
  %5455 = vmatpush.xpose.msra.mxu0 0.0
  %5456 = vmatpush.xpose.msra.mxu0 %v5439
  %5457 = vmatmul.f32.gmra.mxu0 %v5436
  %v5458 = vpop.f32.mrf.mxu0
  %v5459 = vadd.f32 0.0, %v5458
  %5460 = vdwg.mxu0
  %v5462 = vsel %vm328, %v5277, 0
  %v5465 = vsel %vm328, %v5094, 0
  %5467 = vmatpush.xpose.msra.mxu0 0.0
  %5468 = vmatpush.xpose.msra.mxu0 0.0
  %5469 = vmatpush.xpose.msra.mxu0 0.0
  %5470 = vmatpush.xpose.msra.mxu0 0.0
  %5471 = vmatpush.xpose.msra.mxu0 0.0
  %5472 = vmatpush.xpose.msra.mxu0 0.0
  %5473 = vmatpush.xpose.msra.mxu0 0.0
  %5474 = vmatpush.xpose.msra.mxu0 0.0
  %5475 = vmatpush.xpose.msra.mxu0 0.0
  %5476 = vmatpush.xpose.msra.mxu0 0.0
  %5477 = vmatpush.xpose.msra.mxu0 0.0
  %5478 = vmatpush.xpose.msra.mxu0 0.0
  %5479 = vmatpush.xpose.msra.mxu0 0.0
  %5480 = vmatpush.xpose.msra.mxu0 0.0
  %5481 = vmatpush.xpose.msra.mxu0 0.0
  %5482 = vmatpush.xpose.msra.mxu0 %v5465
  %5483 = vmatmul.f32.gmra.mxu0 %v5462
  %v5484 = vpop.f32.mrf.mxu0
  %v5485 = vadd.f32 0.0, %v5484
  %5486 = vdwg.mxu0
  %5487 = vst.msk [vmem:[#allocation3] sm:$0xff] %vm721, %v5303
  %5488 = vst.msk [vmem:[#allocation3 + $0x10] sm:$0xff] %vm721, %v5329
  %5489 = vst.msk [vmem:[#allocation3 + $0x20] sm:$0xff] %vm721, %v5355
  %5490 = vst.msk [vmem:[#allocation3 + $0x30] sm:$0xff] %vm721, %v5381
  %5491 = vst.msk [vmem:[#allocation3 + $0x40] sm:$0xff] %vm721, %v5407
  %5492 = vst.msk [vmem:[#allocation3 + $0x50] sm:$0xff] %vm721, %v5433
  %5493 = vst.msk [vmem:[#allocation3 + $0x60] sm:$0xff] %vm721, %v5459
  %5494 = vst.msk [vmem:[#allocation3 + $0x70] sm:$0xff] %vm721, %v5485
  %v5495 = vadd.f32 %v730, %v4919
  %v5496 = vadd.f32 %v730, %v4920
  %v5497 = vadd.f32 %v730, %v4921
  %v5498 = vadd.f32 %v730, %v4922
  %v5499 = vadd.f32 %v730, %v4923
  %v5500 = vadd.f32 %v730, %v4924
  %v5501 = vadd.f32 %v730, %v4925
  %v5502 = vadd.f32 %v730, %v4926
  %v5503 = vadd.f32 %v5495, 1.0
  %v5504 = vadd.f32 %v5496, 1.0
  %v5505 = vadd.f32 %v5497, 1.0
  %v5506 = vadd.f32 %v5498, 1.0
  %v5507 = vadd.f32 %v5499, 1.0
  %v5508 = vadd.f32 %v5500, 1.0
  %v5509 = vadd.f32 %v5501, 1.0
  %v5510 = vadd.f32 %v5502, 1.0
  %v5511 = vmul.f32 %v5503, 7.5
  %v5512 = vmul.f32 %v5504, 7.5
  %v5513 = vmul.f32 %v5505, 7.5
  %v5514 = vmul.f32 %v5506, 7.5
  %v5515 = vmul.f32 %v5507, 7.5
  %v5516 = vmul.f32 %v5508, 7.5
  %v5517 = vmul.f32 %v5509, 7.5
  %v5518 = vmul.f32 %v5510, 7.5
  %5520 = vset.pattern.permute.xlu0 1
  %5521 = vperm.xlu0 %5520, %v5511
  %v5522 = vpop.permute.xlu0 %5521
  %5525 = vset.pattern.permute.xlu0 1
  %5526 = vperm.xlu0 %5525, %v5512
  %v5527 = vpop.permute.xlu0 %5526
  %5530 = vset.pattern.permute.xlu0 1
  %5531 = vperm.xlu0 %5530, %v5513
  %v5532 = vpop.permute.xlu0 %5531
  %5535 = vset.pattern.permute.xlu0 1
  %5536 = vperm.xlu0 %5535, %v5514
  %v5537 = vpop.permute.xlu0 %5536
  %5540 = vset.pattern.permute.xlu0 1
  %5541 = vperm.xlu0 %5540, %v5515
  %v5542 = vpop.permute.xlu0 %5541
  %5545 = vset.pattern.permute.xlu0 1
  %5546 = vperm.xlu0 %5545, %v5516
  %v5547 = vpop.permute.xlu0 %5546
  %5550 = vset.pattern.permute.xlu0 1
  %5551 = vperm.xlu0 %5550, %v5517
  %v5552 = vpop.permute.xlu0 %5551
  %5555 = vset.pattern.permute.xlu0 1
  %5556 = vperm.xlu0 %5555, %v5518
  %v5557 = vpop.permute.xlu0 %5556
  %v5559 = vsub.f32 %v5522, %v134
  %v5560 = vsub.f32 %v5527, %v134
  %v5561 = vsub.f32 %v5532, %v134
  %v5562 = vsub.f32 %v5537, %v134
  %v5563 = vsub.f32 %v5542, %v134
  %v5564 = vsub.f32 %v5547, %v134
  %v5565 = vsub.f32 %v5552, %v134
  %v5566 = vsub.f32 %v5557, %v134
  %v5567 = vand.u32 2147483647, %v5559
  %v5568 = vand.u32 2147483647, %v5560
  %v5569 = vand.u32 2147483647, %v5561
  %v5570 = vand.u32 2147483647, %v5562
  %v5571 = vand.u32 2147483647, %v5563
  %v5572 = vand.u32 2147483647, %v5564
  %v5573 = vand.u32 2147483647, %v5565
  %v5574 = vand.u32 2147483647, %v5566
  %v5575 = vsub.f32 1.0, %v5567
  %v5576 = vsub.f32 1.0, %v5568
  %v5577 = vsub.f32 1.0, %v5569
  %v5578 = vsub.f32 1.0, %v5570
  %v5579 = vsub.f32 1.0, %v5571
  %v5580 = vsub.f32 1.0, %v5572
  %v5581 = vsub.f32 1.0, %v5573
  %v5582 = vsub.f32 1.0, %v5574
  %v5583 = vmax.f32 %v5575, 0.0
  %v5584 = vmax.f32 %v5576, 0.0
  %v5585 = vmax.f32 %v5577, 0.0
  %v5586 = vmax.f32 %v5578, 0.0
  %v5587 = vmax.f32 %v5579, 0.0
  %v5588 = vmax.f32 %v5580, 0.0
  %v5589 = vmax.f32 %v5581, 0.0
  %v5590 = vmax.f32 %v5582, 0.0
  %5591 = vset.pattern.permute.xlu0 0
  %5592 = vperm.xlu0 %5591, %v5511
  %v5593 = vpop.permute.xlu0 %5592
  %5595 = vset.pattern.permute.xlu0 0
  %5596 = vperm.xlu0 %5595, %v5512
  %v5597 = vpop.permute.xlu0 %5596
  %5599 = vset.pattern.permute.xlu0 0
  %5600 = vperm.xlu0 %5599, %v5513
  %v5601 = vpop.permute.xlu0 %5600
  %5603 = vset.pattern.permute.xlu0 0
  %5604 = vperm.xlu0 %5603, %v5514
  %v5605 = vpop.permute.xlu0 %5604
  %5607 = vset.pattern.permute.xlu0 0
  %5608 = vperm.xlu0 %5607, %v5515
  %v5609 = vpop.permute.xlu0 %5608
  %5611 = vset.pattern.permute.xlu0 0
  %5612 = vperm.xlu0 %5611, %v5516
  %v5613 = vpop.permute.xlu0 %5612
  %5615 = vset.pattern.permute.xlu0 0
  %5616 = vperm.xlu0 %5615, %v5517
  %v5617 = vpop.permute.xlu0 %5616
  %5619 = vset.pattern.permute.xlu0 0
  %5620 = vperm.xlu0 %5619, %v5518
  %v5621 = vpop.permute.xlu0 %5620
  %v5623 = vsub.f32 %v5593, %v134
  %v5624 = vsub.f32 %v5597, %v134
  %v5625 = vsub.f32 %v5601, %v134
  %v5626 = vsub.f32 %v5605, %v134
  %v5627 = vsub.f32 %v5609, %v134
  %v5628 = vsub.f32 %v5613, %v134
  %v5629 = vsub.f32 %v5617, %v134
  %v5630 = vsub.f32 %v5621, %v134
  %v5631 = vand.u32 2147483647, %v5623
  %v5632 = vand.u32 2147483647, %v5624
  %v5633 = vand.u32 2147483647, %v5625
  %v5634 = vand.u32 2147483647, %v5626
  %v5635 = vand.u32 2147483647, %v5627
  %v5636 = vand.u32 2147483647, %v5628
  %v5637 = vand.u32 2147483647, %v5629
  %v5638 = vand.u32 2147483647, %v5630
  %v5639 = vsub.f32 1.0, %v5631
  %v5640 = vsub.f32 1.0, %v5632
  %v5641 = vsub.f32 1.0, %v5633
  %v5642 = vsub.f32 1.0, %v5634
  %v5643 = vsub.f32 1.0, %v5635
  %v5644 = vsub.f32 1.0, %v5636
  %v5645 = vsub.f32 1.0, %v5637
  %v5646 = vsub.f32 1.0, %v5638
  %v5647 = vmax.f32 %v5639, 0.0
  %v5648 = vmax.f32 %v5640, 0.0
  %v5649 = vmax.f32 %v5641, 0.0
  %v5650 = vmax.f32 %v5642, 0.0
  %v5651 = vmax.f32 %v5643, 0.0
  %v5652 = vmax.f32 %v5644, 0.0
  %v5653 = vmax.f32 %v5645, 0.0
  %v5654 = vmax.f32 %v5646, 0.0
  %v5656 = vsel %vm328, %v5583, 0
  %5658 = vmatpush.msra.mxu0 0.0
  %5659 = vmatpush.msra.mxu0 0.0
  %5660 = vmatpush.msra.mxu0 0.0
  %5661 = vmatpush.msra.mxu0 0.0
  %5662 = vmatpush.msra.mxu0 0.0
  %5663 = vmatpush.msra.mxu0 0.0
  %5664 = vmatpush.msra.mxu0 0.0
  %5665 = vmatpush.msra.mxu0 0.0
  %5666 = vmatpush.msra.mxu0 0.0
  %5667 = vmatpush.msra.mxu0 0.0
  %5668 = vmatpush.msra.mxu0 0.0
  %5669 = vmatpush.msra.mxu0 0.0
  %5670 = vmatpush.msra.mxu0 0.0
  %5671 = vmatpush.msra.mxu0 0.0
  %5672 = vmatpush.msra.mxu0 %v53
  %5673 = vmatpush.msra.mxu0 %v52
  %5674 = vmatmul.f32.gmra.mxu0 %v5656
  %v5675 = vpop.f32.mrf.mxu0
  %v5676 = vadd.f32 0.0, %v5675
  %5677 = vdwg.mxu0
  %v5679 = vsel %vm328, %v5584, 0
  %5681 = vmatpush.msra.mxu0 0.0
  %5682 = vmatpush.msra.mxu0 0.0
  %5683 = vmatpush.msra.mxu0 0.0
  %5684 = vmatpush.msra.mxu0 0.0
  %5685 = vmatpush.msra.mxu0 0.0
  %5686 = vmatpush.msra.mxu0 0.0
  %5687 = vmatpush.msra.mxu0 0.0
  %5688 = vmatpush.msra.mxu0 0.0
  %5689 = vmatpush.msra.mxu0 0.0
  %5690 = vmatpush.msra.mxu0 0.0
  %5691 = vmatpush.msra.mxu0 0.0
  %5692 = vmatpush.msra.mxu0 0.0
  %5693 = vmatpush.msra.mxu0 0.0
  %5694 = vmatpush.msra.mxu0 0.0
  %5695 = vmatpush.msra.mxu0 %v55
  %5696 = vmatpush.msra.mxu0 %v54
  %5697 = vmatmul.f32.gmra.mxu0 %v5679
  %v5698 = vpop.f32.mrf.mxu0
  %v5699 = vadd.f32 0.0, %v5698
  %5700 = vdwg.mxu0
  %v5702 = vsel %vm328, %v5585, 0
  %5704 = vmatpush.msra.mxu0 0.0
  %5705 = vmatpush.msra.mxu0 0.0
  %5706 = vmatpush.msra.mxu0 0.0
  %5707 = vmatpush.msra.mxu0 0.0
  %5708 = vmatpush.msra.mxu0 0.0
  %5709 = vmatpush.msra.mxu0 0.0
  %5710 = vmatpush.msra.mxu0 0.0
  %5711 = vmatpush.msra.mxu0 0.0
  %5712 = vmatpush.msra.mxu0 0.0
  %5713 = vmatpush.msra.mxu0 0.0
  %5714 = vmatpush.msra.mxu0 0.0
  %5715 = vmatpush.msra.mxu0 0.0
  %5716 = vmatpush.msra.mxu0 0.0
  %5717 = vmatpush.msra.mxu0 0.0
  %5718 = vmatpush.msra.mxu0 %v57
  %5719 = vmatpush.msra.mxu0 %v56
  %5720 = vmatmul.f32.gmra.mxu0 %v5702
  %v5721 = vpop.f32.mrf.mxu0
  %v5722 = vadd.f32 0.0, %v5721
  %5723 = vdwg.mxu0
  %v5725 = vsel %vm328, %v5586, 0
  %5727 = vmatpush.msra.mxu0 0.0
  %5728 = vmatpush.msra.mxu0 0.0
  %5729 = vmatpush.msra.mxu0 0.0
  %5730 = vmatpush.msra.mxu0 0.0
  %5731 = vmatpush.msra.mxu0 0.0
  %5732 = vmatpush.msra.mxu0 0.0
  %5733 = vmatpush.msra.mxu0 0.0
  %5734 = vmatpush.msra.mxu0 0.0
  %5735 = vmatpush.msra.mxu0 0.0
  %5736 = vmatpush.msra.mxu0 0.0
  %5737 = vmatpush.msra.mxu0 0.0
  %5738 = vmatpush.msra.mxu0 0.0
  %5739 = vmatpush.msra.mxu0 0.0
  %5740 = vmatpush.msra.mxu0 0.0
  %5741 = vmatpush.msra.mxu0 %v59
  %5742 = vmatpush.msra.mxu0 %v58
  %5743 = vmatmul.f32.gmra.mxu0 %v5725
  %v5744 = vpop.f32.mrf.mxu0
  %v5745 = vadd.f32 0.0, %v5744
  %5746 = vdwg.mxu0
  %v5748 = vsel %vm328, %v5587, 0
  %5750 = vmatpush.msra.mxu0 0.0
  %5751 = vmatpush.msra.mxu0 0.0
  %5752 = vmatpush.msra.mxu0 0.0
  %5753 = vmatpush.msra.mxu0 0.0
  %5754 = vmatpush.msra.mxu0 0.0
  %5755 = vmatpush.msra.mxu0 0.0
  %5756 = vmatpush.msra.mxu0 0.0
  %5757 = vmatpush.msra.mxu0 0.0
  %5758 = vmatpush.msra.mxu0 0.0
  %5759 = vmatpush.msra.mxu0 0.0
  %5760 = vmatpush.msra.mxu0 0.0
  %5761 = vmatpush.msra.mxu0 0.0
  %5762 = vmatpush.msra.mxu0 0.0
  %5763 = vmatpush.msra.mxu0 0.0
  %5764 = vmatpush.msra.mxu0 %v61
  %5765 = vmatpush.msra.mxu0 %v60
  %5766 = vmatmul.f32.gmra.mxu0 %v5748
  %v5767 = vpop.f32.mrf.mxu0
  %v5768 = vadd.f32 0.0, %v5767
  %5769 = vdwg.mxu0
  %v5771 = vsel %vm328, %v5588, 0
  %5773 = vmatpush.msra.mxu0 0.0
  %5774 = vmatpush.msra.mxu0 0.0
  %5775 = vmatpush.msra.mxu0 0.0
  %5776 = vmatpush.msra.mxu0 0.0
  %5777 = vmatpush.msra.mxu0 0.0
  %5778 = vmatpush.msra.mxu0 0.0
  %5779 = vmatpush.msra.mxu0 0.0
  %5780 = vmatpush.msra.mxu0 0.0
  %5781 = vmatpush.msra.mxu0 0.0
  %5782 = vmatpush.msra.mxu0 0.0
  %5783 = vmatpush.msra.mxu0 0.0
  %5784 = vmatpush.msra.mxu0 0.0
  %5785 = vmatpush.msra.mxu0 0.0
  %5786 = vmatpush.msra.mxu0 0.0
  %5787 = vmatpush.msra.mxu0 %v63
  %5788 = vmatpush.msra.mxu0 %v62
  %5789 = vmatmul.f32.gmra.mxu0 %v5771
  %v5790 = vpop.f32.mrf.mxu0
  %v5791 = vadd.f32 0.0, %v5790
  %5792 = vdwg.mxu0
  %v5794 = vsel %vm328, %v5589, 0
  %5796 = vmatpush.msra.mxu0 0.0
  %5797 = vmatpush.msra.mxu0 0.0
  %5798 = vmatpush.msra.mxu0 0.0
  %5799 = vmatpush.msra.mxu0 0.0
  %5800 = vmatpush.msra.mxu0 0.0
  %5801 = vmatpush.msra.mxu0 0.0
  %5802 = vmatpush.msra.mxu0 0.0
  %5803 = vmatpush.msra.mxu0 0.0
  %5804 = vmatpush.msra.mxu0 0.0
  %5805 = vmatpush.msra.mxu0 0.0
  %5806 = vmatpush.msra.mxu0 0.0
  %5807 = vmatpush.msra.mxu0 0.0
  %5808 = vmatpush.msra.mxu0 0.0
  %5809 = vmatpush.msra.mxu0 0.0
  %5810 = vmatpush.msra.mxu0 %v65
  %5811 = vmatpush.msra.mxu0 %v64
  %5812 = vmatmul.f32.gmra.mxu0 %v5794
  %v5813 = vpop.f32.mrf.mxu0
  %v5814 = vadd.f32 0.0, %v5813
  %5815 = vdwg.mxu0
  %v5817 = vsel %vm328, %v5590, 0
  %5819 = vmatpush.msra.mxu0 0.0
  %5820 = vmatpush.msra.mxu0 0.0
  %5821 = vmatpush.msra.mxu0 0.0
  %5822 = vmatpush.msra.mxu0 0.0
  %5823 = vmatpush.msra.mxu0 0.0
  %5824 = vmatpush.msra.mxu0 0.0
  %5825 = vmatpush.msra.mxu0 0.0
  %5826 = vmatpush.msra.mxu0 0.0
  %5827 = vmatpush.msra.mxu0 0.0
  %5828 = vmatpush.msra.mxu0 0.0
  %5829 = vmatpush.msra.mxu0 0.0
  %5830 = vmatpush.msra.mxu0 0.0
  %5831 = vmatpush.msra.mxu0 0.0
  %5832 = vmatpush.msra.mxu0 0.0
  %5833 = vmatpush.msra.mxu0 %v67
  %5834 = vmatpush.msra.mxu0 %v66
  %5835 = vmatmul.f32.gmra.mxu0 %v5817
  %v5836 = vpop.f32.mrf.mxu0
  %v5837 = vadd.f32 0.0, %v5836
  %5838 = vdwg.mxu0
  %v5840 = vsel %vm328, %v5676, 0
  %v5843 = vsel %vm328, %v5647, 0
  %5845 = vmatpush.xpose.msra.mxu0 0.0
  %5846 = vmatpush.xpose.msra.mxu0 0.0
  %5847 = vmatpush.xpose.msra.mxu0 0.0
  %5848 = vmatpush.xpose.msra.mxu0 0.0
  %5849 = vmatpush.xpose.msra.mxu0 0.0
  %5850 = vmatpush.xpose.msra.mxu0 0.0
  %5851 = vmatpush.xpose.msra.mxu0 0.0
  %5852 = vmatpush.xpose.msra.mxu0 0.0
  %5853 = vmatpush.xpose.msra.mxu0 0.0
  %5854 = vmatpush.xpose.msra.mxu0 0.0
  %5855 = vmatpush.xpose.msra.mxu0 0.0
  %5856 = vmatpush.xpose.msra.mxu0 0.0
  %5857 = vmatpush.xpose.msra.mxu0 0.0
  %5858 = vmatpush.xpose.msra.mxu0 0.0
  %5859 = vmatpush.xpose.msra.mxu0 0.0
  %5860 = vmatpush.xpose.msra.mxu0 %v5843
  %5861 = vmatmul.f32.gmra.mxu0 %v5840
  %v5862 = vpop.f32.mrf.mxu0
  %v5863 = vadd.f32 0.0, %v5862
  %5864 = vdwg.mxu0
  %v5866 = vsel %vm328, %v5699, 0
  %v5869 = vsel %vm328, %v5648, 0
  %5871 = vmatpush.xpose.msra.mxu0 0.0
  %5872 = vmatpush.xpose.msra.mxu0 0.0
  %5873 = vmatpush.xpose.msra.mxu0 0.0
  %5874 = vmatpush.xpose.msra.mxu0 0.0
  %5875 = vmatpush.xpose.msra.mxu0 0.0
  %5876 = vmatpush.xpose.msra.mxu0 0.0
  %5877 = vmatpush.xpose.msra.mxu0 0.0
  %5878 = vmatpush.xpose.msra.mxu0 0.0
  %5879 = vmatpush.xpose.msra.mxu0 0.0
  %5880 = vmatpush.xpose.msra.mxu0 0.0
  %5881 = vmatpush.xpose.msra.mxu0 0.0
  %5882 = vmatpush.xpose.msra.mxu0 0.0
  %5883 = vmatpush.xpose.msra.mxu0 0.0
  %5884 = vmatpush.xpose.msra.mxu0 0.0
  %5885 = vmatpush.xpose.msra.mxu0 0.0
  %5886 = vmatpush.xpose.msra.mxu0 %v5869
  %5887 = vmatmul.f32.gmra.mxu0 %v5866
  %v5888 = vpop.f32.mrf.mxu0
  %v5889 = vadd.f32 0.0, %v5888
  %5890 = vdwg.mxu0
  %v5892 = vsel %vm328, %v5722, 0
  %v5895 = vsel %vm328, %v5649, 0
  %5897 = vmatpush.xpose.msra.mxu0 0.0
  %5898 = vmatpush.xpose.msra.mxu0 0.0
  %5899 = vmatpush.xpose.msra.mxu0 0.0
  %5900 = vmatpush.xpose.msra.mxu0 0.0
  %5901 = vmatpush.xpose.msra.mxu0 0.0
  %5902 = vmatpush.xpose.msra.mxu0 0.0
  %5903 = vmatpush.xpose.msra.mxu0 0.0
  %5904 = vmatpush.xpose.msra.mxu0 0.0
  %5905 = vmatpush.xpose.msra.mxu0 0.0
  %5906 = vmatpush.xpose.msra.mxu0 0.0
  %5907 = vmatpush.xpose.msra.mxu0 0.0
  %5908 = vmatpush.xpose.msra.mxu0 0.0
  %5909 = vmatpush.xpose.msra.mxu0 0.0
  %5910 = vmatpush.xpose.msra.mxu0 0.0
  %5911 = vmatpush.xpose.msra.mxu0 0.0
  %5912 = vmatpush.xpose.msra.mxu0 %v5895
  %5913 = vmatmul.f32.gmra.mxu0 %v5892
  %v5914 = vpop.f32.mrf.mxu0
  %v5915 = vadd.f32 0.0, %v5914
  %5916 = vdwg.mxu0
  %v5918 = vsel %vm328, %v5745, 0
  %v5921 = vsel %vm328, %v5650, 0
  %5923 = vmatpush.xpose.msra.mxu0 0.0
  %5924 = vmatpush.xpose.msra.mxu0 0.0
  %5925 = vmatpush.xpose.msra.mxu0 0.0
  %5926 = vmatpush.xpose.msra.mxu0 0.0
  %5927 = vmatpush.xpose.msra.mxu0 0.0
  %5928 = vmatpush.xpose.msra.mxu0 0.0
  %5929 = vmatpush.xpose.msra.mxu0 0.0
  %5930 = vmatpush.xpose.msra.mxu0 0.0
  %5931 = vmatpush.xpose.msra.mxu0 0.0
  %5932 = vmatpush.xpose.msra.mxu0 0.0
  %5933 = vmatpush.xpose.msra.mxu0 0.0
  %5934 = vmatpush.xpose.msra.mxu0 0.0
  %5935 = vmatpush.xpose.msra.mxu0 0.0
  %5936 = vmatpush.xpose.msra.mxu0 0.0
  %5937 = vmatpush.xpose.msra.mxu0 0.0
  %5938 = vmatpush.xpose.msra.mxu0 %v5921
  %5939 = vmatmul.f32.gmra.mxu0 %v5918
  %v5940 = vpop.f32.mrf.mxu0
  %v5941 = vadd.f32 0.0, %v5940
  %5942 = vdwg.mxu0
  %v5944 = vsel %vm328, %v5768, 0
  %v5947 = vsel %vm328, %v5651, 0
  %5949 = vmatpush.xpose.msra.mxu0 0.0
  %5950 = vmatpush.xpose.msra.mxu0 0.0
  %5951 = vmatpush.xpose.msra.mxu0 0.0
  %5952 = vmatpush.xpose.msra.mxu0 0.0
  %5953 = vmatpush.xpose.msra.mxu0 0.0
  %5954 = vmatpush.xpose.msra.mxu0 0.0
  %5955 = vmatpush.xpose.msra.mxu0 0.0
  %5956 = vmatpush.xpose.msra.mxu0 0.0
  %5957 = vmatpush.xpose.msra.mxu0 0.0
  %5958 = vmatpush.xpose.msra.mxu0 0.0
  %5959 = vmatpush.xpose.msra.mxu0 0.0
  %5960 = vmatpush.xpose.msra.mxu0 0.0
  %5961 = vmatpush.xpose.msra.mxu0 0.0
  %5962 = vmatpush.xpose.msra.mxu0 0.0
  %5963 = vmatpush.xpose.msra.mxu0 0.0
  %5964 = vmatpush.xpose.msra.mxu0 %v5947
  %5965 = vmatmul.f32.gmra.mxu0 %v5944
  %v5966 = vpop.f32.mrf.mxu0
  %v5967 = vadd.f32 0.0, %v5966
  %5968 = vdwg.mxu0
  %v5970 = vsel %vm328, %v5791, 0
  %v5973 = vsel %vm328, %v5652, 0
  %5975 = vmatpush.xpose.msra.mxu0 0.0
  %5976 = vmatpush.xpose.msra.mxu0 0.0
  %5977 = vmatpush.xpose.msra.mxu0 0.0
  %5978 = vmatpush.xpose.msra.mxu0 0.0
  %5979 = vmatpush.xpose.msra.mxu0 0.0
  %5980 = vmatpush.xpose.msra.mxu0 0.0
  %5981 = vmatpush.xpose.msra.mxu0 0.0
  %5982 = vmatpush.xpose.msra.mxu0 0.0
  %5983 = vmatpush.xpose.msra.mxu0 0.0
  %5984 = vmatpush.xpose.msra.mxu0 0.0
  %5985 = vmatpush.xpose.msra.mxu0 0.0
  %5986 = vmatpush.xpose.msra.mxu0 0.0
  %5987 = vmatpush.xpose.msra.mxu0 0.0
  %5988 = vmatpush.xpose.msra.mxu0 0.0
  %5989 = vmatpush.xpose.msra.mxu0 0.0
  %5990 = vmatpush.xpose.msra.mxu0 %v5973
  %5991 = vmatmul.f32.gmra.mxu0 %v5970
  %v5992 = vpop.f32.mrf.mxu0
  %v5993 = vadd.f32 0.0, %v5992
  %5994 = vdwg.mxu0
  %v5996 = vsel %vm328, %v5814, 0
  %v5999 = vsel %vm328, %v5653, 0
  %6001 = vmatpush.xpose.msra.mxu0 0.0
  %6002 = vmatpush.xpose.msra.mxu0 0.0
  %6003 = vmatpush.xpose.msra.mxu0 0.0
  %6004 = vmatpush.xpose.msra.mxu0 0.0
  %6005 = vmatpush.xpose.msra.mxu0 0.0
  %6006 = vmatpush.xpose.msra.mxu0 0.0
  %6007 = vmatpush.xpose.msra.mxu0 0.0
  %6008 = vmatpush.xpose.msra.mxu0 0.0
  %6009 = vmatpush.xpose.msra.mxu0 0.0
  %6010 = vmatpush.xpose.msra.mxu0 0.0
  %6011 = vmatpush.xpose.msra.mxu0 0.0
  %6012 = vmatpush.xpose.msra.mxu0 0.0
  %6013 = vmatpush.xpose.msra.mxu0 0.0
  %6014 = vmatpush.xpose.msra.mxu0 0.0
  %6015 = vmatpush.xpose.msra.mxu0 0.0
  %6016 = vmatpush.xpose.msra.mxu0 %v5999
  %6017 = vmatmul.f32.gmra.mxu0 %v5996
  %v6018 = vpop.f32.mrf.mxu0
  %v6019 = vadd.f32 0.0, %v6018
  %6020 = vdwg.mxu0
  %v6022 = vsel %vm328, %v5837, 0
  %v6025 = vsel %vm328, %v5654, 0
  %6027 = vmatpush.xpose.msra.mxu0 0.0
  %6028 = vmatpush.xpose.msra.mxu0 0.0
  %6029 = vmatpush.xpose.msra.mxu0 0.0
  %6030 = vmatpush.xpose.msra.mxu0 0.0
  %6031 = vmatpush.xpose.msra.mxu0 0.0
  %6032 = vmatpush.xpose.msra.mxu0 0.0
  %6033 = vmatpush.xpose.msra.mxu0 0.0
  %6034 = vmatpush.xpose.msra.mxu0 0.0
  %6035 = vmatpush.xpose.msra.mxu0 0.0
  %6036 = vmatpush.xpose.msra.mxu0 0.0
  %6037 = vmatpush.xpose.msra.mxu0 0.0
  %6038 = vmatpush.xpose.msra.mxu0 0.0
  %6039 = vmatpush.xpose.msra.mxu0 0.0
  %6040 = vmatpush.xpose.msra.mxu0 0.0
  %6041 = vmatpush.xpose.msra.mxu0 0.0
  %6042 = vmatpush.xpose.msra.mxu0 %v6025
  %6043 = vmatmul.f32.gmra.mxu0 %v6022
  %v6044 = vpop.f32.mrf.mxu0
  %v6045 = vadd.f32 0.0, %v6044
  %6046 = vdwg.mxu0
  %6047 = vst.msk [vmem:[#allocation3 + $0x8] sm:$0xff] %vm721, %v5863
  %6048 = vst.msk [vmem:[#allocation3 + $0x18] sm:$0xff] %vm721, %v5889
  %6049 = vst.msk [vmem:[#allocation3 + $0x28] sm:$0xff] %vm721, %v5915
  %6050 = vst.msk [vmem:[#allocation3 + $0x38] sm:$0xff] %vm721, %v5941
  %6051 = vst.msk [vmem:[#allocation3 + $0x48] sm:$0xff] %vm721, %v5967
  %6052 = vst.msk [vmem:[#allocation3 + $0x58] sm:$0xff] %vm721, %v5993
  %6053 = vst.msk [vmem:[#allocation3 + $0x68] sm:$0xff] %vm721, %v6019
  %6054 = vst.msk [vmem:[#allocation3 + $0x78] sm:$0xff] %vm721, %v6045
  %v6055 = vld [vmem:[#allocation3] sm:$0x1]
  %v6056 = vld [vmem:[#allocation3 + $0x10] sm:$0x1]
  %v6057 = vld [vmem:[#allocation3 + $0x20] sm:$0x1]
  %v6058 = vld [vmem:[#allocation3 + $0x30] sm:$0x1]
  %v6059 = vld [vmem:[#allocation3 + $0x40] sm:$0x1]
  %v6060 = vld [vmem:[#allocation3 + $0x50] sm:$0x1]
  %v6061 = vld [vmem:[#allocation3 + $0x60] sm:$0x1]
  %v6062 = vld [vmem:[#allocation3 + $0x70] sm:$0x1]
  %v6063 = vld [vmem:[#allocation3 + $0x1] sm:$0x1]
  %v6064 = vld [vmem:[#allocation3 + $0x11] sm:$0x1]
  %v6065 = vld [vmem:[#allocation3 + $0x21] sm:$0x1]
  %v6066 = vld [vmem:[#allocation3 + $0x31] sm:$0x1]
  %v6067 = vld [vmem:[#allocation3 + $0x41] sm:$0x1]
  %v6068 = vld [vmem:[#allocation3 + $0x51] sm:$0x1]
  %v6069 = vld [vmem:[#allocation3 + $0x61] sm:$0x1]
  %v6070 = vld [vmem:[#allocation3 + $0x71] sm:$0x1]
  %v6079 = vrot.slane %v6064, 7
  %v6080 = vsel %vm1316, %v6079, %v6063
  %v6081 = vrot.slane %v6065, 6
  %v6082 = vsel %vm1319, %v6081, %v6080
  %v6083 = vrot.slane %v6066, 5
  %v6084 = vsel %vm1322, %v6083, %v6082
  %v6085 = vrot.slane %v6067, 4
  %v6086 = vsel %vm1325, %v6085, %v6084
  %v6087 = vrot.slane %v6068, 3
  %v6088 = vsel %vm1328, %v6087, %v6086
  %v6089 = vrot.slane %v6069, 2
  %v6090 = vsel %vm1331, %v6089, %v6088
  %v6091 = vrot.slane %v6070, 1
  %v6092 = vsel %vm1334, %v6091, %v6090
  %v6093 = vsel %vm721, %v6092, 0
  %6095 = vmatpush.msra.mxu0 0.0
  %6096 = vmatpush.msra.mxu0 0.0
  %6097 = vmatpush.msra.mxu0 0.0
  %6098 = vmatpush.msra.mxu0 0.0
  %6099 = vmatpush.msra.mxu0 0.0
  %6100 = vmatpush.msra.mxu0 0.0
  %6101 = vmatpush.msra.mxu0 0.0
  %6102 = vmatpush.msra.mxu0 0.0
  %6103 = vmatpush.msra.mxu0 0.0
  %6104 = vmatpush.msra.mxu0 0.0
  %6105 = vmatpush.msra.mxu0 0.0
  %6106 = vmatpush.msra.mxu0 0.0
  %6107 = vmatpush.msra.mxu0 0.0
  %6108 = vmatpush.msra.mxu0 0.0
  %6109 = vmatpush.msra.mxu0 0.0
  %6110 = vmatpush.msra.mxu0 %v69
  %6111 = vmatmul.f32.gmra.mxu0 %v6093
  %v6112 = vpop.f32.mrf.mxu0
  %v6113 = vadd.f32 0.0, %v6112
  %6114 = vdwg.mxu0
  %v6123 = vrot.slane %v6056, 7
  %v6124 = vsel %vm1316, %v6123, %v6055
  %v6125 = vrot.slane %v6057, 6
  %v6126 = vsel %vm1319, %v6125, %v6124
  %v6127 = vrot.slane %v6058, 5
  %v6128 = vsel %vm1322, %v6127, %v6126
  %v6129 = vrot.slane %v6059, 4
  %v6130 = vsel %vm1325, %v6129, %v6128
  %v6131 = vrot.slane %v6060, 3
  %v6132 = vsel %vm1328, %v6131, %v6130
  %v6133 = vrot.slane %v6061, 2
  %v6134 = vsel %vm1331, %v6133, %v6132
  %v6135 = vrot.slane %v6062, 1
  %v6136 = vsel %vm1334, %v6135, %v6134
  %v6137 = vsel %vm721, %v6136, 0
  %6139 = vmatpush.msra.mxu0 0.0
  %6140 = vmatpush.msra.mxu0 0.0
  %6141 = vmatpush.msra.mxu0 0.0
  %6142 = vmatpush.msra.mxu0 0.0
  %6143 = vmatpush.msra.mxu0 0.0
  %6144 = vmatpush.msra.mxu0 0.0
  %6145 = vmatpush.msra.mxu0 0.0
  %6146 = vmatpush.msra.mxu0 0.0
  %6147 = vmatpush.msra.mxu0 0.0
  %6148 = vmatpush.msra.mxu0 0.0
  %6149 = vmatpush.msra.mxu0 0.0
  %6150 = vmatpush.msra.mxu0 0.0
  %6151 = vmatpush.msra.mxu0 0.0
  %6152 = vmatpush.msra.mxu0 0.0
  %6153 = vmatpush.msra.mxu0 0.0
  %6154 = vmatpush.msra.mxu0 %v68
  %6155 = vmatmul.f32.gmra.mxu0 %v6137
  %v6156 = vpop.f32.mrf.mxu0
  %v6157 = vadd.f32 %v6113, %v6156
  %6158 = vdwg.mxu0
  %v6159 = vld [vmem:[#allocation3 + $0x2] sm:$0x1]
  %v6160 = vld [vmem:[#allocation3 + $0x12] sm:$0x1]
  %v6161 = vld [vmem:[#allocation3 + $0x22] sm:$0x1]
  %v6162 = vld [vmem:[#allocation3 + $0x32] sm:$0x1]
  %v6163 = vld [vmem:[#allocation3 + $0x42] sm:$0x1]
  %v6164 = vld [vmem:[#allocation3 + $0x52] sm:$0x1]
  %v6165 = vld [vmem:[#allocation3 + $0x62] sm:$0x1]
  %v6166 = vld [vmem:[#allocation3 + $0x72] sm:$0x1]
  %v6175 = vrot.slane %v6160, 7
  %v6176 = vsel %vm1316, %v6175, %v6159
  %v6177 = vrot.slane %v6161, 6
  %v6178 = vsel %vm1319, %v6177, %v6176
  %v6179 = vrot.slane %v6162, 5
  %v6180 = vsel %vm1322, %v6179, %v6178
  %v6181 = vrot.slane %v6163, 4
  %v6182 = vsel %vm1325, %v6181, %v6180
  %v6183 = vrot.slane %v6164, 3
  %v6184 = vsel %vm1328, %v6183, %v6182
  %v6185 = vrot.slane %v6165, 2
  %v6186 = vsel %vm1331, %v6185, %v6184
  %v6187 = vrot.slane %v6166, 1
  %v6188 = vsel %vm1334, %v6187, %v6186
  %v6189 = vsel %vm721, %v6188, 0
  %6191 = vmatpush.msra.mxu0 0.0
  %6192 = vmatpush.msra.mxu0 0.0
  %6193 = vmatpush.msra.mxu0 0.0
  %6194 = vmatpush.msra.mxu0 0.0
  %6195 = vmatpush.msra.mxu0 0.0
  %6196 = vmatpush.msra.mxu0 0.0
  %6197 = vmatpush.msra.mxu0 0.0
  %6198 = vmatpush.msra.mxu0 0.0
  %6199 = vmatpush.msra.mxu0 0.0
  %6200 = vmatpush.msra.mxu0 0.0
  %6201 = vmatpush.msra.mxu0 0.0
  %6202 = vmatpush.msra.mxu0 0.0
  %6203 = vmatpush.msra.mxu0 0.0
  %6204 = vmatpush.msra.mxu0 0.0
  %6205 = vmatpush.msra.mxu0 0.0
  %6206 = vmatpush.msra.mxu0 %v70
  %6207 = vmatmul.f32.gmra.mxu0 %v6189
  %v6208 = vpop.f32.mrf.mxu0
  %v6209 = vadd.f32 0.0, %v6208
  %6210 = vdwg.mxu0
  %v6211 = vadd.f32 %v6157, %v6209
  %v6212 = vld [vmem:[#allocation3 + $0x3] sm:$0x1]
  %v6213 = vld [vmem:[#allocation3 + $0x13] sm:$0x1]
  %v6214 = vld [vmem:[#allocation3 + $0x23] sm:$0x1]
  %v6215 = vld [vmem:[#allocation3 + $0x33] sm:$0x1]
  %v6216 = vld [vmem:[#allocation3 + $0x43] sm:$0x1]
  %v6217 = vld [vmem:[#allocation3 + $0x53] sm:$0x1]
  %v6218 = vld [vmem:[#allocation3 + $0x63] sm:$0x1]
  %v6219 = vld [vmem:[#allocation3 + $0x73] sm:$0x1]
  %v6228 = vrot.slane %v6213, 7
  %v6229 = vsel %vm1316, %v6228, %v6212
  %v6230 = vrot.slane %v6214, 6
  %v6231 = vsel %vm1319, %v6230, %v6229
  %v6232 = vrot.slane %v6215, 5
  %v6233 = vsel %vm1322, %v6232, %v6231
  %v6234 = vrot.slane %v6216, 4
  %v6235 = vsel %vm1325, %v6234, %v6233
  %v6236 = vrot.slane %v6217, 3
  %v6237 = vsel %vm1328, %v6236, %v6235
  %v6238 = vrot.slane %v6218, 2
  %v6239 = vsel %vm1331, %v6238, %v6237
  %v6240 = vrot.slane %v6219, 1
  %v6241 = vsel %vm1334, %v6240, %v6239
  %v6242 = vsel %vm721, %v6241, 0
  %6244 = vmatpush.msra.mxu0 0.0
  %6245 = vmatpush.msra.mxu0 0.0
  %6246 = vmatpush.msra.mxu0 0.0
  %6247 = vmatpush.msra.mxu0 0.0
  %6248 = vmatpush.msra.mxu0 0.0
  %6249 = vmatpush.msra.mxu0 0.0
  %6250 = vmatpush.msra.mxu0 0.0
  %6251 = vmatpush.msra.mxu0 0.0
  %6252 = vmatpush.msra.mxu0 0.0
  %6253 = vmatpush.msra.mxu0 0.0
  %6254 = vmatpush.msra.mxu0 0.0
  %6255 = vmatpush.msra.mxu0 0.0
  %6256 = vmatpush.msra.mxu0 0.0
  %6257 = vmatpush.msra.mxu0 0.0
  %6258 = vmatpush.msra.mxu0 0.0
  %6259 = vmatpush.msra.mxu0 %v71
  %6260 = vmatmul.f32.gmra.mxu0 %v6242
  %v6261 = vpop.f32.mrf.mxu0
  %v6262 = vadd.f32 0.0, %v6261
  %6263 = vdwg.mxu0
  %v6264 = vadd.f32 %v6211, %v6262
  %v6265 = vld [vmem:[#allocation3 + $0x4] sm:$0x1]
  %v6266 = vld [vmem:[#allocation3 + $0x14] sm:$0x1]
  %v6267 = vld [vmem:[#allocation3 + $0x24] sm:$0x1]
  %v6268 = vld [vmem:[#allocation3 + $0x34] sm:$0x1]
  %v6269 = vld [vmem:[#allocation3 + $0x44] sm:$0x1]
  %v6270 = vld [vmem:[#allocation3 + $0x54] sm:$0x1]
  %v6271 = vld [vmem:[#allocation3 + $0x64] sm:$0x1]
  %v6272 = vld [vmem:[#allocation3 + $0x74] sm:$0x1]
  %v6281 = vrot.slane %v6266, 7
  %v6282 = vsel %vm1316, %v6281, %v6265
  %v6283 = vrot.slane %v6267, 6
  %v6284 = vsel %vm1319, %v6283, %v6282
  %v6285 = vrot.slane %v6268, 5
  %v6286 = vsel %vm1322, %v6285, %v6284
  %v6287 = vrot.slane %v6269, 4
  %v6288 = vsel %vm1325, %v6287, %v6286
  %v6289 = vrot.slane %v6270, 3
  %v6290 = vsel %vm1328, %v6289, %v6288
  %v6291 = vrot.slane %v6271, 2
  %v6292 = vsel %vm1331, %v6291, %v6290
  %v6293 = vrot.slane %v6272, 1
  %v6294 = vsel %vm1334, %v6293, %v6292
  %v6295 = vsel %vm721, %v6294, 0
  %6297 = vmatpush.msra.mxu0 0.0
  %6298 = vmatpush.msra.mxu0 0.0
  %6299 = vmatpush.msra.mxu0 0.0
  %6300 = vmatpush.msra.mxu0 0.0
  %6301 = vmatpush.msra.mxu0 0.0
  %6302 = vmatpush.msra.mxu0 0.0
  %6303 = vmatpush.msra.mxu0 0.0
  %6304 = vmatpush.msra.mxu0 0.0
  %6305 = vmatpush.msra.mxu0 0.0
  %6306 = vmatpush.msra.mxu0 0.0
  %6307 = vmatpush.msra.mxu0 0.0
  %6308 = vmatpush.msra.mxu0 0.0
  %6309 = vmatpush.msra.mxu0 0.0
  %6310 = vmatpush.msra.mxu0 0.0
  %6311 = vmatpush.msra.mxu0 0.0
  %6312 = vmatpush.msra.mxu0 %v72
  %6313 = vmatmul.f32.gmra.mxu0 %v6295
  %v6314 = vpop.f32.mrf.mxu0
  %v6315 = vadd.f32 0.0, %v6314
  %6316 = vdwg.mxu0
  %v6317 = vadd.f32 %v6264, %v6315
  %v6318 = vld [vmem:[#allocation3 + $0x5] sm:$0x1]
  %v6319 = vld [vmem:[#allocation3 + $0x15] sm:$0x1]
  %v6320 = vld [vmem:[#allocation3 + $0x25] sm:$0x1]
  %v6321 = vld [vmem:[#allocation3 + $0x35] sm:$0x1]
  %v6322 = vld [vmem:[#allocation3 + $0x45] sm:$0x1]
  %v6323 = vld [vmem:[#allocation3 + $0x55] sm:$0x1]
  %v6324 = vld [vmem:[#allocation3 + $0x65] sm:$0x1]
  %v6325 = vld [vmem:[#allocation3 + $0x75] sm:$0x1]
  %v6334 = vrot.slane %v6319, 7
  %v6335 = vsel %vm1316, %v6334, %v6318
  %v6336 = vrot.slane %v6320, 6
  %v6337 = vsel %vm1319, %v6336, %v6335
  %v6338 = vrot.slane %v6321, 5
  %v6339 = vsel %vm1322, %v6338, %v6337
  %v6340 = vrot.slane %v6322, 4
  %v6341 = vsel %vm1325, %v6340, %v6339
  %v6342 = vrot.slane %v6323, 3
  %v6343 = vsel %vm1328, %v6342, %v6341
  %v6344 = vrot.slane %v6324, 2
  %v6345 = vsel %vm1331, %v6344, %v6343
  %v6346 = vrot.slane %v6325, 1
  %v6347 = vsel %vm1334, %v6346, %v6345
  %v6348 = vsel %vm721, %v6347, 0
  %6350 = vmatpush.msra.mxu0 0.0
  %6351 = vmatpush.msra.mxu0 0.0
  %6352 = vmatpush.msra.mxu0 0.0
  %6353 = vmatpush.msra.mxu0 0.0
  %6354 = vmatpush.msra.mxu0 0.0
  %6355 = vmatpush.msra.mxu0 0.0
  %6356 = vmatpush.msra.mxu0 0.0
  %6357 = vmatpush.msra.mxu0 0.0
  %6358 = vmatpush.msra.mxu0 0.0
  %6359 = vmatpush.msra.mxu0 0.0
  %6360 = vmatpush.msra.mxu0 0.0
  %6361 = vmatpush.msra.mxu0 0.0
  %6362 = vmatpush.msra.mxu0 0.0
  %6363 = vmatpush.msra.mxu0 0.0
  %6364 = vmatpush.msra.mxu0 0.0
  %6365 = vmatpush.msra.mxu0 %v73
  %6366 = vmatmul.f32.gmra.mxu0 %v6348
  %v6367 = vpop.f32.mrf.mxu0
  %v6368 = vadd.f32 0.0, %v6367
  %6369 = vdwg.mxu0
  %v6370 = vadd.f32 %v6317, %v6368
  %v6371 = vld [vmem:[#allocation3 + $0x6] sm:$0x1]
  %v6372 = vld [vmem:[#allocation3 + $0x16] sm:$0x1]
  %v6373 = vld [vmem:[#allocation3 + $0x26] sm:$0x1]
  %v6374 = vld [vmem:[#allocation3 + $0x36] sm:$0x1]
  %v6375 = vld [vmem:[#allocation3 + $0x46] sm:$0x1]
  %v6376 = vld [vmem:[#allocation3 + $0x56] sm:$0x1]
  %v6377 = vld [vmem:[#allocation3 + $0x66] sm:$0x1]
  %v6378 = vld [vmem:[#allocation3 + $0x76] sm:$0x1]
  %v6387 = vrot.slane %v6372, 7
  %v6388 = vsel %vm1316, %v6387, %v6371
  %v6389 = vrot.slane %v6373, 6
  %v6390 = vsel %vm1319, %v6389, %v6388
  %v6391 = vrot.slane %v6374, 5
  %v6392 = vsel %vm1322, %v6391, %v6390
  %v6393 = vrot.slane %v6375, 4
  %v6394 = vsel %vm1325, %v6393, %v6392
  %v6395 = vrot.slane %v6376, 3
  %v6396 = vsel %vm1328, %v6395, %v6394
  %v6397 = vrot.slane %v6377, 2
  %v6398 = vsel %vm1331, %v6397, %v6396
  %v6399 = vrot.slane %v6378, 1
  %v6400 = vsel %vm1334, %v6399, %v6398
  %v6401 = vsel %vm721, %v6400, 0
  %6403 = vmatpush.msra.mxu0 0.0
  %6404 = vmatpush.msra.mxu0 0.0
  %6405 = vmatpush.msra.mxu0 0.0
  %6406 = vmatpush.msra.mxu0 0.0
  %6407 = vmatpush.msra.mxu0 0.0
  %6408 = vmatpush.msra.mxu0 0.0
  %6409 = vmatpush.msra.mxu0 0.0
  %6410 = vmatpush.msra.mxu0 0.0
  %6411 = vmatpush.msra.mxu0 0.0
  %6412 = vmatpush.msra.mxu0 0.0
  %6413 = vmatpush.msra.mxu0 0.0
  %6414 = vmatpush.msra.mxu0 0.0
  %6415 = vmatpush.msra.mxu0 0.0
  %6416 = vmatpush.msra.mxu0 0.0
  %6417 = vmatpush.msra.mxu0 0.0
  %6418 = vmatpush.msra.mxu0 %v74
  %6419 = vmatmul.f32.gmra.mxu0 %v6401
  %v6420 = vpop.f32.mrf.mxu0
  %v6421 = vadd.f32 0.0, %v6420
  %6422 = vdwg.mxu0
  %v6423 = vadd.f32 %v6370, %v6421
  %v6424 = vld [vmem:[#allocation3 + $0x7] sm:$0x1]
  %v6425 = vld [vmem:[#allocation3 + $0x17] sm:$0x1]
  %v6426 = vld [vmem:[#allocation3 + $0x27] sm:$0x1]
  %v6427 = vld [vmem:[#allocation3 + $0x37] sm:$0x1]
  %v6428 = vld [vmem:[#allocation3 + $0x47] sm:$0x1]
  %v6429 = vld [vmem:[#allocation3 + $0x57] sm:$0x1]
  %v6430 = vld [vmem:[#allocation3 + $0x67] sm:$0x1]
  %v6431 = vld [vmem:[#allocation3 + $0x77] sm:$0x1]
  %v6440 = vrot.slane %v6425, 7
  %v6441 = vsel %vm1316, %v6440, %v6424
  %v6442 = vrot.slane %v6426, 6
  %v6443 = vsel %vm1319, %v6442, %v6441
  %v6444 = vrot.slane %v6427, 5
  %v6445 = vsel %vm1322, %v6444, %v6443
  %v6446 = vrot.slane %v6428, 4
  %v6447 = vsel %vm1325, %v6446, %v6445
  %v6448 = vrot.slane %v6429, 3
  %v6449 = vsel %vm1328, %v6448, %v6447
  %v6450 = vrot.slane %v6430, 2
  %v6451 = vsel %vm1331, %v6450, %v6449
  %v6452 = vrot.slane %v6431, 1
  %v6453 = vsel %vm1334, %v6452, %v6451
  %v6454 = vsel %vm721, %v6453, 0
  %6456 = vmatpush.msra.mxu0 0.0
  %6457 = vmatpush.msra.mxu0 0.0
  %6458 = vmatpush.msra.mxu0 0.0
  %6459 = vmatpush.msra.mxu0 0.0
  %6460 = vmatpush.msra.mxu0 0.0
  %6461 = vmatpush.msra.mxu0 0.0
  %6462 = vmatpush.msra.mxu0 0.0
  %6463 = vmatpush.msra.mxu0 0.0
  %6464 = vmatpush.msra.mxu0 0.0
  %6465 = vmatpush.msra.mxu0 0.0
  %6466 = vmatpush.msra.mxu0 0.0
  %6467 = vmatpush.msra.mxu0 0.0
  %6468 = vmatpush.msra.mxu0 0.0
  %6469 = vmatpush.msra.mxu0 0.0
  %6470 = vmatpush.msra.mxu0 0.0
  %6471 = vmatpush.msra.mxu0 %v75
  %6472 = vmatmul.f32.gmra.mxu0 %v6454
  %v6473 = vpop.f32.mrf.mxu0
  %v6474 = vadd.f32 0.0, %v6473
  %6475 = vdwg.mxu0
  %v6476 = vadd.f32 %v6423, %v6474
  %v6477 = vld [vmem:[#allocation3 + $0x8] sm:$0x1]
  %v6478 = vld [vmem:[#allocation3 + $0x18] sm:$0x1]
  %v6479 = vld [vmem:[#allocation3 + $0x28] sm:$0x1]
  %v6480 = vld [vmem:[#allocation3 + $0x38] sm:$0x1]
  %v6481 = vld [vmem:[#allocation3 + $0x48] sm:$0x1]
  %v6482 = vld [vmem:[#allocation3 + $0x58] sm:$0x1]
  %v6483 = vld [vmem:[#allocation3 + $0x68] sm:$0x1]
  %v6484 = vld [vmem:[#allocation3 + $0x78] sm:$0x1]
  %v6493 = vrot.slane %v6478, 7
  %v6494 = vsel %vm1316, %v6493, %v6477
  %v6495 = vrot.slane %v6479, 6
  %v6496 = vsel %vm1319, %v6495, %v6494
  %v6497 = vrot.slane %v6480, 5
  %v6498 = vsel %vm1322, %v6497, %v6496
  %v6499 = vrot.slane %v6481, 4
  %v6500 = vsel %vm1325, %v6499, %v6498
  %v6501 = vrot.slane %v6482, 3
  %v6502 = vsel %vm1328, %v6501, %v6500
  %v6503 = vrot.slane %v6483, 2
  %v6504 = vsel %vm1331, %v6503, %v6502
  %v6505 = vrot.slane %v6484, 1
  %v6506 = vsel %vm1334, %v6505, %v6504
  %v6507 = vsel %vm721, %v6506, 0
  %6509 = vmatpush.msra.mxu0 0.0
  %6510 = vmatpush.msra.mxu0 0.0
  %6511 = vmatpush.msra.mxu0 0.0
  %6512 = vmatpush.msra.mxu0 0.0
  %6513 = vmatpush.msra.mxu0 0.0
  %6514 = vmatpush.msra.mxu0 0.0
  %6515 = vmatpush.msra.mxu0 0.0
  %6516 = vmatpush.msra.mxu0 0.0
  %6517 = vmatpush.msra.mxu0 0.0
  %6518 = vmatpush.msra.mxu0 0.0
  %6519 = vmatpush.msra.mxu0 0.0
  %6520 = vmatpush.msra.mxu0 0.0
  %6521 = vmatpush.msra.mxu0 0.0
  %6522 = vmatpush.msra.mxu0 0.0
  %6523 = vmatpush.msra.mxu0 0.0
  %6524 = vmatpush.msra.mxu0 %v76
  %6525 = vmatmul.f32.gmra.mxu0 %v6507
  %v6526 = vpop.f32.mrf.mxu0
  %v6527 = vadd.f32 0.0, %v6526
  %6528 = vdwg.mxu0
  %v6529 = vadd.f32 %v6476, %v6527
  %v6530 = vld [vmem:[#allocation3 + $0x9] sm:$0x1]
  %v6531 = vld [vmem:[#allocation3 + $0x19] sm:$0x1]
  %v6532 = vld [vmem:[#allocation3 + $0x29] sm:$0x1]
  %v6533 = vld [vmem:[#allocation3 + $0x39] sm:$0x1]
  %v6534 = vld [vmem:[#allocation3 + $0x49] sm:$0x1]
  %v6535 = vld [vmem:[#allocation3 + $0x59] sm:$0x1]
  %v6536 = vld [vmem:[#allocation3 + $0x69] sm:$0x1]
  %v6537 = vld [vmem:[#allocation3 + $0x79] sm:$0x1]
  %v6546 = vrot.slane %v6531, 7
  %v6547 = vsel %vm1316, %v6546, %v6530
  %v6548 = vrot.slane %v6532, 6
  %v6549 = vsel %vm1319, %v6548, %v6547
  %v6550 = vrot.slane %v6533, 5
  %v6551 = vsel %vm1322, %v6550, %v6549
  %v6552 = vrot.slane %v6534, 4
  %v6553 = vsel %vm1325, %v6552, %v6551
  %v6554 = vrot.slane %v6535, 3
  %v6555 = vsel %vm1328, %v6554, %v6553
  %v6556 = vrot.slane %v6536, 2
  %v6557 = vsel %vm1331, %v6556, %v6555
  %v6558 = vrot.slane %v6537, 1
  %v6559 = vsel %vm1334, %v6558, %v6557
  %v6560 = vsel %vm721, %v6559, 0
  %6562 = vmatpush.msra.mxu0 0.0
  %6563 = vmatpush.msra.mxu0 0.0
  %6564 = vmatpush.msra.mxu0 0.0
  %6565 = vmatpush.msra.mxu0 0.0
  %6566 = vmatpush.msra.mxu0 0.0
  %6567 = vmatpush.msra.mxu0 0.0
  %6568 = vmatpush.msra.mxu0 0.0
  %6569 = vmatpush.msra.mxu0 0.0
  %6570 = vmatpush.msra.mxu0 0.0
  %6571 = vmatpush.msra.mxu0 0.0
  %6572 = vmatpush.msra.mxu0 0.0
  %6573 = vmatpush.msra.mxu0 0.0
  %6574 = vmatpush.msra.mxu0 0.0
  %6575 = vmatpush.msra.mxu0 0.0
  %6576 = vmatpush.msra.mxu0 0.0
  %6577 = vmatpush.msra.mxu0 %v77
  %6578 = vmatmul.f32.gmra.mxu0 %v6560
  %v6579 = vpop.f32.mrf.mxu0
  %v6580 = vadd.f32 0.0, %v6579
  %6581 = vdwg.mxu0
  %v6582 = vadd.f32 %v6529, %v6580
  %v6583 = vld [vmem:[#allocation3 + $0xa] sm:$0x1]
  %v6584 = vld [vmem:[#allocation3 + $0x1a] sm:$0x1]
  %v6585 = vld [vmem:[#allocation3 + $0x2a] sm:$0x1]
  %v6586 = vld [vmem:[#allocation3 + $0x3a] sm:$0x1]
  %v6587 = vld [vmem:[#allocation3 + $0x4a] sm:$0x1]
  %v6588 = vld [vmem:[#allocation3 + $0x5a] sm:$0x1]
  %v6589 = vld [vmem:[#allocation3 + $0x6a] sm:$0x1]
  %v6590 = vld [vmem:[#allocation3 + $0x7a] sm:$0x1]
  %v6599 = vrot.slane %v6584, 7
  %v6600 = vsel %vm1316, %v6599, %v6583
  %v6601 = vrot.slane %v6585, 6
  %v6602 = vsel %vm1319, %v6601, %v6600
  %v6603 = vrot.slane %v6586, 5
  %v6604 = vsel %vm1322, %v6603, %v6602
  %v6605 = vrot.slane %v6587, 4
  %v6606 = vsel %vm1325, %v6605, %v6604
  %v6607 = vrot.slane %v6588, 3
  %v6608 = vsel %vm1328, %v6607, %v6606
  %v6609 = vrot.slane %v6589, 2
  %v6610 = vsel %vm1331, %v6609, %v6608
  %v6611 = vrot.slane %v6590, 1
  %v6612 = vsel %vm1334, %v6611, %v6610
  %v6613 = vsel %vm721, %v6612, 0
  %6615 = vmatpush.msra.mxu0 0.0
  %6616 = vmatpush.msra.mxu0 0.0
  %6617 = vmatpush.msra.mxu0 0.0
  %6618 = vmatpush.msra.mxu0 0.0
  %6619 = vmatpush.msra.mxu0 0.0
  %6620 = vmatpush.msra.mxu0 0.0
  %6621 = vmatpush.msra.mxu0 0.0
  %6622 = vmatpush.msra.mxu0 0.0
  %6623 = vmatpush.msra.mxu0 0.0
  %6624 = vmatpush.msra.mxu0 0.0
  %6625 = vmatpush.msra.mxu0 0.0
  %6626 = vmatpush.msra.mxu0 0.0
  %6627 = vmatpush.msra.mxu0 0.0
  %6628 = vmatpush.msra.mxu0 0.0
  %6629 = vmatpush.msra.mxu0 0.0
  %6630 = vmatpush.msra.mxu0 %v78
  %6631 = vmatmul.f32.gmra.mxu0 %v6613
  %v6632 = vpop.f32.mrf.mxu0
  %v6633 = vadd.f32 0.0, %v6632
  %6634 = vdwg.mxu0
  %v6635 = vadd.f32 %v6582, %v6633
  %v6636 = vld [vmem:[#allocation3 + $0xb] sm:$0x1]
  %v6637 = vld [vmem:[#allocation3 + $0x1b] sm:$0x1]
  %v6638 = vld [vmem:[#allocation3 + $0x2b] sm:$0x1]
  %v6639 = vld [vmem:[#allocation3 + $0x3b] sm:$0x1]
  %v6640 = vld [vmem:[#allocation3 + $0x4b] sm:$0x1]
  %v6641 = vld [vmem:[#allocation3 + $0x5b] sm:$0x1]
  %v6642 = vld [vmem:[#allocation3 + $0x6b] sm:$0x1]
  %v6643 = vld [vmem:[#allocation3 + $0x7b] sm:$0x1]
  %v6652 = vrot.slane %v6637, 7
  %v6653 = vsel %vm1316, %v6652, %v6636
  %v6654 = vrot.slane %v6638, 6
  %v6655 = vsel %vm1319, %v6654, %v6653
  %v6656 = vrot.slane %v6639, 5
  %v6657 = vsel %vm1322, %v6656, %v6655
  %v6658 = vrot.slane %v6640, 4
  %v6659 = vsel %vm1325, %v6658, %v6657
  %v6660 = vrot.slane %v6641, 3
  %v6661 = vsel %vm1328, %v6660, %v6659
  %v6662 = vrot.slane %v6642, 2
  %v6663 = vsel %vm1331, %v6662, %v6661
  %v6664 = vrot.slane %v6643, 1
  %v6665 = vsel %vm1334, %v6664, %v6663
  %v6666 = vsel %vm721, %v6665, 0
  %6668 = vmatpush.msra.mxu0 0.0
  %6669 = vmatpush.msra.mxu0 0.0
  %6670 = vmatpush.msra.mxu0 0.0
  %6671 = vmatpush.msra.mxu0 0.0
  %6672 = vmatpush.msra.mxu0 0.0
  %6673 = vmatpush.msra.mxu0 0.0
  %6674 = vmatpush.msra.mxu0 0.0
  %6675 = vmatpush.msra.mxu0 0.0
  %6676 = vmatpush.msra.mxu0 0.0
  %6677 = vmatpush.msra.mxu0 0.0
  %6678 = vmatpush.msra.mxu0 0.0
  %6679 = vmatpush.msra.mxu0 0.0
  %6680 = vmatpush.msra.mxu0 0.0
  %6681 = vmatpush.msra.mxu0 0.0
  %6682 = vmatpush.msra.mxu0 0.0
  %6683 = vmatpush.msra.mxu0 %v79
  %6684 = vmatmul.f32.gmra.mxu0 %v6666
  %v6685 = vpop.f32.mrf.mxu0
  %v6686 = vadd.f32 0.0, %v6685
  %6687 = vdwg.mxu0
  %v6688 = vadd.f32 %v6635, %v6686
  %v6689 = vld [vmem:[#allocation3 + $0xc] sm:$0x1]
  %v6690 = vld [vmem:[#allocation3 + $0x1c] sm:$0x1]
  %v6691 = vld [vmem:[#allocation3 + $0x2c] sm:$0x1]
  %v6692 = vld [vmem:[#allocation3 + $0x3c] sm:$0x1]
  %v6693 = vld [vmem:[#allocation3 + $0x4c] sm:$0x1]
  %v6694 = vld [vmem:[#allocation3 + $0x5c] sm:$0x1]
  %v6695 = vld [vmem:[#allocation3 + $0x6c] sm:$0x1]
  %v6696 = vld [vmem:[#allocation3 + $0x7c] sm:$0x1]
  %v6705 = vrot.slane %v6690, 7
  %v6706 = vsel %vm1316, %v6705, %v6689
  %v6707 = vrot.slane %v6691, 6
  %v6708 = vsel %vm1319, %v6707, %v6706
  %v6709 = vrot.slane %v6692, 5
  %v6710 = vsel %vm1322, %v6709, %v6708
  %v6711 = vrot.slane %v6693, 4
  %v6712 = vsel %vm1325, %v6711, %v6710
  %v6713 = vrot.slane %v6694, 3
  %v6714 = vsel %vm1328, %v6713, %v6712
  %v6715 = vrot.slane %v6695, 2
  %v6716 = vsel %vm1331, %v6715, %v6714
  %v6717 = vrot.slane %v6696, 1
  %v6718 = vsel %vm1334, %v6717, %v6716
  %v6719 = vsel %vm721, %v6718, 0
  %6721 = vmatpush.msra.mxu0 0.0
  %6722 = vmatpush.msra.mxu0 0.0
  %6723 = vmatpush.msra.mxu0 0.0
  %6724 = vmatpush.msra.mxu0 0.0
  %6725 = vmatpush.msra.mxu0 0.0
  %6726 = vmatpush.msra.mxu0 0.0
  %6727 = vmatpush.msra.mxu0 0.0
  %6728 = vmatpush.msra.mxu0 0.0
  %6729 = vmatpush.msra.mxu0 0.0
  %6730 = vmatpush.msra.mxu0 0.0
  %6731 = vmatpush.msra.mxu0 0.0
  %6732 = vmatpush.msra.mxu0 0.0
  %6733 = vmatpush.msra.mxu0 0.0
  %6734 = vmatpush.msra.mxu0 0.0
  %6735 = vmatpush.msra.mxu0 0.0
  %6736 = vmatpush.msra.mxu0 %v80
  %6737 = vmatmul.f32.gmra.mxu0 %v6719
  %v6738 = vpop.f32.mrf.mxu0
  %v6739 = vadd.f32 0.0, %v6738
  %6740 = vdwg.mxu0
  %v6741 = vadd.f32 %v6688, %v6739
  %v6742 = vld [vmem:[#allocation3 + $0xd] sm:$0x1]
  %v6743 = vld [vmem:[#allocation3 + $0x1d] sm:$0x1]
  %v6744 = vld [vmem:[#allocation3 + $0x2d] sm:$0x1]
  %v6745 = vld [vmem:[#allocation3 + $0x3d] sm:$0x1]
  %v6746 = vld [vmem:[#allocation3 + $0x4d] sm:$0x1]
  %v6747 = vld [vmem:[#allocation3 + $0x5d] sm:$0x1]
  %v6748 = vld [vmem:[#allocation3 + $0x6d] sm:$0x1]
  %v6749 = vld [vmem:[#allocation3 + $0x7d] sm:$0x1]
  %v6758 = vrot.slane %v6743, 7
  %v6759 = vsel %vm1316, %v6758, %v6742
  %v6760 = vrot.slane %v6744, 6
  %v6761 = vsel %vm1319, %v6760, %v6759
  %v6762 = vrot.slane %v6745, 5
  %v6763 = vsel %vm1322, %v6762, %v6761
  %v6764 = vrot.slane %v6746, 4
  %v6765 = vsel %vm1325, %v6764, %v6763
  %v6766 = vrot.slane %v6747, 3
  %v6767 = vsel %vm1328, %v6766, %v6765
  %v6768 = vrot.slane %v6748, 2
  %v6769 = vsel %vm1331, %v6768, %v6767
  %v6770 = vrot.slane %v6749, 1
  %v6771 = vsel %vm1334, %v6770, %v6769
  %v6772 = vsel %vm721, %v6771, 0
  %6774 = vmatpush.msra.mxu0 0.0
  %6775 = vmatpush.msra.mxu0 0.0
  %6776 = vmatpush.msra.mxu0 0.0
  %6777 = vmatpush.msra.mxu0 0.0
  %6778 = vmatpush.msra.mxu0 0.0
  %6779 = vmatpush.msra.mxu0 0.0
  %6780 = vmatpush.msra.mxu0 0.0
  %6781 = vmatpush.msra.mxu0 0.0
  %6782 = vmatpush.msra.mxu0 0.0
  %6783 = vmatpush.msra.mxu0 0.0
  %6784 = vmatpush.msra.mxu0 0.0
  %6785 = vmatpush.msra.mxu0 0.0
  %6786 = vmatpush.msra.mxu0 0.0
  %6787 = vmatpush.msra.mxu0 0.0
  %6788 = vmatpush.msra.mxu0 0.0
  %6789 = vmatpush.msra.mxu0 %v81
  %6790 = vmatmul.f32.gmra.mxu0 %v6772
  %v6791 = vpop.f32.mrf.mxu0
  %v6792 = vadd.f32 0.0, %v6791
  %6793 = vdwg.mxu0
  %v6794 = vadd.f32 %v6741, %v6792
  %v6795 = vld [vmem:[#allocation3 + $0xe] sm:$0x1]
  %v6796 = vld [vmem:[#allocation3 + $0x1e] sm:$0x1]
  %v6797 = vld [vmem:[#allocation3 + $0x2e] sm:$0x1]
  %v6798 = vld [vmem:[#allocation3 + $0x3e] sm:$0x1]
  %v6799 = vld [vmem:[#allocation3 + $0x4e] sm:$0x1]
  %v6800 = vld [vmem:[#allocation3 + $0x5e] sm:$0x1]
  %v6801 = vld [vmem:[#allocation3 + $0x6e] sm:$0x1]
  %v6802 = vld [vmem:[#allocation3 + $0x7e] sm:$0x1]
  %v6811 = vrot.slane %v6796, 7
  %v6812 = vsel %vm1316, %v6811, %v6795
  %v6813 = vrot.slane %v6797, 6
  %v6814 = vsel %vm1319, %v6813, %v6812
  %v6815 = vrot.slane %v6798, 5
  %v6816 = vsel %vm1322, %v6815, %v6814
  %v6817 = vrot.slane %v6799, 4
  %v6818 = vsel %vm1325, %v6817, %v6816
  %v6819 = vrot.slane %v6800, 3
  %v6820 = vsel %vm1328, %v6819, %v6818
  %v6821 = vrot.slane %v6801, 2
  %v6822 = vsel %vm1331, %v6821, %v6820
  %v6823 = vrot.slane %v6802, 1
  %v6824 = vsel %vm1334, %v6823, %v6822
  %v6825 = vsel %vm721, %v6824, 0
  %6827 = vmatpush.msra.mxu0 0.0
  %6828 = vmatpush.msra.mxu0 0.0
  %6829 = vmatpush.msra.mxu0 0.0
  %6830 = vmatpush.msra.mxu0 0.0
  %6831 = vmatpush.msra.mxu0 0.0
  %6832 = vmatpush.msra.mxu0 0.0
  %6833 = vmatpush.msra.mxu0 0.0
  %6834 = vmatpush.msra.mxu0 0.0
  %6835 = vmatpush.msra.mxu0 0.0
  %6836 = vmatpush.msra.mxu0 0.0
  %6837 = vmatpush.msra.mxu0 0.0
  %6838 = vmatpush.msra.mxu0 0.0
  %6839 = vmatpush.msra.mxu0 0.0
  %6840 = vmatpush.msra.mxu0 0.0
  %6841 = vmatpush.msra.mxu0 0.0
  %6842 = vmatpush.msra.mxu0 %v82
  %6843 = vmatmul.f32.gmra.mxu0 %v6825
  %v6844 = vpop.f32.mrf.mxu0
  %v6845 = vadd.f32 0.0, %v6844
  %6846 = vdwg.mxu0
  %v6847 = vadd.f32 %v6794, %v6845
  %v6848 = vld [vmem:[#allocation3 + $0xf] sm:$0x1]
  %v6849 = vld [vmem:[#allocation3 + $0x1f] sm:$0x1]
  %v6850 = vld [vmem:[#allocation3 + $0x2f] sm:$0x1]
  %v6851 = vld [vmem:[#allocation3 + $0x3f] sm:$0x1]
  %v6852 = vld [vmem:[#allocation3 + $0x4f] sm:$0x1]
  %v6853 = vld [vmem:[#allocation3 + $0x5f] sm:$0x1]
  %v6854 = vld [vmem:[#allocation3 + $0x6f] sm:$0x1]
  %v6855 = vld [vmem:[#allocation3 + $0x7f] sm:$0x1]
  %v6864 = vrot.slane %v6849, 7
  %v6865 = vsel %vm1316, %v6864, %v6848
  %v6866 = vrot.slane %v6850, 6
  %v6867 = vsel %vm1319, %v6866, %v6865
  %v6868 = vrot.slane %v6851, 5
  %v6869 = vsel %vm1322, %v6868, %v6867
  %v6870 = vrot.slane %v6852, 4
  %v6871 = vsel %vm1325, %v6870, %v6869
  %v6872 = vrot.slane %v6853, 3
  %v6873 = vsel %vm1328, %v6872, %v6871
  %v6874 = vrot.slane %v6854, 2
  %v6875 = vsel %vm1331, %v6874, %v6873
  %v6876 = vrot.slane %v6855, 1
  %v6877 = vsel %vm1334, %v6876, %v6875
  %v6878 = vsel %vm721, %v6877, 0
  %6880 = vmatpush.msra.mxu0 0.0
  %6881 = vmatpush.msra.mxu0 0.0
  %6882 = vmatpush.msra.mxu0 0.0
  %6883 = vmatpush.msra.mxu0 0.0
  %6884 = vmatpush.msra.mxu0 0.0
  %6885 = vmatpush.msra.mxu0 0.0
  %6886 = vmatpush.msra.mxu0 0.0
  %6887 = vmatpush.msra.mxu0 0.0
  %6888 = vmatpush.msra.mxu0 0.0
  %6889 = vmatpush.msra.mxu0 0.0
  %6890 = vmatpush.msra.mxu0 0.0
  %6891 = vmatpush.msra.mxu0 0.0
  %6892 = vmatpush.msra.mxu0 0.0
  %6893 = vmatpush.msra.mxu0 0.0
  %6894 = vmatpush.msra.mxu0 0.0
  %6895 = vmatpush.msra.mxu0 %v83
  %6896 = vmatmul.f32.gmra.mxu0 %v6878
  %v6897 = vpop.f32.mrf.mxu0
  %v6898 = vadd.f32 0.0, %v6897
  %6899 = vdwg.mxu0
  %v6900 = vadd.f32 %v6847, %v6898
  %v6901 = vadd.f32 %v6900, %v2145
  %v6902 = vmax.f32 %v6901, 0.0
  %6903 = vset.pattern.permute.xlu0 0
  %6904 = vperm.xlu0 %6903, %v4903
  %v6905 = vpop.permute.xlu0 %6904
  %v6907 = vperm.slane %v6905, 0
  %6908 = vset.pattern.permute.xlu0 0
  %6909 = vperm.xlu0 %6908, %v4904
  %v6910 = vpop.permute.xlu0 %6909
  %v6912 = vperm.slane %v6910, 0
  %6913 = vset.pattern.permute.xlu0 0
  %6914 = vperm.xlu0 %6913, %v4905
  %v6915 = vpop.permute.xlu0 %6914
  %v6917 = vperm.slane %v6915, 0
  %6918 = vset.pattern.permute.xlu0 0
  %6919 = vperm.xlu0 %6918, %v4906
  %v6920 = vpop.permute.xlu0 %6919
  %v6922 = vperm.slane %v6920, 0
  %6923 = vset.pattern.permute.xlu0 0
  %6924 = vperm.xlu0 %6923, %v4907
  %v6925 = vpop.permute.xlu0 %6924
  %v6927 = vperm.slane %v6925, 0
  %6928 = vset.pattern.permute.xlu0 0
  %6929 = vperm.xlu0 %6928, %v4908
  %v6930 = vpop.permute.xlu0 %6929
  %v6932 = vperm.slane %v6930, 0
  %6933 = vset.pattern.permute.xlu0 0
  %6934 = vperm.xlu0 %6933, %v4909
  %v6935 = vpop.permute.xlu0 %6934
  %v6937 = vperm.slane %v6935, 0
  %6938 = vset.pattern.permute.xlu0 0
  %6939 = vperm.xlu0 %6938, %v4910
  %v6940 = vpop.permute.xlu0 %6939
  %v6942 = vperm.slane %v6940, 0
  %v6943 = vmul.f32 %v6907, %v2189
  %v6944 = vmul.f32 %v6912, %v2191
  %v6945 = vmul.f32 %v6917, %v2192
  %v6946 = vmul.f32 %v6922, %v2193
  %v6947 = vmul.f32 %v6927, %v2194
  %v6948 = vmul.f32 %v6932, %v2195
  %v6949 = vmul.f32 %v6937, %v2196
  %v6950 = vmul.f32 %v6942, %v2197
  %6951 = vset.pattern.permute.xlu0 1
  %6952 = vperm.xlu0 %6951, %v4903
  %v6953 = vpop.permute.xlu0 %6952
  %v6955 = vperm.slane %v6953, 0
  %6956 = vset.pattern.permute.xlu0 1
  %6957 = vperm.xlu0 %6956, %v4904
  %v6958 = vpop.permute.xlu0 %6957
  %v6960 = vperm.slane %v6958, 0
  %6961 = vset.pattern.permute.xlu0 1
  %6962 = vperm.xlu0 %6961, %v4905
  %v6963 = vpop.permute.xlu0 %6962
  %v6965 = vperm.slane %v6963, 0
  %6966 = vset.pattern.permute.xlu0 1
  %6967 = vperm.xlu0 %6966, %v4906
  %v6968 = vpop.permute.xlu0 %6967
  %v6970 = vperm.slane %v6968, 0
  %6971 = vset.pattern.permute.xlu0 1
  %6972 = vperm.xlu0 %6971, %v4907
  %v6973 = vpop.permute.xlu0 %6972
  %v6975 = vperm.slane %v6973, 0
  %6976 = vset.pattern.permute.xlu0 1
  %6977 = vperm.xlu0 %6976, %v4908
  %v6978 = vpop.permute.xlu0 %6977
  %v6980 = vperm.slane %v6978, 0
  %6981 = vset.pattern.permute.xlu0 1
  %6982 = vperm.xlu0 %6981, %v4909
  %v6983 = vpop.permute.xlu0 %6982
  %v6985 = vperm.slane %v6983, 0
  %6986 = vset.pattern.permute.xlu0 1
  %6987 = vperm.xlu0 %6986, %v4910
  %v6988 = vpop.permute.xlu0 %6987
  %v6990 = vperm.slane %v6988, 0
  %v6991 = vmul.f32 %v6955, %v2253
  %v6992 = vmul.f32 %v6960, %v2255
  %v6993 = vmul.f32 %v6965, %v2256
  %v6994 = vmul.f32 %v6970, %v2257
  %v6995 = vmul.f32 %v6975, %v2258
  %v6996 = vmul.f32 %v6980, %v2259
  %v6997 = vmul.f32 %v6985, %v2260
  %v6998 = vmul.f32 %v6990, %v2261
  %v6999 = vadd.f32 %v6943, %v6991
  %v7000 = vadd.f32 %v6944, %v6992
  %v7001 = vadd.f32 %v6945, %v6993
  %v7002 = vadd.f32 %v6946, %v6994
  %v7003 = vadd.f32 %v6947, %v6995
  %v7004 = vadd.f32 %v6948, %v6996
  %v7005 = vadd.f32 %v6949, %v6997
  %v7006 = vadd.f32 %v6950, %v6998
  %v7007 = vadd.f32 %v6999, %v2286
  %v7008 = vadd.f32 %v7000, %v2288
  %v7009 = vadd.f32 %v7001, %v2289
  %v7010 = vadd.f32 %v7002, %v2290
  %v7011 = vadd.f32 %v7003, %v2291
  %v7012 = vadd.f32 %v7004, %v2292
  %v7013 = vadd.f32 %v7005, %v2293
  %v7014 = vadd.f32 %v7006, %v2294
  %v7015 = vmax.f32 %v7007, 0.0
  %v7016 = vmax.f32 %v7008, 0.0
  %v7017 = vmax.f32 %v7009, 0.0
  %v7018 = vmax.f32 %v7010, 0.0
  %v7019 = vmax.f32 %v7011, 0.0
  %v7020 = vmax.f32 %v7012, 0.0
  %v7021 = vmax.f32 %v7013, 0.0
  %v7022 = vmax.f32 %v7014, 0.0
  %7031 = vst [vmem:[#allocation1] ss:$9 sm:$0xff] %v7015
  %s7032 = scalar_lea.vmem [#allocation1], 1
  %7033 = vst [vmem:[%s7032] ss:$9 sm:$0xff] %v7016
  %s7034 = scalar_lea.vmem [#allocation1], 2
  %7035 = vst [vmem:[%s7034] ss:$9 sm:$0xff] %v7017
  %s7036 = scalar_lea.vmem [#allocation1], 3
  %7037 = vst [vmem:[%s7036] ss:$9 sm:$0xff] %v7018
  %s7038 = scalar_lea.vmem [#allocation1], 4
  %7039 = vst [vmem:[%s7038] ss:$9 sm:$0xff] %v7019
  %s7040 = scalar_lea.vmem [#allocation1], 5
  %7041 = vst [vmem:[%s7040] ss:$9 sm:$0xff] %v7020
  %s7042 = scalar_lea.vmem [#allocation1], 6
  %7043 = vst [vmem:[%s7042] ss:$9 sm:$0xff] %v7021
  %s7044 = scalar_lea.vmem [#allocation1], 7
  %7045 = vst [vmem:[%s7044] ss:$9 sm:$0xff] %v7022
  %v7046 = vld [vmem:[#allocation1] sm:$0xff]
  %v7047 = vsel %vm2342, %v7046, 0
  %7049 = vmatpush.msra.mxu0 0.0
  %7050 = vmatpush.msra.mxu0 0.0
  %7051 = vmatpush.msra.mxu0 0.0
  %7052 = vmatpush.msra.mxu0 0.0
  %7053 = vmatpush.msra.mxu0 0.0
  %7054 = vmatpush.msra.mxu0 0.0
  %7055 = vmatpush.msra.mxu0 0.0
  %7056 = vmatpush.msra.mxu0 0.0
  %7057 = vmatpush.msra.mxu0 0.0
  %7058 = vmatpush.msra.mxu0 0.0
  %7059 = vmatpush.msra.mxu0 0.0
  %7060 = vmatpush.msra.mxu0 0.0
  %7061 = vmatpush.msra.mxu0 %v94
  %7062 = vmatpush.msra.mxu0 %v93
  %7063 = vmatpush.msra.mxu0 %v92
  %7064 = vmatpush.msra.mxu0 %v91
  %7065 = vmatmul.f32.gmra.mxu0 %v7047
  %v7066 = vpop.f32.mrf.mxu0
  %v7067 = vadd.f32 0.0, %v7066
  %7068 = vdwg.mxu0
  %v7070 = vsel %vm2342, %v6902, 0
  %7072 = vmatpush.msra.mxu0 0.0
  %7073 = vmatpush.msra.mxu0 0.0
  %7074 = vmatpush.msra.mxu0 0.0
  %7075 = vmatpush.msra.mxu0 0.0
  %7076 = vmatpush.msra.mxu0 0.0
  %7077 = vmatpush.msra.mxu0 0.0
  %7078 = vmatpush.msra.mxu0 0.0
  %7079 = vmatpush.msra.mxu0 0.0
  %7080 = vmatpush.msra.mxu0 0.0
  %7081 = vmatpush.msra.mxu0 0.0
  %7082 = vmatpush.msra.mxu0 0.0
  %7083 = vmatpush.msra.mxu0 0.0
  %7084 = vmatpush.msra.mxu0 %v90
  %7085 = vmatpush.msra.mxu0 %v89
  %7086 = vmatpush.msra.mxu0 %v88
  %7087 = vmatpush.msra.mxu0 %v87
  %7088 = vmatmul.f32.gmra.mxu0 %v7070
  %v7089 = vpop.f32.mrf.mxu0
  %v7090 = vadd.f32 %v7067, %v7089
  %7091 = vdwg.mxu0
  %v7092 = vadd.f32 %v7090, %v2389
  %v7093 = vmax.f32 %v7092, 0.0
  %7094 = vmatpush.msra.mxu0 0.0
  %7095 = vmatpush.msra.mxu0 0.0
  %7096 = vmatpush.msra.mxu0 0.0
  %7097 = vmatpush.msra.mxu0 0.0
  %7098 = vmatpush.msra.mxu0 0.0
  %7099 = vmatpush.msra.mxu0 0.0
  %7100 = vmatpush.msra.mxu0 0.0
  %7101 = vmatpush.msra.mxu0 0.0
  %7102 = vmatpush.msra.mxu0 0.0
  %7103 = vmatpush.msra.mxu0 0.0
  %7104 = vmatpush.msra.mxu0 0.0
  %7105 = vmatpush.msra.mxu0 0.0
  %7106 = vmatpush.msra.mxu0 %v103
  %7107 = vmatpush.msra.mxu0 %v102
  %7108 = vmatpush.msra.mxu0 %v101
  %7109 = vmatpush.msra.mxu0 %v100
  %7110 = vmatmul.f32.gmra.mxu0 %v4836
  %v7111 = vpop.f32.mrf.mxu0
  %v7112 = vadd.f32 0.0, %v7111
  %7113 = vdwg.mxu0
  %v7115 = vsel %vm2342, %v7093, 0
  %7117 = vmatpush.msra.mxu0 0.0
  %7118 = vmatpush.msra.mxu0 0.0
  %7119 = vmatpush.msra.mxu0 0.0
  %7120 = vmatpush.msra.mxu0 0.0
  %7121 = vmatpush.msra.mxu0 0.0
  %7122 = vmatpush.msra.mxu0 0.0
  %7123 = vmatpush.msra.mxu0 0.0
  %7124 = vmatpush.msra.mxu0 0.0
  %7125 = vmatpush.msra.mxu0 0.0
  %7126 = vmatpush.msra.mxu0 0.0
  %7127 = vmatpush.msra.mxu0 0.0
  %7128 = vmatpush.msra.mxu0 0.0
  %7129 = vmatpush.msra.mxu0 %v99
  %7130 = vmatpush.msra.mxu0 %v98
  %7131 = vmatpush.msra.mxu0 %v97
  %7132 = vmatpush.msra.mxu0 %v96
  %7133 = vmatmul.f32.gmra.mxu0 %v7115
  %v7134 = vpop.f32.mrf.mxu0
  %v7135 = vadd.f32 %v7112, %v7134
  %7136 = vdwg.mxu0
  %v7137 = vadd.f32 %v7135, %v2440
  %v7138 = vxor.u32 %v7137, 2147483648
  %v7139 = vmul.f32 %v7138, 1.442695
  %v7140 = vpow.pop %v7139
  %v7141 = vadd.f32 %v7140, 1.0
  %v7142 = vrcp.pop %v7141
  %v7143 = vmul.f32 %v7141, %v7142
  %v7144 = vsub.f32 1.0, %v7143
  %v7145 = vmul.f32 %v7142, %v7144
  %v7146 = vadd.f32 %v7142, %v7145
  %vm7147 = vweird.f32 %v7141
  %vm7148 = vweird.f32 %v7142
  %vm7149 = vmor %vm7147, %vm7148
  %v7150 = vsel %vm7149, %v7142, %v7146
  %v7151 = vand.u32 2147483647, %v7141
  %vm7152 = vcmp.eq.f32.partialorder %v7151, 8.507059e+37
  %v7153 = vand.u32 %v7141, 2147483648
  %v7154 = vor.u32 1.1754944e-38, %v7153
  %v7155 = vsel %vm7152, %v7154, %v7150
  %v7156 = vmul.f32 1.0, %v7155
  %v7157 = vtanh.pop %v7137
  %v7158 = vmul.f32 %v7156, %v4826
  %7160 = vrot.lane.b32.xlu0 %v7157, 64
  %v7161 = vpop.permute.xlu0 %7160
  %v7163 = vmul.f32 %v7156, %v7161
  %7165 = vrot.lane.b32.xlu0 %v7163, 32
  %v7166 = vpop.permute.xlu0 %7165
  %v7168 = vadd.f32 %v7158, %v7166
  %v7169 = vtanh.pop %v7168
  %7171 = vrot.lane.b32.xlu0 %v7169, 64
  %v7172 = vpop.permute.xlu0 %7171
  %v7174 = vmul.f32 %v7156, %v7172
  %7176 = vrot.lane.b32.xlu0 %v7174, 32
  %v7177 = vpop.permute.xlu0 %7176
  %v7178 = vsel %vm2342, %v7177, 0
  %7180 = vmatpush.msra.mxu0 0.0
  %7181 = vmatpush.msra.mxu0 0.0
  %7182 = vmatpush.msra.mxu0 0.0
  %7183 = vmatpush.msra.mxu0 0.0
  %7184 = vmatpush.msra.mxu0 0.0
  %7185 = vmatpush.msra.mxu0 0.0
  %7186 = vmatpush.msra.mxu0 0.0
  %7187 = vmatpush.msra.mxu0 0.0
  %7188 = vmatpush.msra.mxu0 0.0
  %7189 = vmatpush.msra.mxu0 0.0
  %7190 = vmatpush.msra.mxu0 0.0
  %7191 = vmatpush.msra.mxu0 0.0
  %7192 = vmatpush.msra.mxu0 %v108
  %7193 = vmatpush.msra.mxu0 %v107
  %7194 = vmatpush.msra.mxu0 %v106
  %7195 = vmatpush.msra.mxu0 %v105
  %7196 = vmatmul.f32.gmra.mxu0 %v7178
  %v7197 = vpop.f32.mrf.mxu0
  %v7198 = vadd.f32 %v2481, %v7197
  %7199 = vdwg.mxu0
  %v7200 = vtanh.pop %v7198
  %s7201 = scalar_lea.vmem %s2, 16
  %v7202 = vld [vmem:[%s7201] sm:$0xff]
  %v7203 = vmul.f32 %v7202, 0.2
  %v7204 = vadd.f32 %v7200, %v7203
  %v7205 = vsub.f32 %v7204, %v7200
  %v7206 = vmul.f32 %v7205, %v2519
  %v7207 = vmul.f32 %v7206, %v7206
  %v7208 = vmul.f32 %v7207, -0.5
  %v7209 = vsub.f32 %v7208, -1.609438
  %v7210 = vsub.f32 %v7209, 0.9189385
  %v7211 = vsel %vm2525, %v7210, 0.0
  %7212 = vadd.xlane.f32.xlu0 %v7211
  %v7213 = vpop.xlane.xlu0 %7212
  %v7215 = vrot.slane %v7204, 1
  %v7216 = vrot.slane %v7204, 2
  %v7217 = vrot.slane %v7204, 3
  %v7218 = vrot.slane %v7204, 4
  %v7219 = vrot.slane %v7204, 5
  %v7220 = vrot.slane %v7204, 6
  %v7221 = vrot.slane %v7204, 7
  %7229 = vst.msk [vmem:[#allocation2] sm:$0x1] %vm118, %v7204
  %7230 = vst.msk [vmem:[#allocation2 + $0x1] sm:$0x1] %vm118, %v7215
  %7231 = vst.msk [vmem:[#allocation2 + $0x2] sm:$0x1] %vm118, %v7216
  %7232 = vst.msk [vmem:[#allocation2 + $0x3] sm:$0x1] %vm118, %v7217
  %7233 = vst.msk [vmem:[#allocation2 + $0x4] sm:$0x1] %vm118, %v7218
  %7234 = vst.msk [vmem:[#allocation2 + $0x5] sm:$0x1] %vm118, %v7219
  %7235 = vst.msk [vmem:[#allocation2 + $0x6] sm:$0x1] %vm118, %v7220
  %7236 = vst.msk [vmem:[#allocation2 + $0x7] sm:$0x1] %vm118, %v7221
  %7238 = vrot.lane.b32.xlu0 %v7198, 1
  %v7239 = vpop.permute.xlu0 %7238
  %v7241 = vsel %vm2525, %v7204, %v7213
  %v7242 = vsel %vm2557, %v7241, %v7239
  %s7243 = scalar_lea.vmem %s16, 16
  %7244 = vst.msk [vmem:[%s7243] sm:$0xff] %vm2559, %v7242
  %v7245 = vld [vmem:[#allocation2] sm:$0x1]
  %v7246 = vld [vmem:[#allocation2 + $0x1] sm:$0x1]
  %v7247 = vld [vmem:[#allocation2 + $0x2] sm:$0x1]
  %v7248 = vld [vmem:[#allocation2 + $0x3] sm:$0x1]
  %v7249 = vld [vmem:[#allocation2 + $0x4] sm:$0x1]
  %v7250 = vld [vmem:[#allocation2 + $0x5] sm:$0x1]
  %v7251 = vld [vmem:[#allocation2 + $0x6] sm:$0x1]
  %v7252 = vld [vmem:[#allocation2 + $0x7] sm:$0x1]
  %v7261 = vperm.slane %v7245, 0
  %v7262 = vperm.slane %v7246, 0
  %v7263 = vperm.slane %v7247, 0
  %v7264 = vperm.slane %v7248, 0
  %v7265 = vperm.slane %v7249, 0
  %v7266 = vperm.slane %v7250, 0
  %v7267 = vperm.slane %v7251, 0
  %v7268 = vperm.slane %v7252, 0
  %v7277 = vadd.f32 %v143, %v7261
  %v7278 = vadd.f32 %v143, %v7262
  %v7279 = vadd.f32 %v143, %v7263
  %v7280 = vadd.f32 %v143, %v7264
  %v7281 = vadd.f32 %v143, %v7265
  %v7282 = vadd.f32 %v143, %v7266
  %v7283 = vadd.f32 %v143, %v7267
  %v7284 = vadd.f32 %v143, %v7268
  %v7285 = vadd.f32 %v7277, 1.0
  %v7286 = vadd.f32 %v7278, 1.0
  %v7287 = vadd.f32 %v7279, 1.0
  %v7288 = vadd.f32 %v7280, 1.0
  %v7289 = vadd.f32 %v7281, 1.0
  %v7290 = vadd.f32 %v7282, 1.0
  %v7291 = vadd.f32 %v7283, 1.0
  %v7292 = vadd.f32 %v7284, 1.0
  %v7293 = vmul.f32 %v7285, 7.5
  %v7294 = vmul.f32 %v7286, 7.5
  %v7295 = vmul.f32 %v7287, 7.5
  %v7296 = vmul.f32 %v7288, 7.5
  %v7297 = vmul.f32 %v7289, 7.5
  %v7298 = vmul.f32 %v7290, 7.5
  %v7299 = vmul.f32 %v7291, 7.5
  %v7300 = vmul.f32 %v7292, 7.5
  %7302 = vset.pattern.permute.xlu0 1
  %7303 = vperm.xlu0 %7302, %v7293
  %v7304 = vpop.permute.xlu0 %7303
  %7307 = vset.pattern.permute.xlu0 1
  %7308 = vperm.xlu0 %7307, %v7294
  %v7309 = vpop.permute.xlu0 %7308
  %7312 = vset.pattern.permute.xlu0 1
  %7313 = vperm.xlu0 %7312, %v7295
  %v7314 = vpop.permute.xlu0 %7313
  %7317 = vset.pattern.permute.xlu0 1
  %7318 = vperm.xlu0 %7317, %v7296
  %v7319 = vpop.permute.xlu0 %7318
  %7322 = vset.pattern.permute.xlu0 1
  %7323 = vperm.xlu0 %7322, %v7297
  %v7324 = vpop.permute.xlu0 %7323
  %7327 = vset.pattern.permute.xlu0 1
  %7328 = vperm.xlu0 %7327, %v7298
  %v7329 = vpop.permute.xlu0 %7328
  %7332 = vset.pattern.permute.xlu0 1
  %7333 = vperm.xlu0 %7332, %v7299
  %v7334 = vpop.permute.xlu0 %7333
  %7337 = vset.pattern.permute.xlu0 1
  %7338 = vperm.xlu0 %7337, %v7300
  %v7339 = vpop.permute.xlu0 %7338
  %v7341 = vsub.f32 %v7304, %v134
  %v7342 = vsub.f32 %v7309, %v134
  %v7343 = vsub.f32 %v7314, %v134
  %v7344 = vsub.f32 %v7319, %v134
  %v7345 = vsub.f32 %v7324, %v134
  %v7346 = vsub.f32 %v7329, %v134
  %v7347 = vsub.f32 %v7334, %v134
  %v7348 = vsub.f32 %v7339, %v134
  %v7349 = vand.u32 2147483647, %v7341
  %v7350 = vand.u32 2147483647, %v7342
  %v7351 = vand.u32 2147483647, %v7343
  %v7352 = vand.u32 2147483647, %v7344
  %v7353 = vand.u32 2147483647, %v7345
  %v7354 = vand.u32 2147483647, %v7346
  %v7355 = vand.u32 2147483647, %v7347
  %v7356 = vand.u32 2147483647, %v7348
  %v7357 = vsub.f32 1.0, %v7349
  %v7358 = vsub.f32 1.0, %v7350
  %v7359 = vsub.f32 1.0, %v7351
  %v7360 = vsub.f32 1.0, %v7352
  %v7361 = vsub.f32 1.0, %v7353
  %v7362 = vsub.f32 1.0, %v7354
  %v7363 = vsub.f32 1.0, %v7355
  %v7364 = vsub.f32 1.0, %v7356
  %v7365 = vmax.f32 %v7357, 0.0
  %v7366 = vmax.f32 %v7358, 0.0
  %v7367 = vmax.f32 %v7359, 0.0
  %v7368 = vmax.f32 %v7360, 0.0
  %v7369 = vmax.f32 %v7361, 0.0
  %v7370 = vmax.f32 %v7362, 0.0
  %v7371 = vmax.f32 %v7363, 0.0
  %v7372 = vmax.f32 %v7364, 0.0
  %7373 = vset.pattern.permute.xlu0 0
  %7374 = vperm.xlu0 %7373, %v7293
  %v7375 = vpop.permute.xlu0 %7374
  %7377 = vset.pattern.permute.xlu0 0
  %7378 = vperm.xlu0 %7377, %v7294
  %v7379 = vpop.permute.xlu0 %7378
  %7381 = vset.pattern.permute.xlu0 0
  %7382 = vperm.xlu0 %7381, %v7295
  %v7383 = vpop.permute.xlu0 %7382
  %7385 = vset.pattern.permute.xlu0 0
  %7386 = vperm.xlu0 %7385, %v7296
  %v7387 = vpop.permute.xlu0 %7386
  %7389 = vset.pattern.permute.xlu0 0
  %7390 = vperm.xlu0 %7389, %v7297
  %v7391 = vpop.permute.xlu0 %7390
  %7393 = vset.pattern.permute.xlu0 0
  %7394 = vperm.xlu0 %7393, %v7298
  %v7395 = vpop.permute.xlu0 %7394
  %7397 = vset.pattern.permute.xlu0 0
  %7398 = vperm.xlu0 %7397, %v7299
  %v7399 = vpop.permute.xlu0 %7398
  %7401 = vset.pattern.permute.xlu0 0
  %7402 = vperm.xlu0 %7401, %v7300
  %v7403 = vpop.permute.xlu0 %7402
  %v7405 = vsub.f32 %v7375, %v134
  %v7406 = vsub.f32 %v7379, %v134
  %v7407 = vsub.f32 %v7383, %v134
  %v7408 = vsub.f32 %v7387, %v134
  %v7409 = vsub.f32 %v7391, %v134
  %v7410 = vsub.f32 %v7395, %v134
  %v7411 = vsub.f32 %v7399, %v134
  %v7412 = vsub.f32 %v7403, %v134
  %v7413 = vand.u32 2147483647, %v7405
  %v7414 = vand.u32 2147483647, %v7406
  %v7415 = vand.u32 2147483647, %v7407
  %v7416 = vand.u32 2147483647, %v7408
  %v7417 = vand.u32 2147483647, %v7409
  %v7418 = vand.u32 2147483647, %v7410
  %v7419 = vand.u32 2147483647, %v7411
  %v7420 = vand.u32 2147483647, %v7412
  %v7421 = vsub.f32 1.0, %v7413
  %v7422 = vsub.f32 1.0, %v7414
  %v7423 = vsub.f32 1.0, %v7415
  %v7424 = vsub.f32 1.0, %v7416
  %v7425 = vsub.f32 1.0, %v7417
  %v7426 = vsub.f32 1.0, %v7418
  %v7427 = vsub.f32 1.0, %v7419
  %v7428 = vsub.f32 1.0, %v7420
  %v7429 = vmax.f32 %v7421, 0.0
  %v7430 = vmax.f32 %v7422, 0.0
  %v7431 = vmax.f32 %v7423, 0.0
  %v7432 = vmax.f32 %v7424, 0.0
  %v7433 = vmax.f32 %v7425, 0.0
  %v7434 = vmax.f32 %v7426, 0.0
  %v7435 = vmax.f32 %v7427, 0.0
  %v7436 = vmax.f32 %v7428, 0.0
  %v7438 = vsel %vm328, %v7365, 0
  %7440 = vmatpush.msra.mxu0 0.0
  %7441 = vmatpush.msra.mxu0 0.0
  %7442 = vmatpush.msra.mxu0 0.0
  %7443 = vmatpush.msra.mxu0 0.0
  %7444 = vmatpush.msra.mxu0 0.0
  %7445 = vmatpush.msra.mxu0 0.0
  %7446 = vmatpush.msra.mxu0 0.0
  %7447 = vmatpush.msra.mxu0 0.0
  %7448 = vmatpush.msra.mxu0 0.0
  %7449 = vmatpush.msra.mxu0 0.0
  %7450 = vmatpush.msra.mxu0 0.0
  %7451 = vmatpush.msra.mxu0 0.0
  %7452 = vmatpush.msra.mxu0 0.0
  %7453 = vmatpush.msra.mxu0 0.0
  %7454 = vmatpush.msra.mxu0 %v53
  %7455 = vmatpush.msra.mxu0 %v52
  %7456 = vmatmul.f32.gmra.mxu0 %v7438
  %v7457 = vpop.f32.mrf.mxu0
  %v7458 = vadd.f32 0.0, %v7457
  %7459 = vdwg.mxu0
  %v7461 = vsel %vm328, %v7366, 0
  %7463 = vmatpush.msra.mxu0 0.0
  %7464 = vmatpush.msra.mxu0 0.0
  %7465 = vmatpush.msra.mxu0 0.0
  %7466 = vmatpush.msra.mxu0 0.0
  %7467 = vmatpush.msra.mxu0 0.0
  %7468 = vmatpush.msra.mxu0 0.0
  %7469 = vmatpush.msra.mxu0 0.0
  %7470 = vmatpush.msra.mxu0 0.0
  %7471 = vmatpush.msra.mxu0 0.0
  %7472 = vmatpush.msra.mxu0 0.0
  %7473 = vmatpush.msra.mxu0 0.0
  %7474 = vmatpush.msra.mxu0 0.0
  %7475 = vmatpush.msra.mxu0 0.0
  %7476 = vmatpush.msra.mxu0 0.0
  %7477 = vmatpush.msra.mxu0 %v55
  %7478 = vmatpush.msra.mxu0 %v54
  %7479 = vmatmul.f32.gmra.mxu0 %v7461
  %v7480 = vpop.f32.mrf.mxu0
  %v7481 = vadd.f32 0.0, %v7480
  %7482 = vdwg.mxu0
  %v7484 = vsel %vm328, %v7367, 0
  %7486 = vmatpush.msra.mxu0 0.0
  %7487 = vmatpush.msra.mxu0 0.0
  %7488 = vmatpush.msra.mxu0 0.0
  %7489 = vmatpush.msra.mxu0 0.0
  %7490 = vmatpush.msra.mxu0 0.0
  %7491 = vmatpush.msra.mxu0 0.0
  %7492 = vmatpush.msra.mxu0 0.0
  %7493 = vmatpush.msra.mxu0 0.0
  %7494 = vmatpush.msra.mxu0 0.0
  %7495 = vmatpush.msra.mxu0 0.0
  %7496 = vmatpush.msra.mxu0 0.0
  %7497 = vmatpush.msra.mxu0 0.0
  %7498 = vmatpush.msra.mxu0 0.0
  %7499 = vmatpush.msra.mxu0 0.0
  %7500 = vmatpush.msra.mxu0 %v57
  %7501 = vmatpush.msra.mxu0 %v56
  %7502 = vmatmul.f32.gmra.mxu0 %v7484
  %v7503 = vpop.f32.mrf.mxu0
  %v7504 = vadd.f32 0.0, %v7503
  %7505 = vdwg.mxu0
  %v7507 = vsel %vm328, %v7368, 0
  %7509 = vmatpush.msra.mxu0 0.0
  %7510 = vmatpush.msra.mxu0 0.0
  %7511 = vmatpush.msra.mxu0 0.0
  %7512 = vmatpush.msra.mxu0 0.0
  %7513 = vmatpush.msra.mxu0 0.0
  %7514 = vmatpush.msra.mxu0 0.0
  %7515 = vmatpush.msra.mxu0 0.0
  %7516 = vmatpush.msra.mxu0 0.0
  %7517 = vmatpush.msra.mxu0 0.0
  %7518 = vmatpush.msra.mxu0 0.0
  %7519 = vmatpush.msra.mxu0 0.0
  %7520 = vmatpush.msra.mxu0 0.0
  %7521 = vmatpush.msra.mxu0 0.0
  %7522 = vmatpush.msra.mxu0 0.0
  %7523 = vmatpush.msra.mxu0 %v59
  %7524 = vmatpush.msra.mxu0 %v58
  %7525 = vmatmul.f32.gmra.mxu0 %v7507
  %v7526 = vpop.f32.mrf.mxu0
  %v7527 = vadd.f32 0.0, %v7526
  %7528 = vdwg.mxu0
  %v7530 = vsel %vm328, %v7369, 0
  %7532 = vmatpush.msra.mxu0 0.0
  %7533 = vmatpush.msra.mxu0 0.0
  %7534 = vmatpush.msra.mxu0 0.0
  %7535 = vmatpush.msra.mxu0 0.0
  %7536 = vmatpush.msra.mxu0 0.0
  %7537 = vmatpush.msra.mxu0 0.0
  %7538 = vmatpush.msra.mxu0 0.0
  %7539 = vmatpush.msra.mxu0 0.0
  %7540 = vmatpush.msra.mxu0 0.0
  %7541 = vmatpush.msra.mxu0 0.0
  %7542 = vmatpush.msra.mxu0 0.0
  %7543 = vmatpush.msra.mxu0 0.0
  %7544 = vmatpush.msra.mxu0 0.0
  %7545 = vmatpush.msra.mxu0 0.0
  %7546 = vmatpush.msra.mxu0 %v61
  %7547 = vmatpush.msra.mxu0 %v60
  %7548 = vmatmul.f32.gmra.mxu0 %v7530
  %v7549 = vpop.f32.mrf.mxu0
  %v7550 = vadd.f32 0.0, %v7549
  %7551 = vdwg.mxu0
  %v7553 = vsel %vm328, %v7370, 0
  %7555 = vmatpush.msra.mxu0 0.0
  %7556 = vmatpush.msra.mxu0 0.0
  %7557 = vmatpush.msra.mxu0 0.0
  %7558 = vmatpush.msra.mxu0 0.0
  %7559 = vmatpush.msra.mxu0 0.0
  %7560 = vmatpush.msra.mxu0 0.0
  %7561 = vmatpush.msra.mxu0 0.0
  %7562 = vmatpush.msra.mxu0 0.0
  %7563 = vmatpush.msra.mxu0 0.0
  %7564 = vmatpush.msra.mxu0 0.0
  %7565 = vmatpush.msra.mxu0 0.0
  %7566 = vmatpush.msra.mxu0 0.0
  %7567 = vmatpush.msra.mxu0 0.0
  %7568 = vmatpush.msra.mxu0 0.0
  %7569 = vmatpush.msra.mxu0 %v63
  %7570 = vmatpush.msra.mxu0 %v62
  %7571 = vmatmul.f32.gmra.mxu0 %v7553
  %v7572 = vpop.f32.mrf.mxu0
  %v7573 = vadd.f32 0.0, %v7572
  %7574 = vdwg.mxu0
  %v7576 = vsel %vm328, %v7371, 0
  %7578 = vmatpush.msra.mxu0 0.0
  %7579 = vmatpush.msra.mxu0 0.0
  %7580 = vmatpush.msra.mxu0 0.0
  %7581 = vmatpush.msra.mxu0 0.0
  %7582 = vmatpush.msra.mxu0 0.0
  %7583 = vmatpush.msra.mxu0 0.0
  %7584 = vmatpush.msra.mxu0 0.0
  %7585 = vmatpush.msra.mxu0 0.0
  %7586 = vmatpush.msra.mxu0 0.0
  %7587 = vmatpush.msra.mxu0 0.0
  %7588 = vmatpush.msra.mxu0 0.0
  %7589 = vmatpush.msra.mxu0 0.0
  %7590 = vmatpush.msra.mxu0 0.0
  %7591 = vmatpush.msra.mxu0 0.0
  %7592 = vmatpush.msra.mxu0 %v65
  %7593 = vmatpush.msra.mxu0 %v64
  %7594 = vmatmul.f32.gmra.mxu0 %v7576
  %v7595 = vpop.f32.mrf.mxu0
  %v7596 = vadd.f32 0.0, %v7595
  %7597 = vdwg.mxu0
  %v7599 = vsel %vm328, %v7372, 0
  %7601 = vmatpush.msra.mxu0 0.0
  %7602 = vmatpush.msra.mxu0 0.0
  %7603 = vmatpush.msra.mxu0 0.0
  %7604 = vmatpush.msra.mxu0 0.0
  %7605 = vmatpush.msra.mxu0 0.0
  %7606 = vmatpush.msra.mxu0 0.0
  %7607 = vmatpush.msra.mxu0 0.0
  %7608 = vmatpush.msra.mxu0 0.0
  %7609 = vmatpush.msra.mxu0 0.0
  %7610 = vmatpush.msra.mxu0 0.0
  %7611 = vmatpush.msra.mxu0 0.0
  %7612 = vmatpush.msra.mxu0 0.0
  %7613 = vmatpush.msra.mxu0 0.0
  %7614 = vmatpush.msra.mxu0 0.0
  %7615 = vmatpush.msra.mxu0 %v67
  %7616 = vmatpush.msra.mxu0 %v66
  %7617 = vmatmul.f32.gmra.mxu0 %v7599
  %v7618 = vpop.f32.mrf.mxu0
  %v7619 = vadd.f32 0.0, %v7618
  %7620 = vdwg.mxu0
  %v7622 = vsel %vm328, %v7458, 0
  %v7625 = vsel %vm328, %v7429, 0
  %7627 = vmatpush.xpose.msra.mxu0 0.0
  %7628 = vmatpush.xpose.msra.mxu0 0.0
  %7629 = vmatpush.xpose.msra.mxu0 0.0
  %7630 = vmatpush.xpose.msra.mxu0 0.0
  %7631 = vmatpush.xpose.msra.mxu0 0.0
  %7632 = vmatpush.xpose.msra.mxu0 0.0
  %7633 = vmatpush.xpose.msra.mxu0 0.0
  %7634 = vmatpush.xpose.msra.mxu0 0.0
  %7635 = vmatpush.xpose.msra.mxu0 0.0
  %7636 = vmatpush.xpose.msra.mxu0 0.0
  %7637 = vmatpush.xpose.msra.mxu0 0.0
  %7638 = vmatpush.xpose.msra.mxu0 0.0
  %7639 = vmatpush.xpose.msra.mxu0 0.0
  %7640 = vmatpush.xpose.msra.mxu0 0.0
  %7641 = vmatpush.xpose.msra.mxu0 0.0
  %7642 = vmatpush.xpose.msra.mxu0 %v7625
  %7643 = vmatmul.f32.gmra.mxu0 %v7622
  %v7644 = vpop.f32.mrf.mxu0
  %v7645 = vadd.f32 0.0, %v7644
  %7646 = vdwg.mxu0
  %v7648 = vsel %vm328, %v7481, 0
  %v7651 = vsel %vm328, %v7430, 0
  %7653 = vmatpush.xpose.msra.mxu0 0.0
  %7654 = vmatpush.xpose.msra.mxu0 0.0
  %7655 = vmatpush.xpose.msra.mxu0 0.0
  %7656 = vmatpush.xpose.msra.mxu0 0.0
  %7657 = vmatpush.xpose.msra.mxu0 0.0
  %7658 = vmatpush.xpose.msra.mxu0 0.0
  %7659 = vmatpush.xpose.msra.mxu0 0.0
  %7660 = vmatpush.xpose.msra.mxu0 0.0
  %7661 = vmatpush.xpose.msra.mxu0 0.0
  %7662 = vmatpush.xpose.msra.mxu0 0.0
  %7663 = vmatpush.xpose.msra.mxu0 0.0
  %7664 = vmatpush.xpose.msra.mxu0 0.0
  %7665 = vmatpush.xpose.msra.mxu0 0.0
  %7666 = vmatpush.xpose.msra.mxu0 0.0
  %7667 = vmatpush.xpose.msra.mxu0 0.0
  %7668 = vmatpush.xpose.msra.mxu0 %v7651
  %7669 = vmatmul.f32.gmra.mxu0 %v7648
  %v7670 = vpop.f32.mrf.mxu0
  %v7671 = vadd.f32 0.0, %v7670
  %7672 = vdwg.mxu0
  %v7674 = vsel %vm328, %v7504, 0
  %v7677 = vsel %vm328, %v7431, 0
  %7679 = vmatpush.xpose.msra.mxu0 0.0
  %7680 = vmatpush.xpose.msra.mxu0 0.0
  %7681 = vmatpush.xpose.msra.mxu0 0.0
  %7682 = vmatpush.xpose.msra.mxu0 0.0
  %7683 = vmatpush.xpose.msra.mxu0 0.0
  %7684 = vmatpush.xpose.msra.mxu0 0.0
  %7685 = vmatpush.xpose.msra.mxu0 0.0
  %7686 = vmatpush.xpose.msra.mxu0 0.0
  %7687 = vmatpush.xpose.msra.mxu0 0.0
  %7688 = vmatpush.xpose.msra.mxu0 0.0
  %7689 = vmatpush.xpose.msra.mxu0 0.0
  %7690 = vmatpush.xpose.msra.mxu0 0.0
  %7691 = vmatpush.xpose.msra.mxu0 0.0
  %7692 = vmatpush.xpose.msra.mxu0 0.0
  %7693 = vmatpush.xpose.msra.mxu0 0.0
  %7694 = vmatpush.xpose.msra.mxu0 %v7677
  %7695 = vmatmul.f32.gmra.mxu0 %v7674
  %v7696 = vpop.f32.mrf.mxu0
  %v7697 = vadd.f32 0.0, %v7696
  %7698 = vdwg.mxu0
  %v7700 = vsel %vm328, %v7527, 0
  %v7703 = vsel %vm328, %v7432, 0
  %7705 = vmatpush.xpose.msra.mxu0 0.0
  %7706 = vmatpush.xpose.msra.mxu0 0.0
  %7707 = vmatpush.xpose.msra.mxu0 0.0
  %7708 = vmatpush.xpose.msra.mxu0 0.0
  %7709 = vmatpush.xpose.msra.mxu0 0.0
  %7710 = vmatpush.xpose.msra.mxu0 0.0
  %7711 = vmatpush.xpose.msra.mxu0 0.0
  %7712 = vmatpush.xpose.msra.mxu0 0.0
  %7713 = vmatpush.xpose.msra.mxu0 0.0
  %7714 = vmatpush.xpose.msra.mxu0 0.0
  %7715 = vmatpush.xpose.msra.mxu0 0.0
  %7716 = vmatpush.xpose.msra.mxu0 0.0
  %7717 = vmatpush.xpose.msra.mxu0 0.0
  %7718 = vmatpush.xpose.msra.mxu0 0.0
  %7719 = vmatpush.xpose.msra.mxu0 0.0
  %7720 = vmatpush.xpose.msra.mxu0 %v7703
  %7721 = vmatmul.f32.gmra.mxu0 %v7700
  %v7722 = vpop.f32.mrf.mxu0
  %v7723 = vadd.f32 0.0, %v7722
  %7724 = vdwg.mxu0
  %v7726 = vsel %vm328, %v7550, 0
  %v7729 = vsel %vm328, %v7433, 0
  %7731 = vmatpush.xpose.msra.mxu0 0.0
  %7732 = vmatpush.xpose.msra.mxu0 0.0
  %7733 = vmatpush.xpose.msra.mxu0 0.0
  %7734 = vmatpush.xpose.msra.mxu0 0.0
  %7735 = vmatpush.xpose.msra.mxu0 0.0
  %7736 = vmatpush.xpose.msra.mxu0 0.0
  %7737 = vmatpush.xpose.msra.mxu0 0.0
  %7738 = vmatpush.xpose.msra.mxu0 0.0
  %7739 = vmatpush.xpose.msra.mxu0 0.0
  %7740 = vmatpush.xpose.msra.mxu0 0.0
  %7741 = vmatpush.xpose.msra.mxu0 0.0
  %7742 = vmatpush.xpose.msra.mxu0 0.0
  %7743 = vmatpush.xpose.msra.mxu0 0.0
  %7744 = vmatpush.xpose.msra.mxu0 0.0
  %7745 = vmatpush.xpose.msra.mxu0 0.0
  %7746 = vmatpush.xpose.msra.mxu0 %v7729
  %7747 = vmatmul.f32.gmra.mxu0 %v7726
  %v7748 = vpop.f32.mrf.mxu0
  %v7749 = vadd.f32 0.0, %v7748
  %7750 = vdwg.mxu0
  %v7752 = vsel %vm328, %v7573, 0
  %v7755 = vsel %vm328, %v7434, 0
  %7757 = vmatpush.xpose.msra.mxu0 0.0
  %7758 = vmatpush.xpose.msra.mxu0 0.0
  %7759 = vmatpush.xpose.msra.mxu0 0.0
  %7760 = vmatpush.xpose.msra.mxu0 0.0
  %7761 = vmatpush.xpose.msra.mxu0 0.0
  %7762 = vmatpush.xpose.msra.mxu0 0.0
  %7763 = vmatpush.xpose.msra.mxu0 0.0
  %7764 = vmatpush.xpose.msra.mxu0 0.0
  %7765 = vmatpush.xpose.msra.mxu0 0.0
  %7766 = vmatpush.xpose.msra.mxu0 0.0
  %7767 = vmatpush.xpose.msra.mxu0 0.0
  %7768 = vmatpush.xpose.msra.mxu0 0.0
  %7769 = vmatpush.xpose.msra.mxu0 0.0
  %7770 = vmatpush.xpose.msra.mxu0 0.0
  %7771 = vmatpush.xpose.msra.mxu0 0.0
  %7772 = vmatpush.xpose.msra.mxu0 %v7755
  %7773 = vmatmul.f32.gmra.mxu0 %v7752
  %v7774 = vpop.f32.mrf.mxu0
  %v7775 = vadd.f32 0.0, %v7774
  %7776 = vdwg.mxu0
  %v7778 = vsel %vm328, %v7596, 0
  %v7781 = vsel %vm328, %v7435, 0
  %7783 = vmatpush.xpose.msra.mxu0 0.0
  %7784 = vmatpush.xpose.msra.mxu0 0.0
  %7785 = vmatpush.xpose.msra.mxu0 0.0
  %7786 = vmatpush.xpose.msra.mxu0 0.0
  %7787 = vmatpush.xpose.msra.mxu0 0.0
  %7788 = vmatpush.xpose.msra.mxu0 0.0
  %7789 = vmatpush.xpose.msra.mxu0 0.0
  %7790 = vmatpush.xpose.msra.mxu0 0.0
  %7791 = vmatpush.xpose.msra.mxu0 0.0
  %7792 = vmatpush.xpose.msra.mxu0 0.0
  %7793 = vmatpush.xpose.msra.mxu0 0.0
  %7794 = vmatpush.xpose.msra.mxu0 0.0
  %7795 = vmatpush.xpose.msra.mxu0 0.0
  %7796 = vmatpush.xpose.msra.mxu0 0.0
  %7797 = vmatpush.xpose.msra.mxu0 0.0
  %7798 = vmatpush.xpose.msra.mxu0 %v7781
  %7799 = vmatmul.f32.gmra.mxu0 %v7778
  %v7800 = vpop.f32.mrf.mxu0
  %v7801 = vadd.f32 0.0, %v7800
  %7802 = vdwg.mxu0
  %v7804 = vsel %vm328, %v7619, 0
  %v7807 = vsel %vm328, %v7436, 0
  %7809 = vmatpush.xpose.msra.mxu0 0.0
  %7810 = vmatpush.xpose.msra.mxu0 0.0
  %7811 = vmatpush.xpose.msra.mxu0 0.0
  %7812 = vmatpush.xpose.msra.mxu0 0.0
  %7813 = vmatpush.xpose.msra.mxu0 0.0
  %7814 = vmatpush.xpose.msra.mxu0 0.0
  %7815 = vmatpush.xpose.msra.mxu0 0.0
  %7816 = vmatpush.xpose.msra.mxu0 0.0
  %7817 = vmatpush.xpose.msra.mxu0 0.0
  %7818 = vmatpush.xpose.msra.mxu0 0.0
  %7819 = vmatpush.xpose.msra.mxu0 0.0
  %7820 = vmatpush.xpose.msra.mxu0 0.0
  %7821 = vmatpush.xpose.msra.mxu0 0.0
  %7822 = vmatpush.xpose.msra.mxu0 0.0
  %7823 = vmatpush.xpose.msra.mxu0 0.0
  %7824 = vmatpush.xpose.msra.mxu0 %v7807
  %7825 = vmatmul.f32.gmra.mxu0 %v7804
  %v7826 = vpop.f32.mrf.mxu0
  %v7827 = vadd.f32 0.0, %v7826
  %7828 = vdwg.mxu0
  %7829 = vst.msk [vmem:[#allocation3] sm:$0xff] %vm721, %v7645
  %7830 = vst.msk [vmem:[#allocation3 + $0x10] sm:$0xff] %vm721, %v7671
  %7831 = vst.msk [vmem:[#allocation3 + $0x20] sm:$0xff] %vm721, %v7697
  %7832 = vst.msk [vmem:[#allocation3 + $0x30] sm:$0xff] %vm721, %v7723
  %7833 = vst.msk [vmem:[#allocation3 + $0x40] sm:$0xff] %vm721, %v7749
  %7834 = vst.msk [vmem:[#allocation3 + $0x50] sm:$0xff] %vm721, %v7775
  %7835 = vst.msk [vmem:[#allocation3 + $0x60] sm:$0xff] %vm721, %v7801
  %7836 = vst.msk [vmem:[#allocation3 + $0x70] sm:$0xff] %vm721, %v7827
  %v7837 = vadd.f32 %v730, %v7261
  %v7838 = vadd.f32 %v730, %v7262
  %v7839 = vadd.f32 %v730, %v7263
  %v7840 = vadd.f32 %v730, %v7264
  %v7841 = vadd.f32 %v730, %v7265
  %v7842 = vadd.f32 %v730, %v7266
  %v7843 = vadd.f32 %v730, %v7267
  %v7844 = vadd.f32 %v730, %v7268
  %v7845 = vadd.f32 %v7837, 1.0
  %v7846 = vadd.f32 %v7838, 1.0
  %v7847 = vadd.f32 %v7839, 1.0
  %v7848 = vadd.f32 %v7840, 1.0
  %v7849 = vadd.f32 %v7841, 1.0
  %v7850 = vadd.f32 %v7842, 1.0
  %v7851 = vadd.f32 %v7843, 1.0
  %v7852 = vadd.f32 %v7844, 1.0
  %v7853 = vmul.f32 %v7845, 7.5
  %v7854 = vmul.f32 %v7846, 7.5
  %v7855 = vmul.f32 %v7847, 7.5
  %v7856 = vmul.f32 %v7848, 7.5
  %v7857 = vmul.f32 %v7849, 7.5
  %v7858 = vmul.f32 %v7850, 7.5
  %v7859 = vmul.f32 %v7851, 7.5
  %v7860 = vmul.f32 %v7852, 7.5
  %7862 = vset.pattern.permute.xlu0 1
  %7863 = vperm.xlu0 %7862, %v7853
  %v7864 = vpop.permute.xlu0 %7863
  %7867 = vset.pattern.permute.xlu0 1
  %7868 = vperm.xlu0 %7867, %v7854
  %v7869 = vpop.permute.xlu0 %7868
  %7872 = vset.pattern.permute.xlu0 1
  %7873 = vperm.xlu0 %7872, %v7855
  %v7874 = vpop.permute.xlu0 %7873
  %7877 = vset.pattern.permute.xlu0 1
  %7878 = vperm.xlu0 %7877, %v7856
  %v7879 = vpop.permute.xlu0 %7878
  %7882 = vset.pattern.permute.xlu0 1
  %7883 = vperm.xlu0 %7882, %v7857
  %v7884 = vpop.permute.xlu0 %7883
  %7887 = vset.pattern.permute.xlu0 1
  %7888 = vperm.xlu0 %7887, %v7858
  %v7889 = vpop.permute.xlu0 %7888
  %7892 = vset.pattern.permute.xlu0 1
  %7893 = vperm.xlu0 %7892, %v7859
  %v7894 = vpop.permute.xlu0 %7893
  %7897 = vset.pattern.permute.xlu0 1
  %7898 = vperm.xlu0 %7897, %v7860
  %v7899 = vpop.permute.xlu0 %7898
  %v7901 = vsub.f32 %v7864, %v134
  %v7902 = vsub.f32 %v7869, %v134
  %v7903 = vsub.f32 %v7874, %v134
  %v7904 = vsub.f32 %v7879, %v134
  %v7905 = vsub.f32 %v7884, %v134
  %v7906 = vsub.f32 %v7889, %v134
  %v7907 = vsub.f32 %v7894, %v134
  %v7908 = vsub.f32 %v7899, %v134
  %v7909 = vand.u32 2147483647, %v7901
  %v7910 = vand.u32 2147483647, %v7902
  %v7911 = vand.u32 2147483647, %v7903
  %v7912 = vand.u32 2147483647, %v7904
  %v7913 = vand.u32 2147483647, %v7905
  %v7914 = vand.u32 2147483647, %v7906
  %v7915 = vand.u32 2147483647, %v7907
  %v7916 = vand.u32 2147483647, %v7908
  %v7917 = vsub.f32 1.0, %v7909
  %v7918 = vsub.f32 1.0, %v7910
  %v7919 = vsub.f32 1.0, %v7911
  %v7920 = vsub.f32 1.0, %v7912
  %v7921 = vsub.f32 1.0, %v7913
  %v7922 = vsub.f32 1.0, %v7914
  %v7923 = vsub.f32 1.0, %v7915
  %v7924 = vsub.f32 1.0, %v7916
  %v7925 = vmax.f32 %v7917, 0.0
  %v7926 = vmax.f32 %v7918, 0.0
  %v7927 = vmax.f32 %v7919, 0.0
  %v7928 = vmax.f32 %v7920, 0.0
  %v7929 = vmax.f32 %v7921, 0.0
  %v7930 = vmax.f32 %v7922, 0.0
  %v7931 = vmax.f32 %v7923, 0.0
  %v7932 = vmax.f32 %v7924, 0.0
  %7933 = vset.pattern.permute.xlu0 0
  %7934 = vperm.xlu0 %7933, %v7853
  %v7935 = vpop.permute.xlu0 %7934
  %7937 = vset.pattern.permute.xlu0 0
  %7938 = vperm.xlu0 %7937, %v7854
  %v7939 = vpop.permute.xlu0 %7938
  %7941 = vset.pattern.permute.xlu0 0
  %7942 = vperm.xlu0 %7941, %v7855
  %v7943 = vpop.permute.xlu0 %7942
  %7945 = vset.pattern.permute.xlu0 0
  %7946 = vperm.xlu0 %7945, %v7856
  %v7947 = vpop.permute.xlu0 %7946
  %7949 = vset.pattern.permute.xlu0 0
  %7950 = vperm.xlu0 %7949, %v7857
  %v7951 = vpop.permute.xlu0 %7950
  %7953 = vset.pattern.permute.xlu0 0
  %7954 = vperm.xlu0 %7953, %v7858
  %v7955 = vpop.permute.xlu0 %7954
  %7957 = vset.pattern.permute.xlu0 0
  %7958 = vperm.xlu0 %7957, %v7859
  %v7959 = vpop.permute.xlu0 %7958
  %7961 = vset.pattern.permute.xlu0 0
  %7962 = vperm.xlu0 %7961, %v7860
  %v7963 = vpop.permute.xlu0 %7962
  %v7965 = vsub.f32 %v7935, %v134
  %v7966 = vsub.f32 %v7939, %v134
  %v7967 = vsub.f32 %v7943, %v134
  %v7968 = vsub.f32 %v7947, %v134
  %v7969 = vsub.f32 %v7951, %v134
  %v7970 = vsub.f32 %v7955, %v134
  %v7971 = vsub.f32 %v7959, %v134
  %v7972 = vsub.f32 %v7963, %v134
  %v7973 = vand.u32 2147483647, %v7965
  %v7974 = vand.u32 2147483647, %v7966
  %v7975 = vand.u32 2147483647, %v7967
  %v7976 = vand.u32 2147483647, %v7968
  %v7977 = vand.u32 2147483647, %v7969
  %v7978 = vand.u32 2147483647, %v7970
  %v7979 = vand.u32 2147483647, %v7971
  %v7980 = vand.u32 2147483647, %v7972
  %v7981 = vsub.f32 1.0, %v7973
  %v7982 = vsub.f32 1.0, %v7974
  %v7983 = vsub.f32 1.0, %v7975
  %v7984 = vsub.f32 1.0, %v7976
  %v7985 = vsub.f32 1.0, %v7977
  %v7986 = vsub.f32 1.0, %v7978
  %v7987 = vsub.f32 1.0, %v7979
  %v7988 = vsub.f32 1.0, %v7980
  %v7989 = vmax.f32 %v7981, 0.0
  %v7990 = vmax.f32 %v7982, 0.0
  %v7991 = vmax.f32 %v7983, 0.0
  %v7992 = vmax.f32 %v7984, 0.0
  %v7993 = vmax.f32 %v7985, 0.0
  %v7994 = vmax.f32 %v7986, 0.0
  %v7995 = vmax.f32 %v7987, 0.0
  %v7996 = vmax.f32 %v7988, 0.0
  %v7998 = vsel %vm328, %v7925, 0
  %8000 = vmatpush.msra.mxu0 0.0
  %8001 = vmatpush.msra.mxu0 0.0
  %8002 = vmatpush.msra.mxu0 0.0
  %8003 = vmatpush.msra.mxu0 0.0
  %8004 = vmatpush.msra.mxu0 0.0
  %8005 = vmatpush.msra.mxu0 0.0
  %8006 = vmatpush.msra.mxu0 0.0
  %8007 = vmatpush.msra.mxu0 0.0
  %8008 = vmatpush.msra.mxu0 0.0
  %8009 = vmatpush.msra.mxu0 0.0
  %8010 = vmatpush.msra.mxu0 0.0
  %8011 = vmatpush.msra.mxu0 0.0
  %8012 = vmatpush.msra.mxu0 0.0
  %8013 = vmatpush.msra.mxu0 0.0
  %8014 = vmatpush.msra.mxu0 %v53
  %8015 = vmatpush.msra.mxu0 %v52
  %8016 = vmatmul.f32.gmra.mxu0 %v7998
  %v8017 = vpop.f32.mrf.mxu0
  %v8018 = vadd.f32 0.0, %v8017
  %8019 = vdwg.mxu0
  %v8021 = vsel %vm328, %v7926, 0
  %8023 = vmatpush.msra.mxu0 0.0
  %8024 = vmatpush.msra.mxu0 0.0
  %8025 = vmatpush.msra.mxu0 0.0
  %8026 = vmatpush.msra.mxu0 0.0
  %8027 = vmatpush.msra.mxu0 0.0
  %8028 = vmatpush.msra.mxu0 0.0
  %8029 = vmatpush.msra.mxu0 0.0
  %8030 = vmatpush.msra.mxu0 0.0
  %8031 = vmatpush.msra.mxu0 0.0
  %8032 = vmatpush.msra.mxu0 0.0
  %8033 = vmatpush.msra.mxu0 0.0
  %8034 = vmatpush.msra.mxu0 0.0
  %8035 = vmatpush.msra.mxu0 0.0
  %8036 = vmatpush.msra.mxu0 0.0
  %8037 = vmatpush.msra.mxu0 %v55
  %8038 = vmatpush.msra.mxu0 %v54
  %8039 = vmatmul.f32.gmra.mxu0 %v8021
  %v8040 = vpop.f32.mrf.mxu0
  %v8041 = vadd.f32 0.0, %v8040
  %8042 = vdwg.mxu0
  %v8044 = vsel %vm328, %v7927, 0
  %8046 = vmatpush.msra.mxu0 0.0
  %8047 = vmatpush.msra.mxu0 0.0
  %8048 = vmatpush.msra.mxu0 0.0
  %8049 = vmatpush.msra.mxu0 0.0
  %8050 = vmatpush.msra.mxu0 0.0
  %8051 = vmatpush.msra.mxu0 0.0
  %8052 = vmatpush.msra.mxu0 0.0
  %8053 = vmatpush.msra.mxu0 0.0
  %8054 = vmatpush.msra.mxu0 0.0
  %8055 = vmatpush.msra.mxu0 0.0
  %8056 = vmatpush.msra.mxu0 0.0
  %8057 = vmatpush.msra.mxu0 0.0
  %8058 = vmatpush.msra.mxu0 0.0
  %8059 = vmatpush.msra.mxu0 0.0
  %8060 = vmatpush.msra.mxu0 %v57
  %8061 = vmatpush.msra.mxu0 %v56
  %8062 = vmatmul.f32.gmra.mxu0 %v8044
  %v8063 = vpop.f32.mrf.mxu0
  %v8064 = vadd.f32 0.0, %v8063
  %8065 = vdwg.mxu0
  %v8067 = vsel %vm328, %v7928, 0
  %8069 = vmatpush.msra.mxu0 0.0
  %8070 = vmatpush.msra.mxu0 0.0
  %8071 = vmatpush.msra.mxu0 0.0
  %8072 = vmatpush.msra.mxu0 0.0
  %8073 = vmatpush.msra.mxu0 0.0
  %8074 = vmatpush.msra.mxu0 0.0
  %8075 = vmatpush.msra.mxu0 0.0
  %8076 = vmatpush.msra.mxu0 0.0
  %8077 = vmatpush.msra.mxu0 0.0
  %8078 = vmatpush.msra.mxu0 0.0
  %8079 = vmatpush.msra.mxu0 0.0
  %8080 = vmatpush.msra.mxu0 0.0
  %8081 = vmatpush.msra.mxu0 0.0
  %8082 = vmatpush.msra.mxu0 0.0
  %8083 = vmatpush.msra.mxu0 %v59
  %8084 = vmatpush.msra.mxu0 %v58
  %8085 = vmatmul.f32.gmra.mxu0 %v8067
  %v8086 = vpop.f32.mrf.mxu0
  %v8087 = vadd.f32 0.0, %v8086
  %8088 = vdwg.mxu0
  %v8090 = vsel %vm328, %v7929, 0
  %8092 = vmatpush.msra.mxu0 0.0
  %8093 = vmatpush.msra.mxu0 0.0
  %8094 = vmatpush.msra.mxu0 0.0
  %8095 = vmatpush.msra.mxu0 0.0
  %8096 = vmatpush.msra.mxu0 0.0
  %8097 = vmatpush.msra.mxu0 0.0
  %8098 = vmatpush.msra.mxu0 0.0
  %8099 = vmatpush.msra.mxu0 0.0
  %8100 = vmatpush.msra.mxu0 0.0
  %8101 = vmatpush.msra.mxu0 0.0
  %8102 = vmatpush.msra.mxu0 0.0
  %8103 = vmatpush.msra.mxu0 0.0
  %8104 = vmatpush.msra.mxu0 0.0
  %8105 = vmatpush.msra.mxu0 0.0
  %8106 = vmatpush.msra.mxu0 %v61
  %8107 = vmatpush.msra.mxu0 %v60
  %8108 = vmatmul.f32.gmra.mxu0 %v8090
  %v8109 = vpop.f32.mrf.mxu0
  %v8110 = vadd.f32 0.0, %v8109
  %8111 = vdwg.mxu0
  %v8113 = vsel %vm328, %v7930, 0
  %8115 = vmatpush.msra.mxu0 0.0
  %8116 = vmatpush.msra.mxu0 0.0
  %8117 = vmatpush.msra.mxu0 0.0
  %8118 = vmatpush.msra.mxu0 0.0
  %8119 = vmatpush.msra.mxu0 0.0
  %8120 = vmatpush.msra.mxu0 0.0
  %8121 = vmatpush.msra.mxu0 0.0
  %8122 = vmatpush.msra.mxu0 0.0
  %8123 = vmatpush.msra.mxu0 0.0
  %8124 = vmatpush.msra.mxu0 0.0
  %8125 = vmatpush.msra.mxu0 0.0
  %8126 = vmatpush.msra.mxu0 0.0
  %8127 = vmatpush.msra.mxu0 0.0
  %8128 = vmatpush.msra.mxu0 0.0
  %8129 = vmatpush.msra.mxu0 %v63
  %8130 = vmatpush.msra.mxu0 %v62
  %8131 = vmatmul.f32.gmra.mxu0 %v8113
  %v8132 = vpop.f32.mrf.mxu0
  %v8133 = vadd.f32 0.0, %v8132
  %8134 = vdwg.mxu0
  %v8136 = vsel %vm328, %v7931, 0
  %8138 = vmatpush.msra.mxu0 0.0
  %8139 = vmatpush.msra.mxu0 0.0
  %8140 = vmatpush.msra.mxu0 0.0
  %8141 = vmatpush.msra.mxu0 0.0
  %8142 = vmatpush.msra.mxu0 0.0
  %8143 = vmatpush.msra.mxu0 0.0
  %8144 = vmatpush.msra.mxu0 0.0
  %8145 = vmatpush.msra.mxu0 0.0
  %8146 = vmatpush.msra.mxu0 0.0
  %8147 = vmatpush.msra.mxu0 0.0
  %8148 = vmatpush.msra.mxu0 0.0
  %8149 = vmatpush.msra.mxu0 0.0
  %8150 = vmatpush.msra.mxu0 0.0
  %8151 = vmatpush.msra.mxu0 0.0
  %8152 = vmatpush.msra.mxu0 %v65
  %8153 = vmatpush.msra.mxu0 %v64
  %8154 = vmatmul.f32.gmra.mxu0 %v8136
  %v8155 = vpop.f32.mrf.mxu0
  %v8156 = vadd.f32 0.0, %v8155
  %8157 = vdwg.mxu0
  %v8159 = vsel %vm328, %v7932, 0
  %8161 = vmatpush.msra.mxu0 0.0
  %8162 = vmatpush.msra.mxu0 0.0
  %8163 = vmatpush.msra.mxu0 0.0
  %8164 = vmatpush.msra.mxu0 0.0
  %8165 = vmatpush.msra.mxu0 0.0
  %8166 = vmatpush.msra.mxu0 0.0
  %8167 = vmatpush.msra.mxu0 0.0
  %8168 = vmatpush.msra.mxu0 0.0
  %8169 = vmatpush.msra.mxu0 0.0
  %8170 = vmatpush.msra.mxu0 0.0
  %8171 = vmatpush.msra.mxu0 0.0
  %8172 = vmatpush.msra.mxu0 0.0
  %8173 = vmatpush.msra.mxu0 0.0
  %8174 = vmatpush.msra.mxu0 0.0
  %8175 = vmatpush.msra.mxu0 %v67
  %8176 = vmatpush.msra.mxu0 %v66
  %8177 = vmatmul.f32.gmra.mxu0 %v8159
  %v8178 = vpop.f32.mrf.mxu0
  %v8179 = vadd.f32 0.0, %v8178
  %8180 = vdwg.mxu0
  %v8182 = vsel %vm328, %v8018, 0
  %v8185 = vsel %vm328, %v7989, 0
  %8187 = vmatpush.xpose.msra.mxu0 0.0
  %8188 = vmatpush.xpose.msra.mxu0 0.0
  %8189 = vmatpush.xpose.msra.mxu0 0.0
  %8190 = vmatpush.xpose.msra.mxu0 0.0
  %8191 = vmatpush.xpose.msra.mxu0 0.0
  %8192 = vmatpush.xpose.msra.mxu0 0.0
  %8193 = vmatpush.xpose.msra.mxu0 0.0
  %8194 = vmatpush.xpose.msra.mxu0 0.0
  %8195 = vmatpush.xpose.msra.mxu0 0.0
  %8196 = vmatpush.xpose.msra.mxu0 0.0
  %8197 = vmatpush.xpose.msra.mxu0 0.0
  %8198 = vmatpush.xpose.msra.mxu0 0.0
  %8199 = vmatpush.xpose.msra.mxu0 0.0
  %8200 = vmatpush.xpose.msra.mxu0 0.0
  %8201 = vmatpush.xpose.msra.mxu0 0.0
  %8202 = vmatpush.xpose.msra.mxu0 %v8185
  %8203 = vmatmul.f32.gmra.mxu0 %v8182
  %v8204 = vpop.f32.mrf.mxu0
  %v8205 = vadd.f32 0.0, %v8204
  %8206 = vdwg.mxu0
  %v8208 = vsel %vm328, %v8041, 0
  %v8211 = vsel %vm328, %v7990, 0
  %8213 = vmatpush.xpose.msra.mxu0 0.0
  %8214 = vmatpush.xpose.msra.mxu0 0.0
  %8215 = vmatpush.xpose.msra.mxu0 0.0
  %8216 = vmatpush.xpose.msra.mxu0 0.0
  %8217 = vmatpush.xpose.msra.mxu0 0.0
  %8218 = vmatpush.xpose.msra.mxu0 0.0
  %8219 = vmatpush.xpose.msra.mxu0 0.0
  %8220 = vmatpush.xpose.msra.mxu0 0.0
  %8221 = vmatpush.xpose.msra.mxu0 0.0
  %8222 = vmatpush.xpose.msra.mxu0 0.0
  %8223 = vmatpush.xpose.msra.mxu0 0.0
  %8224 = vmatpush.xpose.msra.mxu0 0.0
  %8225 = vmatpush.xpose.msra.mxu0 0.0
  %8226 = vmatpush.xpose.msra.mxu0 0.0
  %8227 = vmatpush.xpose.msra.mxu0 0.0
  %8228 = vmatpush.xpose.msra.mxu0 %v8211
  %8229 = vmatmul.f32.gmra.mxu0 %v8208
  %v8230 = vpop.f32.mrf.mxu0
  %v8231 = vadd.f32 0.0, %v8230
  %8232 = vdwg.mxu0
  %v8234 = vsel %vm328, %v8064, 0
  %v8237 = vsel %vm328, %v7991, 0
  %8239 = vmatpush.xpose.msra.mxu0 0.0
  %8240 = vmatpush.xpose.msra.mxu0 0.0
  %8241 = vmatpush.xpose.msra.mxu0 0.0
  %8242 = vmatpush.xpose.msra.mxu0 0.0
  %8243 = vmatpush.xpose.msra.mxu0 0.0
  %8244 = vmatpush.xpose.msra.mxu0 0.0
  %8245 = vmatpush.xpose.msra.mxu0 0.0
  %8246 = vmatpush.xpose.msra.mxu0 0.0
  %8247 = vmatpush.xpose.msra.mxu0 0.0
  %8248 = vmatpush.xpose.msra.mxu0 0.0
  %8249 = vmatpush.xpose.msra.mxu0 0.0
  %8250 = vmatpush.xpose.msra.mxu0 0.0
  %8251 = vmatpush.xpose.msra.mxu0 0.0
  %8252 = vmatpush.xpose.msra.mxu0 0.0
  %8253 = vmatpush.xpose.msra.mxu0 0.0
  %8254 = vmatpush.xpose.msra.mxu0 %v8237
  %8255 = vmatmul.f32.gmra.mxu0 %v8234
  %v8256 = vpop.f32.mrf.mxu0
  %v8257 = vadd.f32 0.0, %v8256
  %8258 = vdwg.mxu0
  %v8260 = vsel %vm328, %v8087, 0
  %v8263 = vsel %vm328, %v7992, 0
  %8265 = vmatpush.xpose.msra.mxu0 0.0
  %8266 = vmatpush.xpose.msra.mxu0 0.0
  %8267 = vmatpush.xpose.msra.mxu0 0.0
  %8268 = vmatpush.xpose.msra.mxu0 0.0
  %8269 = vmatpush.xpose.msra.mxu0 0.0
  %8270 = vmatpush.xpose.msra.mxu0 0.0
  %8271 = vmatpush.xpose.msra.mxu0 0.0
  %8272 = vmatpush.xpose.msra.mxu0 0.0
  %8273 = vmatpush.xpose.msra.mxu0 0.0
  %8274 = vmatpush.xpose.msra.mxu0 0.0
  %8275 = vmatpush.xpose.msra.mxu0 0.0
  %8276 = vmatpush.xpose.msra.mxu0 0.0
  %8277 = vmatpush.xpose.msra.mxu0 0.0
  %8278 = vmatpush.xpose.msra.mxu0 0.0
  %8279 = vmatpush.xpose.msra.mxu0 0.0
  %8280 = vmatpush.xpose.msra.mxu0 %v8263
  %8281 = vmatmul.f32.gmra.mxu0 %v8260
  %v8282 = vpop.f32.mrf.mxu0
  %v8283 = vadd.f32 0.0, %v8282
  %8284 = vdwg.mxu0
  %v8286 = vsel %vm328, %v8110, 0
  %v8289 = vsel %vm328, %v7993, 0
  %8291 = vmatpush.xpose.msra.mxu0 0.0
  %8292 = vmatpush.xpose.msra.mxu0 0.0
  %8293 = vmatpush.xpose.msra.mxu0 0.0
  %8294 = vmatpush.xpose.msra.mxu0 0.0
  %8295 = vmatpush.xpose.msra.mxu0 0.0
  %8296 = vmatpush.xpose.msra.mxu0 0.0
  %8297 = vmatpush.xpose.msra.mxu0 0.0
  %8298 = vmatpush.xpose.msra.mxu0 0.0
  %8299 = vmatpush.xpose.msra.mxu0 0.0
  %8300 = vmatpush.xpose.msra.mxu0 0.0
  %8301 = vmatpush.xpose.msra.mxu0 0.0
  %8302 = vmatpush.xpose.msra.mxu0 0.0
  %8303 = vmatpush.xpose.msra.mxu0 0.0
  %8304 = vmatpush.xpose.msra.mxu0 0.0
  %8305 = vmatpush.xpose.msra.mxu0 0.0
  %8306 = vmatpush.xpose.msra.mxu0 %v8289
  %8307 = vmatmul.f32.gmra.mxu0 %v8286
  %v8308 = vpop.f32.mrf.mxu0
  %v8309 = vadd.f32 0.0, %v8308
  %8310 = vdwg.mxu0
  %v8312 = vsel %vm328, %v8133, 0
  %v8315 = vsel %vm328, %v7994, 0
  %8317 = vmatpush.xpose.msra.mxu0 0.0
  %8318 = vmatpush.xpose.msra.mxu0 0.0
  %8319 = vmatpush.xpose.msra.mxu0 0.0
  %8320 = vmatpush.xpose.msra.mxu0 0.0
  %8321 = vmatpush.xpose.msra.mxu0 0.0
  %8322 = vmatpush.xpose.msra.mxu0 0.0
  %8323 = vmatpush.xpose.msra.mxu0 0.0
  %8324 = vmatpush.xpose.msra.mxu0 0.0
  %8325 = vmatpush.xpose.msra.mxu0 0.0
  %8326 = vmatpush.xpose.msra.mxu0 0.0
  %8327 = vmatpush.xpose.msra.mxu0 0.0
  %8328 = vmatpush.xpose.msra.mxu0 0.0
  %8329 = vmatpush.xpose.msra.mxu0 0.0
  %8330 = vmatpush.xpose.msra.mxu0 0.0
  %8331 = vmatpush.xpose.msra.mxu0 0.0
  %8332 = vmatpush.xpose.msra.mxu0 %v8315
  %8333 = vmatmul.f32.gmra.mxu0 %v8312
  %v8334 = vpop.f32.mrf.mxu0
  %v8335 = vadd.f32 0.0, %v8334
  %8336 = vdwg.mxu0
  %v8338 = vsel %vm328, %v8156, 0
  %v8341 = vsel %vm328, %v7995, 0
  %8343 = vmatpush.xpose.msra.mxu0 0.0
  %8344 = vmatpush.xpose.msra.mxu0 0.0
  %8345 = vmatpush.xpose.msra.mxu0 0.0
  %8346 = vmatpush.xpose.msra.mxu0 0.0
  %8347 = vmatpush.xpose.msra.mxu0 0.0
  %8348 = vmatpush.xpose.msra.mxu0 0.0
  %8349 = vmatpush.xpose.msra.mxu0 0.0
  %8350 = vmatpush.xpose.msra.mxu0 0.0
  %8351 = vmatpush.xpose.msra.mxu0 0.0
  %8352 = vmatpush.xpose.msra.mxu0 0.0
  %8353 = vmatpush.xpose.msra.mxu0 0.0
  %8354 = vmatpush.xpose.msra.mxu0 0.0
  %8355 = vmatpush.xpose.msra.mxu0 0.0
  %8356 = vmatpush.xpose.msra.mxu0 0.0
  %8357 = vmatpush.xpose.msra.mxu0 0.0
  %8358 = vmatpush.xpose.msra.mxu0 %v8341
  %8359 = vmatmul.f32.gmra.mxu0 %v8338
  %v8360 = vpop.f32.mrf.mxu0
  %v8361 = vadd.f32 0.0, %v8360
  %8362 = vdwg.mxu0
  %v8364 = vsel %vm328, %v8179, 0
  %v8367 = vsel %vm328, %v7996, 0
  %8369 = vmatpush.xpose.msra.mxu0 0.0
  %8370 = vmatpush.xpose.msra.mxu0 0.0
  %8371 = vmatpush.xpose.msra.mxu0 0.0
  %8372 = vmatpush.xpose.msra.mxu0 0.0
  %8373 = vmatpush.xpose.msra.mxu0 0.0
  %8374 = vmatpush.xpose.msra.mxu0 0.0
  %8375 = vmatpush.xpose.msra.mxu0 0.0
  %8376 = vmatpush.xpose.msra.mxu0 0.0
  %8377 = vmatpush.xpose.msra.mxu0 0.0
  %8378 = vmatpush.xpose.msra.mxu0 0.0
  %8379 = vmatpush.xpose.msra.mxu0 0.0
  %8380 = vmatpush.xpose.msra.mxu0 0.0
  %8381 = vmatpush.xpose.msra.mxu0 0.0
  %8382 = vmatpush.xpose.msra.mxu0 0.0
  %8383 = vmatpush.xpose.msra.mxu0 0.0
  %8384 = vmatpush.xpose.msra.mxu0 %v8367
  %8385 = vmatmul.f32.gmra.mxu0 %v8364
  %v8386 = vpop.f32.mrf.mxu0
  %v8387 = vadd.f32 0.0, %v8386
  %8388 = vdwg.mxu0
  %8389 = vst.msk [vmem:[#allocation3 + $0x8] sm:$0xff] %vm721, %v8205
  %8390 = vst.msk [vmem:[#allocation3 + $0x18] sm:$0xff] %vm721, %v8231
  %8391 = vst.msk [vmem:[#allocation3 + $0x28] sm:$0xff] %vm721, %v8257
  %8392 = vst.msk [vmem:[#allocation3 + $0x38] sm:$0xff] %vm721, %v8283
  %8393 = vst.msk [vmem:[#allocation3 + $0x48] sm:$0xff] %vm721, %v8309
  %8394 = vst.msk [vmem:[#allocation3 + $0x58] sm:$0xff] %vm721, %v8335
  %8395 = vst.msk [vmem:[#allocation3 + $0x68] sm:$0xff] %vm721, %v8361
  %8396 = vst.msk [vmem:[#allocation3 + $0x78] sm:$0xff] %vm721, %v8387
  %v8397 = vld [vmem:[#allocation3] sm:$0x1]
  %v8398 = vld [vmem:[#allocation3 + $0x10] sm:$0x1]
  %v8399 = vld [vmem:[#allocation3 + $0x20] sm:$0x1]
  %v8400 = vld [vmem:[#allocation3 + $0x30] sm:$0x1]
  %v8401 = vld [vmem:[#allocation3 + $0x40] sm:$0x1]
  %v8402 = vld [vmem:[#allocation3 + $0x50] sm:$0x1]
  %v8403 = vld [vmem:[#allocation3 + $0x60] sm:$0x1]
  %v8404 = vld [vmem:[#allocation3 + $0x70] sm:$0x1]
  %v8405 = vld [vmem:[#allocation3 + $0x1] sm:$0x1]
  %v8406 = vld [vmem:[#allocation3 + $0x11] sm:$0x1]
  %v8407 = vld [vmem:[#allocation3 + $0x21] sm:$0x1]
  %v8408 = vld [vmem:[#allocation3 + $0x31] sm:$0x1]
  %v8409 = vld [vmem:[#allocation3 + $0x41] sm:$0x1]
  %v8410 = vld [vmem:[#allocation3 + $0x51] sm:$0x1]
  %v8411 = vld [vmem:[#allocation3 + $0x61] sm:$0x1]
  %v8412 = vld [vmem:[#allocation3 + $0x71] sm:$0x1]
  %v8421 = vrot.slane %v8406, 7
  %v8422 = vsel %vm1316, %v8421, %v8405
  %v8423 = vrot.slane %v8407, 6
  %v8424 = vsel %vm1319, %v8423, %v8422
  %v8425 = vrot.slane %v8408, 5
  %v8426 = vsel %vm1322, %v8425, %v8424
  %v8427 = vrot.slane %v8409, 4
  %v8428 = vsel %vm1325, %v8427, %v8426
  %v8429 = vrot.slane %v8410, 3
  %v8430 = vsel %vm1328, %v8429, %v8428
  %v8431 = vrot.slane %v8411, 2
  %v8432 = vsel %vm1331, %v8431, %v8430
  %v8433 = vrot.slane %v8412, 1
  %v8434 = vsel %vm1334, %v8433, %v8432
  %v8435 = vsel %vm721, %v8434, 0
  %8437 = vmatpush.msra.mxu0 0.0
  %8438 = vmatpush.msra.mxu0 0.0
  %8439 = vmatpush.msra.mxu0 0.0
  %8440 = vmatpush.msra.mxu0 0.0
  %8441 = vmatpush.msra.mxu0 0.0
  %8442 = vmatpush.msra.mxu0 0.0
  %8443 = vmatpush.msra.mxu0 0.0
  %8444 = vmatpush.msra.mxu0 0.0
  %8445 = vmatpush.msra.mxu0 0.0
  %8446 = vmatpush.msra.mxu0 0.0
  %8447 = vmatpush.msra.mxu0 0.0
  %8448 = vmatpush.msra.mxu0 0.0
  %8449 = vmatpush.msra.mxu0 0.0
  %8450 = vmatpush.msra.mxu0 0.0
  %8451 = vmatpush.msra.mxu0 0.0
  %8452 = vmatpush.msra.mxu0 %v69
  %8453 = vmatmul.f32.gmra.mxu0 %v8435
  %v8454 = vpop.f32.mrf.mxu0
  %v8455 = vadd.f32 0.0, %v8454
  %8456 = vdwg.mxu0
  %v8465 = vrot.slane %v8398, 7
  %v8466 = vsel %vm1316, %v8465, %v8397
  %v8467 = vrot.slane %v8399, 6
  %v8468 = vsel %vm1319, %v8467, %v8466
  %v8469 = vrot.slane %v8400, 5
  %v8470 = vsel %vm1322, %v8469, %v8468
  %v8471 = vrot.slane %v8401, 4
  %v8472 = vsel %vm1325, %v8471, %v8470
  %v8473 = vrot.slane %v8402, 3
  %v8474 = vsel %vm1328, %v8473, %v8472
  %v8475 = vrot.slane %v8403, 2
  %v8476 = vsel %vm1331, %v8475, %v8474
  %v8477 = vrot.slane %v8404, 1
  %v8478 = vsel %vm1334, %v8477, %v8476
  %v8479 = vsel %vm721, %v8478, 0
  %8481 = vmatpush.msra.mxu0 0.0
  %8482 = vmatpush.msra.mxu0 0.0
  %8483 = vmatpush.msra.mxu0 0.0
  %8484 = vmatpush.msra.mxu0 0.0
  %8485 = vmatpush.msra.mxu0 0.0
  %8486 = vmatpush.msra.mxu0 0.0
  %8487 = vmatpush.msra.mxu0 0.0
  %8488 = vmatpush.msra.mxu0 0.0
  %8489 = vmatpush.msra.mxu0 0.0
  %8490 = vmatpush.msra.mxu0 0.0
  %8491 = vmatpush.msra.mxu0 0.0
  %8492 = vmatpush.msra.mxu0 0.0
  %8493 = vmatpush.msra.mxu0 0.0
  %8494 = vmatpush.msra.mxu0 0.0
  %8495 = vmatpush.msra.mxu0 0.0
  %8496 = vmatpush.msra.mxu0 %v68
  %8497 = vmatmul.f32.gmra.mxu0 %v8479
  %v8498 = vpop.f32.mrf.mxu0
  %v8499 = vadd.f32 %v8455, %v8498
  %8500 = vdwg.mxu0
  %v8501 = vld [vmem:[#allocation3 + $0x2] sm:$0x1]
  %v8502 = vld [vmem:[#allocation3 + $0x12] sm:$0x1]
  %v8503 = vld [vmem:[#allocation3 + $0x22] sm:$0x1]
  %v8504 = vld [vmem:[#allocation3 + $0x32] sm:$0x1]
  %v8505 = vld [vmem:[#allocation3 + $0x42] sm:$0x1]
  %v8506 = vld [vmem:[#allocation3 + $0x52] sm:$0x1]
  %v8507 = vld [vmem:[#allocation3 + $0x62] sm:$0x1]
  %v8508 = vld [vmem:[#allocation3 + $0x72] sm:$0x1]
  %v8517 = vrot.slane %v8502, 7
  %v8518 = vsel %vm1316, %v8517, %v8501
  %v8519 = vrot.slane %v8503, 6
  %v8520 = vsel %vm1319, %v8519, %v8518
  %v8521 = vrot.slane %v8504, 5
  %v8522 = vsel %vm1322, %v8521, %v8520
  %v8523 = vrot.slane %v8505, 4
  %v8524 = vsel %vm1325, %v8523, %v8522
  %v8525 = vrot.slane %v8506, 3
  %v8526 = vsel %vm1328, %v8525, %v8524
  %v8527 = vrot.slane %v8507, 2
  %v8528 = vsel %vm1331, %v8527, %v8526
  %v8529 = vrot.slane %v8508, 1
  %v8530 = vsel %vm1334, %v8529, %v8528
  %v8531 = vsel %vm721, %v8530, 0
  %8533 = vmatpush.msra.mxu0 0.0
  %8534 = vmatpush.msra.mxu0 0.0
  %8535 = vmatpush.msra.mxu0 0.0
  %8536 = vmatpush.msra.mxu0 0.0
  %8537 = vmatpush.msra.mxu0 0.0
  %8538 = vmatpush.msra.mxu0 0.0
  %8539 = vmatpush.msra.mxu0 0.0
  %8540 = vmatpush.msra.mxu0 0.0
  %8541 = vmatpush.msra.mxu0 0.0
  %8542 = vmatpush.msra.mxu0 0.0
  %8543 = vmatpush.msra.mxu0 0.0
  %8544 = vmatpush.msra.mxu0 0.0
  %8545 = vmatpush.msra.mxu0 0.0
  %8546 = vmatpush.msra.mxu0 0.0
  %8547 = vmatpush.msra.mxu0 0.0
  %8548 = vmatpush.msra.mxu0 %v70
  %8549 = vmatmul.f32.gmra.mxu0 %v8531
  %v8550 = vpop.f32.mrf.mxu0
  %v8551 = vadd.f32 0.0, %v8550
  %8552 = vdwg.mxu0
  %v8553 = vadd.f32 %v8499, %v8551
  %v8554 = vld [vmem:[#allocation3 + $0x3] sm:$0x1]
  %v8555 = vld [vmem:[#allocation3 + $0x13] sm:$0x1]
  %v8556 = vld [vmem:[#allocation3 + $0x23] sm:$0x1]
  %v8557 = vld [vmem:[#allocation3 + $0x33] sm:$0x1]
  %v8558 = vld [vmem:[#allocation3 + $0x43] sm:$0x1]
  %v8559 = vld [vmem:[#allocation3 + $0x53] sm:$0x1]
  %v8560 = vld [vmem:[#allocation3 + $0x63] sm:$0x1]
  %v8561 = vld [vmem:[#allocation3 + $0x73] sm:$0x1]
  %v8570 = vrot.slane %v8555, 7
  %v8571 = vsel %vm1316, %v8570, %v8554
  %v8572 = vrot.slane %v8556, 6
  %v8573 = vsel %vm1319, %v8572, %v8571
  %v8574 = vrot.slane %v8557, 5
  %v8575 = vsel %vm1322, %v8574, %v8573
  %v8576 = vrot.slane %v8558, 4
  %v8577 = vsel %vm1325, %v8576, %v8575
  %v8578 = vrot.slane %v8559, 3
  %v8579 = vsel %vm1328, %v8578, %v8577
  %v8580 = vrot.slane %v8560, 2
  %v8581 = vsel %vm1331, %v8580, %v8579
  %v8582 = vrot.slane %v8561, 1
  %v8583 = vsel %vm1334, %v8582, %v8581
  %v8584 = vsel %vm721, %v8583, 0
  %8586 = vmatpush.msra.mxu0 0.0
  %8587 = vmatpush.msra.mxu0 0.0
  %8588 = vmatpush.msra.mxu0 0.0
  %8589 = vmatpush.msra.mxu0 0.0
  %8590 = vmatpush.msra.mxu0 0.0
  %8591 = vmatpush.msra.mxu0 0.0
  %8592 = vmatpush.msra.mxu0 0.0
  %8593 = vmatpush.msra.mxu0 0.0
  %8594 = vmatpush.msra.mxu0 0.0
  %8595 = vmatpush.msra.mxu0 0.0
  %8596 = vmatpush.msra.mxu0 0.0
  %8597 = vmatpush.msra.mxu0 0.0
  %8598 = vmatpush.msra.mxu0 0.0
  %8599 = vmatpush.msra.mxu0 0.0
  %8600 = vmatpush.msra.mxu0 0.0
  %8601 = vmatpush.msra.mxu0 %v71
  %8602 = vmatmul.f32.gmra.mxu0 %v8584
  %v8603 = vpop.f32.mrf.mxu0
  %v8604 = vadd.f32 0.0, %v8603
  %8605 = vdwg.mxu0
  %v8606 = vadd.f32 %v8553, %v8604
  %v8607 = vld [vmem:[#allocation3 + $0x4] sm:$0x1]
  %v8608 = vld [vmem:[#allocation3 + $0x14] sm:$0x1]
  %v8609 = vld [vmem:[#allocation3 + $0x24] sm:$0x1]
  %v8610 = vld [vmem:[#allocation3 + $0x34] sm:$0x1]
  %v8611 = vld [vmem:[#allocation3 + $0x44] sm:$0x1]
  %v8612 = vld [vmem:[#allocation3 + $0x54] sm:$0x1]
  %v8613 = vld [vmem:[#allocation3 + $0x64] sm:$0x1]
  %v8614 = vld [vmem:[#allocation3 + $0x74] sm:$0x1]
  %v8623 = vrot.slane %v8608, 7
  %v8624 = vsel %vm1316, %v8623, %v8607
  %v8625 = vrot.slane %v8609, 6
  %v8626 = vsel %vm1319, %v8625, %v8624
  %v8627 = vrot.slane %v8610, 5
  %v8628 = vsel %vm1322, %v8627, %v8626
  %v8629 = vrot.slane %v8611, 4
  %v8630 = vsel %vm1325, %v8629, %v8628
  %v8631 = vrot.slane %v8612, 3
  %v8632 = vsel %vm1328, %v8631, %v8630
  %v8633 = vrot.slane %v8613, 2
  %v8634 = vsel %vm1331, %v8633, %v8632
  %v8635 = vrot.slane %v8614, 1
  %v8636 = vsel %vm1334, %v8635, %v8634
  %v8637 = vsel %vm721, %v8636, 0
  %8639 = vmatpush.msra.mxu0 0.0
  %8640 = vmatpush.msra.mxu0 0.0
  %8641 = vmatpush.msra.mxu0 0.0
  %8642 = vmatpush.msra.mxu0 0.0
  %8643 = vmatpush.msra.mxu0 0.0
  %8644 = vmatpush.msra.mxu0 0.0
  %8645 = vmatpush.msra.mxu0 0.0
  %8646 = vmatpush.msra.mxu0 0.0
  %8647 = vmatpush.msra.mxu0 0.0
  %8648 = vmatpush.msra.mxu0 0.0
  %8649 = vmatpush.msra.mxu0 0.0
  %8650 = vmatpush.msra.mxu0 0.0
  %8651 = vmatpush.msra.mxu0 0.0
  %8652 = vmatpush.msra.mxu0 0.0
  %8653 = vmatpush.msra.mxu0 0.0
  %8654 = vmatpush.msra.mxu0 %v72
  %8655 = vmatmul.f32.gmra.mxu0 %v8637
  %v8656 = vpop.f32.mrf.mxu0
  %v8657 = vadd.f32 0.0, %v8656
  %8658 = vdwg.mxu0
  %v8659 = vadd.f32 %v8606, %v8657
  %v8660 = vld [vmem:[#allocation3 + $0x5] sm:$0x1]
  %v8661 = vld [vmem:[#allocation3 + $0x15] sm:$0x1]
  %v8662 = vld [vmem:[#allocation3 + $0x25] sm:$0x1]
  %v8663 = vld [vmem:[#allocation3 + $0x35] sm:$0x1]
  %v8664 = vld [vmem:[#allocation3 + $0x45] sm:$0x1]
  %v8665 = vld [vmem:[#allocation3 + $0x55] sm:$0x1]
  %v8666 = vld [vmem:[#allocation3 + $0x65] sm:$0x1]
  %v8667 = vld [vmem:[#allocation3 + $0x75] sm:$0x1]
  %v8676 = vrot.slane %v8661, 7
  %v8677 = vsel %vm1316, %v8676, %v8660
  %v8678 = vrot.slane %v8662, 6
  %v8679 = vsel %vm1319, %v8678, %v8677
  %v8680 = vrot.slane %v8663, 5
  %v8681 = vsel %vm1322, %v8680, %v8679
  %v8682 = vrot.slane %v8664, 4
  %v8683 = vsel %vm1325, %v8682, %v8681
  %v8684 = vrot.slane %v8665, 3
  %v8685 = vsel %vm1328, %v8684, %v8683
  %v8686 = vrot.slane %v8666, 2
  %v8687 = vsel %vm1331, %v8686, %v8685
  %v8688 = vrot.slane %v8667, 1
  %v8689 = vsel %vm1334, %v8688, %v8687
  %v8690 = vsel %vm721, %v8689, 0
  %8692 = vmatpush.msra.mxu0 0.0
  %8693 = vmatpush.msra.mxu0 0.0
  %8694 = vmatpush.msra.mxu0 0.0
  %8695 = vmatpush.msra.mxu0 0.0
  %8696 = vmatpush.msra.mxu0 0.0
  %8697 = vmatpush.msra.mxu0 0.0
  %8698 = vmatpush.msra.mxu0 0.0
  %8699 = vmatpush.msra.mxu0 0.0
  %8700 = vmatpush.msra.mxu0 0.0
  %8701 = vmatpush.msra.mxu0 0.0
  %8702 = vmatpush.msra.mxu0 0.0
  %8703 = vmatpush.msra.mxu0 0.0
  %8704 = vmatpush.msra.mxu0 0.0
  %8705 = vmatpush.msra.mxu0 0.0
  %8706 = vmatpush.msra.mxu0 0.0
  %8707 = vmatpush.msra.mxu0 %v73
  %8708 = vmatmul.f32.gmra.mxu0 %v8690
  %v8709 = vpop.f32.mrf.mxu0
  %v8710 = vadd.f32 0.0, %v8709
  %8711 = vdwg.mxu0
  %v8712 = vadd.f32 %v8659, %v8710
  %v8713 = vld [vmem:[#allocation3 + $0x6] sm:$0x1]
  %v8714 = vld [vmem:[#allocation3 + $0x16] sm:$0x1]
  %v8715 = vld [vmem:[#allocation3 + $0x26] sm:$0x1]
  %v8716 = vld [vmem:[#allocation3 + $0x36] sm:$0x1]
  %v8717 = vld [vmem:[#allocation3 + $0x46] sm:$0x1]
  %v8718 = vld [vmem:[#allocation3 + $0x56] sm:$0x1]
  %v8719 = vld [vmem:[#allocation3 + $0x66] sm:$0x1]
  %v8720 = vld [vmem:[#allocation3 + $0x76] sm:$0x1]
  %v8729 = vrot.slane %v8714, 7
  %v8730 = vsel %vm1316, %v8729, %v8713
  %v8731 = vrot.slane %v8715, 6
  %v8732 = vsel %vm1319, %v8731, %v8730
  %v8733 = vrot.slane %v8716, 5
  %v8734 = vsel %vm1322, %v8733, %v8732
  %v8735 = vrot.slane %v8717, 4
  %v8736 = vsel %vm1325, %v8735, %v8734
  %v8737 = vrot.slane %v8718, 3
  %v8738 = vsel %vm1328, %v8737, %v8736
  %v8739 = vrot.slane %v8719, 2
  %v8740 = vsel %vm1331, %v8739, %v8738
  %v8741 = vrot.slane %v8720, 1
  %v8742 = vsel %vm1334, %v8741, %v8740
  %v8743 = vsel %vm721, %v8742, 0
  %8745 = vmatpush.msra.mxu0 0.0
  %8746 = vmatpush.msra.mxu0 0.0
  %8747 = vmatpush.msra.mxu0 0.0
  %8748 = vmatpush.msra.mxu0 0.0
  %8749 = vmatpush.msra.mxu0 0.0
  %8750 = vmatpush.msra.mxu0 0.0
  %8751 = vmatpush.msra.mxu0 0.0
  %8752 = vmatpush.msra.mxu0 0.0
  %8753 = vmatpush.msra.mxu0 0.0
  %8754 = vmatpush.msra.mxu0 0.0
  %8755 = vmatpush.msra.mxu0 0.0
  %8756 = vmatpush.msra.mxu0 0.0
  %8757 = vmatpush.msra.mxu0 0.0
  %8758 = vmatpush.msra.mxu0 0.0
  %8759 = vmatpush.msra.mxu0 0.0
  %8760 = vmatpush.msra.mxu0 %v74
  %8761 = vmatmul.f32.gmra.mxu0 %v8743
  %v8762 = vpop.f32.mrf.mxu0
  %v8763 = vadd.f32 0.0, %v8762
  %8764 = vdwg.mxu0
  %v8765 = vadd.f32 %v8712, %v8763
  %v8766 = vld [vmem:[#allocation3 + $0x7] sm:$0x1]
  %v8767 = vld [vmem:[#allocation3 + $0x17] sm:$0x1]
  %v8768 = vld [vmem:[#allocation3 + $0x27] sm:$0x1]
  %v8769 = vld [vmem:[#allocation3 + $0x37] sm:$0x1]
  %v8770 = vld [vmem:[#allocation3 + $0x47] sm:$0x1]
  %v8771 = vld [vmem:[#allocation3 + $0x57] sm:$0x1]
  %v8772 = vld [vmem:[#allocation3 + $0x67] sm:$0x1]
  %v8773 = vld [vmem:[#allocation3 + $0x77] sm:$0x1]
  %v8782 = vrot.slane %v8767, 7
  %v8783 = vsel %vm1316, %v8782, %v8766
  %v8784 = vrot.slane %v8768, 6
  %v8785 = vsel %vm1319, %v8784, %v8783
  %v8786 = vrot.slane %v8769, 5
  %v8787 = vsel %vm1322, %v8786, %v8785
  %v8788 = vrot.slane %v8770, 4
  %v8789 = vsel %vm1325, %v8788, %v8787
  %v8790 = vrot.slane %v8771, 3
  %v8791 = vsel %vm1328, %v8790, %v8789
  %v8792 = vrot.slane %v8772, 2
  %v8793 = vsel %vm1331, %v8792, %v8791
  %v8794 = vrot.slane %v8773, 1
  %v8795 = vsel %vm1334, %v8794, %v8793
  %v8796 = vsel %vm721, %v8795, 0
  %8798 = vmatpush.msra.mxu0 0.0
  %8799 = vmatpush.msra.mxu0 0.0
  %8800 = vmatpush.msra.mxu0 0.0
  %8801 = vmatpush.msra.mxu0 0.0
  %8802 = vmatpush.msra.mxu0 0.0
  %8803 = vmatpush.msra.mxu0 0.0
  %8804 = vmatpush.msra.mxu0 0.0
  %8805 = vmatpush.msra.mxu0 0.0
  %8806 = vmatpush.msra.mxu0 0.0
  %8807 = vmatpush.msra.mxu0 0.0
  %8808 = vmatpush.msra.mxu0 0.0
  %8809 = vmatpush.msra.mxu0 0.0
  %8810 = vmatpush.msra.mxu0 0.0
  %8811 = vmatpush.msra.mxu0 0.0
  %8812 = vmatpush.msra.mxu0 0.0
  %8813 = vmatpush.msra.mxu0 %v75
  %8814 = vmatmul.f32.gmra.mxu0 %v8796
  %v8815 = vpop.f32.mrf.mxu0
  %v8816 = vadd.f32 0.0, %v8815
  %8817 = vdwg.mxu0
  %v8818 = vadd.f32 %v8765, %v8816
  %v8819 = vld [vmem:[#allocation3 + $0x8] sm:$0x1]
  %v8820 = vld [vmem:[#allocation3 + $0x18] sm:$0x1]
  %v8821 = vld [vmem:[#allocation3 + $0x28] sm:$0x1]
  %v8822 = vld [vmem:[#allocation3 + $0x38] sm:$0x1]
  %v8823 = vld [vmem:[#allocation3 + $0x48] sm:$0x1]
  %v8824 = vld [vmem:[#allocation3 + $0x58] sm:$0x1]
  %v8825 = vld [vmem:[#allocation3 + $0x68] sm:$0x1]
  %v8826 = vld [vmem:[#allocation3 + $0x78] sm:$0x1]
  %v8835 = vrot.slane %v8820, 7
  %v8836 = vsel %vm1316, %v8835, %v8819
  %v8837 = vrot.slane %v8821, 6
  %v8838 = vsel %vm1319, %v8837, %v8836
  %v8839 = vrot.slane %v8822, 5
  %v8840 = vsel %vm1322, %v8839, %v8838
  %v8841 = vrot.slane %v8823, 4
  %v8842 = vsel %vm1325, %v8841, %v8840
  %v8843 = vrot.slane %v8824, 3
  %v8844 = vsel %vm1328, %v8843, %v8842
  %v8845 = vrot.slane %v8825, 2
  %v8846 = vsel %vm1331, %v8845, %v8844
  %v8847 = vrot.slane %v8826, 1
  %v8848 = vsel %vm1334, %v8847, %v8846
  %v8849 = vsel %vm721, %v8848, 0
  %8851 = vmatpush.msra.mxu0 0.0
  %8852 = vmatpush.msra.mxu0 0.0
  %8853 = vmatpush.msra.mxu0 0.0
  %8854 = vmatpush.msra.mxu0 0.0
  %8855 = vmatpush.msra.mxu0 0.0
  %8856 = vmatpush.msra.mxu0 0.0
  %8857 = vmatpush.msra.mxu0 0.0
  %8858 = vmatpush.msra.mxu0 0.0
  %8859 = vmatpush.msra.mxu0 0.0
  %8860 = vmatpush.msra.mxu0 0.0
  %8861 = vmatpush.msra.mxu0 0.0
  %8862 = vmatpush.msra.mxu0 0.0
  %8863 = vmatpush.msra.mxu0 0.0
  %8864 = vmatpush.msra.mxu0 0.0
  %8865 = vmatpush.msra.mxu0 0.0
  %8866 = vmatpush.msra.mxu0 %v76
  %8867 = vmatmul.f32.gmra.mxu0 %v8849
  %v8868 = vpop.f32.mrf.mxu0
  %v8869 = vadd.f32 0.0, %v8868
  %8870 = vdwg.mxu0
  %v8871 = vadd.f32 %v8818, %v8869
  %v8872 = vld [vmem:[#allocation3 + $0x9] sm:$0x1]
  %v8873 = vld [vmem:[#allocation3 + $0x19] sm:$0x1]
  %v8874 = vld [vmem:[#allocation3 + $0x29] sm:$0x1]
  %v8875 = vld [vmem:[#allocation3 + $0x39] sm:$0x1]
  %v8876 = vld [vmem:[#allocation3 + $0x49] sm:$0x1]
  %v8877 = vld [vmem:[#allocation3 + $0x59] sm:$0x1]
  %v8878 = vld [vmem:[#allocation3 + $0x69] sm:$0x1]
  %v8879 = vld [vmem:[#allocation3 + $0x79] sm:$0x1]
  %v8888 = vrot.slane %v8873, 7
  %v8889 = vsel %vm1316, %v8888, %v8872
  %v8890 = vrot.slane %v8874, 6
  %v8891 = vsel %vm1319, %v8890, %v8889
  %v8892 = vrot.slane %v8875, 5
  %v8893 = vsel %vm1322, %v8892, %v8891
  %v8894 = vrot.slane %v8876, 4
  %v8895 = vsel %vm1325, %v8894, %v8893
  %v8896 = vrot.slane %v8877, 3
  %v8897 = vsel %vm1328, %v8896, %v8895
  %v8898 = vrot.slane %v8878, 2
  %v8899 = vsel %vm1331, %v8898, %v8897
  %v8900 = vrot.slane %v8879, 1
  %v8901 = vsel %vm1334, %v8900, %v8899
  %v8902 = vsel %vm721, %v8901, 0
  %8904 = vmatpush.msra.mxu0 0.0
  %8905 = vmatpush.msra.mxu0 0.0
  %8906 = vmatpush.msra.mxu0 0.0
  %8907 = vmatpush.msra.mxu0 0.0
  %8908 = vmatpush.msra.mxu0 0.0
  %8909 = vmatpush.msra.mxu0 0.0
  %8910 = vmatpush.msra.mxu0 0.0
  %8911 = vmatpush.msra.mxu0 0.0
  %8912 = vmatpush.msra.mxu0 0.0
  %8913 = vmatpush.msra.mxu0 0.0
  %8914 = vmatpush.msra.mxu0 0.0
  %8915 = vmatpush.msra.mxu0 0.0
  %8916 = vmatpush.msra.mxu0 0.0
  %8917 = vmatpush.msra.mxu0 0.0
  %8918 = vmatpush.msra.mxu0 0.0
  %8919 = vmatpush.msra.mxu0 %v77
  %8920 = vmatmul.f32.gmra.mxu0 %v8902
  %v8921 = vpop.f32.mrf.mxu0
  %v8922 = vadd.f32 0.0, %v8921
  %8923 = vdwg.mxu0
  %v8924 = vadd.f32 %v8871, %v8922
  %v8925 = vld [vmem:[#allocation3 + $0xa] sm:$0x1]
  %v8926 = vld [vmem:[#allocation3 + $0x1a] sm:$0x1]
  %v8927 = vld [vmem:[#allocation3 + $0x2a] sm:$0x1]
  %v8928 = vld [vmem:[#allocation3 + $0x3a] sm:$0x1]
  %v8929 = vld [vmem:[#allocation3 + $0x4a] sm:$0x1]
  %v8930 = vld [vmem:[#allocation3 + $0x5a] sm:$0x1]
  %v8931 = vld [vmem:[#allocation3 + $0x6a] sm:$0x1]
  %v8932 = vld [vmem:[#allocation3 + $0x7a] sm:$0x1]
  %v8941 = vrot.slane %v8926, 7
  %v8942 = vsel %vm1316, %v8941, %v8925
  %v8943 = vrot.slane %v8927, 6
  %v8944 = vsel %vm1319, %v8943, %v8942
  %v8945 = vrot.slane %v8928, 5
  %v8946 = vsel %vm1322, %v8945, %v8944
  %v8947 = vrot.slane %v8929, 4
  %v8948 = vsel %vm1325, %v8947, %v8946
  %v8949 = vrot.slane %v8930, 3
  %v8950 = vsel %vm1328, %v8949, %v8948
  %v8951 = vrot.slane %v8931, 2
  %v8952 = vsel %vm1331, %v8951, %v8950
  %v8953 = vrot.slane %v8932, 1
  %v8954 = vsel %vm1334, %v8953, %v8952
  %v8955 = vsel %vm721, %v8954, 0
  %8957 = vmatpush.msra.mxu0 0.0
  %8958 = vmatpush.msra.mxu0 0.0
  %8959 = vmatpush.msra.mxu0 0.0
  %8960 = vmatpush.msra.mxu0 0.0
  %8961 = vmatpush.msra.mxu0 0.0
  %8962 = vmatpush.msra.mxu0 0.0
  %8963 = vmatpush.msra.mxu0 0.0
  %8964 = vmatpush.msra.mxu0 0.0
  %8965 = vmatpush.msra.mxu0 0.0
  %8966 = vmatpush.msra.mxu0 0.0
  %8967 = vmatpush.msra.mxu0 0.0
  %8968 = vmatpush.msra.mxu0 0.0
  %8969 = vmatpush.msra.mxu0 0.0
  %8970 = vmatpush.msra.mxu0 0.0
  %8971 = vmatpush.msra.mxu0 0.0
  %8972 = vmatpush.msra.mxu0 %v78
  %8973 = vmatmul.f32.gmra.mxu0 %v8955
  %v8974 = vpop.f32.mrf.mxu0
  %v8975 = vadd.f32 0.0, %v8974
  %8976 = vdwg.mxu0
  %v8977 = vadd.f32 %v8924, %v8975
  %v8978 = vld [vmem:[#allocation3 + $0xb] sm:$0x1]
  %v8979 = vld [vmem:[#allocation3 + $0x1b] sm:$0x1]
  %v8980 = vld [vmem:[#allocation3 + $0x2b] sm:$0x1]
  %v8981 = vld [vmem:[#allocation3 + $0x3b] sm:$0x1]
  %v8982 = vld [vmem:[#allocation3 + $0x4b] sm:$0x1]
  %v8983 = vld [vmem:[#allocation3 + $0x5b] sm:$0x1]
  %v8984 = vld [vmem:[#allocation3 + $0x6b] sm:$0x1]
  %v8985 = vld [vmem:[#allocation3 + $0x7b] sm:$0x1]
  %v8994 = vrot.slane %v8979, 7
  %v8995 = vsel %vm1316, %v8994, %v8978
  %v8996 = vrot.slane %v8980, 6
  %v8997 = vsel %vm1319, %v8996, %v8995
  %v8998 = vrot.slane %v8981, 5
  %v8999 = vsel %vm1322, %v8998, %v8997
  %v9000 = vrot.slane %v8982, 4
  %v9001 = vsel %vm1325, %v9000, %v8999
  %v9002 = vrot.slane %v8983, 3
  %v9003 = vsel %vm1328, %v9002, %v9001
  %v9004 = vrot.slane %v8984, 2
  %v9005 = vsel %vm1331, %v9004, %v9003
  %v9006 = vrot.slane %v8985, 1
  %v9007 = vsel %vm1334, %v9006, %v9005
  %v9008 = vsel %vm721, %v9007, 0
  %9010 = vmatpush.msra.mxu0 0.0
  %9011 = vmatpush.msra.mxu0 0.0
  %9012 = vmatpush.msra.mxu0 0.0
  %9013 = vmatpush.msra.mxu0 0.0
  %9014 = vmatpush.msra.mxu0 0.0
  %9015 = vmatpush.msra.mxu0 0.0
  %9016 = vmatpush.msra.mxu0 0.0
  %9017 = vmatpush.msra.mxu0 0.0
  %9018 = vmatpush.msra.mxu0 0.0
  %9019 = vmatpush.msra.mxu0 0.0
  %9020 = vmatpush.msra.mxu0 0.0
  %9021 = vmatpush.msra.mxu0 0.0
  %9022 = vmatpush.msra.mxu0 0.0
  %9023 = vmatpush.msra.mxu0 0.0
  %9024 = vmatpush.msra.mxu0 0.0
  %9025 = vmatpush.msra.mxu0 %v79
  %9026 = vmatmul.f32.gmra.mxu0 %v9008
  %v9027 = vpop.f32.mrf.mxu0
  %v9028 = vadd.f32 0.0, %v9027
  %9029 = vdwg.mxu0
  %v9030 = vadd.f32 %v8977, %v9028
  %v9031 = vld [vmem:[#allocation3 + $0xc] sm:$0x1]
  %v9032 = vld [vmem:[#allocation3 + $0x1c] sm:$0x1]
  %v9033 = vld [vmem:[#allocation3 + $0x2c] sm:$0x1]
  %v9034 = vld [vmem:[#allocation3 + $0x3c] sm:$0x1]
  %v9035 = vld [vmem:[#allocation3 + $0x4c] sm:$0x1]
  %v9036 = vld [vmem:[#allocation3 + $0x5c] sm:$0x1]
  %v9037 = vld [vmem:[#allocation3 + $0x6c] sm:$0x1]
  %v9038 = vld [vmem:[#allocation3 + $0x7c] sm:$0x1]
  %v9047 = vrot.slane %v9032, 7
  %v9048 = vsel %vm1316, %v9047, %v9031
  %v9049 = vrot.slane %v9033, 6
  %v9050 = vsel %vm1319, %v9049, %v9048
  %v9051 = vrot.slane %v9034, 5
  %v9052 = vsel %vm1322, %v9051, %v9050
  %v9053 = vrot.slane %v9035, 4
  %v9054 = vsel %vm1325, %v9053, %v9052
  %v9055 = vrot.slane %v9036, 3
  %v9056 = vsel %vm1328, %v9055, %v9054
  %v9057 = vrot.slane %v9037, 2
  %v9058 = vsel %vm1331, %v9057, %v9056
  %v9059 = vrot.slane %v9038, 1
  %v9060 = vsel %vm1334, %v9059, %v9058
  %v9061 = vsel %vm721, %v9060, 0
  %9063 = vmatpush.msra.mxu0 0.0
  %9064 = vmatpush.msra.mxu0 0.0
  %9065 = vmatpush.msra.mxu0 0.0
  %9066 = vmatpush.msra.mxu0 0.0
  %9067 = vmatpush.msra.mxu0 0.0
  %9068 = vmatpush.msra.mxu0 0.0
  %9069 = vmatpush.msra.mxu0 0.0
  %9070 = vmatpush.msra.mxu0 0.0
  %9071 = vmatpush.msra.mxu0 0.0
  %9072 = vmatpush.msra.mxu0 0.0
  %9073 = vmatpush.msra.mxu0 0.0
  %9074 = vmatpush.msra.mxu0 0.0
  %9075 = vmatpush.msra.mxu0 0.0
  %9076 = vmatpush.msra.mxu0 0.0
  %9077 = vmatpush.msra.mxu0 0.0
  %9078 = vmatpush.msra.mxu0 %v80
  %9079 = vmatmul.f32.gmra.mxu0 %v9061
  %v9080 = vpop.f32.mrf.mxu0
  %v9081 = vadd.f32 0.0, %v9080
  %9082 = vdwg.mxu0
  %v9083 = vadd.f32 %v9030, %v9081
  %v9084 = vld [vmem:[#allocation3 + $0xd] sm:$0x1]
  %v9085 = vld [vmem:[#allocation3 + $0x1d] sm:$0x1]
  %v9086 = vld [vmem:[#allocation3 + $0x2d] sm:$0x1]
  %v9087 = vld [vmem:[#allocation3 + $0x3d] sm:$0x1]
  %v9088 = vld [vmem:[#allocation3 + $0x4d] sm:$0x1]
  %v9089 = vld [vmem:[#allocation3 + $0x5d] sm:$0x1]
  %v9090 = vld [vmem:[#allocation3 + $0x6d] sm:$0x1]
  %v9091 = vld [vmem:[#allocation3 + $0x7d] sm:$0x1]
  %v9100 = vrot.slane %v9085, 7
  %v9101 = vsel %vm1316, %v9100, %v9084
  %v9102 = vrot.slane %v9086, 6
  %v9103 = vsel %vm1319, %v9102, %v9101
  %v9104 = vrot.slane %v9087, 5
  %v9105 = vsel %vm1322, %v9104, %v9103
  %v9106 = vrot.slane %v9088, 4
  %v9107 = vsel %vm1325, %v9106, %v9105
  %v9108 = vrot.slane %v9089, 3
  %v9109 = vsel %vm1328, %v9108, %v9107
  %v9110 = vrot.slane %v9090, 2
  %v9111 = vsel %vm1331, %v9110, %v9109
  %v9112 = vrot.slane %v9091, 1
  %v9113 = vsel %vm1334, %v9112, %v9111
  %v9114 = vsel %vm721, %v9113, 0
  %9116 = vmatpush.msra.mxu0 0.0
  %9117 = vmatpush.msra.mxu0 0.0
  %9118 = vmatpush.msra.mxu0 0.0
  %9119 = vmatpush.msra.mxu0 0.0
  %9120 = vmatpush.msra.mxu0 0.0
  %9121 = vmatpush.msra.mxu0 0.0
  %9122 = vmatpush.msra.mxu0 0.0
  %9123 = vmatpush.msra.mxu0 0.0
  %9124 = vmatpush.msra.mxu0 0.0
  %9125 = vmatpush.msra.mxu0 0.0
  %9126 = vmatpush.msra.mxu0 0.0
  %9127 = vmatpush.msra.mxu0 0.0
  %9128 = vmatpush.msra.mxu0 0.0
  %9129 = vmatpush.msra.mxu0 0.0
  %9130 = vmatpush.msra.mxu0 0.0
  %9131 = vmatpush.msra.mxu0 %v81
  %9132 = vmatmul.f32.gmra.mxu0 %v9114
  %v9133 = vpop.f32.mrf.mxu0
  %v9134 = vadd.f32 0.0, %v9133
  %9135 = vdwg.mxu0
  %v9136 = vadd.f32 %v9083, %v9134
  %v9137 = vld [vmem:[#allocation3 + $0xe] sm:$0x1]
  %v9138 = vld [vmem:[#allocation3 + $0x1e] sm:$0x1]
  %v9139 = vld [vmem:[#allocation3 + $0x2e] sm:$0x1]
  %v9140 = vld [vmem:[#allocation3 + $0x3e] sm:$0x1]
  %v9141 = vld [vmem:[#allocation3 + $0x4e] sm:$0x1]
  %v9142 = vld [vmem:[#allocation3 + $0x5e] sm:$0x1]
  %v9143 = vld [vmem:[#allocation3 + $0x6e] sm:$0x1]
  %v9144 = vld [vmem:[#allocation3 + $0x7e] sm:$0x1]
  %v9153 = vrot.slane %v9138, 7
  %v9154 = vsel %vm1316, %v9153, %v9137
  %v9155 = vrot.slane %v9139, 6
  %v9156 = vsel %vm1319, %v9155, %v9154
  %v9157 = vrot.slane %v9140, 5
  %v9158 = vsel %vm1322, %v9157, %v9156
  %v9159 = vrot.slane %v9141, 4
  %v9160 = vsel %vm1325, %v9159, %v9158
  %v9161 = vrot.slane %v9142, 3
  %v9162 = vsel %vm1328, %v9161, %v9160
  %v9163 = vrot.slane %v9143, 2
  %v9164 = vsel %vm1331, %v9163, %v9162
  %v9165 = vrot.slane %v9144, 1
  %v9166 = vsel %vm1334, %v9165, %v9164
  %v9167 = vsel %vm721, %v9166, 0
  %9169 = vmatpush.msra.mxu0 0.0
  %9170 = vmatpush.msra.mxu0 0.0
  %9171 = vmatpush.msra.mxu0 0.0
  %9172 = vmatpush.msra.mxu0 0.0
  %9173 = vmatpush.msra.mxu0 0.0
  %9174 = vmatpush.msra.mxu0 0.0
  %9175 = vmatpush.msra.mxu0 0.0
  %9176 = vmatpush.msra.mxu0 0.0
  %9177 = vmatpush.msra.mxu0 0.0
  %9178 = vmatpush.msra.mxu0 0.0
  %9179 = vmatpush.msra.mxu0 0.0
  %9180 = vmatpush.msra.mxu0 0.0
  %9181 = vmatpush.msra.mxu0 0.0
  %9182 = vmatpush.msra.mxu0 0.0
  %9183 = vmatpush.msra.mxu0 0.0
  %9184 = vmatpush.msra.mxu0 %v82
  %9185 = vmatmul.f32.gmra.mxu0 %v9167
  %v9186 = vpop.f32.mrf.mxu0
  %v9187 = vadd.f32 0.0, %v9186
  %9188 = vdwg.mxu0
  %v9189 = vadd.f32 %v9136, %v9187
  %v9190 = vld [vmem:[#allocation3 + $0xf] sm:$0x1]
  %v9191 = vld [vmem:[#allocation3 + $0x1f] sm:$0x1]
  %v9192 = vld [vmem:[#allocation3 + $0x2f] sm:$0x1]
  %v9193 = vld [vmem:[#allocation3 + $0x3f] sm:$0x1]
  %v9194 = vld [vmem:[#allocation3 + $0x4f] sm:$0x1]
  %v9195 = vld [vmem:[#allocation3 + $0x5f] sm:$0x1]
  %v9196 = vld [vmem:[#allocation3 + $0x6f] sm:$0x1]
  %v9197 = vld [vmem:[#allocation3 + $0x7f] sm:$0x1]
  %v9206 = vrot.slane %v9191, 7
  %v9207 = vsel %vm1316, %v9206, %v9190
  %v9208 = vrot.slane %v9192, 6
  %v9209 = vsel %vm1319, %v9208, %v9207
  %v9210 = vrot.slane %v9193, 5
  %v9211 = vsel %vm1322, %v9210, %v9209
  %v9212 = vrot.slane %v9194, 4
  %v9213 = vsel %vm1325, %v9212, %v9211
  %v9214 = vrot.slane %v9195, 3
  %v9215 = vsel %vm1328, %v9214, %v9213
  %v9216 = vrot.slane %v9196, 2
  %v9217 = vsel %vm1331, %v9216, %v9215
  %v9218 = vrot.slane %v9197, 1
  %v9219 = vsel %vm1334, %v9218, %v9217
  %v9220 = vsel %vm721, %v9219, 0
  %9222 = vmatpush.msra.mxu0 0.0
  %9223 = vmatpush.msra.mxu0 0.0
  %9224 = vmatpush.msra.mxu0 0.0
  %9225 = vmatpush.msra.mxu0 0.0
  %9226 = vmatpush.msra.mxu0 0.0
  %9227 = vmatpush.msra.mxu0 0.0
  %9228 = vmatpush.msra.mxu0 0.0
  %9229 = vmatpush.msra.mxu0 0.0
  %9230 = vmatpush.msra.mxu0 0.0
  %9231 = vmatpush.msra.mxu0 0.0
  %9232 = vmatpush.msra.mxu0 0.0
  %9233 = vmatpush.msra.mxu0 0.0
  %9234 = vmatpush.msra.mxu0 0.0
  %9235 = vmatpush.msra.mxu0 0.0
  %9236 = vmatpush.msra.mxu0 0.0
  %9237 = vmatpush.msra.mxu0 %v83
  %9238 = vmatmul.f32.gmra.mxu0 %v9220
  %v9239 = vpop.f32.mrf.mxu0
  %v9240 = vadd.f32 0.0, %v9239
  %9241 = vdwg.mxu0
  %v9242 = vadd.f32 %v9189, %v9240
  %v9243 = vadd.f32 %v9242, %v2145
  %v9244 = vmax.f32 %v9243, 0.0
  %9245 = vset.pattern.permute.xlu0 0
  %9246 = vperm.xlu0 %9245, %v7245
  %v9247 = vpop.permute.xlu0 %9246
  %v9249 = vperm.slane %v9247, 0
  %9250 = vset.pattern.permute.xlu0 0
  %9251 = vperm.xlu0 %9250, %v7246
  %v9252 = vpop.permute.xlu0 %9251
  %v9254 = vperm.slane %v9252, 0
  %9255 = vset.pattern.permute.xlu0 0
  %9256 = vperm.xlu0 %9255, %v7247
  %v9257 = vpop.permute.xlu0 %9256
  %v9259 = vperm.slane %v9257, 0
  %9260 = vset.pattern.permute.xlu0 0
  %9261 = vperm.xlu0 %9260, %v7248
  %v9262 = vpop.permute.xlu0 %9261
  %v9264 = vperm.slane %v9262, 0
  %9265 = vset.pattern.permute.xlu0 0
  %9266 = vperm.xlu0 %9265, %v7249
  %v9267 = vpop.permute.xlu0 %9266
  %v9269 = vperm.slane %v9267, 0
  %9270 = vset.pattern.permute.xlu0 0
  %9271 = vperm.xlu0 %9270, %v7250
  %v9272 = vpop.permute.xlu0 %9271
  %v9274 = vperm.slane %v9272, 0
  %9275 = vset.pattern.permute.xlu0 0
  %9276 = vperm.xlu0 %9275, %v7251
  %v9277 = vpop.permute.xlu0 %9276
  %v9279 = vperm.slane %v9277, 0
  %9280 = vset.pattern.permute.xlu0 0
  %9281 = vperm.xlu0 %9280, %v7252
  %v9282 = vpop.permute.xlu0 %9281
  %v9284 = vperm.slane %v9282, 0
  %v9285 = vmul.f32 %v9249, %v2189
  %v9286 = vmul.f32 %v9254, %v2191
  %v9287 = vmul.f32 %v9259, %v2192
  %v9288 = vmul.f32 %v9264, %v2193
  %v9289 = vmul.f32 %v9269, %v2194
  %v9290 = vmul.f32 %v9274, %v2195
  %v9291 = vmul.f32 %v9279, %v2196
  %v9292 = vmul.f32 %v9284, %v2197
  %9293 = vset.pattern.permute.xlu0 1
  %9294 = vperm.xlu0 %9293, %v7245
  %v9295 = vpop.permute.xlu0 %9294
  %v9297 = vperm.slane %v9295, 0
  %9298 = vset.pattern.permute.xlu0 1
  %9299 = vperm.xlu0 %9298, %v7246
  %v9300 = vpop.permute.xlu0 %9299
  %v9302 = vperm.slane %v9300, 0
  %9303 = vset.pattern.permute.xlu0 1
  %9304 = vperm.xlu0 %9303, %v7247
  %v9305 = vpop.permute.xlu0 %9304
  %v9307 = vperm.slane %v9305, 0
  %9308 = vset.pattern.permute.xlu0 1
  %9309 = vperm.xlu0 %9308, %v7248
  %v9310 = vpop.permute.xlu0 %9309
  %v9312 = vperm.slane %v9310, 0
  %9313 = vset.pattern.permute.xlu0 1
  %9314 = vperm.xlu0 %9313, %v7249
  %v9315 = vpop.permute.xlu0 %9314
  %v9317 = vperm.slane %v9315, 0
  %9318 = vset.pattern.permute.xlu0 1
  %9319 = vperm.xlu0 %9318, %v7250
  %v9320 = vpop.permute.xlu0 %9319
  %v9322 = vperm.slane %v9320, 0
  %9323 = vset.pattern.permute.xlu0 1
  %9324 = vperm.xlu0 %9323, %v7251
  %v9325 = vpop.permute.xlu0 %9324
  %v9327 = vperm.slane %v9325, 0
  %9328 = vset.pattern.permute.xlu0 1
  %9329 = vperm.xlu0 %9328, %v7252
  %v9330 = vpop.permute.xlu0 %9329
  %v9332 = vperm.slane %v9330, 0
  %v9333 = vmul.f32 %v9297, %v2253
  %v9334 = vmul.f32 %v9302, %v2255
  %v9335 = vmul.f32 %v9307, %v2256
  %v9336 = vmul.f32 %v9312, %v2257
  %v9337 = vmul.f32 %v9317, %v2258
  %v9338 = vmul.f32 %v9322, %v2259
  %v9339 = vmul.f32 %v9327, %v2260
  %v9340 = vmul.f32 %v9332, %v2261
  %v9341 = vadd.f32 %v9285, %v9333
  %v9342 = vadd.f32 %v9286, %v9334
  %v9343 = vadd.f32 %v9287, %v9335
  %v9344 = vadd.f32 %v9288, %v9336
  %v9345 = vadd.f32 %v9289, %v9337
  %v9346 = vadd.f32 %v9290, %v9338
  %v9347 = vadd.f32 %v9291, %v9339
  %v9348 = vadd.f32 %v9292, %v9340
  %v9349 = vadd.f32 %v9341, %v2286
  %v9350 = vadd.f32 %v9342, %v2288
  %v9351 = vadd.f32 %v9343, %v2289
  %v9352 = vadd.f32 %v9344, %v2290
  %v9353 = vadd.f32 %v9345, %v2291
  %v9354 = vadd.f32 %v9346, %v2292
  %v9355 = vadd.f32 %v9347, %v2293
  %v9356 = vadd.f32 %v9348, %v2294
  %v9357 = vmax.f32 %v9349, 0.0
  %v9358 = vmax.f32 %v9350, 0.0
  %v9359 = vmax.f32 %v9351, 0.0
  %v9360 = vmax.f32 %v9352, 0.0
  %v9361 = vmax.f32 %v9353, 0.0
  %v9362 = vmax.f32 %v9354, 0.0
  %v9363 = vmax.f32 %v9355, 0.0
  %v9364 = vmax.f32 %v9356, 0.0
  %9373 = vst [vmem:[#allocation1] ss:$9 sm:$0xff] %v9357
  %s9374 = scalar_lea.vmem [#allocation1], 1
  %9375 = vst [vmem:[%s9374] ss:$9 sm:$0xff] %v9358
  %s9376 = scalar_lea.vmem [#allocation1], 2
  %9377 = vst [vmem:[%s9376] ss:$9 sm:$0xff] %v9359
  %s9378 = scalar_lea.vmem [#allocation1], 3
  %9379 = vst [vmem:[%s9378] ss:$9 sm:$0xff] %v9360
  %s9380 = scalar_lea.vmem [#allocation1], 4
  %9381 = vst [vmem:[%s9380] ss:$9 sm:$0xff] %v9361
  %s9382 = scalar_lea.vmem [#allocation1], 5
  %9383 = vst [vmem:[%s9382] ss:$9 sm:$0xff] %v9362
  %s9384 = scalar_lea.vmem [#allocation1], 6
  %9385 = vst [vmem:[%s9384] ss:$9 sm:$0xff] %v9363
  %s9386 = scalar_lea.vmem [#allocation1], 7
  %9387 = vst [vmem:[%s9386] ss:$9 sm:$0xff] %v9364
  %v9388 = vld [vmem:[#allocation1] sm:$0xff]
  %v9389 = vsel %vm2342, %v9388, 0
  %9391 = vmatpush.msra.mxu0 0.0
  %9392 = vmatpush.msra.mxu0 0.0
  %9393 = vmatpush.msra.mxu0 0.0
  %9394 = vmatpush.msra.mxu0 0.0
  %9395 = vmatpush.msra.mxu0 0.0
  %9396 = vmatpush.msra.mxu0 0.0
  %9397 = vmatpush.msra.mxu0 0.0
  %9398 = vmatpush.msra.mxu0 0.0
  %9399 = vmatpush.msra.mxu0 0.0
  %9400 = vmatpush.msra.mxu0 0.0
  %9401 = vmatpush.msra.mxu0 0.0
  %9402 = vmatpush.msra.mxu0 0.0
  %9403 = vmatpush.msra.mxu0 %v94
  %9404 = vmatpush.msra.mxu0 %v93
  %9405 = vmatpush.msra.mxu0 %v92
  %9406 = vmatpush.msra.mxu0 %v91
  %9407 = vmatmul.f32.gmra.mxu0 %v9389
  %v9408 = vpop.f32.mrf.mxu0
  %v9409 = vadd.f32 0.0, %v9408
  %9410 = vdwg.mxu0
  %v9412 = vsel %vm2342, %v9244, 0
  %9414 = vmatpush.msra.mxu0 0.0
  %9415 = vmatpush.msra.mxu0 0.0
  %9416 = vmatpush.msra.mxu0 0.0
  %9417 = vmatpush.msra.mxu0 0.0
  %9418 = vmatpush.msra.mxu0 0.0
  %9419 = vmatpush.msra.mxu0 0.0
  %9420 = vmatpush.msra.mxu0 0.0
  %9421 = vmatpush.msra.mxu0 0.0
  %9422 = vmatpush.msra.mxu0 0.0
  %9423 = vmatpush.msra.mxu0 0.0
  %9424 = vmatpush.msra.mxu0 0.0
  %9425 = vmatpush.msra.mxu0 0.0
  %9426 = vmatpush.msra.mxu0 %v90
  %9427 = vmatpush.msra.mxu0 %v89
  %9428 = vmatpush.msra.mxu0 %v88
  %9429 = vmatpush.msra.mxu0 %v87
  %9430 = vmatmul.f32.gmra.mxu0 %v9412
  %v9431 = vpop.f32.mrf.mxu0
  %v9432 = vadd.f32 %v9409, %v9431
  %9433 = vdwg.mxu0
  %v9434 = vadd.f32 %v9432, %v2389
  %v9435 = vmax.f32 %v9434, 0.0
  %9436 = vmatpush.msra.mxu0 0.0
  %9437 = vmatpush.msra.mxu0 0.0
  %9438 = vmatpush.msra.mxu0 0.0
  %9439 = vmatpush.msra.mxu0 0.0
  %9440 = vmatpush.msra.mxu0 0.0
  %9441 = vmatpush.msra.mxu0 0.0
  %9442 = vmatpush.msra.mxu0 0.0
  %9443 = vmatpush.msra.mxu0 0.0
  %9444 = vmatpush.msra.mxu0 0.0
  %9445 = vmatpush.msra.mxu0 0.0
  %9446 = vmatpush.msra.mxu0 0.0
  %9447 = vmatpush.msra.mxu0 0.0
  %9448 = vmatpush.msra.mxu0 %v103
  %9449 = vmatpush.msra.mxu0 %v102
  %9450 = vmatpush.msra.mxu0 %v101
  %9451 = vmatpush.msra.mxu0 %v100
  %9452 = vmatmul.f32.gmra.mxu0 %v7178
  %v9453 = vpop.f32.mrf.mxu0
  %v9454 = vadd.f32 0.0, %v9453
  %9455 = vdwg.mxu0
  %v9457 = vsel %vm2342, %v9435, 0
  %9459 = vmatpush.msra.mxu0 0.0
  %9460 = vmatpush.msra.mxu0 0.0
  %9461 = vmatpush.msra.mxu0 0.0
  %9462 = vmatpush.msra.mxu0 0.0
  %9463 = vmatpush.msra.mxu0 0.0
  %9464 = vmatpush.msra.mxu0 0.0
  %9465 = vmatpush.msra.mxu0 0.0
  %9466 = vmatpush.msra.mxu0 0.0
  %9467 = vmatpush.msra.mxu0 0.0
  %9468 = vmatpush.msra.mxu0 0.0
  %9469 = vmatpush.msra.mxu0 0.0
  %9470 = vmatpush.msra.mxu0 0.0
  %9471 = vmatpush.msra.mxu0 %v99
  %9472 = vmatpush.msra.mxu0 %v98
  %9473 = vmatpush.msra.mxu0 %v97
  %9474 = vmatpush.msra.mxu0 %v96
  %9475 = vmatmul.f32.gmra.mxu0 %v9457
  %v9476 = vpop.f32.mrf.mxu0
  %v9477 = vadd.f32 %v9454, %v9476
  %9478 = vdwg.mxu0
  %v9479 = vadd.f32 %v9477, %v2440
  %v9480 = vxor.u32 %v9479, 2147483648
  %v9481 = vmul.f32 %v9480, 1.442695
  %v9482 = vpow.pop %v9481
  %v9483 = vadd.f32 %v9482, 1.0
  %v9484 = vrcp.pop %v9483
  %v9485 = vmul.f32 %v9483, %v9484
  %v9486 = vsub.f32 1.0, %v9485
  %v9487 = vmul.f32 %v9484, %v9486
  %v9488 = vadd.f32 %v9484, %v9487
  %vm9489 = vweird.f32 %v9483
  %vm9490 = vweird.f32 %v9484
  %vm9491 = vmor %vm9489, %vm9490
  %v9492 = vsel %vm9491, %v9484, %v9488
  %v9493 = vand.u32 2147483647, %v9483
  %vm9494 = vcmp.eq.f32.partialorder %v9493, 8.507059e+37
  %v9495 = vand.u32 %v9483, 2147483648
  %v9496 = vor.u32 1.1754944e-38, %v9495
  %v9497 = vsel %vm9494, %v9496, %v9492
  %v9498 = vmul.f32 1.0, %v9497
  %v9499 = vtanh.pop %v9479
  %v9500 = vmul.f32 %v9498, %v7168
  %9502 = vrot.lane.b32.xlu0 %v9499, 64
  %v9503 = vpop.permute.xlu0 %9502
  %v9505 = vmul.f32 %v9498, %v9503
  %9507 = vrot.lane.b32.xlu0 %v9505, 32
  %v9508 = vpop.permute.xlu0 %9507
  %v9510 = vadd.f32 %v9500, %v9508
  %v9511 = vtanh.pop %v9510
  %9513 = vrot.lane.b32.xlu0 %v9511, 64
  %v9514 = vpop.permute.xlu0 %9513
  %v9516 = vmul.f32 %v9498, %v9514
  %9518 = vrot.lane.b32.xlu0 %v9516, 32
  %v9519 = vpop.permute.xlu0 %9518
  %v9520 = vsel %vm2342, %v9519, 0
  %9522 = vmatpush.msra.mxu0 0.0
  %9523 = vmatpush.msra.mxu0 0.0
  %9524 = vmatpush.msra.mxu0 0.0
  %9525 = vmatpush.msra.mxu0 0.0
  %9526 = vmatpush.msra.mxu0 0.0
  %9527 = vmatpush.msra.mxu0 0.0
  %9528 = vmatpush.msra.mxu0 0.0
  %9529 = vmatpush.msra.mxu0 0.0
  %9530 = vmatpush.msra.mxu0 0.0
  %9531 = vmatpush.msra.mxu0 0.0
  %9532 = vmatpush.msra.mxu0 0.0
  %9533 = vmatpush.msra.mxu0 0.0
  %9534 = vmatpush.msra.mxu0 %v108
  %9535 = vmatpush.msra.mxu0 %v107
  %9536 = vmatpush.msra.mxu0 %v106
  %9537 = vmatpush.msra.mxu0 %v105
  %9538 = vmatmul.f32.gmra.mxu0 %v9520
  %v9539 = vpop.f32.mrf.mxu0
  %v9540 = vadd.f32 %v2481, %v9539
  %9541 = vdwg.mxu0
  %v9542 = vtanh.pop %v9540
  %s9543 = scalar_lea.vmem %s2, 24
  %v9544 = vld [vmem:[%s9543] sm:$0xff]
  %v9545 = vmul.f32 %v9544, 0.2
  %v9546 = vadd.f32 %v9542, %v9545
  %v9547 = vsub.f32 %v9546, %v9542
  %v9548 = vmul.f32 %v9547, %v2519
  %v9549 = vmul.f32 %v9548, %v9548
  %v9550 = vmul.f32 %v9549, -0.5
  %v9551 = vsub.f32 %v9550, -1.609438
  %v9552 = vsub.f32 %v9551, 0.9189385
  %v9553 = vsel %vm2525, %v9552, 0.0
  %9554 = vadd.xlane.f32.xlu0 %v9553
  %v9555 = vpop.xlane.xlu0 %9554
  %v9557 = vrot.slane %v9546, 1
  %v9558 = vrot.slane %v9546, 2
  %v9559 = vrot.slane %v9546, 3
  %v9560 = vrot.slane %v9546, 4
  %v9561 = vrot.slane %v9546, 5
  %v9562 = vrot.slane %v9546, 6
  %v9563 = vrot.slane %v9546, 7
  %9571 = vst.msk [vmem:[#allocation2] sm:$0x1] %vm118, %v9546
  %9572 = vst.msk [vmem:[#allocation2 + $0x1] sm:$0x1] %vm118, %v9557
  %9573 = vst.msk [vmem:[#allocation2 + $0x2] sm:$0x1] %vm118, %v9558
  %9574 = vst.msk [vmem:[#allocation2 + $0x3] sm:$0x1] %vm118, %v9559
  %9575 = vst.msk [vmem:[#allocation2 + $0x4] sm:$0x1] %vm118, %v9560
  %9576 = vst.msk [vmem:[#allocation2 + $0x5] sm:$0x1] %vm118, %v9561
  %9577 = vst.msk [vmem:[#allocation2 + $0x6] sm:$0x1] %vm118, %v9562
  %9578 = vst.msk [vmem:[#allocation2 + $0x7] sm:$0x1] %vm118, %v9563
  %9580 = vrot.lane.b32.xlu0 %v9540, 1
  %v9581 = vpop.permute.xlu0 %9580
  %v9583 = vsel %vm2525, %v9546, %v9555
  %v9584 = vsel %vm2557, %v9583, %v9581
  %s9585 = scalar_lea.vmem %s16, 24
  %9586 = vst.msk [vmem:[%s9585] sm:$0xff] %vm2559, %v9584
  %vm9587 = vcmask 105496
  %v9588 = vsel %vm9587, %v9540, -inf
  %9589 = vmax.xlane.f32.xlu0 %v9588
  %v9590 = vpop.xlane.xlu0 %9589
  %v9591 = vsub.f32 %v9540, %v9590
  %v9592 = vmul.f32 %v9591, 1.442695
  %v9593 = vpow.pop %v9592
  %9595 = vrot.lane.b32.xlu0 %v9593, 125
  %v9596 = vpop.permute.xlu0 %9595
  %vm9598 = vcmask 80896
  %v9599 = vsel %vm9598, %v9596, 0.0
  %9600 = vadd.xlane.f32.xlu0 %v9599
  %v9601 = vpop.xlane.xlu0 %9600
  %v9602 = vlog2.pop %v9601
  %v9603 = vmul.f32 %v9602, 0.6931472
  %v9604 = vadd.f32 %v9590, %v9603
  %v9605 = vsub.f32 %v9540, %v9604
  %9607 = vrot.lane.b32.xlu0 %v9605, 125
  %v9608 = vpop.permute.xlu0 %9607
  %9610 = vst.msk [vmem:[%s15] sm:$0xff] %vm9598, %v9608
  // Predicated region
  $region62: #{ram_forward.3} parent=0 // pred_check
    _
  $region63: #{ram_forward.3} parent=0 // pred_check_branch
    %9612 = sbr.rel (0) target = $region65
  $region64: #{ram_forward.3} parent=0 // pred_region
    _
  $region65: #{ram_forward.3} parent=0 // pred_fallthru
    _
  // Predicated region
  $region66: #{ram_forward.3} parent=0 // pred_check
    _
  $region67: #{ram_forward.3} parent=0 // pred_check_branch
    %9614 = sbr.rel (0) target = $region69
  $region68: #{ram_forward.3} parent=0 // pred_region
    _
  $region69: #{ram_forward.3} parent=0 // pred_fallthru
    _
  // Predicated region
  $region70: #{ram_forward.3} parent=0 // pred_check
    _
  $region71: #{ram_forward.3} parent=0 // pred_check_branch
    %9616 = sbr.rel (0) target = $region73
  $region72: #{ram_forward.3} parent=0 // pred_region
    _
  $region73: #{ram_forward.3} parent=0 // pred_fallthru
    _
  // Predicated region
  $region74: #{ram_forward.3} parent=0 // pred_check
    _
  $region75: #{ram_forward.3} parent=0 // pred_check_branch
    %9618 = sbr.rel (0) target = $region77
  $region76: #{ram_forward.3} parent=0 // pred_region
    _
  $region77: #{ram_forward.3} parent=0 // pred_fallthru
    _

</llo_original>
